<compile_context>
chip_gen: v6e
topology: v6e:2x2x1
jax: 0.10.0
libtpu: 0.0.40
codegen_flags: <defaults>
</compile_context>

<pallas_src>
import numpy as np
import jax
import jax.numpy as jnp
from jax.experimental import pallas as pl
from jax.experimental.pallas import tpu as pltpu

# ----------------------------- model config ---------------------------------
DEPTH = 2      # hourglass recursion depth
NFEAT = 8      # channels
NMODULES = 1   # resblocks per residual branch


# --------------------------------------------------------------------------
# Host-side constant builders (numpy, run once at setup, outside jit).
# --------------------------------------------------------------------------
def _band_conv(w9, Wres):
    """(9, C, C) taps (k = ky*3+kx, input (y+ky-1, x+kx-1) -> output (y, x)) ->
    (3, W*C, W*C) lane-dense block-banded weights, one matrix per ky.  The kx offsets
    and the zero padding at the left/right image edges are folded into the band."""
    C = w9.shape[1]
    L = Wres * C
    out = np.zeros((3, L, L), np.float32)
    for ky in range(3):
        for kx in range(3):
            blk = w9[ky * 3 + kx]
            for xo in range(Wres):
                xi = xo + kx - 1
                if 0 <= xi < Wres:
                    out[ky, xi * C:(xi + 1) * C, xo * C:(xo + 1) * C] = blk
    return out


def _lane_bias(b, Wres):
    """(C,) per-channel bias -> (1, W*C) lane-dense bias row."""
    return np.tile(b, Wres).reshape(1, Wres * b.shape[0])


def _shift_mats(H):
    """(2, H, H): [0] picks row y-1 (zero at y=0), [1] picks row y+1 (zero at y=H-1).
    Used to realise the ky = 0 / 2 row offsets (and the top/bottom zero padding)."""
    return np.stack([np.eye(H, k=-1, dtype=np.float32),
                     np.eye(H, k=1, dtype=np.float32)])


def _hpool_mats(H):
    """(2, H/2, H): 0/1 selectors picking even / odd rows (pool, H direction)."""
    Hh = H // 2
    e = np.zeros((Hh, H), np.float32)
    o = np.zeros((Hh, H), np.float32)
    e[np.arange(Hh), 2 * np.arange(Hh)] = 1.0
    o[np.arange(Hh), 2 * np.arange(Hh) + 1] = 1.0
    return np.stack([e, o])


def _wpool_mats(Wres, C):
    """(2, W*C, (W/2)*C): 0/1 selectors picking even / odd W lane-blocks (pool, W dir)."""
    L, Lh = Wres * C, (Wres // 2) * C
    eye = np.eye(C, dtype=np.float32)
    e = np.zeros((L, Lh), np.float32)
    o = np.zeros((L, Lh), np.float32)
    for j in range(Wres // 2):
        e[(2 * j) * C:(2 * j + 1) * C, j * C:(j + 1) * C] = eye
        o[(2 * j + 1) * C:(2 * j + 2) * C, j * C:(j + 1) * C] = eye
    return np.stack([e, o])


def _rdup_mat(Hout):
    """(Hout, Hout/2): nearest-neighbour row duplication (out row i <- in row i//2)."""
    m = np.zeros((Hout, Hout // 2), np.float32)
    m[np.arange(Hout), np.arange(Hout) // 2] = 1.0
    return m


def _cdup_mat(Wout, C):
    """((Wout/2)*C, Wout*C): nearest-neighbour W lane-block duplication."""
    Win = Wout // 2
    eye = np.eye(C, dtype=np.float32)
    m = np.zeros((Win * C, Wout * C), np.float32)
    for j in range(Win):
        m[j * C:(j + 1) * C, (2 * j) * C:(2 * j + 1) * C] = eye
        m[j * C:(j + 1) * C, (2 * j + 1) * C:(2 * j + 2) * C] = eye
    return m


def build_inputs(params, H0):
    """Flatten every kernel-side constant (banded conv weights, lane biases, shift /
    pool / upsample matrices) into one flat list of arrays + a name->position index."""
    arrays, index = [], {}

    def add(name, arr):
        index[name] = len(arrays)
        arrays.append(jnp.asarray(arr, dtype=jnp.float32))

    res = [H0 // (2 ** k) for k in range(DEPTH + 1)]
    for R in res:
        add(f"shift_{R}", _shift_mats(R))
    for R in res[:-1]:                      # pooling R -> R/2, upsample R/2 -> R
        add(f"hpool_{R}", _hpool_mats(R))
        add(f"wpool_{R}", _wpool_mats(R, NFEAT))
        add(f"rdup_{R}", _rdup_mat(R))
        add(f"cdup_{R}", _cdup_mat(R, NFEAT))

    for i, level in enumerate(params):
        Ri = H0 // (2 ** i)
        for b_idx, branch_mods in enumerate(level):
            Rb = Ri if b_idx == 0 else Ri // 2      # branch 0 runs at full level res
            for m_idx, (w1, b1, w2, b2) in enumerate(branch_mods):
                add(f"w_{i}_{b_idx}_{m_idx}_0", _band_conv(np.asarray(w1), Rb))
                add(f"b_{i}_{b_idx}_{m_idx}_0", _lane_bias(np.asarray(b1), Rb))
                add(f"w_{i}_{b_idx}_{m_idx}_1", _band_conv(np.asarray(w2), Rb))
                add(f"b_{i}_{b_idx}_{m_idx}_1", _lane_bias(np.asarray(b2), Rb))
    return arrays, index


# --------------------------------------------------------------------------
# The fused hourglass kernel (one grid step = one image).
# --------------------------------------------------------------------------
def make_hourglass_kernel(index, H0):
    def kernel(*refs):
        x_ref = refs[0]
        o_ref = refs[-1]
        aux = refs[1:-1]
        g = lambda name: aux[index[name]]

        dot = lambda a, b: jnp.dot(a, b, preferred_element_type=jnp.float32)

        def conv(v, w_ref, b_ref, dn, up):
            # out[y] = bias + x[y] @ W_ky1 + x[y-1] @ W_ky0 + x[y+1] @ W_ky2
            a0 = dot(v, w_ref[0])
            a1 = dot(v, w_ref[1])
            a2 = dot(v, w_ref[2])
            return b_ref[...] + a1 + dot(dn, a0) + dot(up, a2)

        def resblock(v, i, b_idx, m, dn, up):
            h = jnp.maximum(
                conv(v, g(f"w_{i}_{b_idx}_{m}_0"), g(f"b_{i}_{b_idx}_{m}_0"), dn, up),
                0.0)
            return v + conv(h, g(f"w_{i}_{b_idx}_{m}_1"), g(f"b_{i}_{b_idx}_{m}_1"),
                            dn, up)

        def branch(v, i, b_idx, R):
            sh = g(f"shift_{R}")
            dn, up = sh[0], sh[1]
            for m in range(NMODULES):
                v = resblock(v, i, b_idx, m, dn, up)
            return v

        def pool(v, R):                       # 2x2 max-pool, (R, R*C) -> (R/2, (R/2)*C)
            hp = g(f"hpool_{R}")
            wp = g(f"wpool_{R}")
            hm = jnp.maximum(dot(hp[0], v), dot(hp[1], v))
            return jnp.maximum(dot(hm, wp[0]), dot(hm, wp[1]))

        def upsample(v, R):                   # nearest 2x, (R/2, (R/2)*C) -> (R, R*C)
            rows = dot(g(f"rdup_{R}")[...], v)
            return dot(rows, g(f"cdup_{R}")[...])

        def hg(i, v, R):                      # mirrors Hourglass._hour_glass_forward
            up1 = branch(v, i, 0, R)
            low1 = branch(pool(v, R), i, 1, R // 2)
            if i == DEPTH - 1:
                low2 = branch(low1, i, 3, R // 2)
            else:
                low2 = hg(i + 1, low1, R // 2)
            low3 = branch(low2, i, 2, R // 2)
            return up1 + upsample(low3, R)

        o_ref[0] = hg(0, x_ref[0], H0)

    return kernel


def make_forward(index):
    """NCHW -> NCHW forward around the single fused pallas_call."""
    def fwd(x_nchw, *arrays):
        N, C, H, W = x_nchw.shape
        L0 = W * C
        # lane-dense NHWC view: (N, H, W*C); lane = x*C + c  (free reshape)
        x_ld = jnp.transpose(x_nchw, (0, 2, 3, 1)).reshape(N, H, L0)

        kernel = make_hourglass_kernel(index, H)
        in_specs = [pl.BlockSpec((1, H, L0), lambda n: (n, 0, 0))]
        in_specs += [pl.BlockSpec(a.shape, lambda n, _nd=a.ndim: (0,) * _nd)
                     for a in arrays]

        out = pl.pallas_call(
            kernel,
            out_shape=jax.ShapeDtypeStruct((N, H, L0), jnp.float32),
            grid=(N,),
            in_specs=in_specs,
            out_specs=pl.BlockSpec((1, H, L0), lambda n: (n, 0, 0)),
            compiler_params=pltpu.CompilerParams(
                dimension_semantics=("parallel",),   # one image per TC on v7x
            ),
        )(x_ld, *arrays)
        return jnp.transpose(out.reshape(N, H, W, C), (0, 3, 1, 2))
    return jax.jit(fwd)


# ----------------------------- parameter init --------------------------------
def init_params(key):
    """Deterministic synthetic weights: per conv a (9, Cin, Cout) tap tensor
    (tap order ky*3+kx) and a (Cout,) bias."""
    params = []
    for i in range(DEPTH):
        n_branches = 4 if i == DEPTH - 1 else 3
        branches = []
        for _ in range(n_branches):
            mods = []
            for _ in range(NMODULES):
                key, k1, k2, k3, k4 = jax.random.split(key, 5)
                w1 = jax.random.normal(k1, (9, NFEAT, NFEAT), jnp.float32) * 0.05
                b1 = jax.random.normal(k2, (NFEAT,), jnp.float32) * 0.05
                w2 = jax.random.normal(k3, (9, NFEAT, NFEAT), jnp.float32) * 0.05
                b2 = jax.random.normal(k4, (NFEAT,), jnp.float32) * 0.05
                mods.append((w1, b1, w2, b2))
            branches.append(mods)
        params.append(branches)
    return params


# ----------------------------- main -------------------------------------------
if __name__ == "__main__":
    key = jax.random.PRNGKey(0)
    kp, kx = jax.random.split(key)
    params = init_params(kp)

    # PyTorch-style NCHW input: batch=2, channels=NFEAT, 16x16 spatial.
    x_nchw = jax.random.normal(kx, (2, NFEAT, 16, 16), jnp.float32)
    N, C, H, W = x_nchw.shape
    assert C == NFEAT and H == W and H % (2 ** DEPTH) == 0, (N, C, H, W)

    arrays, index = build_inputs(params, H)   # host-side constant folding (eager numpy)
    fwd = make_forward(index)

    out_nchw = fwd(x_nchw, *arrays)
    jax.block_until_ready(out_nchw)

    assert out_nchw.shape == x_nchw.shape, out_nchw.shape
    assert bool(jnp.all(jnp.isfinite(out_nchw)))
    print("KERNEL_OK")
</pallas_src>

<mosaic_0001>
module attributes {stable_mosaic.version = 11 : i64} {
  func.func @kernel(%arg0: i32, %arg1: memref<1x16x128xf32, #tpu.memory_space<vmem>>, %arg2: memref<2x16x16xf32, #tpu.memory_space<vmem>>, %arg3: memref<2x8x8xf32, #tpu.memory_space<vmem>>, %arg4: memref<2x4x4xf32, #tpu.memory_space<vmem>>, %arg5: memref<2x8x16xf32, #tpu.memory_space<vmem>>, %arg6: memref<2x128x64xf32, #tpu.memory_space<vmem>>, %arg7: memref<16x8xf32, #tpu.memory_space<vmem>>, %arg8: memref<64x128xf32, #tpu.memory_space<vmem>>, %arg9: memref<2x4x8xf32, #tpu.memory_space<vmem>>, %arg10: memref<2x64x32xf32, #tpu.memory_space<vmem>>, %arg11: memref<8x4xf32, #tpu.memory_space<vmem>>, %arg12: memref<32x64xf32, #tpu.memory_space<vmem>>, %arg13: memref<3x128x128xf32, #tpu.memory_space<vmem>>, %arg14: memref<1x128xf32, #tpu.memory_space<vmem>>, %arg15: memref<3x128x128xf32, #tpu.memory_space<vmem>>, %arg16: memref<1x128xf32, #tpu.memory_space<vmem>>, %arg17: memref<3x64x64xf32, #tpu.memory_space<vmem>>, %arg18: memref<1x64xf32, #tpu.memory_space<vmem>>, %arg19: memref<3x64x64xf32, #tpu.memory_space<vmem>>, %arg20: memref<1x64xf32, #tpu.memory_space<vmem>>, %arg21: memref<3x64x64xf32, #tpu.memory_space<vmem>>, %arg22: memref<1x64xf32, #tpu.memory_space<vmem>>, %arg23: memref<3x64x64xf32, #tpu.memory_space<vmem>>, %arg24: memref<1x64xf32, #tpu.memory_space<vmem>>, %arg25: memref<3x64x64xf32, #tpu.memory_space<vmem>>, %arg26: memref<1x64xf32, #tpu.memory_space<vmem>>, %arg27: memref<3x64x64xf32, #tpu.memory_space<vmem>>, %arg28: memref<1x64xf32, #tpu.memory_space<vmem>>, %arg29: memref<3x32x32xf32, #tpu.memory_space<vmem>>, %arg30: memref<1x32xf32, #tpu.memory_space<vmem>>, %arg31: memref<3x32x32xf32, #tpu.memory_space<vmem>>, %arg32: memref<1x32xf32, #tpu.memory_space<vmem>>, %arg33: memref<3x32x32xf32, #tpu.memory_space<vmem>>, %arg34: memref<1x32xf32, #tpu.memory_space<vmem>>, %arg35: memref<3x32x32xf32, #tpu.memory_space<vmem>>, %arg36: memref<1x32xf32, #tpu.memory_space<vmem>>, %arg37: memref<3x32x32xf32, #tpu.memory_space<vmem>>, %arg38: memref<1x32xf32, #tpu.memory_space<vmem>>, %arg39: memref<3x32x32xf32, #tpu.memory_space<vmem>>, %arg40: memref<1x32xf32, #tpu.memory_space<vmem>>, %arg41: memref<1x16x128xf32, #tpu.memory_space<vmem>>) attributes {dimension_semantics = [#tpu.dimension_semantics<parallel>], iteration_bounds = array<i64: 2>, scalar_prefetch = 0 : i64, scratch_operands = 0 : i64, tpu.core_type = #tpu.core_type<tc>, window_params = [{transform_indices = @transform_0, window_bounds = array<i64: 1, 16, 128>}, {pipeline_mode = #tpu.pipeline_mode<synchronous>, transform_indices = @transform_1, window_bounds = array<i64: 2, 16, 16>}, {pipeline_mode = #tpu.pipeline_mode<synchronous>, transform_indices = @transform_2, window_bounds = array<i64: 2, 8, 8>}, {pipeline_mode = #tpu.pipeline_mode<synchronous>, transform_indices = @transform_3, window_bounds = array<i64: 2, 4, 4>}, {pipeline_mode = #tpu.pipeline_mode<synchronous>, transform_indices = @transform_4, window_bounds = array<i64: 2, 8, 16>}, {pipeline_mode = #tpu.pipeline_mode<synchronous>, transform_indices = @transform_5, window_bounds = array<i64: 2, 128, 64>}, {pipeline_mode = #tpu.pipeline_mode<synchronous>, transform_indices = @transform_6, window_bounds = array<i64: 16, 8>}, {pipeline_mode = #tpu.pipeline_mode<synchronous>, transform_indices = @transform_7, window_bounds = array<i64: 64, 128>}, {pipeline_mode = #tpu.pipeline_mode<synchronous>, transform_indices = @transform_8, window_bounds = array<i64: 2, 4, 8>}, {pipeline_mode = #tpu.pipeline_mode<synchronous>, transform_indices = @transform_9, window_bounds = array<i64: 2, 64, 32>}, {pipeline_mode = #tpu.pipeline_mode<synchronous>, transform_indices = @transform_10, window_bounds = array<i64: 8, 4>}, {pipeline_mode = #tpu.pipeline_mode<synchronous>, transform_indices = @transform_11, window_bounds = array<i64: 32, 64>}, {pipeline_mode = #tpu.pipeline_mode<synchronous>, transform_indices = @transform_12, window_bounds = array<i64: 3, 128, 128>}, {pipeline_mode = #tpu.pipeline_mode<synchronous>, transform_indices = @transform_13, window_bounds = array<i64: 1, 128>}, {pipeline_mode = #tpu.pipeline_mode<synchronous>, transform_indices = @transform_14, window_bounds = array<i64: 3, 128, 128>}, {pipeline_mode = #tpu.pipeline_mode<synchronous>, transform_indices = @transform_15, window_bounds = array<i64: 1, 128>}, {pipeline_mode = #tpu.pipeline_mode<synchronous>, transform_indices = @transform_16, window_bounds = array<i64: 3, 64, 64>}, {pipeline_mode = #tpu.pipeline_mode<synchronous>, transform_indices = @transform_17, window_bounds = array<i64: 1, 64>}, {pipeline_mode = #tpu.pipeline_mode<synchronous>, transform_indices = @transform_18, window_bounds = array<i64: 3, 64, 64>}, {pipeline_mode = #tpu.pipeline_mode<synchronous>, transform_indices = @transform_19, window_bounds = array<i64: 1, 64>}, {pipeline_mode = #tpu.pipeline_mode<synchronous>, transform_indices = @transform_20, window_bounds = array<i64: 3, 64, 64>}, {pipeline_mode = #tpu.pipeline_mode<synchronous>, transform_indices = @transform_21, window_bounds = array<i64: 1, 64>}, {pipeline_mode = #tpu.pipeline_mode<synchronous>, transform_indices = @transform_22, window_bounds = array<i64: 3, 64, 64>}, {pipeline_mode = #tpu.pipeline_mode<synchronous>, transform_indices = @transform_23, window_bounds = array<i64: 1, 64>}, {pipeline_mode = #tpu.pipeline_mode<synchronous>, transform_indices = @transform_24, window_bounds = array<i64: 3, 64, 64>}, {pipeline_mode = #tpu.pipeline_mode<synchronous>, transform_indices = @transform_25, window_bounds = array<i64: 1, 64>}, {pipeline_mode = #tpu.pipeline_mode<synchronous>, transform_indices = @transform_26, window_bounds = array<i64: 3, 64, 64>}, {pipeline_mode = #tpu.pipeline_mode<synchronous>, transform_indices = @transform_27, window_bounds = array<i64: 1, 64>}, {pipeline_mode = #tpu.pipeline_mode<synchronous>, transform_indices = @transform_28, window_bounds = array<i64: 3, 32, 32>}, {pipeline_mode = #tpu.pipeline_mode<synchronous>, transform_indices = @transform_29, window_bounds = array<i64: 1, 32>}, {pipeline_mode = #tpu.pipeline_mode<synchronous>, transform_indices = @transform_30, window_bounds = array<i64: 3, 32, 32>}, {pipeline_mode = #tpu.pipeline_mode<synchronous>, transform_indices = @transform_31, window_bounds = array<i64: 1, 32>}, {pipeline_mode = #tpu.pipeline_mode<synchronous>, transform_indices = @transform_32, window_bounds = array<i64: 3, 32, 32>}, {pipeline_mode = #tpu.pipeline_mode<synchronous>, transform_indices = @transform_33, window_bounds = array<i64: 1, 32>}, {pipeline_mode = #tpu.pipeline_mode<synchronous>, transform_indices = @transform_34, window_bounds = array<i64: 3, 32, 32>}, {pipeline_mode = #tpu.pipeline_mode<synchronous>, transform_indices = @transform_35, window_bounds = array<i64: 1, 32>}, {pipeline_mode = #tpu.pipeline_mode<synchronous>, transform_indices = @transform_36, window_bounds = array<i64: 3, 32, 32>}, {pipeline_mode = #tpu.pipeline_mode<synchronous>, transform_indices = @transform_37, window_bounds = array<i64: 1, 32>}, {pipeline_mode = #tpu.pipeline_mode<synchronous>, transform_indices = @transform_38, window_bounds = array<i64: 3, 32, 32>}, {pipeline_mode = #tpu.pipeline_mode<synchronous>, transform_indices = @transform_39, window_bounds = array<i64: 1, 32>}, {transform_indices = @transform_40, window_bounds = array<i64: 1, 16, 128>}]} {
    %c0 = arith.constant 0 : index
    %c0_0 = arith.constant 0 : index
    %c0_1 = arith.constant 0 : index
    %0 = vector.load %arg1[%c0, %c0_0, %c0_1] : memref<1x16x128xf32, #tpu.memory_space<vmem>>, vector<1x16x128xf32>
    %1 = vector.shape_cast %0 : vector<1x16x128xf32> to vector<16x128xf32>
    %c0_2 = arith.constant 0 : index
    %c0_3 = arith.constant 0 : index
    %c0_4 = arith.constant 0 : index
    %2 = vector.load %arg2[%c0_2, %c0_3, %c0_4] : memref<2x16x16xf32, #tpu.memory_space<vmem>>, vector<1x16x16xf32>
    %3 = vector.shape_cast %2 : vector<1x16x16xf32> to vector<16x16xf32>
    %c1 = arith.constant 1 : index
    %c0_5 = arith.constant 0 : index
    %c0_6 = arith.constant 0 : index
    %4 = vector.load %arg2[%c1, %c0_5, %c0_6] : memref<2x16x16xf32, #tpu.memory_space<vmem>>, vector<1x16x16xf32>
    %5 = vector.shape_cast %4 : vector<1x16x16xf32> to vector<16x16xf32>
    %c0_7 = arith.constant 0 : index
    %c0_8 = arith.constant 0 : index
    %c0_9 = arith.constant 0 : index
    %6 = vector.load %arg13[%c0_7, %c0_8, %c0_9] : memref<3x128x128xf32, #tpu.memory_space<vmem>>, vector<1x128x128xf32>
    %7 = vector.shape_cast %6 : vector<1x128x128xf32> to vector<128x128xf32>
    %cst = arith.constant dense<0.000000e+00> : vector<16x128xf32>
    %8 = tpu.matmul %1, %7, %cst {dimension_numbers = #tpu.dot_dimension_numbers<[1], [0], [0], [1], [0, 0, 1, 1], [], []>} : vector<16x128xf32>, vector<128x128xf32>, vector<16x128xf32> -> vector<16x128xf32>
    %c1_10 = arith.constant 1 : index
    %c0_11 = arith.constant 0 : index
    %c0_12 = arith.constant 0 : index
    %9 = vector.load %arg13[%c1_10, %c0_11, %c0_12] : memref<3x128x128xf32, #tpu.memory_space<vmem>>, vector<1x128x128xf32>
    %10 = vector.shape_cast %9 : vector<1x128x128xf32> to vector<128x128xf32>
    %cst_13 = arith.constant dense<0.000000e+00> : vector<16x128xf32>
    %11 = tpu.matmul %1, %10, %cst_13 {dimension_numbers = #tpu.dot_dimension_numbers<[1], [0], [0], [1], [0, 0, 1, 1], [], []>} : vector<16x128xf32>, vector<128x128xf32>, vector<16x128xf32> -> vector<16x128xf32>
    %c2 = arith.constant 2 : index
    %c0_14 = arith.constant 0 : index
    %c0_15 = arith.constant 0 : index
    %12 = vector.load %arg13[%c2, %c0_14, %c0_15] : memref<3x128x128xf32, #tpu.memory_space<vmem>>, vector<1x128x128xf32>
    %13 = vector.shape_cast %12 : vector<1x128x128xf32> to vector<128x128xf32>
    %cst_16 = arith.constant dense<0.000000e+00> : vector<16x128xf32>
    %14 = tpu.matmul %1, %13, %cst_16 {dimension_numbers = #tpu.dot_dimension_numbers<[1], [0], [0], [1], [0, 0, 1, 1], [], []>} : vector<16x128xf32>, vector<128x128xf32>, vector<16x128xf32> -> vector<16x128xf32>
    %c0_17 = arith.constant 0 : index
    %c0_18 = arith.constant 0 : index
    %15 = vector.load %arg14[%c0_17, %c0_18] : memref<1x128xf32, #tpu.memory_space<vmem>>, vector<1x128xf32>
    %16 = vector.broadcast %15 : vector<1x128xf32> to vector<16x128xf32>
    %17 = arith.addf %16, %11 : vector<16x128xf32>
    %cst_19 = arith.constant dense<0.000000e+00> : vector<16x128xf32>
    %18 = tpu.matmul %3, %8, %cst_19 {dimension_numbers = #tpu.dot_dimension_numbers<[1], [0], [0], [1], [0, 0, 1, 1], [], []>} : vector<16x16xf32>, vector<16x128xf32>, vector<16x128xf32> -> vector<16x128xf32>
    %19 = arith.addf %17, %18 : vector<16x128xf32>
    %cst_20 = arith.constant dense<0.000000e+00> : vector<16x128xf32>
    %20 = tpu.matmul %5, %14, %cst_20 {dimension_numbers = #tpu.dot_dimension_numbers<[1], [0], [0], [1], [0, 0, 1, 1], [], []>} : vector<16x16xf32>, vector<16x128xf32>, vector<16x128xf32> -> vector<16x128xf32>
    %21 = arith.addf %19, %20 : vector<16x128xf32>
    %cst_21 = arith.constant 0.000000e+00 : f32
    %22 = vector.broadcast %cst_21 : f32 to vector<16x128xf32>
    %23 = arith.maximumf %21, %22 : vector<16x128xf32>
    %c0_22 = arith.constant 0 : index
    %c0_23 = arith.constant 0 : index
    %c0_24 = arith.constant 0 : index
    %24 = vector.load %arg15[%c0_22, %c0_23, %c0_24] : memref<3x128x128xf32, #tpu.memory_space<vmem>>, vector<1x128x128xf32>
    %25 = vector.shape_cast %24 : vector<1x128x128xf32> to vector<128x128xf32>
    %cst_25 = arith.constant dense<0.000000e+00> : vector<16x128xf32>
    %26 = tpu.matmul %23, %25, %cst_25 {dimension_numbers = #tpu.dot_dimension_numbers<[1], [0], [0], [1], [0, 0, 1, 1], [], []>} : vector<16x128xf32>, vector<128x128xf32>, vector<16x128xf32> -> vector<16x128xf32>
    %c1_26 = arith.constant 1 : index
    %c0_27 = arith.constant 0 : index
    %c0_28 = arith.constant 0 : index
    %27 = vector.load %arg15[%c1_26, %c0_27, %c0_28] : memref<3x128x128xf32, #tpu.memory_space<vmem>>, vector<1x128x128xf32>
    %28 = vector.shape_cast %27 : vector<1x128x128xf32> to vector<128x128xf32>
    %cst_29 = arith.constant dense<0.000000e+00> : vector<16x128xf32>
    %29 = tpu.matmul %23, %28, %cst_29 {dimension_numbers = #tpu.dot_dimension_numbers<[1], [0], [0], [1], [0, 0, 1, 1], [], []>} : vector<16x128xf32>, vector<128x128xf32>, vector<16x128xf32> -> vector<16x128xf32>
    %c2_30 = arith.constant 2 : index
    %c0_31 = arith.constant 0 : index
    %c0_32 = arith.constant 0 : index
    %30 = vector.load %arg15[%c2_30, %c0_31, %c0_32] : memref<3x128x128xf32, #tpu.memory_space<vmem>>, vector<1x128x128xf32>
    %31 = vector.shape_cast %30 : vector<1x128x128xf32> to vector<128x128xf32>
    %cst_33 = arith.constant dense<0.000000e+00> : vector<16x128xf32>
    %32 = tpu.matmul %23, %31, %cst_33 {dimension_numbers = #tpu.dot_dimension_numbers<[1], [0], [0], [1], [0, 0, 1, 1], [], []>} : vector<16x128xf32>, vector<128x128xf32>, vector<16x128xf32> -> vector<16x128xf32>
    %c0_34 = arith.constant 0 : index
    %c0_35 = arith.constant 0 : index
    %33 = vector.load %arg16[%c0_34, %c0_35] : memref<1x128xf32, #tpu.memory_space<vmem>>, vector<1x128xf32>
    %34 = vector.broadcast %33 : vector<1x128xf32> to vector<16x128xf32>
    %35 = arith.addf %34, %29 : vector<16x128xf32>
    %cst_36 = arith.constant dense<0.000000e+00> : vector<16x128xf32>
    %36 = tpu.matmul %3, %26, %cst_36 {dimension_numbers = #tpu.dot_dimension_numbers<[1], [0], [0], [1], [0, 0, 1, 1], [], []>} : vector<16x16xf32>, vector<16x128xf32>, vector<16x128xf32> -> vector<16x128xf32>
    %37 = arith.addf %35, %36 : vector<16x128xf32>
    %cst_37 = arith.constant dense<0.000000e+00> : vector<16x128xf32>
    %38 = tpu.matmul %5, %32, %cst_37 {dimension_numbers = #tpu.dot_dimension_numbers<[1], [0], [0], [1], [0, 0, 1, 1], [], []>} : vector<16x16xf32>, vector<16x128xf32>, vector<16x128xf32> -> vector<16x128xf32>
    %39 = arith.addf %37, %38 : vector<16x128xf32>
    %40 = arith.addf %1, %39 : vector<16x128xf32>
    %c0_38 = arith.constant 0 : index
    %c0_39 = arith.constant 0 : index
    %c0_40 = arith.constant 0 : index
    %41 = vector.load %arg5[%c0_38, %c0_39, %c0_40] : memref<2x8x16xf32, #tpu.memory_space<vmem>>, vector<1x8x16xf32>
    %42 = vector.shape_cast %41 : vector<1x8x16xf32> to vector<8x16xf32>
    %cst_41 = arith.constant dense<0.000000e+00> : vector<8x128xf32>
    %43 = tpu.matmul %42, %1, %cst_41 {dimension_numbers = #tpu.dot_dimension_numbers<[1], [0], [0], [1], [0, 0, 1, 1], [], []>} : vector<8x16xf32>, vector<16x128xf32>, vector<8x128xf32> -> vector<8x128xf32>
    %c1_42 = arith.constant 1 : index
    %c0_43 = arith.constant 0 : index
    %c0_44 = arith.constant 0 : index
    %44 = vector.load %arg5[%c1_42, %c0_43, %c0_44] : memref<2x8x16xf32, #tpu.memory_space<vmem>>, vector<1x8x16xf32>
    %45 = vector.shape_cast %44 : vector<1x8x16xf32> to vector<8x16xf32>
    %cst_45 = arith.constant dense<0.000000e+00> : vector<8x128xf32>
    %46 = tpu.matmul %45, %1, %cst_45 {dimension_numbers = #tpu.dot_dimension_numbers<[1], [0], [0], [1], [0, 0, 1, 1], [], []>} : vector<8x16xf32>, vector<16x128xf32>, vector<8x128xf32> -> vector<8x128xf32>
    %47 = arith.maximumf %43, %46 : vector<8x128xf32>
    %c0_46 = arith.constant 0 : index
    %c0_47 = arith.constant 0 : index
    %c0_48 = arith.constant 0 : index
    %48 = vector.load %arg6[%c0_46, %c0_47, %c0_48] : memref<2x128x64xf32, #tpu.memory_space<vmem>>, vector<1x128x64xf32>
    %49 = vector.shape_cast %48 : vector<1x128x64xf32> to vector<128x64xf32>
    %cst_49 = arith.constant dense<0.000000e+00> : vector<8x64xf32>
    %50 = tpu.matmul %47, %49, %cst_49 {dimension_numbers = #tpu.dot_dimension_numbers<[1], [0], [0], [1], [0, 0, 1, 1], [], []>} : vector<8x128xf32>, vector<128x64xf32>, vector<8x64xf32> -> vector<8x64xf32>
    %c1_50 = arith.constant 1 : index
    %c0_51 = arith.constant 0 : index
    %c0_52 = arith.constant 0 : index
    %51 = vector.load %arg6[%c1_50, %c0_51, %c0_52] : memref<2x128x64xf32, #tpu.memory_space<vmem>>, vector<1x128x64xf32>
    %52 = vector.shape_cast %51 : vector<1x128x64xf32> to vector<128x64xf32>
    %cst_53 = arith.constant dense<0.000000e+00> : vector<8x64xf32>
    %53 = tpu.matmul %47, %52, %cst_53 {dimension_numbers = #tpu.dot_dimension_numbers<[1], [0], [0], [1], [0, 0, 1, 1], [], []>} : vector<8x128xf32>, vector<128x64xf32>, vector<8x64xf32> -> vector<8x64xf32>
    %54 = arith.maximumf %50, %53 : vector<8x64xf32>
    %c0_54 = arith.constant 0 : index
    %c0_55 = arith.constant 0 : index
    %c0_56 = arith.constant 0 : index
    %55 = vector.load %arg3[%c0_54, %c0_55, %c0_56] : memref<2x8x8xf32, #tpu.memory_space<vmem>>, vector<1x8x8xf32>
    %56 = vector.shape_cast %55 : vector<1x8x8xf32> to vector<8x8xf32>
    %c1_57 = arith.constant 1 : index
    %c0_58 = arith.constant 0 : index
    %c0_59 = arith.constant 0 : index
    %57 = vector.load %arg3[%c1_57, %c0_58, %c0_59] : memref<2x8x8xf32, #tpu.memory_space<vmem>>, vector<1x8x8xf32>
    %58 = vector.shape_cast %57 : vector<1x8x8xf32> to vector<8x8xf32>
    %c0_60 = arith.constant 0 : index
    %c0_61 = arith.constant 0 : index
    %c0_62 = arith.constant 0 : index
    %59 = vector.load %arg17[%c0_60, %c0_61, %c0_62] : memref<3x64x64xf32, #tpu.memory_space<vmem>>, vector<1x64x64xf32>
    %60 = vector.shape_cast %59 : vector<1x64x64xf32> to vector<64x64xf32>
    %cst_63 = arith.constant dense<0.000000e+00> : vector<8x64xf32>
    %61 = tpu.matmul %54, %60, %cst_63 {dimension_numbers = #tpu.dot_dimension_numbers<[1], [0], [0], [1], [0, 0, 1, 1], [], []>} : vector<8x64xf32>, vector<64x64xf32>, vector<8x64xf32> -> vector<8x64xf32>
    %c1_64 = arith.constant 1 : index
    %c0_65 = arith.constant 0 : index
    %c0_66 = arith.constant 0 : index
    %62 = vector.load %arg17[%c1_64, %c0_65, %c0_66] : memref<3x64x64xf32, #tpu.memory_space<vmem>>, vector<1x64x64xf32>
    %63 = vector.shape_cast %62 : vector<1x64x64xf32> to vector<64x64xf32>
    %cst_67 = arith.constant dense<0.000000e+00> : vector<8x64xf32>
    %64 = tpu.matmul %54, %63, %cst_67 {dimension_numbers = #tpu.dot_dimension_numbers<[1], [0], [0], [1], [0, 0, 1, 1], [], []>} : vector<8x64xf32>, vector<64x64xf32>, vector<8x64xf32> -> vector<8x64xf32>
    %c2_68 = arith.constant 2 : index
    %c0_69 = arith.constant 0 : index
    %c0_70 = arith.constant 0 : index
    %65 = vector.load %arg17[%c2_68, %c0_69, %c0_70] : memref<3x64x64xf32, #tpu.memory_space<vmem>>, vector<1x64x64xf32>
    %66 = vector.shape_cast %65 : vector<1x64x64xf32> to vector<64x64xf32>
    %cst_71 = arith.constant dense<0.000000e+00> : vector<8x64xf32>
    %67 = tpu.matmul %54, %66, %cst_71 {dimension_numbers = #tpu.dot_dimension_numbers<[1], [0], [0], [1], [0, 0, 1, 1], [], []>} : vector<8x64xf32>, vector<64x64xf32>, vector<8x64xf32> -> vector<8x64xf32>
    %c0_72 = arith.constant 0 : index
    %c0_73 = arith.constant 0 : index
    %68 = vector.load %arg18[%c0_72, %c0_73] : memref<1x64xf32, #tpu.memory_space<vmem>>, vector<1x64xf32>
    %69 = vector.broadcast %68 : vector<1x64xf32> to vector<8x64xf32>
    %70 = arith.addf %69, %64 : vector<8x64xf32>
    %cst_74 = arith.constant dense<0.000000e+00> : vector<8x64xf32>
    %71 = tpu.matmul %56, %61, %cst_74 {dimension_numbers = #tpu.dot_dimension_numbers<[1], [0], [0], [1], [0, 0, 1, 1], [], []>} : vector<8x8xf32>, vector<8x64xf32>, vector<8x64xf32> -> vector<8x64xf32>
    %72 = arith.addf %70, %71 : vector<8x64xf32>
    %cst_75 = arith.constant dense<0.000000e+00> : vector<8x64xf32>
    %73 = tpu.matmul %58, %67, %cst_75 {dimension_numbers = #tpu.dot_dimension_numbers<[1], [0], [0], [1], [0, 0, 1, 1], [], []>} : vector<8x8xf32>, vector<8x64xf32>, vector<8x64xf32> -> vector<8x64xf32>
    %74 = arith.addf %72, %73 : vector<8x64xf32>
    %cst_76 = arith.constant 0.000000e+00 : f32
    %75 = vector.broadcast %cst_76 : f32 to vector<8x64xf32>
    %76 = arith.maximumf %74, %75 : vector<8x64xf32>
    %c0_77 = arith.constant 0 : index
    %c0_78 = arith.constant 0 : index
    %c0_79 = arith.constant 0 : index
    %77 = vector.load %arg19[%c0_77, %c0_78, %c0_79] : memref<3x64x64xf32, #tpu.memory_space<vmem>>, vector<1x64x64xf32>
    %78 = vector.shape_cast %77 : vector<1x64x64xf32> to vector<64x64xf32>
    %cst_80 = arith.constant dense<0.000000e+00> : vector<8x64xf32>
    %79 = tpu.matmul %76, %78, %cst_80 {dimension_numbers = #tpu.dot_dimension_numbers<[1], [0], [0], [1], [0, 0, 1, 1], [], []>} : vector<8x64xf32>, vector<64x64xf32>, vector<8x64xf32> -> vector<8x64xf32>
    %c1_81 = arith.constant 1 : index
    %c0_82 = arith.constant 0 : index
    %c0_83 = arith.constant 0 : index
    %80 = vector.load %arg19[%c1_81, %c0_82, %c0_83] : memref<3x64x64xf32, #tpu.memory_space<vmem>>, vector<1x64x64xf32>
    %81 = vector.shape_cast %80 : vector<1x64x64xf32> to vector<64x64xf32>
    %cst_84 = arith.constant dense<0.000000e+00> : vector<8x64xf32>
    %82 = tpu.matmul %76, %81, %cst_84 {dimension_numbers = #tpu.dot_dimension_numbers<[1], [0], [0], [1], [0, 0, 1, 1], [], []>} : vector<8x64xf32>, vector<64x64xf32>, vector<8x64xf32> -> vector<8x64xf32>
    %c2_85 = arith.constant 2 : index
    %c0_86 = arith.constant 0 : index
    %c0_87 = arith.constant 0 : index
    %83 = vector.load %arg19[%c2_85, %c0_86, %c0_87] : memref<3x64x64xf32, #tpu.memory_space<vmem>>, vector<1x64x64xf32>
    %84 = vector.shape_cast %83 : vector<1x64x64xf32> to vector<64x64xf32>
    %cst_88 = arith.constant dense<0.000000e+00> : vector<8x64xf32>
    %85 = tpu.matmul %76, %84, %cst_88 {dimension_numbers = #tpu.dot_dimension_numbers<[1], [0], [0], [1], [0, 0, 1, 1], [], []>} : vector<8x64xf32>, vector<64x64xf32>, vector<8x64xf32> -> vector<8x64xf32>
    %c0_89 = arith.constant 0 : index
    %c0_90 = arith.constant 0 : index
    %86 = vector.load %arg20[%c0_89, %c0_90] : memref<1x64xf32, #tpu.memory_space<vmem>>, vector<1x64xf32>
    %87 = vector.broadcast %86 : vector<1x64xf32> to vector<8x64xf32>
    %88 = arith.addf %87, %82 : vector<8x64xf32>
    %cst_91 = arith.constant dense<0.000000e+00> : vector<8x64xf32>
    %89 = tpu.matmul %56, %79, %cst_91 {dimension_numbers = #tpu.dot_dimension_numbers<[1], [0], [0], [1], [0, 0, 1, 1], [], []>} : vector<8x8xf32>, vector<8x64xf32>, vector<8x64xf32> -> vector<8x64xf32>
    %90 = arith.addf %88, %89 : vector<8x64xf32>
    %cst_92 = arith.constant dense<0.000000e+00> : vector<8x64xf32>
    %91 = tpu.matmul %58, %85, %cst_92 {dimension_numbers = #tpu.dot_dimension_numbers<[1], [0], [0], [1], [0, 0, 1, 1], [], []>} : vector<8x8xf32>, vector<8x64xf32>, vector<8x64xf32> -> vector<8x64xf32>
    %92 = arith.addf %90, %91 : vector<8x64xf32>
    %93 = arith.addf %54, %92 : vector<8x64xf32>
    %c0_93 = arith.constant 0 : index
    %c0_94 = arith.constant 0 : index
    %c0_95 = arith.constant 0 : index
    %94 = vector.load %arg3[%c0_93, %c0_94, %c0_95] : memref<2x8x8xf32, #tpu.memory_space<vmem>>, vector<1x8x8xf32>
    %95 = vector.shape_cast %94 : vector<1x8x8xf32> to vector<8x8xf32>
    %c1_96 = arith.constant 1 : index
    %c0_97 = arith.constant 0 : index
    %c0_98 = arith.constant 0 : index
    %96 = vector.load %arg3[%c1_96, %c0_97, %c0_98] : memref<2x8x8xf32, #tpu.memory_space<vmem>>, vector<1x8x8xf32>
    %97 = vector.shape_cast %96 : vector<1x8x8xf32> to vector<8x8xf32>
    %c0_99 = arith.constant 0 : index
    %c0_100 = arith.constant 0 : index
    %c0_101 = arith.constant 0 : index
    %98 = vector.load %arg25[%c0_99, %c0_100, %c0_101] : memref<3x64x64xf32, #tpu.memory_space<vmem>>, vector<1x64x64xf32>
    %99 = vector.shape_cast %98 : vector<1x64x64xf32> to vector<64x64xf32>
    %cst_102 = arith.constant dense<0.000000e+00> : vector<8x64xf32>
    %100 = tpu.matmul %93, %99, %cst_102 {dimension_numbers = #tpu.dot_dimension_numbers<[1], [0], [0], [1], [0, 0, 1, 1], [], []>} : vector<8x64xf32>, vector<64x64xf32>, vector<8x64xf32> -> vector<8x64xf32>
    %c1_103 = arith.constant 1 : index
    %c0_104 = arith.constant 0 : index
    %c0_105 = arith.constant 0 : index
    %101 = vector.load %arg25[%c1_103, %c0_104, %c0_105] : memref<3x64x64xf32, #tpu.memory_space<vmem>>, vector<1x64x64xf32>
    %102 = vector.shape_cast %101 : vector<1x64x64xf32> to vector<64x64xf32>
    %cst_106 = arith.constant dense<0.000000e+00> : vector<8x64xf32>
    %103 = tpu.matmul %93, %102, %cst_106 {dimension_numbers = #tpu.dot_dimension_numbers<[1], [0], [0], [1], [0, 0, 1, 1], [], []>} : vector<8x64xf32>, vector<64x64xf32>, vector<8x64xf32> -> vector<8x64xf32>
    %c2_107 = arith.constant 2 : index
    %c0_108 = arith.constant 0 : index
    %c0_109 = arith.constant 0 : index
    %104 = vector.load %arg25[%c2_107, %c0_108, %c0_109] : memref<3x64x64xf32, #tpu.memory_space<vmem>>, vector<1x64x64xf32>
    %105 = vector.shape_cast %104 : vector<1x64x64xf32> to vector<64x64xf32>
    %cst_110 = arith.constant dense<0.000000e+00> : vector<8x64xf32>
    %106 = tpu.matmul %93, %105, %cst_110 {dimension_numbers = #tpu.dot_dimension_numbers<[1], [0], [0], [1], [0, 0, 1, 1], [], []>} : vector<8x64xf32>, vector<64x64xf32>, vector<8x64xf32> -> vector<8x64xf32>
    %c0_111 = arith.constant 0 : index
    %c0_112 = arith.constant 0 : index
    %107 = vector.load %arg26[%c0_111, %c0_112] : memref<1x64xf32, #tpu.memory_space<vmem>>, vector<1x64xf32>
    %108 = vector.broadcast %107 : vector<1x64xf32> to vector<8x64xf32>
    %109 = arith.addf %108, %103 : vector<8x64xf32>
    %cst_113 = arith.constant dense<0.000000e+00> : vector<8x64xf32>
    %110 = tpu.matmul %95, %100, %cst_113 {dimension_numbers = #tpu.dot_dimension_numbers<[1], [0], [0], [1], [0, 0, 1, 1], [], []>} : vector<8x8xf32>, vector<8x64xf32>, vector<8x64xf32> -> vector<8x64xf32>
    %111 = arith.addf %109, %110 : vector<8x64xf32>
    %cst_114 = arith.constant dense<0.000000e+00> : vector<8x64xf32>
    %112 = tpu.matmul %97, %106, %cst_114 {dimension_numbers = #tpu.dot_dimension_numbers<[1], [0], [0], [1], [0, 0, 1, 1], [], []>} : vector<8x8xf32>, vector<8x64xf32>, vector<8x64xf32> -> vector<8x64xf32>
    %113 = arith.addf %111, %112 : vector<8x64xf32>
    %cst_115 = arith.constant 0.000000e+00 : f32
    %114 = vector.broadcast %cst_115 : f32 to vector<8x64xf32>
    %115 = arith.maximumf %113, %114 : vector<8x64xf32>
    %c0_116 = arith.constant 0 : index
    %c0_117 = arith.constant 0 : index
    %c0_118 = arith.constant 0 : index
    %116 = vector.load %arg27[%c0_116, %c0_117, %c0_118] : memref<3x64x64xf32, #tpu.memory_space<vmem>>, vector<1x64x64xf32>
    %117 = vector.shape_cast %116 : vector<1x64x64xf32> to vector<64x64xf32>
    %cst_119 = arith.constant dense<0.000000e+00> : vector<8x64xf32>
    %118 = tpu.matmul %115, %117, %cst_119 {dimension_numbers = #tpu.dot_dimension_numbers<[1], [0], [0], [1], [0, 0, 1, 1], [], []>} : vector<8x64xf32>, vector<64x64xf32>, vector<8x64xf32> -> vector<8x64xf32>
    %c1_120 = arith.constant 1 : index
    %c0_121 = arith.constant 0 : index
    %c0_122 = arith.constant 0 : index
    %119 = vector.load %arg27[%c1_120, %c0_121, %c0_122] : memref<3x64x64xf32, #tpu.memory_space<vmem>>, vector<1x64x64xf32>
    %120 = vector.shape_cast %119 : vector<1x64x64xf32> to vector<64x64xf32>
    %cst_123 = arith.constant dense<0.000000e+00> : vector<8x64xf32>
    %121 = tpu.matmul %115, %120, %cst_123 {dimension_numbers = #tpu.dot_dimension_numbers<[1], [0], [0], [1], [0, 0, 1, 1], [], []>} : vector<8x64xf32>, vector<64x64xf32>, vector<8x64xf32> -> vector<8x64xf32>
    %c2_124 = arith.constant 2 : index
    %c0_125 = arith.constant 0 : index
    %c0_126 = arith.constant 0 : index
    %122 = vector.load %arg27[%c2_124, %c0_125, %c0_126] : memref<3x64x64xf32, #tpu.memory_space<vmem>>, vector<1x64x64xf32>
    %123 = vector.shape_cast %122 : vector<1x64x64xf32> to vector<64x64xf32>
    %cst_127 = arith.constant dense<0.000000e+00> : vector<8x64xf32>
    %124 = tpu.matmul %115, %123, %cst_127 {dimension_numbers = #tpu.dot_dimension_numbers<[1], [0], [0], [1], [0, 0, 1, 1], [], []>} : vector<8x64xf32>, vector<64x64xf32>, vector<8x64xf32> -> vector<8x64xf32>
    %c0_128 = arith.constant 0 : index
    %c0_129 = arith.constant 0 : index
    %125 = vector.load %arg28[%c0_128, %c0_129] : memref<1x64xf32, #tpu.memory_space<vmem>>, vector<1x64xf32>
    %126 = vector.broadcast %125 : vector<1x64xf32> to vector<8x64xf32>
    %127 = arith.addf %126, %121 : vector<8x64xf32>
    %cst_130 = arith.constant dense<0.000000e+00> : vector<8x64xf32>
    %128 = tpu.matmul %95, %118, %cst_130 {dimension_numbers = #tpu.dot_dimension_numbers<[1], [0], [0], [1], [0, 0, 1, 1], [], []>} : vector<8x8xf32>, vector<8x64xf32>, vector<8x64xf32> -> vector<8x64xf32>
    %129 = arith.addf %127, %128 : vector<8x64xf32>
    %cst_131 = arith.constant dense<0.000000e+00> : vector<8x64xf32>
    %130 = tpu.matmul %97, %124, %cst_131 {dimension_numbers = #tpu.dot_dimension_numbers<[1], [0], [0], [1], [0, 0, 1, 1], [], []>} : vector<8x8xf32>, vector<8x64xf32>, vector<8x64xf32> -> vector<8x64xf32>
    %131 = arith.addf %129, %130 : vector<8x64xf32>
    %132 = arith.addf %93, %131 : vector<8x64xf32>
    %c0_132 = arith.constant 0 : index
    %c0_133 = arith.constant 0 : index
    %c0_134 = arith.constant 0 : index
    %133 = vector.load %arg9[%c0_132, %c0_133, %c0_134] : memref<2x4x8xf32, #tpu.memory_space<vmem>>, vector<1x4x8xf32>
    %134 = vector.shape_cast %133 : vector<1x4x8xf32> to vector<4x8xf32>
    %cst_135 = arith.constant dense<0.000000e+00> : vector<4x64xf32>
    %135 = tpu.matmul %134, %93, %cst_135 {dimension_numbers = #tpu.dot_dimension_numbers<[1], [0], [0], [1], [0, 0, 1, 1], [], []>} : vector<4x8xf32>, vector<8x64xf32>, vector<4x64xf32> -> vector<4x64xf32>
    %c1_136 = arith.constant 1 : index
    %c0_137 = arith.constant 0 : index
    %c0_138 = arith.constant 0 : index
    %136 = vector.load %arg9[%c1_136, %c0_137, %c0_138] : memref<2x4x8xf32, #tpu.memory_space<vmem>>, vector<1x4x8xf32>
    %137 = vector.shape_cast %136 : vector<1x4x8xf32> to vector<4x8xf32>
    %cst_139 = arith.constant dense<0.000000e+00> : vector<4x64xf32>
    %138 = tpu.matmul %137, %93, %cst_139 {dimension_numbers = #tpu.dot_dimension_numbers<[1], [0], [0], [1], [0, 0, 1, 1], [], []>} : vector<4x8xf32>, vector<8x64xf32>, vector<4x64xf32> -> vector<4x64xf32>
    %139 = arith.maximumf %135, %138 : vector<4x64xf32>
    %c0_140 = arith.constant 0 : index
    %c0_141 = arith.constant 0 : index
    %c0_142 = arith.constant 0 : index
    %140 = vector.load %arg10[%c0_140, %c0_141, %c0_142] : memref<2x64x32xf32, #tpu.memory_space<vmem>>, vector<1x64x32xf32>
    %141 = vector.shape_cast %140 : vector<1x64x32xf32> to vector<64x32xf32>
    %cst_143 = arith.constant dense<0.000000e+00> : vector<4x32xf32>
    %142 = tpu.matmul %139, %141, %cst_143 {dimension_numbers = #tpu.dot_dimension_numbers<[1], [0], [0], [1], [0, 0, 1, 1], [], []>} : vector<4x64xf32>, vector<64x32xf32>, vector<4x32xf32> -> vector<4x32xf32>
    %c1_144 = arith.constant 1 : index
    %c0_145 = arith.constant 0 : index
    %c0_146 = arith.constant 0 : index
    %143 = vector.load %arg10[%c1_144, %c0_145, %c0_146] : memref<2x64x32xf32, #tpu.memory_space<vmem>>, vector<1x64x32xf32>
    %144 = vector.shape_cast %143 : vector<1x64x32xf32> to vector<64x32xf32>
    %cst_147 = arith.constant dense<0.000000e+00> : vector<4x32xf32>
    %145 = tpu.matmul %139, %144, %cst_147 {dimension_numbers = #tpu.dot_dimension_numbers<[1], [0], [0], [1], [0, 0, 1, 1], [], []>} : vector<4x64xf32>, vector<64x32xf32>, vector<4x32xf32> -> vector<4x32xf32>
    %146 = arith.maximumf %142, %145 : vector<4x32xf32>
    %c0_148 = arith.constant 0 : index
    %c0_149 = arith.constant 0 : index
    %c0_150 = arith.constant 0 : index
    %147 = vector.load %arg4[%c0_148, %c0_149, %c0_150] : memref<2x4x4xf32, #tpu.memory_space<vmem>>, vector<1x4x4xf32>
    %148 = vector.shape_cast %147 : vector<1x4x4xf32> to vector<4x4xf32>
    %c1_151 = arith.constant 1 : index
    %c0_152 = arith.constant 0 : index
    %c0_153 = arith.constant 0 : index
    %149 = vector.load %arg4[%c1_151, %c0_152, %c0_153] : memref<2x4x4xf32, #tpu.memory_space<vmem>>, vector<1x4x4xf32>
    %150 = vector.shape_cast %149 : vector<1x4x4xf32> to vector<4x4xf32>
    %c0_154 = arith.constant 0 : index
    %c0_155 = arith.constant 0 : index
    %c0_156 = arith.constant 0 : index
    %151 = vector.load %arg29[%c0_154, %c0_155, %c0_156] : memref<3x32x32xf32, #tpu.memory_space<vmem>>, vector<1x32x32xf32>
    %152 = vector.shape_cast %151 : vector<1x32x32xf32> to vector<32x32xf32>
    %cst_157 = arith.constant dense<0.000000e+00> : vector<4x32xf32>
    %153 = tpu.matmul %146, %152, %cst_157 {dimension_numbers = #tpu.dot_dimension_numbers<[1], [0], [0], [1], [0, 0, 1, 1], [], []>} : vector<4x32xf32>, vector<32x32xf32>, vector<4x32xf32> -> vector<4x32xf32>
    %c1_158 = arith.constant 1 : index
    %c0_159 = arith.constant 0 : index
    %c0_160 = arith.constant 0 : index
    %154 = vector.load %arg29[%c1_158, %c0_159, %c0_160] : memref<3x32x32xf32, #tpu.memory_space<vmem>>, vector<1x32x32xf32>
    %155 = vector.shape_cast %154 : vector<1x32x32xf32> to vector<32x32xf32>
    %cst_161 = arith.constant dense<0.000000e+00> : vector<4x32xf32>
    %156 = tpu.matmul %146, %155, %cst_161 {dimension_numbers = #tpu.dot_dimension_numbers<[1], [0], [0], [1], [0, 0, 1, 1], [], []>} : vector<4x32xf32>, vector<32x32xf32>, vector<4x32xf32> -> vector<4x32xf32>
    %c2_162 = arith.constant 2 : index
    %c0_163 = arith.constant 0 : index
    %c0_164 = arith.constant 0 : index
    %157 = vector.load %arg29[%c2_162, %c0_163, %c0_164] : memref<3x32x32xf32, #tpu.memory_space<vmem>>, vector<1x32x32xf32>
    %158 = vector.shape_cast %157 : vector<1x32x32xf32> to vector<32x32xf32>
    %cst_165 = arith.constant dense<0.000000e+00> : vector<4x32xf32>
    %159 = tpu.matmul %146, %158, %cst_165 {dimension_numbers = #tpu.dot_dimension_numbers<[1], [0], [0], [1], [0, 0, 1, 1], [], []>} : vector<4x32xf32>, vector<32x32xf32>, vector<4x32xf32> -> vector<4x32xf32>
    %c0_166 = arith.constant 0 : index
    %c0_167 = arith.constant 0 : index
    %160 = vector.load %arg30[%c0_166, %c0_167] : memref<1x32xf32, #tpu.memory_space<vmem>>, vector<1x32xf32>
    %161 = vector.broadcast %160 : vector<1x32xf32> to vector<4x32xf32>
    %162 = arith.addf %161, %156 : vector<4x32xf32>
    %cst_168 = arith.constant dense<0.000000e+00> : vector<4x32xf32>
    %163 = tpu.matmul %148, %153, %cst_168 {dimension_numbers = #tpu.dot_dimension_numbers<[1], [0], [0], [1], [0, 0, 1, 1], [], []>} : vector<4x4xf32>, vector<4x32xf32>, vector<4x32xf32> -> vector<4x32xf32>
    %164 = arith.addf %162, %163 : vector<4x32xf32>
    %cst_169 = arith.constant dense<0.000000e+00> : vector<4x32xf32>
    %165 = tpu.matmul %150, %159, %cst_169 {dimension_numbers = #tpu.dot_dimension_numbers<[1], [0], [0], [1], [0, 0, 1, 1], [], []>} : vector<4x4xf32>, vector<4x32xf32>, vector<4x32xf32> -> vector<4x32xf32>
    %166 = arith.addf %164, %165 : vector<4x32xf32>
    %cst_170 = arith.constant 0.000000e+00 : f32
    %167 = vector.broadcast %cst_170 : f32 to vector<4x32xf32>
    %168 = arith.maximumf %166, %167 : vector<4x32xf32>
    %c0_171 = arith.constant 0 : index
    %c0_172 = arith.constant 0 : index
    %c0_173 = arith.constant 0 : index
    %169 = vector.load %arg31[%c0_171, %c0_172, %c0_173] : memref<3x32x32xf32, #tpu.memory_space<vmem>>, vector<1x32x32xf32>
    %170 = vector.shape_cast %169 : vector<1x32x32xf32> to vector<32x32xf32>
    %cst_174 = arith.constant dense<0.000000e+00> : vector<4x32xf32>
    %171 = tpu.matmul %168, %170, %cst_174 {dimension_numbers = #tpu.dot_dimension_numbers<[1], [0], [0], [1], [0, 0, 1, 1], [], []>} : vector<4x32xf32>, vector<32x32xf32>, vector<4x32xf32> -> vector<4x32xf32>
    %c1_175 = arith.constant 1 : index
    %c0_176 = arith.constant 0 : index
    %c0_177 = arith.constant 0 : index
    %172 = vector.load %arg31[%c1_175, %c0_176, %c0_177] : memref<3x32x32xf32, #tpu.memory_space<vmem>>, vector<1x32x32xf32>
    %173 = vector.shape_cast %172 : vector<1x32x32xf32> to vector<32x32xf32>
    %cst_178 = arith.constant dense<0.000000e+00> : vector<4x32xf32>
    %174 = tpu.matmul %168, %173, %cst_178 {dimension_numbers = #tpu.dot_dimension_numbers<[1], [0], [0], [1], [0, 0, 1, 1], [], []>} : vector<4x32xf32>, vector<32x32xf32>, vector<4x32xf32> -> vector<4x32xf32>
    %c2_179 = arith.constant 2 : index
    %c0_180 = arith.constant 0 : index
    %c0_181 = arith.constant 0 : index
    %175 = vector.load %arg31[%c2_179, %c0_180, %c0_181] : memref<3x32x32xf32, #tpu.memory_space<vmem>>, vector<1x32x32xf32>
    %176 = vector.shape_cast %175 : vector<1x32x32xf32> to vector<32x32xf32>
    %cst_182 = arith.constant dense<0.000000e+00> : vector<4x32xf32>
    %177 = tpu.matmul %168, %176, %cst_182 {dimension_numbers = #tpu.dot_dimension_numbers<[1], [0], [0], [1], [0, 0, 1, 1], [], []>} : vector<4x32xf32>, vector<32x32xf32>, vector<4x32xf32> -> vector<4x32xf32>
    %c0_183 = arith.constant 0 : index
    %c0_184 = arith.constant 0 : index
    %178 = vector.load %arg32[%c0_183, %c0_184] : memref<1x32xf32, #tpu.memory_space<vmem>>, vector<1x32xf32>
    %179 = vector.broadcast %178 : vector<1x32xf32> to vector<4x32xf32>
    %180 = arith.addf %179, %174 : vector<4x32xf32>
    %cst_185 = arith.constant dense<0.000000e+00> : vector<4x32xf32>
    %181 = tpu.matmul %148, %171, %cst_185 {dimension_numbers = #tpu.dot_dimension_numbers<[1], [0], [0], [1], [0, 0, 1, 1], [], []>} : vector<4x4xf32>, vector<4x32xf32>, vector<4x32xf32> -> vector<4x32xf32>
    %182 = arith.addf %180, %181 : vector<4x32xf32>
    %cst_186 = arith.constant dense<0.000000e+00> : vector<4x32xf32>
    %183 = tpu.matmul %150, %177, %cst_186 {dimension_numbers = #tpu.dot_dimension_numbers<[1], [0], [0], [1], [0, 0, 1, 1], [], []>} : vector<4x4xf32>, vector<4x32xf32>, vector<4x32xf32> -> vector<4x32xf32>
    %184 = arith.addf %182, %183 : vector<4x32xf32>
    %185 = arith.addf %146, %184 : vector<4x32xf32>
    %c0_187 = arith.constant 0 : index
    %c0_188 = arith.constant 0 : index
    %c0_189 = arith.constant 0 : index
    %186 = vector.load %arg4[%c0_187, %c0_188, %c0_189] : memref<2x4x4xf32, #tpu.memory_space<vmem>>, vector<1x4x4xf32>
    %187 = vector.shape_cast %186 : vector<1x4x4xf32> to vector<4x4xf32>
    %c1_190 = arith.constant 1 : index
    %c0_191 = arith.constant 0 : index
    %c0_192 = arith.constant 0 : index
    %188 = vector.load %arg4[%c1_190, %c0_191, %c0_192] : memref<2x4x4xf32, #tpu.memory_space<vmem>>, vector<1x4x4xf32>
    %189 = vector.shape_cast %188 : vector<1x4x4xf32> to vector<4x4xf32>
    %c0_193 = arith.constant 0 : index
    %c0_194 = arith.constant 0 : index
    %c0_195 = arith.constant 0 : index
    %190 = vector.load %arg37[%c0_193, %c0_194, %c0_195] : memref<3x32x32xf32, #tpu.memory_space<vmem>>, vector<1x32x32xf32>
    %191 = vector.shape_cast %190 : vector<1x32x32xf32> to vector<32x32xf32>
    %cst_196 = arith.constant dense<0.000000e+00> : vector<4x32xf32>
    %192 = tpu.matmul %185, %191, %cst_196 {dimension_numbers = #tpu.dot_dimension_numbers<[1], [0], [0], [1], [0, 0, 1, 1], [], []>} : vector<4x32xf32>, vector<32x32xf32>, vector<4x32xf32> -> vector<4x32xf32>
    %c1_197 = arith.constant 1 : index
    %c0_198 = arith.constant 0 : index
    %c0_199 = arith.constant 0 : index
    %193 = vector.load %arg37[%c1_197, %c0_198, %c0_199] : memref<3x32x32xf32, #tpu.memory_space<vmem>>, vector<1x32x32xf32>
    %194 = vector.shape_cast %193 : vector<1x32x32xf32> to vector<32x32xf32>
    %cst_200 = arith.constant dense<0.000000e+00> : vector<4x32xf32>
    %195 = tpu.matmul %185, %194, %cst_200 {dimension_numbers = #tpu.dot_dimension_numbers<[1], [0], [0], [1], [0, 0, 1, 1], [], []>} : vector<4x32xf32>, vector<32x32xf32>, vector<4x32xf32> -> vector<4x32xf32>
    %c2_201 = arith.constant 2 : index
    %c0_202 = arith.constant 0 : index
    %c0_203 = arith.constant 0 : index
    %196 = vector.load %arg37[%c2_201, %c0_202, %c0_203] : memref<3x32x32xf32, #tpu.memory_space<vmem>>, vector<1x32x32xf32>
    %197 = vector.shape_cast %196 : vector<1x32x32xf32> to vector<32x32xf32>
    %cst_204 = arith.constant dense<0.000000e+00> : vector<4x32xf32>
    %198 = tpu.matmul %185, %197, %cst_204 {dimension_numbers = #tpu.dot_dimension_numbers<[1], [0], [0], [1], [0, 0, 1, 1], [], []>} : vector<4x32xf32>, vector<32x32xf32>, vector<4x32xf32> -> vector<4x32xf32>
    %c0_205 = arith.constant 0 : index
    %c0_206 = arith.constant 0 : index
    %199 = vector.load %arg38[%c0_205, %c0_206] : memref<1x32xf32, #tpu.memory_space<vmem>>, vector<1x32xf32>
    %200 = vector.broadcast %199 : vector<1x32xf32> to vector<4x32xf32>
    %201 = arith.addf %200, %195 : vector<4x32xf32>
    %cst_207 = arith.constant dense<0.000000e+00> : vector<4x32xf32>
    %202 = tpu.matmul %187, %192, %cst_207 {dimension_numbers = #tpu.dot_dimension_numbers<[1], [0], [0], [1], [0, 0, 1, 1], [], []>} : vector<4x4xf32>, vector<4x32xf32>, vector<4x32xf32> -> vector<4x32xf32>
    %203 = arith.addf %201, %202 : vector<4x32xf32>
    %cst_208 = arith.constant dense<0.000000e+00> : vector<4x32xf32>
    %204 = tpu.matmul %189, %198, %cst_208 {dimension_numbers = #tpu.dot_dimension_numbers<[1], [0], [0], [1], [0, 0, 1, 1], [], []>} : vector<4x4xf32>, vector<4x32xf32>, vector<4x32xf32> -> vector<4x32xf32>
    %205 = arith.addf %203, %204 : vector<4x32xf32>
    %cst_209 = arith.constant 0.000000e+00 : f32
    %206 = vector.broadcast %cst_209 : f32 to vector<4x32xf32>
    %207 = arith.maximumf %205, %206 : vector<4x32xf32>
    %c0_210 = arith.constant 0 : index
    %c0_211 = arith.constant 0 : index
    %c0_212 = arith.constant 0 : index
    %208 = vector.load %arg39[%c0_210, %c0_211, %c0_212] : memref<3x32x32xf32, #tpu.memory_space<vmem>>, vector<1x32x32xf32>
    %209 = vector.shape_cast %208 : vector<1x32x32xf32> to vector<32x32xf32>
    %cst_213 = arith.constant dense<0.000000e+00> : vector<4x32xf32>
    %210 = tpu.matmul %207, %209, %cst_213 {dimension_numbers = #tpu.dot_dimension_numbers<[1], [0], [0], [1], [0, 0, 1, 1], [], []>} : vector<4x32xf32>, vector<32x32xf32>, vector<4x32xf32> -> vector<4x32xf32>
    %c1_214 = arith.constant 1 : index
    %c0_215 = arith.constant 0 : index
    %c0_216 = arith.constant 0 : index
    %211 = vector.load %arg39[%c1_214, %c0_215, %c0_216] : memref<3x32x32xf32, #tpu.memory_space<vmem>>, vector<1x32x32xf32>
    %212 = vector.shape_cast %211 : vector<1x32x32xf32> to vector<32x32xf32>
    %cst_217 = arith.constant dense<0.000000e+00> : vector<4x32xf32>
    %213 = tpu.matmul %207, %212, %cst_217 {dimension_numbers = #tpu.dot_dimension_numbers<[1], [0], [0], [1], [0, 0, 1, 1], [], []>} : vector<4x32xf32>, vector<32x32xf32>, vector<4x32xf32> -> vector<4x32xf32>
    %c2_218 = arith.constant 2 : index
    %c0_219 = arith.constant 0 : index
    %c0_220 = arith.constant 0 : index
    %214 = vector.load %arg39[%c2_218, %c0_219, %c0_220] : memref<3x32x32xf32, #tpu.memory_space<vmem>>, vector<1x32x32xf32>
    %215 = vector.shape_cast %214 : vector<1x32x32xf32> to vector<32x32xf32>
    %cst_221 = arith.constant dense<0.000000e+00> : vector<4x32xf32>
    %216 = tpu.matmul %207, %215, %cst_221 {dimension_numbers = #tpu.dot_dimension_numbers<[1], [0], [0], [1], [0, 0, 1, 1], [], []>} : vector<4x32xf32>, vector<32x32xf32>, vector<4x32xf32> -> vector<4x32xf32>
    %c0_222 = arith.constant 0 : index
    %c0_223 = arith.constant 0 : index
    %217 = vector.load %arg40[%c0_222, %c0_223] : memref<1x32xf32, #tpu.memory_space<vmem>>, vector<1x32xf32>
    %218 = vector.broadcast %217 : vector<1x32xf32> to vector<4x32xf32>
    %219 = arith.addf %218, %213 : vector<4x32xf32>
    %cst_224 = arith.constant dense<0.000000e+00> : vector<4x32xf32>
    %220 = tpu.matmul %187, %210, %cst_224 {dimension_numbers = #tpu.dot_dimension_numbers<[1], [0], [0], [1], [0, 0, 1, 1], [], []>} : vector<4x4xf32>, vector<4x32xf32>, vector<4x32xf32> -> vector<4x32xf32>
    %221 = arith.addf %219, %220 : vector<4x32xf32>
    %cst_225 = arith.constant dense<0.000000e+00> : vector<4x32xf32>
    %222 = tpu.matmul %189, %216, %cst_225 {dimension_numbers = #tpu.dot_dimension_numbers<[1], [0], [0], [1], [0, 0, 1, 1], [], []>} : vector<4x4xf32>, vector<4x32xf32>, vector<4x32xf32> -> vector<4x32xf32>
    %223 = arith.addf %221, %222 : vector<4x32xf32>
    %224 = arith.addf %185, %223 : vector<4x32xf32>
    %c0_226 = arith.constant 0 : index
    %c0_227 = arith.constant 0 : index
    %c0_228 = arith.constant 0 : index
    %225 = vector.load %arg4[%c0_226, %c0_227, %c0_228] : memref<2x4x4xf32, #tpu.memory_space<vmem>>, vector<1x4x4xf32>
    %226 = vector.shape_cast %225 : vector<1x4x4xf32> to vector<4x4xf32>
    %c1_229 = arith.constant 1 : index
    %c0_230 = arith.constant 0 : index
    %c0_231 = arith.constant 0 : index
    %227 = vector.load %arg4[%c1_229, %c0_230, %c0_231] : memref<2x4x4xf32, #tpu.memory_space<vmem>>, vector<1x4x4xf32>
    %228 = vector.shape_cast %227 : vector<1x4x4xf32> to vector<4x4xf32>
    %c0_232 = arith.constant 0 : index
    %c0_233 = arith.constant 0 : index
    %c0_234 = arith.constant 0 : index
    %229 = vector.load %arg33[%c0_232, %c0_233, %c0_234] : memref<3x32x32xf32, #tpu.memory_space<vmem>>, vector<1x32x32xf32>
    %230 = vector.shape_cast %229 : vector<1x32x32xf32> to vector<32x32xf32>
    %cst_235 = arith.constant dense<0.000000e+00> : vector<4x32xf32>
    %231 = tpu.matmul %224, %230, %cst_235 {dimension_numbers = #tpu.dot_dimension_numbers<[1], [0], [0], [1], [0, 0, 1, 1], [], []>} : vector<4x32xf32>, vector<32x32xf32>, vector<4x32xf32> -> vector<4x32xf32>
    %c1_236 = arith.constant 1 : index
    %c0_237 = arith.constant 0 : index
    %c0_238 = arith.constant 0 : index
    %232 = vector.load %arg33[%c1_236, %c0_237, %c0_238] : memref<3x32x32xf32, #tpu.memory_space<vmem>>, vector<1x32x32xf32>
    %233 = vector.shape_cast %232 : vector<1x32x32xf32> to vector<32x32xf32>
    %cst_239 = arith.constant dense<0.000000e+00> : vector<4x32xf32>
    %234 = tpu.matmul %224, %233, %cst_239 {dimension_numbers = #tpu.dot_dimension_numbers<[1], [0], [0], [1], [0, 0, 1, 1], [], []>} : vector<4x32xf32>, vector<32x32xf32>, vector<4x32xf32> -> vector<4x32xf32>
    %c2_240 = arith.constant 2 : index
    %c0_241 = arith.constant 0 : index
    %c0_242 = arith.constant 0 : index
    %235 = vector.load %arg33[%c2_240, %c0_241, %c0_242] : memref<3x32x32xf32, #tpu.memory_space<vmem>>, vector<1x32x32xf32>
    %236 = vector.shape_cast %235 : vector<1x32x32xf32> to vector<32x32xf32>
    %cst_243 = arith.constant dense<0.000000e+00> : vector<4x32xf32>
    %237 = tpu.matmul %224, %236, %cst_243 {dimension_numbers = #tpu.dot_dimension_numbers<[1], [0], [0], [1], [0, 0, 1, 1], [], []>} : vector<4x32xf32>, vector<32x32xf32>, vector<4x32xf32> -> vector<4x32xf32>
    %c0_244 = arith.constant 0 : index
    %c0_245 = arith.constant 0 : index
    %238 = vector.load %arg34[%c0_244, %c0_245] : memref<1x32xf32, #tpu.memory_space<vmem>>, vector<1x32xf32>
    %239 = vector.broadcast %238 : vector<1x32xf32> to vector<4x32xf32>
    %240 = arith.addf %239, %234 : vector<4x32xf32>
    %cst_246 = arith.constant dense<0.000000e+00> : vector<4x32xf32>
    %241 = tpu.matmul %226, %231, %cst_246 {dimension_numbers = #tpu.dot_dimension_numbers<[1], [0], [0], [1], [0, 0, 1, 1], [], []>} : vector<4x4xf32>, vector<4x32xf32>, vector<4x32xf32> -> vector<4x32xf32>
    %242 = arith.addf %240, %241 : vector<4x32xf32>
    %cst_247 = arith.constant dense<0.000000e+00> : vector<4x32xf32>
    %243 = tpu.matmul %228, %237, %cst_247 {dimension_numbers = #tpu.dot_dimension_numbers<[1], [0], [0], [1], [0, 0, 1, 1], [], []>} : vector<4x4xf32>, vector<4x32xf32>, vector<4x32xf32> -> vector<4x32xf32>
    %244 = arith.addf %242, %243 : vector<4x32xf32>
    %cst_248 = arith.constant 0.000000e+00 : f32
    %245 = vector.broadcast %cst_248 : f32 to vector<4x32xf32>
    %246 = arith.maximumf %244, %245 : vector<4x32xf32>
    %c0_249 = arith.constant 0 : index
    %c0_250 = arith.constant 0 : index
    %c0_251 = arith.constant 0 : index
    %247 = vector.load %arg35[%c0_249, %c0_250, %c0_251] : memref<3x32x32xf32, #tpu.memory_space<vmem>>, vector<1x32x32xf32>
    %248 = vector.shape_cast %247 : vector<1x32x32xf32> to vector<32x32xf32>
    %cst_252 = arith.constant dense<0.000000e+00> : vector<4x32xf32>
    %249 = tpu.matmul %246, %248, %cst_252 {dimension_numbers = #tpu.dot_dimension_numbers<[1], [0], [0], [1], [0, 0, 1, 1], [], []>} : vector<4x32xf32>, vector<32x32xf32>, vector<4x32xf32> -> vector<4x32xf32>
    %c1_253 = arith.constant 1 : index
    %c0_254 = arith.constant 0 : index
    %c0_255 = arith.constant 0 : index
    %250 = vector.load %arg35[%c1_253, %c0_254, %c0_255] : memref<3x32x32xf32, #tpu.memory_space<vmem>>, vector<1x32x32xf32>
    %251 = vector.shape_cast %250 : vector<1x32x32xf32> to vector<32x32xf32>
    %cst_256 = arith.constant dense<0.000000e+00> : vector<4x32xf32>
    %252 = tpu.matmul %246, %251, %cst_256 {dimension_numbers = #tpu.dot_dimension_numbers<[1], [0], [0], [1], [0, 0, 1, 1], [], []>} : vector<4x32xf32>, vector<32x32xf32>, vector<4x32xf32> -> vector<4x32xf32>
    %c2_257 = arith.constant 2 : index
    %c0_258 = arith.constant 0 : index
    %c0_259 = arith.constant 0 : index
    %253 = vector.load %arg35[%c2_257, %c0_258, %c0_259] : memref<3x32x32xf32, #tpu.memory_space<vmem>>, vector<1x32x32xf32>
    %254 = vector.shape_cast %253 : vector<1x32x32xf32> to vector<32x32xf32>
    %cst_260 = arith.constant dense<0.000000e+00> : vector<4x32xf32>
    %255 = tpu.matmul %246, %254, %cst_260 {dimension_numbers = #tpu.dot_dimension_numbers<[1], [0], [0], [1], [0, 0, 1, 1], [], []>} : vector<4x32xf32>, vector<32x32xf32>, vector<4x32xf32> -> vector<4x32xf32>
    %c0_261 = arith.constant 0 : index
    %c0_262 = arith.constant 0 : index
    %256 = vector.load %arg36[%c0_261, %c0_262] : memref<1x32xf32, #tpu.memory_space<vmem>>, vector<1x32xf32>
    %257 = vector.broadcast %256 : vector<1x32xf32> to vector<4x32xf32>
    %258 = arith.addf %257, %252 : vector<4x32xf32>
    %cst_263 = arith.constant dense<0.000000e+00> : vector<4x32xf32>
    %259 = tpu.matmul %226, %249, %cst_263 {dimension_numbers = #tpu.dot_dimension_numbers<[1], [0], [0], [1], [0, 0, 1, 1], [], []>} : vector<4x4xf32>, vector<4x32xf32>, vector<4x32xf32> -> vector<4x32xf32>
    %260 = arith.addf %258, %259 : vector<4x32xf32>
    %cst_264 = arith.constant dense<0.000000e+00> : vector<4x32xf32>
    %261 = tpu.matmul %228, %255, %cst_264 {dimension_numbers = #tpu.dot_dimension_numbers<[1], [0], [0], [1], [0, 0, 1, 1], [], []>} : vector<4x4xf32>, vector<4x32xf32>, vector<4x32xf32> -> vector<4x32xf32>
    %262 = arith.addf %260, %261 : vector<4x32xf32>
    %263 = arith.addf %224, %262 : vector<4x32xf32>
    %c0_265 = arith.constant 0 : index
    %c0_266 = arith.constant 0 : index
    %264 = vector.load %arg11[%c0_265, %c0_266] : memref<8x4xf32, #tpu.memory_space<vmem>>, vector<8x4xf32>
    %cst_267 = arith.constant dense<0.000000e+00> : vector<8x32xf32>
    %265 = tpu.matmul %264, %263, %cst_267 {dimension_numbers = #tpu.dot_dimension_numbers<[1], [0], [0], [1], [0, 0, 1, 1], [], []>} : vector<8x4xf32>, vector<4x32xf32>, vector<8x32xf32> -> vector<8x32xf32>
    %c0_268 = arith.constant 0 : index
    %c0_269 = arith.constant 0 : index
    %266 = vector.load %arg12[%c0_268, %c0_269] : memref<32x64xf32, #tpu.memory_space<vmem>>, vector<32x64xf32>
    %cst_270 = arith.constant dense<0.000000e+00> : vector<8x64xf32>
    %267 = tpu.matmul %265, %266, %cst_270 {dimension_numbers = #tpu.dot_dimension_numbers<[1], [0], [0], [1], [0, 0, 1, 1], [], []>} : vector<8x32xf32>, vector<32x64xf32>, vector<8x64xf32> -> vector<8x64xf32>
    %268 = arith.addf %132, %267 : vector<8x64xf32>
    %c0_271 = arith.constant 0 : index
    %c0_272 = arith.constant 0 : index
    %c0_273 = arith.constant 0 : index
    %269 = vector.load %arg3[%c0_271, %c0_272, %c0_273] : memref<2x8x8xf32, #tpu.memory_space<vmem>>, vector<1x8x8xf32>
    %270 = vector.shape_cast %269 : vector<1x8x8xf32> to vector<8x8xf32>
    %c1_274 = arith.constant 1 : index
    %c0_275 = arith.constant 0 : index
    %c0_276 = arith.constant 0 : index
    %271 = vector.load %arg3[%c1_274, %c0_275, %c0_276] : memref<2x8x8xf32, #tpu.memory_space<vmem>>, vector<1x8x8xf32>
    %272 = vector.shape_cast %271 : vector<1x8x8xf32> to vector<8x8xf32>
    %c0_277 = arith.constant 0 : index
    %c0_278 = arith.constant 0 : index
    %c0_279 = arith.constant 0 : index
    %273 = vector.load %arg21[%c0_277, %c0_278, %c0_279] : memref<3x64x64xf32, #tpu.memory_space<vmem>>, vector<1x64x64xf32>
    %274 = vector.shape_cast %273 : vector<1x64x64xf32> to vector<64x64xf32>
    %cst_280 = arith.constant dense<0.000000e+00> : vector<8x64xf32>
    %275 = tpu.matmul %268, %274, %cst_280 {dimension_numbers = #tpu.dot_dimension_numbers<[1], [0], [0], [1], [0, 0, 1, 1], [], []>} : vector<8x64xf32>, vector<64x64xf32>, vector<8x64xf32> -> vector<8x64xf32>
    %c1_281 = arith.constant 1 : index
    %c0_282 = arith.constant 0 : index
    %c0_283 = arith.constant 0 : index
    %276 = vector.load %arg21[%c1_281, %c0_282, %c0_283] : memref<3x64x64xf32, #tpu.memory_space<vmem>>, vector<1x64x64xf32>
    %277 = vector.shape_cast %276 : vector<1x64x64xf32> to vector<64x64xf32>
    %cst_284 = arith.constant dense<0.000000e+00> : vector<8x64xf32>
    %278 = tpu.matmul %268, %277, %cst_284 {dimension_numbers = #tpu.dot_dimension_numbers<[1], [0], [0], [1], [0, 0, 1, 1], [], []>} : vector<8x64xf32>, vector<64x64xf32>, vector<8x64xf32> -> vector<8x64xf32>
    %c2_285 = arith.constant 2 : index
    %c0_286 = arith.constant 0 : index
    %c0_287 = arith.constant 0 : index
    %279 = vector.load %arg21[%c2_285, %c0_286, %c0_287] : memref<3x64x64xf32, #tpu.memory_space<vmem>>, vector<1x64x64xf32>
    %280 = vector.shape_cast %279 : vector<1x64x64xf32> to vector<64x64xf32>
    %cst_288 = arith.constant dense<0.000000e+00> : vector<8x64xf32>
    %281 = tpu.matmul %268, %280, %cst_288 {dimension_numbers = #tpu.dot_dimension_numbers<[1], [0], [0], [1], [0, 0, 1, 1], [], []>} : vector<8x64xf32>, vector<64x64xf32>, vector<8x64xf32> -> vector<8x64xf32>
    %c0_289 = arith.constant 0 : index
    %c0_290 = arith.constant 0 : index
    %282 = vector.load %arg22[%c0_289, %c0_290] : memref<1x64xf32, #tpu.memory_space<vmem>>, vector<1x64xf32>
    %283 = vector.broadcast %282 : vector<1x64xf32> to vector<8x64xf32>
    %284 = arith.addf %283, %278 : vector<8x64xf32>
    %cst_291 = arith.constant dense<0.000000e+00> : vector<8x64xf32>
    %285 = tpu.matmul %270, %275, %cst_291 {dimension_numbers = #tpu.dot_dimension_numbers<[1], [0], [0], [1], [0, 0, 1, 1], [], []>} : vector<8x8xf32>, vector<8x64xf32>, vector<8x64xf32> -> vector<8x64xf32>
    %286 = arith.addf %284, %285 : vector<8x64xf32>
    %cst_292 = arith.constant dense<0.000000e+00> : vector<8x64xf32>
    %287 = tpu.matmul %272, %281, %cst_292 {dimension_numbers = #tpu.dot_dimension_numbers<[1], [0], [0], [1], [0, 0, 1, 1], [], []>} : vector<8x8xf32>, vector<8x64xf32>, vector<8x64xf32> -> vector<8x64xf32>
    %288 = arith.addf %286, %287 : vector<8x64xf32>
    %cst_293 = arith.constant 0.000000e+00 : f32
    %289 = vector.broadcast %cst_293 : f32 to vector<8x64xf32>
    %290 = arith.maximumf %288, %289 : vector<8x64xf32>
    %c0_294 = arith.constant 0 : index
    %c0_295 = arith.constant 0 : index
    %c0_296 = arith.constant 0 : index
    %291 = vector.load %arg23[%c0_294, %c0_295, %c0_296] : memref<3x64x64xf32, #tpu.memory_space<vmem>>, vector<1x64x64xf32>
    %292 = vector.shape_cast %291 : vector<1x64x64xf32> to vector<64x64xf32>
    %cst_297 = arith.constant dense<0.000000e+00> : vector<8x64xf32>
    %293 = tpu.matmul %290, %292, %cst_297 {dimension_numbers = #tpu.dot_dimension_numbers<[1], [0], [0], [1], [0, 0, 1, 1], [], []>} : vector<8x64xf32>, vector<64x64xf32>, vector<8x64xf32> -> vector<8x64xf32>
    %c1_298 = arith.constant 1 : index
    %c0_299 = arith.constant 0 : index
    %c0_300 = arith.constant 0 : index
    %294 = vector.load %arg23[%c1_298, %c0_299, %c0_300] : memref<3x64x64xf32, #tpu.memory_space<vmem>>, vector<1x64x64xf32>
    %295 = vector.shape_cast %294 : vector<1x64x64xf32> to vector<64x64xf32>
    %cst_301 = arith.constant dense<0.000000e+00> : vector<8x64xf32>
    %296 = tpu.matmul %290, %295, %cst_301 {dimension_numbers = #tpu.dot_dimension_numbers<[1], [0], [0], [1], [0, 0, 1, 1], [], []>} : vector<8x64xf32>, vector<64x64xf32>, vector<8x64xf32> -> vector<8x64xf32>
    %c2_302 = arith.constant 2 : index
    %c0_303 = arith.constant 0 : index
    %c0_304 = arith.constant 0 : index
    %297 = vector.load %arg23[%c2_302, %c0_303, %c0_304] : memref<3x64x64xf32, #tpu.memory_space<vmem>>, vector<1x64x64xf32>
    %298 = vector.shape_cast %297 : vector<1x64x64xf32> to vector<64x64xf32>
    %cst_305 = arith.constant dense<0.000000e+00> : vector<8x64xf32>
    %299 = tpu.matmul %290, %298, %cst_305 {dimension_numbers = #tpu.dot_dimension_numbers<[1], [0], [0], [1], [0, 0, 1, 1], [], []>} : vector<8x64xf32>, vector<64x64xf32>, vector<8x64xf32> -> vector<8x64xf32>
    %c0_306 = arith.constant 0 : index
    %c0_307 = arith.constant 0 : index
    %300 = vector.load %arg24[%c0_306, %c0_307] : memref<1x64xf32, #tpu.memory_space<vmem>>, vector<1x64xf32>
    %301 = vector.broadcast %300 : vector<1x64xf32> to vector<8x64xf32>
    %302 = arith.addf %301, %296 : vector<8x64xf32>
    %cst_308 = arith.constant dense<0.000000e+00> : vector<8x64xf32>
    %303 = tpu.matmul %270, %293, %cst_308 {dimension_numbers = #tpu.dot_dimension_numbers<[1], [0], [0], [1], [0, 0, 1, 1], [], []>} : vector<8x8xf32>, vector<8x64xf32>, vector<8x64xf32> -> vector<8x64xf32>
    %304 = arith.addf %302, %303 : vector<8x64xf32>
    %cst_309 = arith.constant dense<0.000000e+00> : vector<8x64xf32>
    %305 = tpu.matmul %272, %299, %cst_309 {dimension_numbers = #tpu.dot_dimension_numbers<[1], [0], [0], [1], [0, 0, 1, 1], [], []>} : vector<8x8xf32>, vector<8x64xf32>, vector<8x64xf32> -> vector<8x64xf32>
    %306 = arith.addf %304, %305 : vector<8x64xf32>
    %307 = arith.addf %268, %306 : vector<8x64xf32>
    %c0_310 = arith.constant 0 : index
    %c0_311 = arith.constant 0 : index
    %308 = vector.load %arg7[%c0_310, %c0_311] : memref<16x8xf32, #tpu.memory_space<vmem>>, vector<16x8xf32>
    %cst_312 = arith.constant dense<0.000000e+00> : vector<16x64xf32>
    %309 = tpu.matmul %308, %307, %cst_312 {dimension_numbers = #tpu.dot_dimension_numbers<[1], [0], [0], [1], [0, 0, 1, 1], [], []>} : vector<16x8xf32>, vector<8x64xf32>, vector<16x64xf32> -> vector<16x64xf32>
    %c0_313 = arith.constant 0 : index
    %c0_314 = arith.constant 0 : index
    %310 = vector.load %arg8[%c0_313, %c0_314] : memref<64x128xf32, #tpu.memory_space<vmem>>, vector<64x128xf32>
    %cst_315 = arith.constant dense<0.000000e+00> : vector<16x128xf32>
    %311 = tpu.matmul %309, %310, %cst_315 {dimension_numbers = #tpu.dot_dimension_numbers<[1], [0], [0], [1], [0, 0, 1, 1], [], []>} : vector<16x64xf32>, vector<64x128xf32>, vector<16x128xf32> -> vector<16x128xf32>
    %312 = arith.addf %40, %311 : vector<16x128xf32>
    %c0_316 = arith.constant 0 : index
    %c0_317 = arith.constant 0 : index
    %c0_318 = arith.constant 0 : index
    %313 = vector.load %arg41[%c0_316, %c0_317, %c0_318] : memref<1x16x128xf32, #tpu.memory_space<vmem>>, vector<1x16x128xf32>
    %314 = vector.shape_cast %313 : vector<1x16x128xf32> to vector<16x128xf32>
    %315 = vector.shape_cast %312 : vector<16x128xf32> to vector<1x16x128xf32>
    tpu.vector_store %arg41[%c0_316, %c0_317, %c0_318], %315 {strides = array<i32>} : memref<1x16x128xf32, #tpu.memory_space<vmem>>, vector<1x16x128xf32>,
    return
  }
  func.func @transform_0(%arg0: i32) -> (i32, i32, i32) {
    %c0_i32 = arith.constant 0 : i32
    %c0_i32_0 = arith.constant 0 : i32
    %c0_i32_1 = arith.constant 0 : i32
    return %arg0, %c0_i32, %c0_i32_0 : i32, i32, i32
  }
  func.func @transform_1(%arg0: i32) -> (i32, i32, i32) {
    %c0_i32 = arith.constant 0 : i32
    %c0_i32_0 = arith.constant 0 : i32
    %c0_i32_1 = arith.constant 0 : i32
    %c0_i32_2 = arith.constant 0 : i32
    return %c0_i32, %c0_i32_0, %c0_i32_1 : i32, i32, i32
  }
  func.func @transform_2(%arg0: i32) -> (i32, i32, i32) {
    %c0_i32 = arith.constant 0 : i32
    %c0_i32_0 = arith.constant 0 : i32
    %c0_i32_1 = arith.constant 0 : i32
    %c0_i32_2 = arith.constant 0 : i32
    return %c0_i32, %c0_i32_0, %c0_i32_1 : i32, i32, i32
  }
  func.func @transform_3(%arg0: i32) -> (i32, i32, i32) {
    %c0_i32 = arith.constant 0 : i32
    %c0_i32_0 = arith.constant 0 : i32
    %c0_i32_1 = arith.constant 0 : i32
    %c0_i32_2 = arith.constant 0 : i32
    return %c0_i32, %c0_i32_0, %c0_i32_1 : i32, i32, i32
  }
  func.func @transform_4(%arg0: i32) -> (i32, i32, i32) {
    %c0_i32 = arith.constant 0 : i32
    %c0_i32_0 = arith.constant 0 : i32
    %c0_i32_1 = arith.constant 0 : i32
    %c0_i32_2 = arith.constant 0 : i32
    return %c0_i32, %c0_i32_0, %c0_i32_1 : i32, i32, i32
  }
  func.func @transform_5(%arg0: i32) -> (i32, i32, i32) {
    %c0_i32 = arith.constant 0 : i32
    %c0_i32_0 = arith.constant 0 : i32
    %c0_i32_1 = arith.constant 0 : i32
    %c0_i32_2 = arith.constant 0 : i32
    return %c0_i32, %c0_i32_0, %c0_i32_1 : i32, i32, i32
  }
  func.func @transform_6(%arg0: i32) -> (i32, i32) {
    %c0_i32 = arith.constant 0 : i32
    %c0_i32_0 = arith.constant 0 : i32
    %c0_i32_1 = arith.constant 0 : i32
    return %c0_i32, %c0_i32_0 : i32, i32
  }
  func.func @transform_7(%arg0: i32) -> (i32, i32) {
    %c0_i32 = arith.constant 0 : i32
    %c0_i32_0 = arith.constant 0 : i32
    %c0_i32_1 = arith.constant 0 : i32
    return %c0_i32, %c0_i32_0 : i32, i32
  }
  func.func @transform_8(%arg0: i32) -> (i32, i32, i32) {
    %c0_i32 = arith.constant 0 : i32
    %c0_i32_0 = arith.constant 0 : i32
    %c0_i32_1 = arith.constant 0 : i32
    %c0_i32_2 = arith.constant 0 : i32
    return %c0_i32, %c0_i32_0, %c0_i32_1 : i32, i32, i32
  }
  func.func @transform_9(%arg0: i32) -> (i32, i32, i32) {
    %c0_i32 = arith.constant 0 : i32
    %c0_i32_0 = arith.constant 0 : i32
    %c0_i32_1 = arith.constant 0 : i32
    %c0_i32_2 = arith.constant 0 : i32
    return %c0_i32, %c0_i32_0, %c0_i32_1 : i32, i32, i32
  }
  func.func @transform_10(%arg0: i32) -> (i32, i32) {
    %c0_i32 = arith.constant 0 : i32
    %c0_i32_0 = arith.constant 0 : i32
    %c0_i32_1 = arith.constant 0 : i32
    return %c0_i32, %c0_i32_0 : i32, i32
  }
  func.func @transform_11(%arg0: i32) -> (i32, i32) {
    %c0_i32 = arith.constant 0 : i32
    %c0_i32_0 = arith.constant 0 : i32
    %c0_i32_1 = arith.constant 0 : i32
    return %c0_i32, %c0_i32_0 : i32, i32
  }
  func.func @transform_12(%arg0: i32) -> (i32, i32, i32) {
    %c0_i32 = arith.constant 0 : i32
    %c0_i32_0 = arith.constant 0 : i32
    %c0_i32_1 = arith.constant 0 : i32
    %c0_i32_2 = arith.constant 0 : i32
    return %c0_i32, %c0_i32_0, %c0_i32_1 : i32, i32, i32
  }
  func.func @transform_13(%arg0: i32) -> (i32, i32) {
    %c0_i32 = arith.constant 0 : i32
    %c0_i32_0 = arith.constant 0 : i32
    %c0_i32_1 = arith.constant 0 : i32
    return %c0_i32, %c0_i32_0 : i32, i32
  }
  func.func @transform_14(%arg0: i32) -> (i32, i32, i32) {
    %c0_i32 = arith.constant 0 : i32
    %c0_i32_0 = arith.constant 0 : i32
    %c0_i32_1 = arith.constant 0 : i32
    %c0_i32_2 = arith.constant 0 : i32
    return %c0_i32, %c0_i32_0, %c0_i32_1 : i32, i32, i32
  }
  func.func @transform_15(%arg0: i32) -> (i32, i32) {
    %c0_i32 = arith.constant 0 : i32
    %c0_i32_0 = arith.constant 0 : i32
    %c0_i32_1 = arith.constant 0 : i32
    return %c0_i32, %c0_i32_0 : i32, i32
  }
  func.func @transform_16(%arg0: i32) -> (i32, i32, i32) {
    %c0_i32 = arith.constant 0 : i32
    %c0_i32_0 = arith.constant 0 : i32
    %c0_i32_1 = arith.constant 0 : i32
    %c0_i32_2 = arith.constant 0 : i32
    return %c0_i32, %c0_i32_0, %c0_i32_1 : i32, i32, i32
  }
  func.func @transform_17(%arg0: i32) -> (i32, i32) {
    %c0_i32 = arith.constant 0 : i32
    %c0_i32_0 = arith.constant 0 : i32
    %c0_i32_1 = arith.constant 0 : i32
    return %c0_i32, %c0_i32_0 : i32, i32
  }
  func.func @transform_18(%arg0: i32) -> (i32, i32, i32) {
    %c0_i32 = arith.constant 0 : i32
    %c0_i32_0 = arith.constant 0 : i32
    %c0_i32_1 = arith.constant 0 : i32
    %c0_i32_2 = arith.constant 0 : i32
    return %c0_i32, %c0_i32_0, %c0_i32_1 : i32, i32, i32
  }
  func.func @transform_19(%arg0: i32) -> (i32, i32) {
    %c0_i32 = arith.constant 0 : i32
    %c0_i32_0 = arith.constant 0 : i32
    %c0_i32_1 = arith.constant 0 : i32
    return %c0_i32, %c0_i32_0 : i32, i32
  }
  func.func @transform_20(%arg0: i32) -> (i32, i32, i32) {
    %c0_i32 = arith.constant 0 : i32
    %c0_i32_0 = arith.constant 0 : i32
    %c0_i32_1 = arith.constant 0 : i32
    %c0_i32_2 = arith.constant 0 : i32
    return %c0_i32, %c0_i32_0, %c0_i32_1 : i32, i32, i32
  }
  func.func @transform_21(%arg0: i32) -> (i32, i32) {
    %c0_i32 = arith.constant 0 : i32
    %c0_i32_0 = arith.constant 0 : i32
    %c0_i32_1 = arith.constant 0 : i32
    return %c0_i32, %c0_i32_0 : i32, i32
  }
  func.func @transform_22(%arg0: i32) -> (i32, i32, i32) {
    %c0_i32 = arith.constant 0 : i32
    %c0_i32_0 = arith.constant 0 : i32
    %c0_i32_1 = arith.constant 0 : i32
    %c0_i32_2 = arith.constant 0 : i32
    return %c0_i32, %c0_i32_0, %c0_i32_1 : i32, i32, i32
  }
  func.func @transform_23(%arg0: i32) -> (i32, i32) {
    %c0_i32 = arith.constant 0 : i32
    %c0_i32_0 = arith.constant 0 : i32
    %c0_i32_1 = arith.constant 0 : i32
    return %c0_i32, %c0_i32_0 : i32, i32
  }
  func.func @transform_24(%arg0: i32) -> (i32, i32, i32) {
    %c0_i32 = arith.constant 0 : i32
    %c0_i32_0 = arith.constant 0 : i32
    %c0_i32_1 = arith.constant 0 : i32
    %c0_i32_2 = arith.constant 0 : i32
    return %c0_i32, %c0_i32_0, %c0_i32_1 : i32, i32, i32
  }
  func.func @transform_25(%arg0: i32) -> (i32, i32) {
    %c0_i32 = arith.constant 0 : i32
    %c0_i32_0 = arith.constant 0 : i32
    %c0_i32_1 = arith.constant 0 : i32
    return %c0_i32, %c0_i32_0 : i32, i32
  }
  func.func @transform_26(%arg0: i32) -> (i32, i32, i32) {
    %c0_i32 = arith.constant 0 : i32
    %c0_i32_0 = arith.constant 0 : i32
    %c0_i32_1 = arith.constant 0 : i32
    %c0_i32_2 = arith.constant 0 : i32
    return %c0_i32, %c0_i32_0, %c0_i32_1 : i32, i32, i32
  }
  func.func @transform_27(%arg0: i32) -> (i32, i32) {
    %c0_i32 = arith.constant 0 : i32
    %c0_i32_0 = arith.constant 0 : i32
    %c0_i32_1 = arith.constant 0 : i32
    return %c0_i32, %c0_i32_0 : i32, i32
  }
  func.func @transform_28(%arg0: i32) -> (i32, i32, i32) {
    %c0_i32 = arith.constant 0 : i32
    %c0_i32_0 = arith.constant 0 : i32
    %c0_i32_1 = arith.constant 0 : i32
    %c0_i32_2 = arith.constant 0 : i32
    return %c0_i32, %c0_i32_0, %c0_i32_1 : i32, i32, i32
  }
  func.func @transform_29(%arg0: i32) -> (i32, i32) {
    %c0_i32 = arith.constant 0 : i32
    %c0_i32_0 = arith.constant 0 : i32
    %c0_i32_1 = arith.constant 0 : i32
    return %c0_i32, %c0_i32_0 : i32, i32
  }
  func.func @transform_30(%arg0: i32) -> (i32, i32, i32) {
    %c0_i32 = arith.constant 0 : i32
    %c0_i32_0 = arith.constant 0 : i32
    %c0_i32_1 = arith.constant 0 : i32
    %c0_i32_2 = arith.constant 0 : i32
    return %c0_i32, %c0_i32_0, %c0_i32_1 : i32, i32, i32
  }
  func.func @transform_31(%arg0: i32) -> (i32, i32) {
    %c0_i32 = arith.constant 0 : i32
    %c0_i32_0 = arith.constant 0 : i32
    %c0_i32_1 = arith.constant 0 : i32
    return %c0_i32, %c0_i32_0 : i32, i32
  }
  func.func @transform_32(%arg0: i32) -> (i32, i32, i32) {
    %c0_i32 = arith.constant 0 : i32
    %c0_i32_0 = arith.constant 0 : i32
    %c0_i32_1 = arith.constant 0 : i32
    %c0_i32_2 = arith.constant 0 : i32
    return %c0_i32, %c0_i32_0, %c0_i32_1 : i32, i32, i32
  }
  func.func @transform_33(%arg0: i32) -> (i32, i32) {
    %c0_i32 = arith.constant 0 : i32
    %c0_i32_0 = arith.constant 0 : i32
    %c0_i32_1 = arith.constant 0 : i32
    return %c0_i32, %c0_i32_0 : i32, i32
  }
  func.func @transform_34(%arg0: i32) -> (i32, i32, i32) {
    %c0_i32 = arith.constant 0 : i32
    %c0_i32_0 = arith.constant 0 : i32
    %c0_i32_1 = arith.constant 0 : i32
    %c0_i32_2 = arith.constant 0 : i32
    return %c0_i32, %c0_i32_0, %c0_i32_1 : i32, i32, i32
  }
  func.func @transform_35(%arg0: i32) -> (i32, i32) {
    %c0_i32 = arith.constant 0 : i32
    %c0_i32_0 = arith.constant 0 : i32
    %c0_i32_1 = arith.constant 0 : i32
    return %c0_i32, %c0_i32_0 : i32, i32
  }
  func.func @transform_36(%arg0: i32) -> (i32, i32, i32) {
    %c0_i32 = arith.constant 0 : i32
    %c0_i32_0 = arith.constant 0 : i32
    %c0_i32_1 = arith.constant 0 : i32
    %c0_i32_2 = arith.constant 0 : i32
    return %c0_i32, %c0_i32_0, %c0_i32_1 : i32, i32, i32
  }
  func.func @transform_37(%arg0: i32) -> (i32, i32) {
    %c0_i32 = arith.constant 0 : i32
    %c0_i32_0 = arith.constant 0 : i32
    %c0_i32_1 = arith.constant 0 : i32
    return %c0_i32, %c0_i32_0 : i32, i32
  }
  func.func @transform_38(%arg0: i32) -> (i32, i32, i32) {
    %c0_i32 = arith.constant 0 : i32
    %c0_i32_0 = arith.constant 0 : i32
    %c0_i32_1 = arith.constant 0 : i32
    %c0_i32_2 = arith.constant 0 : i32
    return %c0_i32, %c0_i32_0, %c0_i32_1 : i32, i32, i32
  }
  func.func @transform_39(%arg0: i32) -> (i32, i32) {
    %c0_i32 = arith.constant 0 : i32
    %c0_i32_0 = arith.constant 0 : i32
    %c0_i32_1 = arith.constant 0 : i32
    return %c0_i32, %c0_i32_0 : i32, i32
  }
  func.func @transform_40(%arg0: i32) -> (i32, i32, i32) {
    %c0_i32 = arith.constant 0 : i32
    %c0_i32_0 = arith.constant 0 : i32
    %c0_i32_1 = arith.constant 0 : i32
    return %arg0, %c0_i32, %c0_i32_0 : i32, i32, i32
  }
}

</mosaic_0001>

<llo_original>
// kernel: fwd.1
$region0: #{fwd.1}
  #allocation0 [shape = 'u32[]', space=smem, size = 0x4, offset = 0x4, fixed_abs, tag = 'smem constant byte address 0x4 - core index']
  #allocation1 [shape = 'u32[144,128]{1,0:T(1,128)}', space=vmem, size = 0x12000, scoped, tag = 'internal scratch']
  %s0 = inlined_call_operand.smem [shape: u32[41], index: -1, kind: input, shape index: {}]
  %s1 = sld [smem:[%s0]]
  %s2 = scalar_lea.smem %s0, 1
  %s3 = sld [smem:[%s2]]
  %s4 = scalar_lea.smem %s0, 2
  %s5 = sld [smem:[%s4]]
  %s6 = scalar_lea.smem %s0, 3
  %s7 = sld [smem:[%s6]]
  %s8 = scalar_lea.smem %s0, 4
  %s9 = sld [smem:[%s8]]
  %s10 = scalar_lea.smem %s0, 5
  %s11 = sld [smem:[%s10]]
  %s12 = scalar_lea.smem %s0, 6
  %s13 = sld [smem:[%s12]]
  %s14 = scalar_lea.smem %s0, 7
  %s15 = sld [smem:[%s14]]
  %s16 = scalar_lea.smem %s0, 8
  %s17 = sld [smem:[%s16]]
  %s18 = scalar_lea.smem %s0, 9
  %s19 = sld [smem:[%s18]]
  %s20 = scalar_lea.smem %s0, 10
  %s21 = sld [smem:[%s20]]
  %s22 = scalar_lea.smem %s0, 11
  %s23 = sld [smem:[%s22]]
  %s24 = scalar_lea.smem %s0, 12
  %s25 = sld [smem:[%s24]]
  %s26 = scalar_lea.smem %s0, 13
  %s27 = sld [smem:[%s26]]
  %s28 = scalar_lea.smem %s0, 14
  %s29 = sld [smem:[%s28]]
  %s30 = scalar_lea.smem %s0, 15
  %s31 = sld [smem:[%s30]]
  %s32 = scalar_lea.smem %s0, 16
  %s33 = sld [smem:[%s32]]
  %s34 = scalar_lea.smem %s0, 17
  %s35 = sld [smem:[%s34]]
  %s36 = scalar_lea.smem %s0, 18
  %s37 = sld [smem:[%s36]]
  %s38 = scalar_lea.smem %s0, 19
  %s39 = sld [smem:[%s38]]
  %s40 = scalar_lea.smem %s0, 20
  %s41 = sld [smem:[%s40]]
  %s42 = scalar_lea.smem %s0, 21
  %s43 = sld [smem:[%s42]]
  %s44 = scalar_lea.smem %s0, 22
  %s45 = sld [smem:[%s44]]
  %s46 = scalar_lea.smem %s0, 23
  %s47 = sld [smem:[%s46]]
  %s48 = scalar_lea.smem %s0, 24
  %s49 = sld [smem:[%s48]]
  %s50 = scalar_lea.smem %s0, 25
  %s51 = sld [smem:[%s50]]
  %s52 = scalar_lea.smem %s0, 26
  %s53 = sld [smem:[%s52]]
  %s54 = scalar_lea.smem %s0, 27
  %s55 = sld [smem:[%s54]]
  %s56 = scalar_lea.smem %s0, 28
  %s57 = sld [smem:[%s56]]
  %s58 = scalar_lea.smem %s0, 29
  %s59 = sld [smem:[%s58]]
  %s60 = scalar_lea.smem %s0, 30
  %s61 = sld [smem:[%s60]]
  %s62 = scalar_lea.smem %s0, 31
  %s63 = sld [smem:[%s62]]
  %s64 = scalar_lea.smem %s0, 32
  %s65 = sld [smem:[%s64]]
  %s66 = scalar_lea.smem %s0, 33
  %s67 = sld [smem:[%s66]]
  %s68 = scalar_lea.smem %s0, 34
  %s69 = sld [smem:[%s68]]
  %s70 = scalar_lea.smem %s0, 35
  %s71 = sld [smem:[%s70]]
  %s72 = scalar_lea.smem %s0, 36
  %s73 = sld [smem:[%s72]]
  %s74 = scalar_lea.smem %s0, 37
  %s75 = sld [smem:[%s74]]
  %s76 = scalar_lea.smem %s0, 38
  %s77 = sld [smem:[%s76]]
  %s78 = scalar_lea.smem %s0, 39
  %s79 = sld [smem:[%s78]]
  %s80 = scalar_lea.smem %s0, 40
  %s81 = sld [smem:[%s80]]
  %s82 = sld [smem:[#allocation0]]
  $region269: #{fwd.1} parent=0
    _
  %s84 = ssub.s32 1, %s82
  %s85 = scalar_select 0, %s84, %s82
  $region1: #{fwd.1} parent=0
    #allocation2 [shape = 'u8[16384]{0}', space=vmem, size = 0x4000, scoped, tag = 'input window, operand 1, single buffered']
    #allocation3 [shape = 's32[2]{0}', space=sflag, size = 0x8, scoped, tag = 'scoped memory for fwd.1']
    #allocation4 [shape = 'u8[8192]{0}', space=vmem, size = 0x2000, scoped, tag = 'input window, operand 2, single buffered']
    #allocation5 [shape = 's32[1]{0}', space=sflag, size = 0x4, scoped, tag = 'scoped memory for fwd.1']
    #allocation6 [shape = 'u8[8192]{0}', space=vmem, size = 0x2000, scoped, tag = 'input window, operand 4, single buffered']
    #allocation7 [shape = 'u8[32768]{0}', space=vmem, size = 0x8000, scoped, tag = 'input window, operand 7, single buffered']
    #allocation8 [shape = 's32[1]{0}', space=sflag, size = 0x4, scoped, tag = 'scoped memory for fwd.1']
    #allocation9 [shape = 'u8[4096]{0}', space=vmem, size = 0x1000, scoped, tag = 'input window, operand 8, single buffered']
    #allocation10 [shape = 'u8[16384]{0}', space=vmem, size = 0x4000, scoped, tag = 'input window, operand 11, single buffered']
    #allocation11 [shape = 's32[1]{0}', space=sflag, size = 0x4, scoped, tag = 'scoped memory for fwd.1']
    #allocation12 [shape = 'u8[512]{0}', space=vmem, size = 0x400, scoped, tag = 'input window, operand 17, single buffered']
    #allocation13 [shape = 'u8[512]{0}', space=vmem, size = 0x400, scoped, tag = 'input window, operand 19, single buffered']
    #allocation14 [shape = 's32[1]{0}', space=sflag, size = 0x4, scoped, tag = 'scoped memory for fwd.1']
    #allocation15 [shape = 'u8[512]{0}', space=vmem, size = 0x400, scoped, tag = 'input window, operand 21, single buffered']
    #allocation16 [shape = 'u8[98304]{0}', space=vmem, size = 0x18000, scoped, tag = 'input window, operand 22, single buffered']
    #allocation17 [shape = 's32[1]{0}', space=sflag, size = 0x4, scoped, tag = 'scoped memory for fwd.1']
    #allocation18 [shape = 'u8[512]{0}', space=vmem, size = 0x400, scoped, tag = 'input window, operand 23, single buffered']
    #allocation19 [shape = 'u8[98304]{0}', space=vmem, size = 0x18000, scoped, tag = 'input window, operand 24, single buffered']
    #allocation20 [shape = 's32[1]{0}', space=sflag, size = 0x4, scoped, tag = 'scoped memory for fwd.1']
    #allocation21 [shape = 'u8[98304]{0}', space=vmem, size = 0x18000, scoped, tag = 'input window, operand 26, single buffered']
    #allocation22 [shape = 'u8[512]{0}', space=vmem, size = 0x400, scoped, tag = 'input window, operand 27, single buffered']
    #allocation23 [shape = 's32[1]{0}', space=sflag, size = 0x4, scoped, tag = 'scoped memory for fwd.1']
    #allocation24 [shape = 'u8[49152]{0}', space=vmem, size = 0xc000, scoped, tag = 'input window, operand 30, single buffered']
    #allocation25 [shape = 'u8[49152]{0}', space=vmem, size = 0xc000, scoped, tag = 'input window, operand 32, single buffered']
    #allocation26 [shape = 's32[1]{0}', space=sflag, size = 0x4, scoped, tag = 'scoped memory for fwd.1']
    #allocation27 [shape = 'u8[49152]{0}', space=vmem, size = 0xc000, scoped, tag = 'input window, operand 34, single buffered']
    #allocation28 [shape = 'u8[49152]{0}', space=vmem, size = 0xc000, scoped, tag = 'input window, operand 36, single buffered']
    #allocation29 [shape = 's32[1]{0}', space=sflag, size = 0x4, scoped, tag = 'scoped memory for fwd.1']
    #allocation30 [shape = 'u8[49152]{0}', space=vmem, size = 0xc000, scoped, tag = 'input window, operand 38, single buffered']
    %86 = vsyncpa [#allocation3], 0
    %87 = vsyncpa [#allocation5], 0
    %88 = vsyncpa [#allocation8], 0
    %89 = vsyncpa [#allocation11], 0
    %90 = vsyncpa [#allocation14], 0
    %91 = vsyncpa [#allocation17], 0
    %92 = vsyncpa [#allocation20], 0
    %93 = vsyncpa [#allocation23], 0
    %94 = vsyncpa [#allocation26], 0
    %95 = vsyncpa [#allocation29], 0
    loop: start=0, step=1, limit=4
    $region2: #{fwd.1} parent=1 // loop_pre_header
      _
    $region3: #{fwd.1} parent=1 // loop_header
      %s97 = sphi 0, %s101
      %p98 = scmp.ge.s32.totalorder %s97, 4
      %s107 = sphi 0, %s109
      %s110 = sphi 0, %s107
      %s111 = sphi 0, %s110
      %s127 = sphi 0, %s111
      %s131 = sphi 0, %s131
      %s133 = sphi 0, %s131
      %s134 = sphi 0, %s133
      %s148 = sphi 0, %s134
      %s152 = sphi 0, %s152
      %s154 = sphi 0, %s152
      %s155 = sphi 0, %s154
      %s169 = sphi 0, %s155
      %s173 = sphi 0, %s173
      %s175 = sphi 0, %s173
      %s176 = sphi 0, %s175
      %s190 = sphi 0, %s176
      %s194 = sphi 0, %s194
      %s196 = sphi 0, %s194
      %s197 = sphi 0, %s196
      %s211 = sphi 0, %s197
      %s215 = sphi 0, %s215
      %s217 = sphi 0, %s215
      %s218 = sphi 0, %s217
      %s232 = sphi 0, %s218
      %s236 = sphi 0, %s236
      %s238 = sphi 0, %s236
      %s239 = sphi 0, %s238
      %s253 = sphi 0, %s239
      %s257 = sphi 0, %s257
      %s259 = sphi 0, %s257
      %s260 = sphi 0, %s259
      %s274 = sphi 0, %s260
      %s278 = sphi 0, %s278
      %s280 = sphi 0, %s278
      %s281 = sphi 0, %s280
      %s295 = sphi 0, %s281
      %s299 = sphi 0, %s299
      %s301 = sphi 0, %s299
      %s302 = sphi 0, %s301
      %s316 = sphi 0, %s302
      %s320 = sphi 0, %s320
      %s322 = sphi 0, %s320
      %s323 = sphi 0, %s322
      %s337 = sphi 0, %s323
      %s341 = sphi 0, %s341
      %s343 = sphi 0, %s341
      %s344 = sphi 0, %s343
      %s358 = sphi 0, %s344
      %s362 = sphi 0, %s362
      %s364 = sphi 0, %s362
      %s365 = sphi 0, %s364
      %s379 = sphi 0, %s365
      %s383 = sphi 0, %s383
      %s385 = sphi 0, %s383
      %s386 = sphi 0, %s385
      %s400 = sphi 0, %s386
      %s404 = sphi 0, %s404
      %s406 = sphi 0, %s404
      %s407 = sphi 0, %s406
      %s421 = sphi 0, %s407
      %s425 = sphi 0, %s425
      %s427 = sphi 0, %s425
      %s428 = sphi 0, %s427
      %s442 = sphi 0, %s428
      %s446 = sphi 0, %s446
      %s448 = sphi 0, %s446
      %s449 = sphi 0, %s448
      %s463 = sphi 0, %s449
      %s467 = sphi 0, %s467
      %s469 = sphi 0, %s467
      %s470 = sphi 0, %s469
      %s484 = sphi 0, %s470
      %s488 = sphi 0, %s488
      %s490 = sphi 0, %s488
      %s491 = sphi 0, %s490
      %s505 = sphi 0, %s491
      %s509 = sphi 0, %s509
      %s511 = sphi 0, %s509
      %s512 = sphi 0, %s511
      %s526 = sphi 0, %s512
      %s530 = sphi 0, %s530
      %s532 = sphi 0, %s530
      %s533 = sphi 0, %s532
      %s547 = sphi 0, %s533
      %s551 = sphi 0, %s551
      %s553 = sphi 0, %s551
      %s554 = sphi 0, %s553
      %s568 = sphi 0, %s554
      %s572 = sphi 0, %s572
      %s574 = sphi 0, %s572
      %s575 = sphi 0, %s574
      %s589 = sphi 0, %s575
      %s593 = sphi 0, %s593
      %s595 = sphi 0, %s593
      %s596 = sphi 0, %s595
      %s610 = sphi 0, %s596
      %s614 = sphi 0, %s614
      %s616 = sphi 0, %s614
      %s617 = sphi 0, %s616
      %s631 = sphi 0, %s617
      %s635 = sphi 0, %s635
      %s637 = sphi 0, %s635
      %s638 = sphi 0, %s637
      %s652 = sphi 0, %s638
      %s656 = sphi 0, %s656
      %s658 = sphi 0, %s656
      %s659 = sphi 0, %s658
      %s673 = sphi 0, %s659
      %s677 = sphi 0, %s677
      %s679 = sphi 0, %s677
      %s680 = sphi 0, %s679
      %s694 = sphi 0, %s680
      %s698 = sphi 0, %s698
      %s700 = sphi 0, %s698
      %s701 = sphi 0, %s700
      %s715 = sphi 0, %s701
      %s719 = sphi 0, %s719
      %s721 = sphi 0, %s719
      %s722 = sphi 0, %s721
      %s736 = sphi 0, %s722
      %s740 = sphi 0, %s740
      %s742 = sphi 0, %s740
      %s743 = sphi 0, %s742
      %s757 = sphi 0, %s743
      %s761 = sphi 0, %s761
      %s763 = sphi 0, %s761
      %s764 = sphi 0, %s763
      %s778 = sphi 0, %s764
      %s782 = sphi 0, %s782
      %s784 = sphi 0, %s782
      %s785 = sphi 0, %s784
      %s799 = sphi 0, %s785
      %s803 = sphi 0, %s803
      %s805 = sphi 0, %s803
      %s806 = sphi 0, %s805
      %s820 = sphi 0, %s806
      %s824 = sphi 0, %s824
      %s826 = sphi 0, %s824
      %s827 = sphi 0, %s826
      %s841 = sphi 0, %s827
      %s845 = sphi 0, %s845
      %s847 = sphi 0, %s845
      %s848 = sphi 0, %s847
      %s862 = sphi 0, %s848
      %s866 = sphi 0, %s866
      %s868 = sphi 0, %s866
      %s869 = sphi 0, %s868
      %s883 = sphi 0, %s869
      %s887 = sphi 0, %s887
      %s889 = sphi 0, %s887
      %s890 = sphi 0, %s889
      %s904 = sphi 0, %s890
      %s908 = sphi 0, %s908
      %s910 = sphi 0, %s908
      %s911 = sphi 0, %s910
      %s925 = sphi 0, %s911
      %s929 = sphi 0, %s929
      %s931 = sphi 0, %s929
      %s932 = sphi 0, %s931
      %s946 = sphi 0, %s932
      %s952 = sphi 0, %s954
      %s955 = sphi 0, %s952
      %s956 = sphi 0, %s955
      %s972 = sphi 0, %s956
    $region4: #{fwd.1} parent=1 // loop_header_branch
      %100 = sbr.rel (%p98) target = $region8
    $region5: #{fwd.1} parent=1 // loop_body
      %s102 = ssub.s32 %s97, 1
      %s103 = ssub.s32 %s97, 2
      %s104 = sadd.s32 %s97, 1
      %s105 = ssub.s32 %s97, %s104
      %p106 = scmp.eq.s32.totalorder %s105, 0
      %s108 = sadd.s32 %s107, 1
      %s109 = scalar_select %p106, %s107, %s108
      %p112 = pneg %p106
      %p113 = scmp.eq.s32.totalorder %s97, 1
      %p114 = por %p112, %p113
      %p115 = scmp.ne.s32.totalorder %s107, %s110
      %p116 = scmp.eq.s32.totalorder %s97, 0
      %p117 = por %p115, %p116
      %p118 = scmp.ne.s32.totalorder %s107, %s110
      %p119 = scmp.eq.s32.totalorder %s102, 1
      %p120 = por %p118, %p119
      %p121 = scmp.ne.s32.totalorder %s110, %s111
      %p122 = scmp.eq.s32.totalorder %s102, 0
      %p123 = por %p121, %p122
      %p124 = scmp.ne.s32.totalorder %s110, %s111
      %p125 = scmp.eq.s32.totalorder %s103, 1
      %p126 = por %p124, %p125
      %p128 = scmp.ne.s32.totalorder %s111, %s127
      %p129 = scmp.eq.s32.totalorder %s103, 0
      %p130 = por %p128, %p129
      %s132 = sadd.s32 %s131, 1
      %p135 = scmp.eq.s32.totalorder %s97, 1
      %p136 = scmp.ne.s32.totalorder %s131, %s133
      %p137 = scmp.eq.s32.totalorder %s97, 0
      %p138 = por %p136, %p137
      %p139 = scmp.ne.s32.totalorder %s131, %s133
      %p140 = scmp.eq.s32.totalorder %s102, 1
      %p141 = por %p139, %p140
      %p142 = scmp.ne.s32.totalorder %s133, %s134
      %p143 = scmp.eq.s32.totalorder %s102, 0
      %p144 = por %p142, %p143
      %p145 = scmp.ne.s32.totalorder %s133, %s134
      %p146 = scmp.eq.s32.totalorder %s103, 1
      %p147 = por %p145, %p146
      %p149 = scmp.ne.s32.totalorder %s134, %s148
      %p150 = scmp.eq.s32.totalorder %s103, 0
      %p151 = por %p149, %p150
      %s153 = sadd.s32 %s152, 1
      %p156 = scmp.eq.s32.totalorder %s97, 1
      %p157 = scmp.ne.s32.totalorder %s152, %s154
      %p158 = scmp.eq.s32.totalorder %s97, 0
      %p159 = por %p157, %p158
      %p160 = scmp.ne.s32.totalorder %s152, %s154
      %p161 = scmp.eq.s32.totalorder %s102, 1
      %p162 = por %p160, %p161
      %p163 = scmp.ne.s32.totalorder %s154, %s155
      %p164 = scmp.eq.s32.totalorder %s102, 0
      %p165 = por %p163, %p164
      %p166 = scmp.ne.s32.totalorder %s154, %s155
      %p167 = scmp.eq.s32.totalorder %s103, 1
      %p168 = por %p166, %p167
      %p170 = scmp.ne.s32.totalorder %s155, %s169
      %p171 = scmp.eq.s32.totalorder %s103, 0
      %p172 = por %p170, %p171
      %s174 = sadd.s32 %s173, 1
      %p177 = scmp.eq.s32.totalorder %s97, 1
      %p178 = scmp.ne.s32.totalorder %s173, %s175
      %p179 = scmp.eq.s32.totalorder %s97, 0
      %p180 = por %p178, %p179
      %p181 = scmp.ne.s32.totalorder %s173, %s175
      %p182 = scmp.eq.s32.totalorder %s102, 1
      %p183 = por %p181, %p182
      %p184 = scmp.ne.s32.totalorder %s175, %s176
      %p185 = scmp.eq.s32.totalorder %s102, 0
      %p186 = por %p184, %p185
      %p187 = scmp.ne.s32.totalorder %s175, %s176
      %p188 = scmp.eq.s32.totalorder %s103, 1
      %p189 = por %p187, %p188
      %p191 = scmp.ne.s32.totalorder %s176, %s190
      %p192 = scmp.eq.s32.totalorder %s103, 0
      %p193 = por %p191, %p192
      %s195 = sadd.s32 %s194, 1
      %p198 = scmp.eq.s32.totalorder %s97, 1
      %p199 = scmp.ne.s32.totalorder %s194, %s196
      %p200 = scmp.eq.s32.totalorder %s97, 0
      %p201 = por %p199, %p200
      %p202 = scmp.ne.s32.totalorder %s194, %s196
      %p203 = scmp.eq.s32.totalorder %s102, 1
      %p204 = por %p202, %p203
      %p205 = scmp.ne.s32.totalorder %s196, %s197
      %p206 = scmp.eq.s32.totalorder %s102, 0
      %p207 = por %p205, %p206
      %p208 = scmp.ne.s32.totalorder %s196, %s197
      %p209 = scmp.eq.s32.totalorder %s103, 1
      %p210 = por %p208, %p209
      %p212 = scmp.ne.s32.totalorder %s197, %s211
      %p213 = scmp.eq.s32.totalorder %s103, 0
      %p214 = por %p212, %p213
      %s216 = sadd.s32 %s215, 1
      %p219 = scmp.eq.s32.totalorder %s97, 1
      %p220 = scmp.ne.s32.totalorder %s215, %s217
      %p221 = scmp.eq.s32.totalorder %s97, 0
      %p222 = por %p220, %p221
      %p223 = scmp.ne.s32.totalorder %s215, %s217
      %p224 = scmp.eq.s32.totalorder %s102, 1
      %p225 = por %p223, %p224
      %p226 = scmp.ne.s32.totalorder %s217, %s218
      %p227 = scmp.eq.s32.totalorder %s102, 0
      %p228 = por %p226, %p227
      %p229 = scmp.ne.s32.totalorder %s217, %s218
      %p230 = scmp.eq.s32.totalorder %s103, 1
      %p231 = por %p229, %p230
      %p233 = scmp.ne.s32.totalorder %s218, %s232
      %p234 = scmp.eq.s32.totalorder %s103, 0
      %p235 = por %p233, %p234
      %s237 = sadd.s32 %s236, 1
      %p240 = scmp.eq.s32.totalorder %s97, 1
      %p241 = scmp.ne.s32.totalorder %s236, %s238
      %p242 = scmp.eq.s32.totalorder %s97, 0
      %p243 = por %p241, %p242
      %p244 = scmp.ne.s32.totalorder %s236, %s238
      %p245 = scmp.eq.s32.totalorder %s102, 1
      %p246 = por %p244, %p245
      %p247 = scmp.ne.s32.totalorder %s238, %s239
      %p248 = scmp.eq.s32.totalorder %s102, 0
      %p249 = por %p247, %p248
      %p250 = scmp.ne.s32.totalorder %s238, %s239
      %p251 = scmp.eq.s32.totalorder %s103, 1
      %p252 = por %p250, %p251
      %p254 = scmp.ne.s32.totalorder %s239, %s253
      %p255 = scmp.eq.s32.totalorder %s103, 0
      %p256 = por %p254, %p255
      %s258 = sadd.s32 %s257, 1
      %p261 = scmp.eq.s32.totalorder %s97, 1
      %p262 = scmp.ne.s32.totalorder %s257, %s259
      %p263 = scmp.eq.s32.totalorder %s97, 0
      %p264 = por %p262, %p263
      %p265 = scmp.ne.s32.totalorder %s257, %s259
      %p266 = scmp.eq.s32.totalorder %s102, 1
      %p267 = por %p265, %p266
      %p268 = scmp.ne.s32.totalorder %s259, %s260
      %p269 = scmp.eq.s32.totalorder %s102, 0
      %p270 = por %p268, %p269
      %p271 = scmp.ne.s32.totalorder %s259, %s260
      %p272 = scmp.eq.s32.totalorder %s103, 1
      %p273 = por %p271, %p272
      %p275 = scmp.ne.s32.totalorder %s260, %s274
      %p276 = scmp.eq.s32.totalorder %s103, 0
      %p277 = por %p275, %p276
      %s279 = sadd.s32 %s278, 1
      %p282 = scmp.eq.s32.totalorder %s97, 1
      %p283 = scmp.ne.s32.totalorder %s278, %s280
      %p284 = scmp.eq.s32.totalorder %s97, 0
      %p285 = por %p283, %p284
      %p286 = scmp.ne.s32.totalorder %s278, %s280
      %p287 = scmp.eq.s32.totalorder %s102, 1
      %p288 = por %p286, %p287
      %p289 = scmp.ne.s32.totalorder %s280, %s281
      %p290 = scmp.eq.s32.totalorder %s102, 0
      %p291 = por %p289, %p290
      %p292 = scmp.ne.s32.totalorder %s280, %s281
      %p293 = scmp.eq.s32.totalorder %s103, 1
      %p294 = por %p292, %p293
      %p296 = scmp.ne.s32.totalorder %s281, %s295
      %p297 = scmp.eq.s32.totalorder %s103, 0
      %p298 = por %p296, %p297
      %s300 = sadd.s32 %s299, 1
      %p303 = scmp.eq.s32.totalorder %s97, 1
      %p304 = scmp.ne.s32.totalorder %s299, %s301
      %p305 = scmp.eq.s32.totalorder %s97, 0
      %p306 = por %p304, %p305
      %p307 = scmp.ne.s32.totalorder %s299, %s301
      %p308 = scmp.eq.s32.totalorder %s102, 1
      %p309 = por %p307, %p308
      %p310 = scmp.ne.s32.totalorder %s301, %s302
      %p311 = scmp.eq.s32.totalorder %s102, 0
      %p312 = por %p310, %p311
      %p313 = scmp.ne.s32.totalorder %s301, %s302
      %p314 = scmp.eq.s32.totalorder %s103, 1
      %p315 = por %p313, %p314
      %p317 = scmp.ne.s32.totalorder %s302, %s316
      %p318 = scmp.eq.s32.totalorder %s103, 0
      %p319 = por %p317, %p318
      %s321 = sadd.s32 %s320, 1
      %p324 = scmp.eq.s32.totalorder %s97, 1
      %p325 = scmp.ne.s32.totalorder %s320, %s322
      %p326 = scmp.eq.s32.totalorder %s97, 0
      %p327 = por %p325, %p326
      %p328 = scmp.ne.s32.totalorder %s320, %s322
      %p329 = scmp.eq.s32.totalorder %s102, 1
      %p330 = por %p328, %p329
      %p331 = scmp.ne.s32.totalorder %s322, %s323
      %p332 = scmp.eq.s32.totalorder %s102, 0
      %p333 = por %p331, %p332
      %p334 = scmp.ne.s32.totalorder %s322, %s323
      %p335 = scmp.eq.s32.totalorder %s103, 1
      %p336 = por %p334, %p335
      %p338 = scmp.ne.s32.totalorder %s323, %s337
      %p339 = scmp.eq.s32.totalorder %s103, 0
      %p340 = por %p338, %p339
      %s342 = sadd.s32 %s341, 1
      %p345 = scmp.eq.s32.totalorder %s97, 1
      %p346 = scmp.ne.s32.totalorder %s341, %s343
      %p347 = scmp.eq.s32.totalorder %s97, 0
      %p348 = por %p346, %p347
      %p349 = scmp.ne.s32.totalorder %s341, %s343
      %p350 = scmp.eq.s32.totalorder %s102, 1
      %p351 = por %p349, %p350
      %p352 = scmp.ne.s32.totalorder %s343, %s344
      %p353 = scmp.eq.s32.totalorder %s102, 0
      %p354 = por %p352, %p353
      %p355 = scmp.ne.s32.totalorder %s343, %s344
      %p356 = scmp.eq.s32.totalorder %s103, 1
      %p357 = por %p355, %p356
      %p359 = scmp.ne.s32.totalorder %s344, %s358
      %p360 = scmp.eq.s32.totalorder %s103, 0
      %p361 = por %p359, %p360
      %s363 = sadd.s32 %s362, 1
      %p366 = scmp.eq.s32.totalorder %s97, 1
      %p367 = scmp.ne.s32.totalorder %s362, %s364
      %p368 = scmp.eq.s32.totalorder %s97, 0
      %p369 = por %p367, %p368
      %p370 = scmp.ne.s32.totalorder %s362, %s364
      %p371 = scmp.eq.s32.totalorder %s102, 1
      %p372 = por %p370, %p371
      %p373 = scmp.ne.s32.totalorder %s364, %s365
      %p374 = scmp.eq.s32.totalorder %s102, 0
      %p375 = por %p373, %p374
      %p376 = scmp.ne.s32.totalorder %s364, %s365
      %p377 = scmp.eq.s32.totalorder %s103, 1
      %p378 = por %p376, %p377
      %p380 = scmp.ne.s32.totalorder %s365, %s379
      %p381 = scmp.eq.s32.totalorder %s103, 0
      %p382 = por %p380, %p381
      %s384 = sadd.s32 %s383, 1
      %p387 = scmp.eq.s32.totalorder %s97, 1
      %p388 = scmp.ne.s32.totalorder %s383, %s385
      %p389 = scmp.eq.s32.totalorder %s97, 0
      %p390 = por %p388, %p389
      %p391 = scmp.ne.s32.totalorder %s383, %s385
      %p392 = scmp.eq.s32.totalorder %s102, 1
      %p393 = por %p391, %p392
      %p394 = scmp.ne.s32.totalorder %s385, %s386
      %p395 = scmp.eq.s32.totalorder %s102, 0
      %p396 = por %p394, %p395
      %p397 = scmp.ne.s32.totalorder %s385, %s386
      %p398 = scmp.eq.s32.totalorder %s103, 1
      %p399 = por %p397, %p398
      %p401 = scmp.ne.s32.totalorder %s386, %s400
      %p402 = scmp.eq.s32.totalorder %s103, 0
      %p403 = por %p401, %p402
      %s405 = sadd.s32 %s404, 1
      %p408 = scmp.eq.s32.totalorder %s97, 1
      %p409 = scmp.ne.s32.totalorder %s404, %s406
      %p410 = scmp.eq.s32.totalorder %s97, 0
      %p411 = por %p409, %p410
      %p412 = scmp.ne.s32.totalorder %s404, %s406
      %p413 = scmp.eq.s32.totalorder %s102, 1
      %p414 = por %p412, %p413
      %p415 = scmp.ne.s32.totalorder %s406, %s407
      %p416 = scmp.eq.s32.totalorder %s102, 0
      %p417 = por %p415, %p416
      %p418 = scmp.ne.s32.totalorder %s406, %s407
      %p419 = scmp.eq.s32.totalorder %s103, 1
      %p420 = por %p418, %p419
      %p422 = scmp.ne.s32.totalorder %s407, %s421
      %p423 = scmp.eq.s32.totalorder %s103, 0
      %p424 = por %p422, %p423
      %s426 = sadd.s32 %s425, 1
      %p429 = scmp.eq.s32.totalorder %s97, 1
      %p430 = scmp.ne.s32.totalorder %s425, %s427
      %p431 = scmp.eq.s32.totalorder %s97, 0
      %p432 = por %p430, %p431
      %p433 = scmp.ne.s32.totalorder %s425, %s427
      %p434 = scmp.eq.s32.totalorder %s102, 1
      %p435 = por %p433, %p434
      %p436 = scmp.ne.s32.totalorder %s427, %s428
      %p437 = scmp.eq.s32.totalorder %s102, 0
      %p438 = por %p436, %p437
      %p439 = scmp.ne.s32.totalorder %s427, %s428
      %p440 = scmp.eq.s32.totalorder %s103, 1
      %p441 = por %p439, %p440
      %p443 = scmp.ne.s32.totalorder %s428, %s442
      %p444 = scmp.eq.s32.totalorder %s103, 0
      %p445 = por %p443, %p444
      %s447 = sadd.s32 %s446, 1
      %p450 = scmp.eq.s32.totalorder %s97, 1
      %p451 = scmp.ne.s32.totalorder %s446, %s448
      %p452 = scmp.eq.s32.totalorder %s97, 0
      %p453 = por %p451, %p452
      %p454 = scmp.ne.s32.totalorder %s446, %s448
      %p455 = scmp.eq.s32.totalorder %s102, 1
      %p456 = por %p454, %p455
      %p457 = scmp.ne.s32.totalorder %s448, %s449
      %p458 = scmp.eq.s32.totalorder %s102, 0
      %p459 = por %p457, %p458
      %p460 = scmp.ne.s32.totalorder %s448, %s449
      %p461 = scmp.eq.s32.totalorder %s103, 1
      %p462 = por %p460, %p461
      %p464 = scmp.ne.s32.totalorder %s449, %s463
      %p465 = scmp.eq.s32.totalorder %s103, 0
      %p466 = por %p464, %p465
      %s468 = sadd.s32 %s467, 1
      %p471 = scmp.eq.s32.totalorder %s97, 1
      %p472 = scmp.ne.s32.totalorder %s467, %s469
      %p473 = scmp.eq.s32.totalorder %s97, 0
      %p474 = por %p472, %p473
      %p475 = scmp.ne.s32.totalorder %s467, %s469
      %p476 = scmp.eq.s32.totalorder %s102, 1
      %p477 = por %p475, %p476
      %p478 = scmp.ne.s32.totalorder %s469, %s470
      %p479 = scmp.eq.s32.totalorder %s102, 0
      %p480 = por %p478, %p479
      %p481 = scmp.ne.s32.totalorder %s469, %s470
      %p482 = scmp.eq.s32.totalorder %s103, 1
      %p483 = por %p481, %p482
      %p485 = scmp.ne.s32.totalorder %s470, %s484
      %p486 = scmp.eq.s32.totalorder %s103, 0
      %p487 = por %p485, %p486
      %s489 = sadd.s32 %s488, 1
      %p492 = scmp.eq.s32.totalorder %s97, 1
      %p493 = scmp.ne.s32.totalorder %s488, %s490
      %p494 = scmp.eq.s32.totalorder %s97, 0
      %p495 = por %p493, %p494
      %p496 = scmp.ne.s32.totalorder %s488, %s490
      %p497 = scmp.eq.s32.totalorder %s102, 1
      %p498 = por %p496, %p497
      %p499 = scmp.ne.s32.totalorder %s490, %s491
      %p500 = scmp.eq.s32.totalorder %s102, 0
      %p501 = por %p499, %p500
      %p502 = scmp.ne.s32.totalorder %s490, %s491
      %p503 = scmp.eq.s32.totalorder %s103, 1
      %p504 = por %p502, %p503
      %p506 = scmp.ne.s32.totalorder %s491, %s505
      %p507 = scmp.eq.s32.totalorder %s103, 0
      %p508 = por %p506, %p507
      %s510 = sadd.s32 %s509, 1
      %p513 = scmp.eq.s32.totalorder %s97, 1
      %p514 = scmp.ne.s32.totalorder %s509, %s511
      %p515 = scmp.eq.s32.totalorder %s97, 0
      %p516 = por %p514, %p515
      %p517 = scmp.ne.s32.totalorder %s509, %s511
      %p518 = scmp.eq.s32.totalorder %s102, 1
      %p519 = por %p517, %p518
      %p520 = scmp.ne.s32.totalorder %s511, %s512
      %p521 = scmp.eq.s32.totalorder %s102, 0
      %p522 = por %p520, %p521
      %p523 = scmp.ne.s32.totalorder %s511, %s512
      %p524 = scmp.eq.s32.totalorder %s103, 1
      %p525 = por %p523, %p524
      %p527 = scmp.ne.s32.totalorder %s512, %s526
      %p528 = scmp.eq.s32.totalorder %s103, 0
      %p529 = por %p527, %p528
      %s531 = sadd.s32 %s530, 1
      %p534 = scmp.eq.s32.totalorder %s97, 1
      %p535 = scmp.ne.s32.totalorder %s530, %s532
      %p536 = scmp.eq.s32.totalorder %s97, 0
      %p537 = por %p535, %p536
      %p538 = scmp.ne.s32.totalorder %s530, %s532
      %p539 = scmp.eq.s32.totalorder %s102, 1
      %p540 = por %p538, %p539
      %p541 = scmp.ne.s32.totalorder %s532, %s533
      %p542 = scmp.eq.s32.totalorder %s102, 0
      %p543 = por %p541, %p542
      %p544 = scmp.ne.s32.totalorder %s532, %s533
      %p545 = scmp.eq.s32.totalorder %s103, 1
      %p546 = por %p544, %p545
      %p548 = scmp.ne.s32.totalorder %s533, %s547
      %p549 = scmp.eq.s32.totalorder %s103, 0
      %p550 = por %p548, %p549
      %s552 = sadd.s32 %s551, 1
      %p555 = scmp.eq.s32.totalorder %s97, 1
      %p556 = scmp.ne.s32.totalorder %s551, %s553
      %p557 = scmp.eq.s32.totalorder %s97, 0
      %p558 = por %p556, %p557
      %p559 = scmp.ne.s32.totalorder %s551, %s553
      %p560 = scmp.eq.s32.totalorder %s102, 1
      %p561 = por %p559, %p560
      %p562 = scmp.ne.s32.totalorder %s553, %s554
      %p563 = scmp.eq.s32.totalorder %s102, 0
      %p564 = por %p562, %p563
      %p565 = scmp.ne.s32.totalorder %s553, %s554
      %p566 = scmp.eq.s32.totalorder %s103, 1
      %p567 = por %p565, %p566
      %p569 = scmp.ne.s32.totalorder %s554, %s568
      %p570 = scmp.eq.s32.totalorder %s103, 0
      %p571 = por %p569, %p570
      %s573 = sadd.s32 %s572, 1
      %p576 = scmp.eq.s32.totalorder %s97, 1
      %p577 = scmp.ne.s32.totalorder %s572, %s574
      %p578 = scmp.eq.s32.totalorder %s97, 0
      %p579 = por %p577, %p578
      %p580 = scmp.ne.s32.totalorder %s572, %s574
      %p581 = scmp.eq.s32.totalorder %s102, 1
      %p582 = por %p580, %p581
      %p583 = scmp.ne.s32.totalorder %s574, %s575
      %p584 = scmp.eq.s32.totalorder %s102, 0
      %p585 = por %p583, %p584
      %p586 = scmp.ne.s32.totalorder %s574, %s575
      %p587 = scmp.eq.s32.totalorder %s103, 1
      %p588 = por %p586, %p587
      %p590 = scmp.ne.s32.totalorder %s575, %s589
      %p591 = scmp.eq.s32.totalorder %s103, 0
      %p592 = por %p590, %p591
      %s594 = sadd.s32 %s593, 1
      %p597 = scmp.eq.s32.totalorder %s97, 1
      %p598 = scmp.ne.s32.totalorder %s593, %s595
      %p599 = scmp.eq.s32.totalorder %s97, 0
      %p600 = por %p598, %p599
      %p601 = scmp.ne.s32.totalorder %s593, %s595
      %p602 = scmp.eq.s32.totalorder %s102, 1
      %p603 = por %p601, %p602
      %p604 = scmp.ne.s32.totalorder %s595, %s596
      %p605 = scmp.eq.s32.totalorder %s102, 0
      %p606 = por %p604, %p605
      %p607 = scmp.ne.s32.totalorder %s595, %s596
      %p608 = scmp.eq.s32.totalorder %s103, 1
      %p609 = por %p607, %p608
      %p611 = scmp.ne.s32.totalorder %s596, %s610
      %p612 = scmp.eq.s32.totalorder %s103, 0
      %p613 = por %p611, %p612
      %s615 = sadd.s32 %s614, 1
      %p618 = scmp.eq.s32.totalorder %s97, 1
      %p619 = scmp.ne.s32.totalorder %s614, %s616
      %p620 = scmp.eq.s32.totalorder %s97, 0
      %p621 = por %p619, %p620
      %p622 = scmp.ne.s32.totalorder %s614, %s616
      %p623 = scmp.eq.s32.totalorder %s102, 1
      %p624 = por %p622, %p623
      %p625 = scmp.ne.s32.totalorder %s616, %s617
      %p626 = scmp.eq.s32.totalorder %s102, 0
      %p627 = por %p625, %p626
      %p628 = scmp.ne.s32.totalorder %s616, %s617
      %p629 = scmp.eq.s32.totalorder %s103, 1
      %p630 = por %p628, %p629
      %p632 = scmp.ne.s32.totalorder %s617, %s631
      %p633 = scmp.eq.s32.totalorder %s103, 0
      %p634 = por %p632, %p633
      %s636 = sadd.s32 %s635, 1
      %p639 = scmp.eq.s32.totalorder %s97, 1
      %p640 = scmp.ne.s32.totalorder %s635, %s637
      %p641 = scmp.eq.s32.totalorder %s97, 0
      %p642 = por %p640, %p641
      %p643 = scmp.ne.s32.totalorder %s635, %s637
      %p644 = scmp.eq.s32.totalorder %s102, 1
      %p645 = por %p643, %p644
      %p646 = scmp.ne.s32.totalorder %s637, %s638
      %p647 = scmp.eq.s32.totalorder %s102, 0
      %p648 = por %p646, %p647
      %p649 = scmp.ne.s32.totalorder %s637, %s638
      %p650 = scmp.eq.s32.totalorder %s103, 1
      %p651 = por %p649, %p650
      %p653 = scmp.ne.s32.totalorder %s638, %s652
      %p654 = scmp.eq.s32.totalorder %s103, 0
      %p655 = por %p653, %p654
      %s657 = sadd.s32 %s656, 1
      %p660 = scmp.eq.s32.totalorder %s97, 1
      %p661 = scmp.ne.s32.totalorder %s656, %s658
      %p662 = scmp.eq.s32.totalorder %s97, 0
      %p663 = por %p661, %p662
      %p664 = scmp.ne.s32.totalorder %s656, %s658
      %p665 = scmp.eq.s32.totalorder %s102, 1
      %p666 = por %p664, %p665
      %p667 = scmp.ne.s32.totalorder %s658, %s659
      %p668 = scmp.eq.s32.totalorder %s102, 0
      %p669 = por %p667, %p668
      %p670 = scmp.ne.s32.totalorder %s658, %s659
      %p671 = scmp.eq.s32.totalorder %s103, 1
      %p672 = por %p670, %p671
      %p674 = scmp.ne.s32.totalorder %s659, %s673
      %p675 = scmp.eq.s32.totalorder %s103, 0
      %p676 = por %p674, %p675
      %s678 = sadd.s32 %s677, 1
      %p681 = scmp.eq.s32.totalorder %s97, 1
      %p682 = scmp.ne.s32.totalorder %s677, %s679
      %p683 = scmp.eq.s32.totalorder %s97, 0
      %p684 = por %p682, %p683
      %p685 = scmp.ne.s32.totalorder %s677, %s679
      %p686 = scmp.eq.s32.totalorder %s102, 1
      %p687 = por %p685, %p686
      %p688 = scmp.ne.s32.totalorder %s679, %s680
      %p689 = scmp.eq.s32.totalorder %s102, 0
      %p690 = por %p688, %p689
      %p691 = scmp.ne.s32.totalorder %s679, %s680
      %p692 = scmp.eq.s32.totalorder %s103, 1
      %p693 = por %p691, %p692
      %p695 = scmp.ne.s32.totalorder %s680, %s694
      %p696 = scmp.eq.s32.totalorder %s103, 0
      %p697 = por %p695, %p696
      %s699 = sadd.s32 %s698, 1
      %p702 = scmp.eq.s32.totalorder %s97, 1
      %p703 = scmp.ne.s32.totalorder %s698, %s700
      %p704 = scmp.eq.s32.totalorder %s97, 0
      %p705 = por %p703, %p704
      %p706 = scmp.ne.s32.totalorder %s698, %s700
      %p707 = scmp.eq.s32.totalorder %s102, 1
      %p708 = por %p706, %p707
      %p709 = scmp.ne.s32.totalorder %s700, %s701
      %p710 = scmp.eq.s32.totalorder %s102, 0
      %p711 = por %p709, %p710
      %p712 = scmp.ne.s32.totalorder %s700, %s701
      %p713 = scmp.eq.s32.totalorder %s103, 1
      %p714 = por %p712, %p713
      %p716 = scmp.ne.s32.totalorder %s701, %s715
      %p717 = scmp.eq.s32.totalorder %s103, 0
      %p718 = por %p716, %p717
      %s720 = sadd.s32 %s719, 1
      %p723 = scmp.eq.s32.totalorder %s97, 1
      %p724 = scmp.ne.s32.totalorder %s719, %s721
      %p725 = scmp.eq.s32.totalorder %s97, 0
      %p726 = por %p724, %p725
      %p727 = scmp.ne.s32.totalorder %s719, %s721
      %p728 = scmp.eq.s32.totalorder %s102, 1
      %p729 = por %p727, %p728
      %p730 = scmp.ne.s32.totalorder %s721, %s722
      %p731 = scmp.eq.s32.totalorder %s102, 0
      %p732 = por %p730, %p731
      %p733 = scmp.ne.s32.totalorder %s721, %s722
      %p734 = scmp.eq.s32.totalorder %s103, 1
      %p735 = por %p733, %p734
      %p737 = scmp.ne.s32.totalorder %s722, %s736
      %p738 = scmp.eq.s32.totalorder %s103, 0
      %p739 = por %p737, %p738
      %s741 = sadd.s32 %s740, 1
      %p744 = scmp.eq.s32.totalorder %s97, 1
      %p745 = scmp.ne.s32.totalorder %s740, %s742
      %p746 = scmp.eq.s32.totalorder %s97, 0
      %p747 = por %p745, %p746
      %p748 = scmp.ne.s32.totalorder %s740, %s742
      %p749 = scmp.eq.s32.totalorder %s102, 1
      %p750 = por %p748, %p749
      %p751 = scmp.ne.s32.totalorder %s742, %s743
      %p752 = scmp.eq.s32.totalorder %s102, 0
      %p753 = por %p751, %p752
      %p754 = scmp.ne.s32.totalorder %s742, %s743
      %p755 = scmp.eq.s32.totalorder %s103, 1
      %p756 = por %p754, %p755
      %p758 = scmp.ne.s32.totalorder %s743, %s757
      %p759 = scmp.eq.s32.totalorder %s103, 0
      %p760 = por %p758, %p759
      %s762 = sadd.s32 %s761, 1
      %p765 = scmp.eq.s32.totalorder %s97, 1
      %p766 = scmp.ne.s32.totalorder %s761, %s763
      %p767 = scmp.eq.s32.totalorder %s97, 0
      %p768 = por %p766, %p767
      %p769 = scmp.ne.s32.totalorder %s761, %s763
      %p770 = scmp.eq.s32.totalorder %s102, 1
      %p771 = por %p769, %p770
      %p772 = scmp.ne.s32.totalorder %s763, %s764
      %p773 = scmp.eq.s32.totalorder %s102, 0
      %p774 = por %p772, %p773
      %p775 = scmp.ne.s32.totalorder %s763, %s764
      %p776 = scmp.eq.s32.totalorder %s103, 1
      %p777 = por %p775, %p776
      %p779 = scmp.ne.s32.totalorder %s764, %s778
      %p780 = scmp.eq.s32.totalorder %s103, 0
      %p781 = por %p779, %p780
      %s783 = sadd.s32 %s782, 1
      %p786 = scmp.eq.s32.totalorder %s97, 1
      %p787 = scmp.ne.s32.totalorder %s782, %s784
      %p788 = scmp.eq.s32.totalorder %s97, 0
      %p789 = por %p787, %p788
      %p790 = scmp.ne.s32.totalorder %s782, %s784
      %p791 = scmp.eq.s32.totalorder %s102, 1
      %p792 = por %p790, %p791
      %p793 = scmp.ne.s32.totalorder %s784, %s785
      %p794 = scmp.eq.s32.totalorder %s102, 0
      %p795 = por %p793, %p794
      %p796 = scmp.ne.s32.totalorder %s784, %s785
      %p797 = scmp.eq.s32.totalorder %s103, 1
      %p798 = por %p796, %p797
      %p800 = scmp.ne.s32.totalorder %s785, %s799
      %p801 = scmp.eq.s32.totalorder %s103, 0
      %p802 = por %p800, %p801
      %s804 = sadd.s32 %s803, 1
      %p807 = scmp.eq.s32.totalorder %s97, 1
      %p808 = scmp.ne.s32.totalorder %s803, %s805
      %p809 = scmp.eq.s32.totalorder %s97, 0
      %p810 = por %p808, %p809
      %p811 = scmp.ne.s32.totalorder %s803, %s805
      %p812 = scmp.eq.s32.totalorder %s102, 1
      %p813 = por %p811, %p812
      %p814 = scmp.ne.s32.totalorder %s805, %s806
      %p815 = scmp.eq.s32.totalorder %s102, 0
      %p816 = por %p814, %p815
      %p817 = scmp.ne.s32.totalorder %s805, %s806
      %p818 = scmp.eq.s32.totalorder %s103, 1
      %p819 = por %p817, %p818
      %p821 = scmp.ne.s32.totalorder %s806, %s820
      %p822 = scmp.eq.s32.totalorder %s103, 0
      %p823 = por %p821, %p822
      %s825 = sadd.s32 %s824, 1
      %p828 = scmp.eq.s32.totalorder %s97, 1
      %p829 = scmp.ne.s32.totalorder %s824, %s826
      %p830 = scmp.eq.s32.totalorder %s97, 0
      %p831 = por %p829, %p830
      %p832 = scmp.ne.s32.totalorder %s824, %s826
      %p833 = scmp.eq.s32.totalorder %s102, 1
      %p834 = por %p832, %p833
      %p835 = scmp.ne.s32.totalorder %s826, %s827
      %p836 = scmp.eq.s32.totalorder %s102, 0
      %p837 = por %p835, %p836
      %p838 = scmp.ne.s32.totalorder %s826, %s827
      %p839 = scmp.eq.s32.totalorder %s103, 1
      %p840 = por %p838, %p839
      %p842 = scmp.ne.s32.totalorder %s827, %s841
      %p843 = scmp.eq.s32.totalorder %s103, 0
      %p844 = por %p842, %p843
      %s846 = sadd.s32 %s845, 1
      %p849 = scmp.eq.s32.totalorder %s97, 1
      %p850 = scmp.ne.s32.totalorder %s845, %s847
      %p851 = scmp.eq.s32.totalorder %s97, 0
      %p852 = por %p850, %p851
      %p853 = scmp.ne.s32.totalorder %s845, %s847
      %p854 = scmp.eq.s32.totalorder %s102, 1
      %p855 = por %p853, %p854
      %p856 = scmp.ne.s32.totalorder %s847, %s848
      %p857 = scmp.eq.s32.totalorder %s102, 0
      %p858 = por %p856, %p857
      %p859 = scmp.ne.s32.totalorder %s847, %s848
      %p860 = scmp.eq.s32.totalorder %s103, 1
      %p861 = por %p859, %p860
      %p863 = scmp.ne.s32.totalorder %s848, %s862
      %p864 = scmp.eq.s32.totalorder %s103, 0
      %p865 = por %p863, %p864
      %s867 = sadd.s32 %s866, 1
      %p870 = scmp.eq.s32.totalorder %s97, 1
      %p871 = scmp.ne.s32.totalorder %s866, %s868
      %p872 = scmp.eq.s32.totalorder %s97, 0
      %p873 = por %p871, %p872
      %p874 = scmp.ne.s32.totalorder %s866, %s868
      %p875 = scmp.eq.s32.totalorder %s102, 1
      %p876 = por %p874, %p875
      %p877 = scmp.ne.s32.totalorder %s868, %s869
      %p878 = scmp.eq.s32.totalorder %s102, 0
      %p879 = por %p877, %p878
      %p880 = scmp.ne.s32.totalorder %s868, %s869
      %p881 = scmp.eq.s32.totalorder %s103, 1
      %p882 = por %p880, %p881
      %p884 = scmp.ne.s32.totalorder %s869, %s883
      %p885 = scmp.eq.s32.totalorder %s103, 0
      %p886 = por %p884, %p885
      %s888 = sadd.s32 %s887, 1
      %p891 = scmp.eq.s32.totalorder %s97, 1
      %p892 = scmp.ne.s32.totalorder %s887, %s889
      %p893 = scmp.eq.s32.totalorder %s97, 0
      %p894 = por %p892, %p893
      %p895 = scmp.ne.s32.totalorder %s887, %s889
      %p896 = scmp.eq.s32.totalorder %s102, 1
      %p897 = por %p895, %p896
      %p898 = scmp.ne.s32.totalorder %s889, %s890
      %p899 = scmp.eq.s32.totalorder %s102, 0
      %p900 = por %p898, %p899
      %p901 = scmp.ne.s32.totalorder %s889, %s890
      %p902 = scmp.eq.s32.totalorder %s103, 1
      %p903 = por %p901, %p902
      %p905 = scmp.ne.s32.totalorder %s890, %s904
      %p906 = scmp.eq.s32.totalorder %s103, 0
      %p907 = por %p905, %p906
      %s909 = sadd.s32 %s908, 1
      %p912 = scmp.eq.s32.totalorder %s97, 1
      %p913 = scmp.ne.s32.totalorder %s908, %s910
      %p914 = scmp.eq.s32.totalorder %s97, 0
      %p915 = por %p913, %p914
      %p916 = scmp.ne.s32.totalorder %s908, %s910
      %p917 = scmp.eq.s32.totalorder %s102, 1
      %p918 = por %p916, %p917
      %p919 = scmp.ne.s32.totalorder %s910, %s911
      %p920 = scmp.eq.s32.totalorder %s102, 0
      %p921 = por %p919, %p920
      %p922 = scmp.ne.s32.totalorder %s910, %s911
      %p923 = scmp.eq.s32.totalorder %s103, 1
      %p924 = por %p922, %p923
      %p926 = scmp.ne.s32.totalorder %s911, %s925
      %p927 = scmp.eq.s32.totalorder %s103, 0
      %p928 = por %p926, %p927
      %s930 = sadd.s32 %s929, 1
      %p933 = scmp.eq.s32.totalorder %s97, 1
      %p934 = scmp.ne.s32.totalorder %s929, %s931
      %p935 = scmp.eq.s32.totalorder %s97, 0
      %p936 = por %p934, %p935
      %p937 = scmp.ne.s32.totalorder %s929, %s931
      %p938 = scmp.eq.s32.totalorder %s102, 1
      %p939 = por %p937, %p938
      %p940 = scmp.ne.s32.totalorder %s931, %s932
      %p941 = scmp.eq.s32.totalorder %s102, 0
      %p942 = por %p940, %p941
      %p943 = scmp.ne.s32.totalorder %s931, %s932
      %p944 = scmp.eq.s32.totalorder %s103, 1
      %p945 = por %p943, %p944
      %p947 = scmp.ne.s32.totalorder %s932, %s946
      %p948 = scmp.eq.s32.totalorder %s103, 0
      %p949 = por %p947, %p948
      %s950 = ssub.s32 %s97, %s104
      %p951 = scmp.eq.s32.totalorder %s950, 0
      %s953 = sadd.s32 %s952, 1
      %s954 = scalar_select %p951, %s952, %s953
      %p957 = pneg %p951
      %p958 = scmp.eq.s32.totalorder %s97, 1
      %p959 = por %p957, %p958
      %p960 = scmp.ne.s32.totalorder %s952, %s955
      %p961 = scmp.eq.s32.totalorder %s97, 0
      %p962 = por %p960, %p961
      %p963 = scmp.ne.s32.totalorder %s952, %s955
      %p964 = scmp.eq.s32.totalorder %s102, 1
      %p965 = por %p963, %p964
      %p966 = scmp.ne.s32.totalorder %s955, %s956
      %p967 = scmp.eq.s32.totalorder %s102, 0
      %p968 = por %p966, %p967
      %p969 = scmp.ne.s32.totalorder %s955, %s956
      %p970 = scmp.eq.s32.totalorder %s103, 1
      %p971 = por %p969, %p970
      %p973 = scmp.ne.s32.totalorder %s956, %s972
      %p974 = scmp.eq.s32.totalorder %s103, 0
      %p975 = por %p973, %p974
      %p976 = scmp.le.s32.totalorder 1, %s97
      %p977 = scmp.lt.s32.totalorder %s97, 3
      %p978 = pnand %p976, %p977
      %p979 = pneg %p978
      // Predicated region
      $region9: #{fwd.1} parent=5 // pred_check
        _
      $region10: #{fwd.1} parent=5 // pred_check_branch
        %981 = sbr.rel (%p978) target = $region12
      $region11: #{fwd.1} parent=5 // pred_region
        %s982 = ssub.s32 %s97, 1
        // Predicated region
        $region13: #{fwd.1} parent=11 // pred_check
          %p983 = pneg %p144
        $region14: #{fwd.1} parent=11 // pred_check_branch
          %985 = sbr.rel (%p983) target = $region16
        $region15: #{fwd.1} parent=11 // pred_region
          %s987 = ssub.s32 512, 512
          %988 = vsyncadd [#allocation3], %s987
          %s989 = sshll.u32 [#allocation2], 4
          %s990 = int_to_ptr.vmem [resolvable:$true] %s989
          %995 = dma.hbm_to_vmem [thread:$0]  %s3, 512, %s990, [#allocation3], 128, 128, 8
        $region16: #{fwd.1} parent=11 // pred_fallthru
          _
        // Predicated region
        $region17: #{fwd.1} parent=11 // pred_check
          %p996 = pneg %p165
        $region18: #{fwd.1} parent=11 // pred_check_branch
          %998 = sbr.rel (%p996) target = $region20
        $region19: #{fwd.1} parent=11 // pred_region
          %s1000 = ssub.s32 256, 256
          %1001 = vsyncadd [#allocation5], %s1000
          %s1002 = sshll.u32 [#allocation4], 4
          %s1003 = int_to_ptr.vmem [resolvable:$true] %s1002
          %1008 = dma.hbm_to_vmem [thread:$0]  %s5, 256, %s1003, [#allocation5], 128, 128, 8
        $region20: #{fwd.1} parent=11 // pred_fallthru
          _
        // Predicated region
        $region21: #{fwd.1} parent=11 // pred_check
          %p1009 = pneg %p186
        $region22: #{fwd.1} parent=11 // pred_check_branch
          %1011 = sbr.rel (%p1009) target = $region24
        $region23: #{fwd.1} parent=11 // pred_region
          _
        $region24: #{fwd.1} parent=11 // pred_fallthru
          _
        // Predicated region
        $region25: #{fwd.1} parent=11 // pred_check
          %p1012 = pneg %p207
        $region26: #{fwd.1} parent=11 // pred_check_branch
          %1014 = sbr.rel (%p1012) target = $region28
        $region27: #{fwd.1} parent=11 // pred_region
          %s1016 = ssub.s32 256, 256
          %1017 = vsyncadd [#allocation5], %s1016
          %s1018 = sshll.u32 [#allocation6], 4
          %s1019 = int_to_ptr.vmem [resolvable:$true] %s1018
          %1024 = dma.hbm_to_vmem [thread:$0]  %s9, 256, %s1019, [#allocation5], 128, 128, 8
        $region28: #{fwd.1} parent=11 // pred_fallthru
          _
        // Predicated region
        $region29: #{fwd.1} parent=11 // pred_check
          %p1025 = pneg %p228
        $region30: #{fwd.1} parent=11 // pred_check_branch
          %1027 = sbr.rel (%p1025) target = $region32
        $region31: #{fwd.1} parent=11 // pred_region
          _
        $region32: #{fwd.1} parent=11 // pred_fallthru
          _
        // Predicated region
        $region33: #{fwd.1} parent=11 // pred_check
          %p1028 = pneg %p249
        $region34: #{fwd.1} parent=11 // pred_check_branch
          %1030 = sbr.rel (%p1028) target = $region36
        $region35: #{fwd.1} parent=11 // pred_region
          _
        $region36: #{fwd.1} parent=11 // pred_fallthru
          _
        // Predicated region
        $region37: #{fwd.1} parent=11 // pred_check
          %p1031 = pneg %p270
        $region38: #{fwd.1} parent=11 // pred_check_branch
          %1033 = sbr.rel (%p1031) target = $region40
        $region39: #{fwd.1} parent=11 // pred_region
          %s1035 = ssub.s32 1024, 1024
          %1036 = vsyncadd [#allocation8], %s1035
          %s1037 = sshll.u32 [#allocation7], 4
          %s1038 = int_to_ptr.vmem [resolvable:$true] %s1037
          %1043 = dma.hbm_to_vmem [thread:$0]  %s15, 1024, %s1038, [#allocation8], 128, 128, 8
        $region40: #{fwd.1} parent=11 // pred_fallthru
          _
        // Predicated region
        $region41: #{fwd.1} parent=11 // pred_check
          %p1044 = pneg %p291
        $region42: #{fwd.1} parent=11 // pred_check_branch
          %1046 = sbr.rel (%p1044) target = $region44
        $region43: #{fwd.1} parent=11 // pred_region
          %s1048 = ssub.s32 128, 128
          %1049 = vsyncadd [#allocation8], %s1048
          %s1050 = sshll.u32 [#allocation9], 4
          %s1051 = int_to_ptr.vmem [resolvable:$true] %s1050
          %1056 = dma.hbm_to_vmem [thread:$0]  %s17, 128, %s1051, [#allocation8], 64, 64, 4
        $region44: #{fwd.1} parent=11 // pred_fallthru
          _
        // Predicated region
        $region45: #{fwd.1} parent=11 // pred_check
          %p1057 = pneg %p312
        $region46: #{fwd.1} parent=11 // pred_check_branch
          %1059 = sbr.rel (%p1057) target = $region48
        $region47: #{fwd.1} parent=11 // pred_region
          _
        $region48: #{fwd.1} parent=11 // pred_fallthru
          _
        // Predicated region
        $region49: #{fwd.1} parent=11 // pred_check
          %p1060 = pneg %p333
        $region50: #{fwd.1} parent=11 // pred_check_branch
          %1062 = sbr.rel (%p1060) target = $region52
        $region51: #{fwd.1} parent=11 // pred_region
          _
        $region52: #{fwd.1} parent=11 // pred_fallthru
          _
        // Predicated region
        $region53: #{fwd.1} parent=11 // pred_check
          %p1063 = pneg %p354
        $region54: #{fwd.1} parent=11 // pred_check_branch
          %1065 = sbr.rel (%p1063) target = $region56
        $region55: #{fwd.1} parent=11 // pred_region
          %s1067 = ssub.s32 512, 512
          %1068 = vsyncadd [#allocation11], %s1067
          %s1069 = sshll.u32 [#allocation10], 4
          %s1070 = int_to_ptr.vmem [resolvable:$true] %s1069
          %1075 = dma.hbm_to_vmem [thread:$0]  %s23, 512, %s1070, [#allocation11], 128, 128, 8
        $region56: #{fwd.1} parent=11 // pred_fallthru
          _
        // Predicated region
        $region57: #{fwd.1} parent=11 // pred_check
          %p1076 = pneg %p375
        $region58: #{fwd.1} parent=11 // pred_check_branch
          %1078 = sbr.rel (%p1076) target = $region60
        $region59: #{fwd.1} parent=11 // pred_region
          _
        $region60: #{fwd.1} parent=11 // pred_fallthru
          _
        // Predicated region
        $region61: #{fwd.1} parent=11 // pred_check
          %p1079 = pneg %p396
        $region62: #{fwd.1} parent=11 // pred_check_branch
          %1081 = sbr.rel (%p1079) target = $region64
        $region63: #{fwd.1} parent=11 // pred_region
          _
        $region64: #{fwd.1} parent=11 // pred_fallthru
          _
        // Predicated region
        $region65: #{fwd.1} parent=11 // pred_check
          %p1082 = pneg %p417
        $region66: #{fwd.1} parent=11 // pred_check_branch
          %1084 = sbr.rel (%p1082) target = $region68
        $region67: #{fwd.1} parent=11 // pred_region
          _
        $region68: #{fwd.1} parent=11 // pred_fallthru
          _
        // Predicated region
        $region69: #{fwd.1} parent=11 // pred_check
          %p1085 = pneg %p438
        $region70: #{fwd.1} parent=11 // pred_check_branch
          %1087 = sbr.rel (%p1085) target = $region72
        $region71: #{fwd.1} parent=11 // pred_region
          _
        $region72: #{fwd.1} parent=11 // pred_fallthru
          _
        // Predicated region
        $region73: #{fwd.1} parent=11 // pred_check
          %p1088 = pneg %p459
        $region74: #{fwd.1} parent=11 // pred_check_branch
          %1090 = sbr.rel (%p1088) target = $region76
        $region75: #{fwd.1} parent=11 // pred_region
          _
        $region76: #{fwd.1} parent=11 // pred_fallthru
          _
        // Predicated region
        $region77: #{fwd.1} parent=11 // pred_check
          %p1091 = pneg %p480
        $region78: #{fwd.1} parent=11 // pred_check_branch
          %1093 = sbr.rel (%p1091) target = $region80
        $region79: #{fwd.1} parent=11 // pred_region
          %s1095 = ssub.s32 16, 16
          %1096 = vsyncadd [#allocation11], %s1095
          %s1098 = sshll.u32 [#allocation12], 4
          %s1099 = int_to_ptr.vmem [resolvable:$true] %s1098
          %1101 = dma.hbm_to_vmem [thread:$0]  %s35, 16, %s1099, [#allocation11]
        $region80: #{fwd.1} parent=11 // pred_fallthru
          _
        // Predicated region
        $region81: #{fwd.1} parent=11 // pred_check
          %p1102 = pneg %p501
        $region82: #{fwd.1} parent=11 // pred_check_branch
          %1104 = sbr.rel (%p1102) target = $region84
        $region83: #{fwd.1} parent=11 // pred_region
          _
        $region84: #{fwd.1} parent=11 // pred_fallthru
          _
        // Predicated region
        $region85: #{fwd.1} parent=11 // pred_check
          %p1105 = pneg %p522
        $region86: #{fwd.1} parent=11 // pred_check_branch
          %1107 = sbr.rel (%p1105) target = $region88
        $region87: #{fwd.1} parent=11 // pred_region
          %s1109 = ssub.s32 16, 16
          %1110 = vsyncadd [#allocation14], %s1109
          %s1112 = sshll.u32 [#allocation13], 4
          %s1113 = int_to_ptr.vmem [resolvable:$true] %s1112
          %1115 = dma.hbm_to_vmem [thread:$0]  %s39, 16, %s1113, [#allocation14]
        $region88: #{fwd.1} parent=11 // pred_fallthru
          _
        // Predicated region
        $region89: #{fwd.1} parent=11 // pred_check
          %p1116 = pneg %p543
        $region90: #{fwd.1} parent=11 // pred_check_branch
          %1118 = sbr.rel (%p1116) target = $region92
        $region91: #{fwd.1} parent=11 // pred_region
          _
        $region92: #{fwd.1} parent=11 // pred_fallthru
          _
        // Predicated region
        $region93: #{fwd.1} parent=11 // pred_check
          %p1119 = pneg %p564
        $region94: #{fwd.1} parent=11 // pred_check_branch
          %1121 = sbr.rel (%p1119) target = $region96
        $region95: #{fwd.1} parent=11 // pred_region
          %s1123 = ssub.s32 16, 16
          %1124 = vsyncadd [#allocation14], %s1123
          %s1126 = sshll.u32 [#allocation15], 4
          %s1127 = int_to_ptr.vmem [resolvable:$true] %s1126
          %1129 = dma.hbm_to_vmem [thread:$0]  %s43, 16, %s1127, [#allocation14]
        $region96: #{fwd.1} parent=11 // pred_fallthru
          _
        // Predicated region
        $region97: #{fwd.1} parent=11 // pred_check
          %p1130 = pneg %p585
        $region98: #{fwd.1} parent=11 // pred_check_branch
          %1132 = sbr.rel (%p1130) target = $region100
        $region99: #{fwd.1} parent=11 // pred_region
          %s1134 = ssub.s32 3072, 3072
          %1135 = vsyncadd [#allocation17], %s1134
          %s1136 = sshll.u32 [#allocation16], 4
          %s1137 = int_to_ptr.vmem [resolvable:$true] %s1136
          %1142 = dma.hbm_to_vmem [thread:$0]  %s45, 3072, %s1137, [#allocation17], 128, 128, 8
        $region100: #{fwd.1} parent=11 // pred_fallthru
          _
        // Predicated region
        $region101: #{fwd.1} parent=11 // pred_check
          %p1143 = pneg %p606
        $region102: #{fwd.1} parent=11 // pred_check_branch
          %1145 = sbr.rel (%p1143) target = $region104
        $region103: #{fwd.1} parent=11 // pred_region
          %s1147 = ssub.s32 16, 16
          %1148 = vsyncadd [#allocation17], %s1147
          %s1150 = sshll.u32 [#allocation18], 4
          %s1151 = int_to_ptr.vmem [resolvable:$true] %s1150
          %1153 = dma.hbm_to_vmem [thread:$0]  %s47, 16, %s1151, [#allocation17]
        $region104: #{fwd.1} parent=11 // pred_fallthru
          _
        // Predicated region
        $region105: #{fwd.1} parent=11 // pred_check
          %p1154 = pneg %p627
        $region106: #{fwd.1} parent=11 // pred_check_branch
          %1156 = sbr.rel (%p1154) target = $region108
        $region107: #{fwd.1} parent=11 // pred_region
          %s1158 = ssub.s32 3072, 3072
          %1159 = vsyncadd [#allocation20], %s1158
          %s1160 = sshll.u32 [#allocation19], 4
          %s1161 = int_to_ptr.vmem [resolvable:$true] %s1160
          %1166 = dma.hbm_to_vmem [thread:$0]  %s49, 3072, %s1161, [#allocation20], 128, 128, 8
        $region108: #{fwd.1} parent=11 // pred_fallthru
          _
        // Predicated region
        $region109: #{fwd.1} parent=11 // pred_check
          %p1167 = pneg %p648
        $region110: #{fwd.1} parent=11 // pred_check_branch
          %1169 = sbr.rel (%p1167) target = $region112
        $region111: #{fwd.1} parent=11 // pred_region
          _
        $region112: #{fwd.1} parent=11 // pred_fallthru
          _
        // Predicated region
        $region113: #{fwd.1} parent=11 // pred_check
          %p1170 = pneg %p669
        $region114: #{fwd.1} parent=11 // pred_check_branch
          %1172 = sbr.rel (%p1170) target = $region116
        $region115: #{fwd.1} parent=11 // pred_region
          %s1174 = ssub.s32 3072, 3072
          %1175 = vsyncadd [#allocation20], %s1174
          %s1176 = sshll.u32 [#allocation21], 4
          %s1177 = int_to_ptr.vmem [resolvable:$true] %s1176
          %1182 = dma.hbm_to_vmem [thread:$0]  %s53, 3072, %s1177, [#allocation20], 128, 128, 8
        $region116: #{fwd.1} parent=11 // pred_fallthru
          _
        // Predicated region
        $region117: #{fwd.1} parent=11 // pred_check
          %p1183 = pneg %p690
        $region118: #{fwd.1} parent=11 // pred_check_branch
          %1185 = sbr.rel (%p1183) target = $region120
        $region119: #{fwd.1} parent=11 // pred_region
          %s1187 = ssub.s32 16, 16
          %1188 = vsyncadd [#allocation23], %s1187
          %s1190 = sshll.u32 [#allocation22], 4
          %s1191 = int_to_ptr.vmem [resolvable:$true] %s1190
          %1193 = dma.hbm_to_vmem [thread:$0]  %s55, 16, %s1191, [#allocation23]
        $region120: #{fwd.1} parent=11 // pred_fallthru
          _
        // Predicated region
        $region121: #{fwd.1} parent=11 // pred_check
          %p1194 = pneg %p711
        $region122: #{fwd.1} parent=11 // pred_check_branch
          %1196 = sbr.rel (%p1194) target = $region124
        $region123: #{fwd.1} parent=11 // pred_region
          _
        $region124: #{fwd.1} parent=11 // pred_fallthru
          _
        // Predicated region
        $region125: #{fwd.1} parent=11 // pred_check
          %p1197 = pneg %p732
        $region126: #{fwd.1} parent=11 // pred_check_branch
          %1199 = sbr.rel (%p1197) target = $region128
        $region127: #{fwd.1} parent=11 // pred_region
          _
        $region128: #{fwd.1} parent=11 // pred_fallthru
          _
        // Predicated region
        $region129: #{fwd.1} parent=11 // pred_check
          %p1200 = pneg %p753
        $region130: #{fwd.1} parent=11 // pred_check_branch
          %1202 = sbr.rel (%p1200) target = $region132
        $region131: #{fwd.1} parent=11 // pred_region
          %s1204 = ssub.s32 1536, 1536
          %1205 = vsyncadd [#allocation23], %s1204
          %s1206 = sshll.u32 [#allocation24], 4
          %s1207 = int_to_ptr.vmem [resolvable:$true] %s1206
          %1212 = dma.hbm_to_vmem [thread:$0]  %s61, 1536, %s1207, [#allocation23], 128, 128, 8
        $region132: #{fwd.1} parent=11 // pred_fallthru
          _
        // Predicated region
        $region133: #{fwd.1} parent=11 // pred_check
          %p1213 = pneg %p774
        $region134: #{fwd.1} parent=11 // pred_check_branch
          %1215 = sbr.rel (%p1213) target = $region136
        $region135: #{fwd.1} parent=11 // pred_region
          _
        $region136: #{fwd.1} parent=11 // pred_fallthru
          _
        // Predicated region
        $region137: #{fwd.1} parent=11 // pred_check
          %p1216 = pneg %p795
        $region138: #{fwd.1} parent=11 // pred_check_branch
          %1218 = sbr.rel (%p1216) target = $region140
        $region139: #{fwd.1} parent=11 // pred_region
          %s1220 = ssub.s32 1536, 1536
          %1221 = vsyncadd [#allocation26], %s1220
          %s1222 = sshll.u32 [#allocation25], 4
          %s1223 = int_to_ptr.vmem [resolvable:$true] %s1222
          %1228 = dma.hbm_to_vmem [thread:$0]  %s65, 1536, %s1223, [#allocation26], 128, 128, 8
        $region140: #{fwd.1} parent=11 // pred_fallthru
          _
        // Predicated region
        $region141: #{fwd.1} parent=11 // pred_check
          %p1229 = pneg %p816
        $region142: #{fwd.1} parent=11 // pred_check_branch
          %1231 = sbr.rel (%p1229) target = $region144
        $region143: #{fwd.1} parent=11 // pred_region
          _
        $region144: #{fwd.1} parent=11 // pred_fallthru
          _
        // Predicated region
        $region145: #{fwd.1} parent=11 // pred_check
          %p1232 = pneg %p837
        $region146: #{fwd.1} parent=11 // pred_check_branch
          %1234 = sbr.rel (%p1232) target = $region148
        $region147: #{fwd.1} parent=11 // pred_region
          %s1236 = ssub.s32 1536, 1536
          %1237 = vsyncadd [#allocation26], %s1236
          %s1238 = sshll.u32 [#allocation27], 4
          %s1239 = int_to_ptr.vmem [resolvable:$true] %s1238
          %1244 = dma.hbm_to_vmem [thread:$0]  %s69, 1536, %s1239, [#allocation26], 128, 128, 8
        $region148: #{fwd.1} parent=11 // pred_fallthru
          _
        // Predicated region
        $region149: #{fwd.1} parent=11 // pred_check
          %p1245 = pneg %p858
        $region150: #{fwd.1} parent=11 // pred_check_branch
          %1247 = sbr.rel (%p1245) target = $region152
        $region151: #{fwd.1} parent=11 // pred_region
          _
        $region152: #{fwd.1} parent=11 // pred_fallthru
          _
        // Predicated region
        $region153: #{fwd.1} parent=11 // pred_check
          %p1248 = pneg %p879
        $region154: #{fwd.1} parent=11 // pred_check_branch
          %1250 = sbr.rel (%p1248) target = $region156
        $region155: #{fwd.1} parent=11 // pred_region
          %s1252 = ssub.s32 1536, 1536
          %1253 = vsyncadd [#allocation29], %s1252
          %s1254 = sshll.u32 [#allocation28], 4
          %s1255 = int_to_ptr.vmem [resolvable:$true] %s1254
          %1260 = dma.hbm_to_vmem [thread:$0]  %s73, 1536, %s1255, [#allocation29], 128, 128, 8
        $region156: #{fwd.1} parent=11 // pred_fallthru
          _
        // Predicated region
        $region157: #{fwd.1} parent=11 // pred_check
          %p1261 = pneg %p900
        $region158: #{fwd.1} parent=11 // pred_check_branch
          %1263 = sbr.rel (%p1261) target = $region160
        $region159: #{fwd.1} parent=11 // pred_region
          _
        $region160: #{fwd.1} parent=11 // pred_fallthru
          _
        // Predicated region
        $region161: #{fwd.1} parent=11 // pred_check
          %p1264 = pneg %p921
        $region162: #{fwd.1} parent=11 // pred_check_branch
          %1266 = sbr.rel (%p1264) target = $region164
        $region163: #{fwd.1} parent=11 // pred_region
          %s1268 = ssub.s32 1536, 1536
          %1269 = vsyncadd [#allocation29], %s1268
          %s1270 = sshll.u32 [#allocation30], 4
          %s1271 = int_to_ptr.vmem [resolvable:$true] %s1270
          %1276 = dma.hbm_to_vmem [thread:$0]  %s77, 1536, %s1271, [#allocation29], 128, 128, 8
        $region164: #{fwd.1} parent=11 // pred_fallthru
          _
        // Predicated region
        $region165: #{fwd.1} parent=11 // pred_check
          %p1277 = pneg %p942
        $region166: #{fwd.1} parent=11 // pred_check_branch
          %1279 = sbr.rel (%p1277) target = $region168
        $region167: #{fwd.1} parent=11 // pred_region
          _
        $region168: #{fwd.1} parent=11 // pred_fallthru
          _
      $region12: #{fwd.1} parent=5 // pred_fallthru
        _
      %p1280 = scmp.lt.s32.totalorder %s97, 2
      // Predicated region
      $region169: #{fwd.1} parent=5 // pred_check
        %p1281 = pneg %p1280
      $region170: #{fwd.1} parent=5 // pred_check_branch
        %1283 = sbr.rel (%p1281) target = $region172
      $region171: #{fwd.1} parent=5 // pred_region
        // Predicated region
        $region173: #{fwd.1} parent=171 // pred_check
          %p1284 = pneg %p117
        $region174: #{fwd.1} parent=171 // pred_check_branch
          %1286 = sbr.rel (%p1284) target = $region176
        $region175: #{fwd.1} parent=171 // pred_region
          %p1287 = scmp.lt.s32.totalorder %s97, 1
          %s1288 = scalar_select %p1287, %s97, 1
          %s1289 = smul.addr %s1288, 2
          %s1290 = smul.addr %s1289, 8
          %s1291 = scalar_lea.vmem %s1, %s1290
        $region176: #{fwd.1} parent=171 // pred_fallthru
          _
      $region172: #{fwd.1} parent=5 // pred_fallthru
        _
      %p1292 = scmp.le.s32.totalorder 1, %s97
      %p1293 = scmp.lt.s32.totalorder %s97, 3
      %p1294 = pnand %p1292, %p1293
      %p1295 = pneg %p1294
      // Predicated region
      $region177: #{fwd.1} parent=5 // pred_check
        _
      $region178: #{fwd.1} parent=5 // pred_check_branch
        %1297 = sbr.rel (%p1294) target = $region180
      $region179: #{fwd.1} parent=5 // pred_region
        %s1298 = ssub.s32 %s97, 1
        // Predicated region
        $region181: #{fwd.1} parent=179 // pred_check
          %p1299 = pneg %p144
        $region182: #{fwd.1} parent=179 // pred_check_branch
          %1301 = sbr.rel (%p1299) target = $region184
        $region183: #{fwd.1} parent=179 // pred_region
          %1302 = dma.done [#allocation3], 512
        $region184: #{fwd.1} parent=179 // pred_fallthru
          _
        // Predicated region
        $region185: #{fwd.1} parent=179 // pred_check
          %p1303 = pneg %p165
        $region186: #{fwd.1} parent=179 // pred_check_branch
          %1305 = sbr.rel (%p1303) target = $region188
        $region187: #{fwd.1} parent=179 // pred_region
          %1306 = dma.done [#allocation5], 256
        $region188: #{fwd.1} parent=179 // pred_fallthru
          _
        // Predicated region
        $region189: #{fwd.1} parent=179 // pred_check
          %p1307 = pneg %p207
        $region190: #{fwd.1} parent=179 // pred_check_branch
          %1309 = sbr.rel (%p1307) target = $region192
        $region191: #{fwd.1} parent=179 // pred_region
          %1310 = dma.done [#allocation5], 256
        $region192: #{fwd.1} parent=179 // pred_fallthru
          _
        // Predicated region
        $region193: #{fwd.1} parent=179 // pred_check
          %p1311 = pneg %p270
        $region194: #{fwd.1} parent=179 // pred_check_branch
          %1313 = sbr.rel (%p1311) target = $region196
        $region195: #{fwd.1} parent=179 // pred_region
          %1314 = dma.done [#allocation8], 1024
        $region196: #{fwd.1} parent=179 // pred_fallthru
          _
        // Predicated region
        $region197: #{fwd.1} parent=179 // pred_check
          %p1315 = pneg %p291
        $region198: #{fwd.1} parent=179 // pred_check_branch
          %1317 = sbr.rel (%p1315) target = $region200
        $region199: #{fwd.1} parent=179 // pred_region
          %1318 = dma.done [#allocation8], 128
        $region200: #{fwd.1} parent=179 // pred_fallthru
          _
        // Predicated region
        $region201: #{fwd.1} parent=179 // pred_check
          %p1319 = pneg %p354
        $region202: #{fwd.1} parent=179 // pred_check_branch
          %1321 = sbr.rel (%p1319) target = $region204
        $region203: #{fwd.1} parent=179 // pred_region
          %1322 = dma.done [#allocation11], 512
        $region204: #{fwd.1} parent=179 // pred_fallthru
          _
        // Predicated region
        $region205: #{fwd.1} parent=179 // pred_check
          %p1323 = pneg %p480
        $region206: #{fwd.1} parent=179 // pred_check_branch
          %1325 = sbr.rel (%p1323) target = $region208
        $region207: #{fwd.1} parent=179 // pred_region
          %1326 = dma.done [#allocation11], 16
        $region208: #{fwd.1} parent=179 // pred_fallthru
          _
        // Predicated region
        $region209: #{fwd.1} parent=179 // pred_check
          %p1327 = pneg %p522
        $region210: #{fwd.1} parent=179 // pred_check_branch
          %1329 = sbr.rel (%p1327) target = $region212
        $region211: #{fwd.1} parent=179 // pred_region
          %1330 = dma.done [#allocation14], 16
        $region212: #{fwd.1} parent=179 // pred_fallthru
          _
        // Predicated region
        $region213: #{fwd.1} parent=179 // pred_check
          %p1331 = pneg %p564
        $region214: #{fwd.1} parent=179 // pred_check_branch
          %1333 = sbr.rel (%p1331) target = $region216
        $region215: #{fwd.1} parent=179 // pred_region
          %1334 = dma.done [#allocation14], 16
        $region216: #{fwd.1} parent=179 // pred_fallthru
          _
        // Predicated region
        $region217: #{fwd.1} parent=179 // pred_check
          %p1335 = pneg %p585
        $region218: #{fwd.1} parent=179 // pred_check_branch
          %1337 = sbr.rel (%p1335) target = $region220
        $region219: #{fwd.1} parent=179 // pred_region
          %1338 = dma.done [#allocation17], 3072
        $region220: #{fwd.1} parent=179 // pred_fallthru
          _
        // Predicated region
        $region221: #{fwd.1} parent=179 // pred_check
          %p1339 = pneg %p606
        $region222: #{fwd.1} parent=179 // pred_check_branch
          %1341 = sbr.rel (%p1339) target = $region224
        $region223: #{fwd.1} parent=179 // pred_region
          %1342 = dma.done [#allocation17], 16
        $region224: #{fwd.1} parent=179 // pred_fallthru
          _
        // Predicated region
        $region225: #{fwd.1} parent=179 // pred_check
          %p1343 = pneg %p627
        $region226: #{fwd.1} parent=179 // pred_check_branch
          %1345 = sbr.rel (%p1343) target = $region228
        $region227: #{fwd.1} parent=179 // pred_region
          %1346 = dma.done [#allocation20], 3072
        $region228: #{fwd.1} parent=179 // pred_fallthru
          _
        // Predicated region
        $region229: #{fwd.1} parent=179 // pred_check
          %p1347 = pneg %p669
        $region230: #{fwd.1} parent=179 // pred_check_branch
          %1349 = sbr.rel (%p1347) target = $region232
        $region231: #{fwd.1} parent=179 // pred_region
          %1350 = dma.done [#allocation20], 3072
        $region232: #{fwd.1} parent=179 // pred_fallthru
          _
        // Predicated region
        $region233: #{fwd.1} parent=179 // pred_check
          %p1351 = pneg %p690
        $region234: #{fwd.1} parent=179 // pred_check_branch
          %1353 = sbr.rel (%p1351) target = $region236
        $region235: #{fwd.1} parent=179 // pred_region
          %1354 = dma.done [#allocation23], 16
        $region236: #{fwd.1} parent=179 // pred_fallthru
          _
        // Predicated region
        $region237: #{fwd.1} parent=179 // pred_check
          %p1355 = pneg %p753
        $region238: #{fwd.1} parent=179 // pred_check_branch
          %1357 = sbr.rel (%p1355) target = $region240
        $region239: #{fwd.1} parent=179 // pred_region
          %1358 = dma.done [#allocation23], 1536
        $region240: #{fwd.1} parent=179 // pred_fallthru
          _
        // Predicated region
        $region241: #{fwd.1} parent=179 // pred_check
          %p1359 = pneg %p795
        $region242: #{fwd.1} parent=179 // pred_check_branch
          %1361 = sbr.rel (%p1359) target = $region244
        $region243: #{fwd.1} parent=179 // pred_region
          %1362 = dma.done [#allocation26], 1536
        $region244: #{fwd.1} parent=179 // pred_fallthru
          _
        // Predicated region
        $region245: #{fwd.1} parent=179 // pred_check
          %p1363 = pneg %p837
        $region246: #{fwd.1} parent=179 // pred_check_branch
          %1365 = sbr.rel (%p1363) target = $region248
        $region247: #{fwd.1} parent=179 // pred_region
          %1366 = dma.done [#allocation26], 1536
        $region248: #{fwd.1} parent=179 // pred_fallthru
          _
        // Predicated region
        $region249: #{fwd.1} parent=179 // pred_check
          %p1367 = pneg %p879
        $region250: #{fwd.1} parent=179 // pred_check_branch
          %1369 = sbr.rel (%p1367) target = $region252
        $region251: #{fwd.1} parent=179 // pred_region
          %1370 = dma.done [#allocation29], 1536
        $region252: #{fwd.1} parent=179 // pred_fallthru
          _
        // Predicated region
        $region253: #{fwd.1} parent=179 // pred_check
          %p1371 = pneg %p921
        $region254: #{fwd.1} parent=179 // pred_check_branch
          %1373 = sbr.rel (%p1371) target = $region256
        $region255: #{fwd.1} parent=179 // pred_region
          %1374 = dma.done [#allocation29], 1536
        $region256: #{fwd.1} parent=179 // pred_fallthru
          _
        %p1375 = scmp.lt.s32.totalorder %s102, 1
        %s1376 = scalar_select %p1375, %s102, 1
        %s1377 = smul.addr %s1376, 2
        %s1378 = smul.addr %s1377, 8
        %s1379 = scalar_lea.vmem %s1, %s1378
        %p1380 = pneg %p123
        %p1381 = pneg %p120
        %p1382 = pneg %p144
        %p1383 = pneg %p141
        %p1384 = pneg %p165
        %p1385 = pneg %p162
        %p1386 = pneg %p186
        %p1387 = pneg %p183
        %p1388 = pneg %p207
        %p1389 = pneg %p204
        %p1390 = pneg %p228
        %p1391 = pneg %p225
        %p1392 = pneg %p249
        %p1393 = pneg %p246
        %p1394 = pneg %p270
        %p1395 = pneg %p267
        %p1396 = pneg %p291
        %p1397 = pneg %p288
        %p1398 = pneg %p312
        %p1399 = pneg %p309
        %p1400 = pneg %p333
        %p1401 = pneg %p330
        %p1402 = pneg %p354
        %p1403 = pneg %p351
        %p1404 = pneg %p375
        %p1405 = pneg %p372
        %p1406 = pneg %p396
        %p1407 = pneg %p393
        %p1408 = pneg %p417
        %p1409 = pneg %p414
        %p1410 = pneg %p438
        %p1411 = pneg %p435
        %p1412 = pneg %p459
        %p1413 = pneg %p456
        %p1414 = pneg %p480
        %p1415 = pneg %p477
        %p1416 = pneg %p501
        %p1417 = pneg %p498
        %p1418 = pneg %p522
        %p1419 = pneg %p519
        %p1420 = pneg %p543
        %p1421 = pneg %p540
        %p1422 = pneg %p564
        %p1423 = pneg %p561
        %p1424 = pneg %p585
        %p1425 = pneg %p582
        %p1426 = pneg %p606
        %p1427 = pneg %p603
        %p1428 = pneg %p627
        %p1429 = pneg %p624
        %p1430 = pneg %p648
        %p1431 = pneg %p645
        %p1432 = pneg %p669
        %p1433 = pneg %p666
        %p1434 = pneg %p690
        %p1435 = pneg %p687
        %p1436 = pneg %p711
        %p1437 = pneg %p708
        %p1438 = pneg %p732
        %p1439 = pneg %p729
        %p1440 = pneg %p753
        %p1441 = pneg %p750
        %p1442 = pneg %p774
        %p1443 = pneg %p771
        %p1444 = pneg %p795
        %p1445 = pneg %p792
        %p1446 = pneg %p816
        %p1447 = pneg %p813
        %p1448 = pneg %p837
        %p1449 = pneg %p834
        %p1450 = pneg %p858
        %p1451 = pneg %p855
        %p1452 = pneg %p879
        %p1453 = pneg %p876
        %p1454 = pneg %p900
        %p1455 = pneg %p897
        %p1456 = pneg %p921
        %p1457 = pneg %p918
        %p1458 = pneg %p942
        %p1459 = pneg %p939
        %p1460 = pneg %p968
        %p1461 = pneg %p965
        %p1462 = scmp.lt.s32.totalorder %s102, 1
        %s1463 = scalar_select %p1462, %s102, 1
        %s1464 = smul.addr %s1463, 2
        %s1465 = smul.addr %s1464, 8
        %s1466 = scalar_lea.vmem %s81, %s1465
        %p1467 = scmp.lt.s32.totalorder %s102, 1
        %s1468 = scalar_select %p1467, %s102, 1
        %s1469 = smul.addr %s1468, 2
        %s1470 = smul.addr %s1469, 8
        %s1471 = scalar_lea.vmem %s1, %s1470
        %p1472 = scmp.lt.s32.totalorder %s102, 1
        %s1473 = scalar_select %p1472, %s102, 1
        %s1474 = smul.addr %s1473, 2
        %s1475 = smul.addr %s1474, 8
        %s1476 = scalar_lea.vmem %s81, %s1475
        %v1477 = vld [vmem:[%s1471] sm:$0xff]
        %v1478 = vld [vmem:[%s1471 + $0x8] sm:$0xff]
        %v1479 = vld [vmem:[#allocation2] sm:$0xff]
        %v1480 = vld [vmem:[#allocation2 + $0x8] sm:$0xff]
        %s1481 = scalar_lea.vmem [#allocation2], 16
        %v1482 = vld [vmem:[%s1481] sm:$0xff]
        %v1483 = vld [vmem:[%s1481 + $0x8] sm:$0xff]
        %v1484 = vld [vmem:[%s25] sm:$0xff]
        %v1485 = vld [vmem:[%s25 + $0x8] sm:$0xff]
        %v1486 = vld [vmem:[%s25 + $0x10] sm:$0xff]
        %v1487 = vld [vmem:[%s25 + $0x18] sm:$0xff]
        %v1488 = vld [vmem:[%s25 + $0x20] sm:$0xff]
        %v1489 = vld [vmem:[%s25 + $0x28] sm:$0xff]
        %v1490 = vld [vmem:[%s25 + $0x30] sm:$0xff]
        %v1491 = vld [vmem:[%s25 + $0x38] sm:$0xff]
        %v1492 = vld [vmem:[%s25 + $0x40] sm:$0xff]
        %v1493 = vld [vmem:[%s25 + $0x48] sm:$0xff]
        %v1494 = vld [vmem:[%s25 + $0x50] sm:$0xff]
        %v1495 = vld [vmem:[%s25 + $0x58] sm:$0xff]
        %v1496 = vld [vmem:[%s25 + $0x60] sm:$0xff]
        %v1497 = vld [vmem:[%s25 + $0x68] sm:$0xff]
        %v1498 = vld [vmem:[%s25 + $0x70] sm:$0xff]
        %v1499 = vld [vmem:[%s25 + $0x78] sm:$0xff]
        %1500 = vmatprep.subr.mxu0 0.0
        %1501 = vmatpush1.msra.mxu0 %v1499
        %1502 = vmatprep.subr.mxu0 0.0
        %1503 = vmatpush1.msra.mxu0 %v1498
        %1504 = vmatprep.subr.mxu0 0.0
        %1505 = vmatpush1.msra.mxu0 %v1497
        %1506 = vmatprep.subr.mxu0 0.0
        %1507 = vmatpush1.msra.mxu0 %v1496
        %1508 = vmatprep.subr.mxu0 0.0
        %1509 = vmatpush1.msra.mxu0 %v1495
        %1510 = vmatprep.subr.mxu0 0.0
        %1511 = vmatpush1.msra.mxu0 %v1494
        %1512 = vmatprep.subr.mxu0 0.0
        %1513 = vmatpush1.msra.mxu0 %v1493
        %1514 = vmatprep.subr.mxu0 0.0
        %1515 = vmatpush1.msra.mxu0 %v1492
        %1516 = vmatprep.subr.mxu0 0.0
        %1517 = vmatpush1.msra.mxu0 %v1491
        %1518 = vmatprep.subr.mxu0 0.0
        %1519 = vmatpush1.msra.mxu0 %v1490
        %1520 = vmatprep.subr.mxu0 0.0
        %1521 = vmatpush1.msra.mxu0 %v1489
        %1522 = vmatprep.subr.mxu0 0.0
        %1523 = vmatpush1.msra.mxu0 %v1488
        %1524 = vmatprep.subr.mxu0 0.0
        %1525 = vmatpush1.msra.mxu0 %v1487
        %1526 = vmatprep.subr.mxu0 0.0
        %1527 = vmatpush1.msra.mxu0 %v1486
        %1528 = vmatprep.subr.mxu0 0.0
        %1529 = vmatpush1.msra.mxu0 %v1485
        %1530 = vmatprep.subr.mxu0 0.0
        %1531 = vmatpush1.msra.mxu0 %v1484
        %1532 = vmatprep.subr.mxu0 0.0
        %1533 = vmatpush2.msra.mxu0 0.0
        %1534 = vmatprep.subr.mxu0 0.0
        %1535 = vmatpush2.msra.mxu0 0.0
        %1536 = vmatprep.subr.mxu0 0.0
        %1537 = vmatpush2.msra.mxu0 0.0
        %1538 = vmatprep.subr.mxu0 0.0
        %1539 = vmatpush2.msra.mxu0 0.0
        %1540 = vmatprep.subr.mxu0 0.0
        %1541 = vmatpush2.msra.mxu0 0.0
        %1542 = vmatprep.subr.mxu0 0.0
        %1543 = vmatpush2.msra.mxu0 0.0
        %1544 = vmatprep.subr.mxu0 0.0
        %1545 = vmatpush2.msra.mxu0 0.0
        %1546 = vmatprep.subr.mxu0 0.0
        %1547 = vmatpush2.msra.mxu0 0.0
        %1548 = vmatprep.subr.mxu0 0.0
        %1549 = vmatpush2.msra.mxu0 0.0
        %1550 = vmatprep.subr.mxu0 0.0
        %1551 = vmatpush2.msra.mxu0 0.0
        %1552 = vmatprep.subr.mxu0 0.0
        %1553 = vmatpush2.msra.mxu0 0.0
        %1554 = vmatprep.subr.mxu0 0.0
        %1555 = vmatpush2.msra.mxu0 0.0
        %1556 = vmatprep.subr.mxu0 0.0
        %1557 = vmatpush2.msra.mxu0 0.0
        %1558 = vmatprep.subr.mxu0 0.0
        %1559 = vmatpush2.msra.mxu0 0.0
        %1560 = vmatprep.subr.mxu0 0.0
        %1561 = vmatpush2.msra.mxu0 0.0
        %1562 = vmatprep.subr.mxu0 0.0
        %1563 = vmatpush2.msra.mxu0 0.0
        %1564 = vmatprep.mubr.f32.mxu0 0.0
        %1565 = vmatmul.mubr.f32.gmra.mxu0 %v1477
        %v1566 = vpop.f32.mrf.mxu0
        %v1567 = vadd.f32 0.0, %v1566
        %v1568 = vpop.f32.mrf.mxu0
        %1569 = vmatprep.mubr.f32.mxu0 0.0
        %1570 = vmatmul.mubr.f32.gmra.mxu0 %v1478
        %v1571 = vpop.f32.mrf.mxu0
        %v1572 = vadd.f32 0.0, %v1571
        %v1573 = vpop.f32.mrf.mxu0
        %1574 = vdwg.mxu0
        %s1575 = scalar_lea.vmem %s25, 128
        %v1576 = vld [vmem:[%s1575] sm:$0xff]
        %v1577 = vld [vmem:[%s1575 + $0x8] sm:$0xff]
        %v1578 = vld [vmem:[%s1575 + $0x10] sm:$0xff]
        %v1579 = vld [vmem:[%s1575 + $0x18] sm:$0xff]
        %v1580 = vld [vmem:[%s1575 + $0x20] sm:$0xff]
        %v1581 = vld [vmem:[%s1575 + $0x28] sm:$0xff]
        %v1582 = vld [vmem:[%s1575 + $0x30] sm:$0xff]
        %v1583 = vld [vmem:[%s1575 + $0x38] sm:$0xff]
        %v1584 = vld [vmem:[%s1575 + $0x40] sm:$0xff]
        %v1585 = vld [vmem:[%s1575 + $0x48] sm:$0xff]
        %v1586 = vld [vmem:[%s1575 + $0x50] sm:$0xff]
        %v1587 = vld [vmem:[%s1575 + $0x58] sm:$0xff]
        %v1588 = vld [vmem:[%s1575 + $0x60] sm:$0xff]
        %v1589 = vld [vmem:[%s1575 + $0x68] sm:$0xff]
        %v1590 = vld [vmem:[%s1575 + $0x70] sm:$0xff]
        %v1591 = vld [vmem:[%s1575 + $0x78] sm:$0xff]
        %1592 = vmatprep.subr.mxu0 0.0
        %1593 = vmatpush1.msra.mxu0 %v1591
        %1594 = vmatprep.subr.mxu0 0.0
        %1595 = vmatpush1.msra.mxu0 %v1590
        %1596 = vmatprep.subr.mxu0 0.0
        %1597 = vmatpush1.msra.mxu0 %v1589
        %1598 = vmatprep.subr.mxu0 0.0
        %1599 = vmatpush1.msra.mxu0 %v1588
        %1600 = vmatprep.subr.mxu0 0.0
        %1601 = vmatpush1.msra.mxu0 %v1587
        %1602 = vmatprep.subr.mxu0 0.0
        %1603 = vmatpush1.msra.mxu0 %v1586
        %1604 = vmatprep.subr.mxu0 0.0
        %1605 = vmatpush1.msra.mxu0 %v1585
        %1606 = vmatprep.subr.mxu0 0.0
        %1607 = vmatpush1.msra.mxu0 %v1584
        %1608 = vmatprep.subr.mxu0 0.0
        %1609 = vmatpush1.msra.mxu0 %v1583
        %1610 = vmatprep.subr.mxu0 0.0
        %1611 = vmatpush1.msra.mxu0 %v1582
        %1612 = vmatprep.subr.mxu0 0.0
        %1613 = vmatpush1.msra.mxu0 %v1581
        %1614 = vmatprep.subr.mxu0 0.0
        %1615 = vmatpush1.msra.mxu0 %v1580
        %1616 = vmatprep.subr.mxu0 0.0
        %1617 = vmatpush1.msra.mxu0 %v1579
        %1618 = vmatprep.subr.mxu0 0.0
        %1619 = vmatpush1.msra.mxu0 %v1578
        %1620 = vmatprep.subr.mxu0 0.0
        %1621 = vmatpush1.msra.mxu0 %v1577
        %1622 = vmatprep.subr.mxu0 0.0
        %1623 = vmatpush1.msra.mxu0 %v1576
        %1624 = vmatprep.subr.mxu0 0.0
        %1625 = vmatpush2.msra.mxu0 0.0
        %1626 = vmatprep.subr.mxu0 0.0
        %1627 = vmatpush2.msra.mxu0 0.0
        %1628 = vmatprep.subr.mxu0 0.0
        %1629 = vmatpush2.msra.mxu0 0.0
        %1630 = vmatprep.subr.mxu0 0.0
        %1631 = vmatpush2.msra.mxu0 0.0
        %1632 = vmatprep.subr.mxu0 0.0
        %1633 = vmatpush2.msra.mxu0 0.0
        %1634 = vmatprep.subr.mxu0 0.0
        %1635 = vmatpush2.msra.mxu0 0.0
        %1636 = vmatprep.subr.mxu0 0.0
        %1637 = vmatpush2.msra.mxu0 0.0
        %1638 = vmatprep.subr.mxu0 0.0
        %1639 = vmatpush2.msra.mxu0 0.0
        %1640 = vmatprep.subr.mxu0 0.0
        %1641 = vmatpush2.msra.mxu0 0.0
        %1642 = vmatprep.subr.mxu0 0.0
        %1643 = vmatpush2.msra.mxu0 0.0
        %1644 = vmatprep.subr.mxu0 0.0
        %1645 = vmatpush2.msra.mxu0 0.0
        %1646 = vmatprep.subr.mxu0 0.0
        %1647 = vmatpush2.msra.mxu0 0.0
        %1648 = vmatprep.subr.mxu0 0.0
        %1649 = vmatpush2.msra.mxu0 0.0
        %1650 = vmatprep.subr.mxu0 0.0
        %1651 = vmatpush2.msra.mxu0 0.0
        %1652 = vmatprep.subr.mxu0 0.0
        %1653 = vmatpush2.msra.mxu0 0.0
        %1654 = vmatprep.subr.mxu0 0.0
        %1655 = vmatpush2.msra.mxu0 0.0
        %1656 = vmatprep.mubr.f32.mxu0 0.0
        %1657 = vmatmul.mubr.f32.gmra.mxu0 %v1477
        %v1658 = vpop.f32.mrf.mxu0
        %v1659 = vadd.f32 0.0, %v1658
        %v1660 = vpop.f32.mrf.mxu0
        %1661 = vmatprep.mubr.f32.mxu0 0.0
        %1662 = vmatmul.mubr.f32.gmra.mxu0 %v1478
        %v1663 = vpop.f32.mrf.mxu0
        %v1664 = vadd.f32 0.0, %v1663
        %v1665 = vpop.f32.mrf.mxu0
        %1666 = vdwg.mxu0
        %s1667 = scalar_lea.vmem %s25, 256
        %v1668 = vld [vmem:[%s1667] sm:$0xff]
        %v1669 = vld [vmem:[%s1667 + $0x8] sm:$0xff]
        %v1670 = vld [vmem:[%s1667 + $0x10] sm:$0xff]
        %v1671 = vld [vmem:[%s1667 + $0x18] sm:$0xff]
        %v1672 = vld [vmem:[%s1667 + $0x20] sm:$0xff]
        %v1673 = vld [vmem:[%s1667 + $0x28] sm:$0xff]
        %v1674 = vld [vmem:[%s1667 + $0x30] sm:$0xff]
        %v1675 = vld [vmem:[%s1667 + $0x38] sm:$0xff]
        %v1676 = vld [vmem:[%s1667 + $0x40] sm:$0xff]
        %v1677 = vld [vmem:[%s1667 + $0x48] sm:$0xff]
        %v1678 = vld [vmem:[%s1667 + $0x50] sm:$0xff]
        %v1679 = vld [vmem:[%s1667 + $0x58] sm:$0xff]
        %v1680 = vld [vmem:[%s1667 + $0x60] sm:$0xff]
        %v1681 = vld [vmem:[%s1667 + $0x68] sm:$0xff]
        %v1682 = vld [vmem:[%s1667 + $0x70] sm:$0xff]
        %v1683 = vld [vmem:[%s1667 + $0x78] sm:$0xff]
        %1684 = vmatprep.subr.mxu0 0.0
        %1685 = vmatpush1.msra.mxu0 %v1683
        %1686 = vmatprep.subr.mxu0 0.0
        %1687 = vmatpush1.msra.mxu0 %v1682
        %1688 = vmatprep.subr.mxu0 0.0
        %1689 = vmatpush1.msra.mxu0 %v1681
        %1690 = vmatprep.subr.mxu0 0.0
        %1691 = vmatpush1.msra.mxu0 %v1680
        %1692 = vmatprep.subr.mxu0 0.0
        %1693 = vmatpush1.msra.mxu0 %v1679
        %1694 = vmatprep.subr.mxu0 0.0
        %1695 = vmatpush1.msra.mxu0 %v1678
        %1696 = vmatprep.subr.mxu0 0.0
        %1697 = vmatpush1.msra.mxu0 %v1677
        %1698 = vmatprep.subr.mxu0 0.0
        %1699 = vmatpush1.msra.mxu0 %v1676
        %1700 = vmatprep.subr.mxu0 0.0
        %1701 = vmatpush1.msra.mxu0 %v1675
        %1702 = vmatprep.subr.mxu0 0.0
        %1703 = vmatpush1.msra.mxu0 %v1674
        %1704 = vmatprep.subr.mxu0 0.0
        %1705 = vmatpush1.msra.mxu0 %v1673
        %1706 = vmatprep.subr.mxu0 0.0
        %1707 = vmatpush1.msra.mxu0 %v1672
        %1708 = vmatprep.subr.mxu0 0.0
        %1709 = vmatpush1.msra.mxu0 %v1671
        %1710 = vmatprep.subr.mxu0 0.0
        %1711 = vmatpush1.msra.mxu0 %v1670
        %1712 = vmatprep.subr.mxu0 0.0
        %1713 = vmatpush1.msra.mxu0 %v1669
        %1714 = vmatprep.subr.mxu0 0.0
        %1715 = vmatpush1.msra.mxu0 %v1668
        %1716 = vmatprep.subr.mxu0 0.0
        %1717 = vmatpush2.msra.mxu0 0.0
        %1718 = vmatprep.subr.mxu0 0.0
        %1719 = vmatpush2.msra.mxu0 0.0
        %1720 = vmatprep.subr.mxu0 0.0
        %1721 = vmatpush2.msra.mxu0 0.0
        %1722 = vmatprep.subr.mxu0 0.0
        %1723 = vmatpush2.msra.mxu0 0.0
        %1724 = vmatprep.subr.mxu0 0.0
        %1725 = vmatpush2.msra.mxu0 0.0
        %1726 = vmatprep.subr.mxu0 0.0
        %1727 = vmatpush2.msra.mxu0 0.0
        %1728 = vmatprep.subr.mxu0 0.0
        %1729 = vmatpush2.msra.mxu0 0.0
        %1730 = vmatprep.subr.mxu0 0.0
        %1731 = vmatpush2.msra.mxu0 0.0
        %1732 = vmatprep.subr.mxu0 0.0
        %1733 = vmatpush2.msra.mxu0 0.0
        %1734 = vmatprep.subr.mxu0 0.0
        %1735 = vmatpush2.msra.mxu0 0.0
        %1736 = vmatprep.subr.mxu0 0.0
        %1737 = vmatpush2.msra.mxu0 0.0
        %1738 = vmatprep.subr.mxu0 0.0
        %1739 = vmatpush2.msra.mxu0 0.0
        %1740 = vmatprep.subr.mxu0 0.0
        %1741 = vmatpush2.msra.mxu0 0.0
        %1742 = vmatprep.subr.mxu0 0.0
        %1743 = vmatpush2.msra.mxu0 0.0
        %1744 = vmatprep.subr.mxu0 0.0
        %1745 = vmatpush2.msra.mxu0 0.0
        %1746 = vmatprep.subr.mxu0 0.0
        %1747 = vmatpush2.msra.mxu0 0.0
        %1748 = vmatprep.mubr.f32.mxu0 0.0
        %1749 = vmatmul.mubr.f32.gmra.mxu0 %v1477
        %v1750 = vpop.f32.mrf.mxu0
        %v1751 = vadd.f32 0.0, %v1750
        %v1752 = vpop.f32.mrf.mxu0
        %1753 = vmatprep.mubr.f32.mxu0 0.0
        %1754 = vmatmul.mubr.f32.gmra.mxu0 %v1478
        %v1755 = vpop.f32.mrf.mxu0
        %v1756 = vadd.f32 0.0, %v1755
        %v1757 = vpop.f32.mrf.mxu0
        %1758 = vdwg.mxu0
        %v1759 = vld [vmem:[%s27] sm:$0x1]
        %v1761 = vlaneseq
        %v1762 = vshrl.u32 %v1761, 7
        %v1763 = vsub.s32 0, %v1762
        %v1764 = vrot.slane %v1759, %v1763
        %v1766 = vadd.f32 %v1764, %v1659
        %v1767 = vadd.f32 %v1764, %v1664
        %vm1768 = vcmask 130048
        %v1770 = vsel %vm1768, %v1479, 0
        %v1773 = vsel %vm1768, %v1480, 0
        %1775 = vmatprep.subr.mxu0 0.0
        %1776 = vmatpush1.msra.mxu0 0.0
        %1777 = vmatprep.subr.mxu0 0.0
        %1778 = vmatpush1.msra.mxu0 0.0
        %1779 = vmatprep.subr.mxu0 0.0
        %1780 = vmatpush1.msra.mxu0 0.0
        %1781 = vmatprep.subr.mxu0 0.0
        %1782 = vmatpush1.msra.mxu0 0.0
        %1783 = vmatprep.subr.mxu0 0.0
        %1784 = vmatpush1.msra.mxu0 0.0
        %1785 = vmatprep.subr.mxu0 0.0
        %1786 = vmatpush1.msra.mxu0 0.0
        %1787 = vmatprep.subr.mxu0 0.0
        %1788 = vmatpush1.msra.mxu0 0.0
        %1789 = vmatprep.subr.mxu0 0.0
        %1790 = vmatpush1.msra.mxu0 0.0
        %1791 = vmatprep.subr.mxu0 0.0
        %1792 = vmatpush1.msra.mxu0 0.0
        %1793 = vmatprep.subr.mxu0 0.0
        %1794 = vmatpush1.msra.mxu0 0.0
        %1795 = vmatprep.subr.mxu0 0.0
        %1796 = vmatpush1.msra.mxu0 0.0
        %1797 = vmatprep.subr.mxu0 0.0
        %1798 = vmatpush1.msra.mxu0 0.0
        %1799 = vmatprep.subr.mxu0 0.0
        %1800 = vmatpush1.msra.mxu0 0.0
        %1801 = vmatprep.subr.mxu0 0.0
        %1802 = vmatpush1.msra.mxu0 0.0
        %1803 = vmatprep.subr.mxu0 0.0
        %1804 = vmatpush1.msra.mxu0 %v1572
        %1805 = vmatprep.subr.mxu0 0.0
        %1806 = vmatpush1.msra.mxu0 %v1567
        %1807 = vmatprep.subr.mxu0 0.0
        %1808 = vmatpush2.msra.mxu0 0.0
        %1809 = vmatprep.subr.mxu0 0.0
        %1810 = vmatpush2.msra.mxu0 0.0
        %1811 = vmatprep.subr.mxu0 0.0
        %1812 = vmatpush2.msra.mxu0 0.0
        %1813 = vmatprep.subr.mxu0 0.0
        %1814 = vmatpush2.msra.mxu0 0.0
        %1815 = vmatprep.subr.mxu0 0.0
        %1816 = vmatpush2.msra.mxu0 0.0
        %1817 = vmatprep.subr.mxu0 0.0
        %1818 = vmatpush2.msra.mxu0 0.0
        %1819 = vmatprep.subr.mxu0 0.0
        %1820 = vmatpush2.msra.mxu0 0.0
        %1821 = vmatprep.subr.mxu0 0.0
        %1822 = vmatpush2.msra.mxu0 0.0
        %1823 = vmatprep.subr.mxu0 0.0
        %1824 = vmatpush2.msra.mxu0 0.0
        %1825 = vmatprep.subr.mxu0 0.0
        %1826 = vmatpush2.msra.mxu0 0.0
        %1827 = vmatprep.subr.mxu0 0.0
        %1828 = vmatpush2.msra.mxu0 0.0
        %1829 = vmatprep.subr.mxu0 0.0
        %1830 = vmatpush2.msra.mxu0 0.0
        %1831 = vmatprep.subr.mxu0 0.0
        %1832 = vmatpush2.msra.mxu0 0.0
        %1833 = vmatprep.subr.mxu0 0.0
        %1834 = vmatpush2.msra.mxu0 0.0
        %1835 = vmatprep.subr.mxu0 0.0
        %1836 = vmatpush2.msra.mxu0 0.0
        %1837 = vmatprep.subr.mxu0 0.0
        %1838 = vmatpush2.msra.mxu0 0.0
        %1839 = vmatprep.mubr.f32.mxu0 0.0
        %1840 = vmatmul.mubr.f32.gmra.mxu0 %v1770
        %v1841 = vpop.f32.mrf.mxu0
        %v1842 = vadd.f32 0.0, %v1841
        %v1843 = vpop.f32.mrf.mxu0
        %1844 = vmatprep.mubr.f32.mxu0 0.0
        %1845 = vmatmul.mubr.f32.gmra.mxu0 %v1773
        %v1846 = vpop.f32.mrf.mxu0
        %v1847 = vadd.f32 0.0, %v1846
        %v1848 = vpop.f32.mrf.mxu0
        %1849 = vdwg.mxu0
        %v1850 = vadd.f32 %v1766, %v1842
        %v1851 = vadd.f32 %v1767, %v1847
        %v1853 = vsel %vm1768, %v1482, 0
        %v1856 = vsel %vm1768, %v1483, 0
        %1858 = vmatprep.subr.mxu0 0.0
        %1859 = vmatpush1.msra.mxu0 0.0
        %1860 = vmatprep.subr.mxu0 0.0
        %1861 = vmatpush1.msra.mxu0 0.0
        %1862 = vmatprep.subr.mxu0 0.0
        %1863 = vmatpush1.msra.mxu0 0.0
        %1864 = vmatprep.subr.mxu0 0.0
        %1865 = vmatpush1.msra.mxu0 0.0
        %1866 = vmatprep.subr.mxu0 0.0
        %1867 = vmatpush1.msra.mxu0 0.0
        %1868 = vmatprep.subr.mxu0 0.0
        %1869 = vmatpush1.msra.mxu0 0.0
        %1870 = vmatprep.subr.mxu0 0.0
        %1871 = vmatpush1.msra.mxu0 0.0
        %1872 = vmatprep.subr.mxu0 0.0
        %1873 = vmatpush1.msra.mxu0 0.0
        %1874 = vmatprep.subr.mxu0 0.0
        %1875 = vmatpush1.msra.mxu0 0.0
        %1876 = vmatprep.subr.mxu0 0.0
        %1877 = vmatpush1.msra.mxu0 0.0
        %1878 = vmatprep.subr.mxu0 0.0
        %1879 = vmatpush1.msra.mxu0 0.0
        %1880 = vmatprep.subr.mxu0 0.0
        %1881 = vmatpush1.msra.mxu0 0.0
        %1882 = vmatprep.subr.mxu0 0.0
        %1883 = vmatpush1.msra.mxu0 0.0
        %1884 = vmatprep.subr.mxu0 0.0
        %1885 = vmatpush1.msra.mxu0 0.0
        %1886 = vmatprep.subr.mxu0 0.0
        %1887 = vmatpush1.msra.mxu0 %v1756
        %1888 = vmatprep.subr.mxu0 0.0
        %1889 = vmatpush1.msra.mxu0 %v1751
        %1890 = vmatprep.subr.mxu0 0.0
        %1891 = vmatpush2.msra.mxu0 0.0
        %1892 = vmatprep.subr.mxu0 0.0
        %1893 = vmatpush2.msra.mxu0 0.0
        %1894 = vmatprep.subr.mxu0 0.0
        %1895 = vmatpush2.msra.mxu0 0.0
        %1896 = vmatprep.subr.mxu0 0.0
        %1897 = vmatpush2.msra.mxu0 0.0
        %1898 = vmatprep.subr.mxu0 0.0
        %1899 = vmatpush2.msra.mxu0 0.0
        %1900 = vmatprep.subr.mxu0 0.0
        %1901 = vmatpush2.msra.mxu0 0.0
        %1902 = vmatprep.subr.mxu0 0.0
        %1903 = vmatpush2.msra.mxu0 0.0
        %1904 = vmatprep.subr.mxu0 0.0
        %1905 = vmatpush2.msra.mxu0 0.0
        %1906 = vmatprep.subr.mxu0 0.0
        %1907 = vmatpush2.msra.mxu0 0.0
        %1908 = vmatprep.subr.mxu0 0.0
        %1909 = vmatpush2.msra.mxu0 0.0
        %1910 = vmatprep.subr.mxu0 0.0
        %1911 = vmatpush2.msra.mxu0 0.0
        %1912 = vmatprep.subr.mxu0 0.0
        %1913 = vmatpush2.msra.mxu0 0.0
        %1914 = vmatprep.subr.mxu0 0.0
        %1915 = vmatpush2.msra.mxu0 0.0
        %1916 = vmatprep.subr.mxu0 0.0
        %1917 = vmatpush2.msra.mxu0 0.0
        %1918 = vmatprep.subr.mxu0 0.0
        %1919 = vmatpush2.msra.mxu0 0.0
        %1920 = vmatprep.subr.mxu0 0.0
        %1921 = vmatpush2.msra.mxu0 0.0
        %1922 = vmatprep.mubr.f32.mxu0 0.0
        %1923 = vmatmul.mubr.f32.gmra.mxu0 %v1853
        %v1924 = vpop.f32.mrf.mxu0
        %v1925 = vadd.f32 0.0, %v1924
        %v1926 = vpop.f32.mrf.mxu0
        %1927 = vmatprep.mubr.f32.mxu0 0.0
        %1928 = vmatmul.mubr.f32.gmra.mxu0 %v1856
        %v1929 = vpop.f32.mrf.mxu0
        %v1930 = vadd.f32 0.0, %v1929
        %v1931 = vpop.f32.mrf.mxu0
        %1932 = vdwg.mxu0
        %v1933 = vadd.f32 %v1850, %v1925
        %v1934 = vadd.f32 %v1851, %v1930
        %v1935 = vmax.f32 %v1933, 0.0
        %v1936 = vmax.f32 %v1934, 0.0
        %v1937 = vld [vmem:[%s29] sm:$0xff]
        %v1938 = vld [vmem:[%s29 + $0x8] sm:$0xff]
        %v1939 = vld [vmem:[%s29 + $0x10] sm:$0xff]
        %v1940 = vld [vmem:[%s29 + $0x18] sm:$0xff]
        %v1941 = vld [vmem:[%s29 + $0x20] sm:$0xff]
        %v1942 = vld [vmem:[%s29 + $0x28] sm:$0xff]
        %v1943 = vld [vmem:[%s29 + $0x30] sm:$0xff]
        %v1944 = vld [vmem:[%s29 + $0x38] sm:$0xff]
        %v1945 = vld [vmem:[%s29 + $0x40] sm:$0xff]
        %v1946 = vld [vmem:[%s29 + $0x48] sm:$0xff]
        %v1947 = vld [vmem:[%s29 + $0x50] sm:$0xff]
        %v1948 = vld [vmem:[%s29 + $0x58] sm:$0xff]
        %v1949 = vld [vmem:[%s29 + $0x60] sm:$0xff]
        %v1950 = vld [vmem:[%s29 + $0x68] sm:$0xff]
        %v1951 = vld [vmem:[%s29 + $0x70] sm:$0xff]
        %v1952 = vld [vmem:[%s29 + $0x78] sm:$0xff]
        %1953 = vmatprep.subr.mxu0 0.0
        %1954 = vmatpush1.msra.mxu0 %v1952
        %1955 = vmatprep.subr.mxu0 0.0
        %1956 = vmatpush1.msra.mxu0 %v1951
        %1957 = vmatprep.subr.mxu0 0.0
        %1958 = vmatpush1.msra.mxu0 %v1950
        %1959 = vmatprep.subr.mxu0 0.0
        %1960 = vmatpush1.msra.mxu0 %v1949
        %1961 = vmatprep.subr.mxu0 0.0
        %1962 = vmatpush1.msra.mxu0 %v1948
        %1963 = vmatprep.subr.mxu0 0.0
        %1964 = vmatpush1.msra.mxu0 %v1947
        %1965 = vmatprep.subr.mxu0 0.0
        %1966 = vmatpush1.msra.mxu0 %v1946
        %1967 = vmatprep.subr.mxu0 0.0
        %1968 = vmatpush1.msra.mxu0 %v1945
        %1969 = vmatprep.subr.mxu0 0.0
        %1970 = vmatpush1.msra.mxu0 %v1944
        %1971 = vmatprep.subr.mxu0 0.0
        %1972 = vmatpush1.msra.mxu0 %v1943
        %1973 = vmatprep.subr.mxu0 0.0
        %1974 = vmatpush1.msra.mxu0 %v1942
        %1975 = vmatprep.subr.mxu0 0.0
        %1976 = vmatpush1.msra.mxu0 %v1941
        %1977 = vmatprep.subr.mxu0 0.0
        %1978 = vmatpush1.msra.mxu0 %v1940
        %1979 = vmatprep.subr.mxu0 0.0
        %1980 = vmatpush1.msra.mxu0 %v1939
        %1981 = vmatprep.subr.mxu0 0.0
        %1982 = vmatpush1.msra.mxu0 %v1938
        %1983 = vmatprep.subr.mxu0 0.0
        %1984 = vmatpush1.msra.mxu0 %v1937
        %1985 = vmatprep.subr.mxu0 0.0
        %1986 = vmatpush2.msra.mxu0 0.0
        %1987 = vmatprep.subr.mxu0 0.0
        %1988 = vmatpush2.msra.mxu0 0.0
        %1989 = vmatprep.subr.mxu0 0.0
        %1990 = vmatpush2.msra.mxu0 0.0
        %1991 = vmatprep.subr.mxu0 0.0
        %1992 = vmatpush2.msra.mxu0 0.0
        %1993 = vmatprep.subr.mxu0 0.0
        %1994 = vmatpush2.msra.mxu0 0.0
        %1995 = vmatprep.subr.mxu0 0.0
        %1996 = vmatpush2.msra.mxu0 0.0
        %1997 = vmatprep.subr.mxu0 0.0
        %1998 = vmatpush2.msra.mxu0 0.0
        %1999 = vmatprep.subr.mxu0 0.0
        %2000 = vmatpush2.msra.mxu0 0.0
        %2001 = vmatprep.subr.mxu0 0.0
        %2002 = vmatpush2.msra.mxu0 0.0
        %2003 = vmatprep.subr.mxu0 0.0
        %2004 = vmatpush2.msra.mxu0 0.0
        %2005 = vmatprep.subr.mxu0 0.0
        %2006 = vmatpush2.msra.mxu0 0.0
        %2007 = vmatprep.subr.mxu0 0.0
        %2008 = vmatpush2.msra.mxu0 0.0
        %2009 = vmatprep.subr.mxu0 0.0
        %2010 = vmatpush2.msra.mxu0 0.0
        %2011 = vmatprep.subr.mxu0 0.0
        %2012 = vmatpush2.msra.mxu0 0.0
        %2013 = vmatprep.subr.mxu0 0.0
        %2014 = vmatpush2.msra.mxu0 0.0
        %2015 = vmatprep.subr.mxu0 0.0
        %2016 = vmatpush2.msra.mxu0 0.0
        %2017 = vmatprep.mubr.f32.mxu0 0.0
        %2018 = vmatmul.mubr.f32.gmra.mxu0 %v1935
        %v2019 = vpop.f32.mrf.mxu0
        %v2020 = vadd.f32 0.0, %v2019
        %v2021 = vpop.f32.mrf.mxu0
        %2022 = vmatprep.mubr.f32.mxu0 0.0
        %2023 = vmatmul.mubr.f32.gmra.mxu0 %v1936
        %v2024 = vpop.f32.mrf.mxu0
        %v2025 = vadd.f32 0.0, %v2024
        %v2026 = vpop.f32.mrf.mxu0
        %2027 = vdwg.mxu0
        %s2028 = scalar_lea.vmem %s29, 128
        %v2029 = vld [vmem:[%s2028] sm:$0xff]
        %v2030 = vld [vmem:[%s2028 + $0x8] sm:$0xff]
        %v2031 = vld [vmem:[%s2028 + $0x10] sm:$0xff]
        %v2032 = vld [vmem:[%s2028 + $0x18] sm:$0xff]
        %v2033 = vld [vmem:[%s2028 + $0x20] sm:$0xff]
        %v2034 = vld [vmem:[%s2028 + $0x28] sm:$0xff]
        %v2035 = vld [vmem:[%s2028 + $0x30] sm:$0xff]
        %v2036 = vld [vmem:[%s2028 + $0x38] sm:$0xff]
        %v2037 = vld [vmem:[%s2028 + $0x40] sm:$0xff]
        %v2038 = vld [vmem:[%s2028 + $0x48] sm:$0xff]
        %v2039 = vld [vmem:[%s2028 + $0x50] sm:$0xff]
        %v2040 = vld [vmem:[%s2028 + $0x58] sm:$0xff]
        %v2041 = vld [vmem:[%s2028 + $0x60] sm:$0xff]
        %v2042 = vld [vmem:[%s2028 + $0x68] sm:$0xff]
        %v2043 = vld [vmem:[%s2028 + $0x70] sm:$0xff]
        %v2044 = vld [vmem:[%s2028 + $0x78] sm:$0xff]
        %2045 = vmatprep.subr.mxu0 0.0
        %2046 = vmatpush1.msra.mxu0 %v2044
        %2047 = vmatprep.subr.mxu0 0.0
        %2048 = vmatpush1.msra.mxu0 %v2043
        %2049 = vmatprep.subr.mxu0 0.0
        %2050 = vmatpush1.msra.mxu0 %v2042
        %2051 = vmatprep.subr.mxu0 0.0
        %2052 = vmatpush1.msra.mxu0 %v2041
        %2053 = vmatprep.subr.mxu0 0.0
        %2054 = vmatpush1.msra.mxu0 %v2040
        %2055 = vmatprep.subr.mxu0 0.0
        %2056 = vmatpush1.msra.mxu0 %v2039
        %2057 = vmatprep.subr.mxu0 0.0
        %2058 = vmatpush1.msra.mxu0 %v2038
        %2059 = vmatprep.subr.mxu0 0.0
        %2060 = vmatpush1.msra.mxu0 %v2037
        %2061 = vmatprep.subr.mxu0 0.0
        %2062 = vmatpush1.msra.mxu0 %v2036
        %2063 = vmatprep.subr.mxu0 0.0
        %2064 = vmatpush1.msra.mxu0 %v2035
        %2065 = vmatprep.subr.mxu0 0.0
        %2066 = vmatpush1.msra.mxu0 %v2034
        %2067 = vmatprep.subr.mxu0 0.0
        %2068 = vmatpush1.msra.mxu0 %v2033
        %2069 = vmatprep.subr.mxu0 0.0
        %2070 = vmatpush1.msra.mxu0 %v2032
        %2071 = vmatprep.subr.mxu0 0.0
        %2072 = vmatpush1.msra.mxu0 %v2031
        %2073 = vmatprep.subr.mxu0 0.0
        %2074 = vmatpush1.msra.mxu0 %v2030
        %2075 = vmatprep.subr.mxu0 0.0
        %2076 = vmatpush1.msra.mxu0 %v2029
        %2077 = vmatprep.subr.mxu0 0.0
        %2078 = vmatpush2.msra.mxu0 0.0
        %2079 = vmatprep.subr.mxu0 0.0
        %2080 = vmatpush2.msra.mxu0 0.0
        %2081 = vmatprep.subr.mxu0 0.0
        %2082 = vmatpush2.msra.mxu0 0.0
        %2083 = vmatprep.subr.mxu0 0.0
        %2084 = vmatpush2.msra.mxu0 0.0
        %2085 = vmatprep.subr.mxu0 0.0
        %2086 = vmatpush2.msra.mxu0 0.0
        %2087 = vmatprep.subr.mxu0 0.0
        %2088 = vmatpush2.msra.mxu0 0.0
        %2089 = vmatprep.subr.mxu0 0.0
        %2090 = vmatpush2.msra.mxu0 0.0
        %2091 = vmatprep.subr.mxu0 0.0
        %2092 = vmatpush2.msra.mxu0 0.0
        %2093 = vmatprep.subr.mxu0 0.0
        %2094 = vmatpush2.msra.mxu0 0.0
        %2095 = vmatprep.subr.mxu0 0.0
        %2096 = vmatpush2.msra.mxu0 0.0
        %2097 = vmatprep.subr.mxu0 0.0
        %2098 = vmatpush2.msra.mxu0 0.0
        %2099 = vmatprep.subr.mxu0 0.0
        %2100 = vmatpush2.msra.mxu0 0.0
        %2101 = vmatprep.subr.mxu0 0.0
        %2102 = vmatpush2.msra.mxu0 0.0
        %2103 = vmatprep.subr.mxu0 0.0
        %2104 = vmatpush2.msra.mxu0 0.0
        %2105 = vmatprep.subr.mxu0 0.0
        %2106 = vmatpush2.msra.mxu0 0.0
        %2107 = vmatprep.subr.mxu0 0.0
        %2108 = vmatpush2.msra.mxu0 0.0
        %2109 = vmatprep.mubr.f32.mxu0 0.0
        %2110 = vmatmul.mubr.f32.gmra.mxu0 %v1935
        %v2111 = vpop.f32.mrf.mxu0
        %v2112 = vadd.f32 0.0, %v2111
        %v2113 = vpop.f32.mrf.mxu0
        %2114 = vmatprep.mubr.f32.mxu0 0.0
        %2115 = vmatmul.mubr.f32.gmra.mxu0 %v1936
        %v2116 = vpop.f32.mrf.mxu0
        %v2117 = vadd.f32 0.0, %v2116
        %v2118 = vpop.f32.mrf.mxu0
        %2119 = vdwg.mxu0
        %s2120 = scalar_lea.vmem %s29, 256
        %v2121 = vld [vmem:[%s2120] sm:$0xff]
        %v2122 = vld [vmem:[%s2120 + $0x8] sm:$0xff]
        %v2123 = vld [vmem:[%s2120 + $0x10] sm:$0xff]
        %v2124 = vld [vmem:[%s2120 + $0x18] sm:$0xff]
        %v2125 = vld [vmem:[%s2120 + $0x20] sm:$0xff]
        %v2126 = vld [vmem:[%s2120 + $0x28] sm:$0xff]
        %v2127 = vld [vmem:[%s2120 + $0x30] sm:$0xff]
        %v2128 = vld [vmem:[%s2120 + $0x38] sm:$0xff]
        %v2129 = vld [vmem:[%s2120 + $0x40] sm:$0xff]
        %v2130 = vld [vmem:[%s2120 + $0x48] sm:$0xff]
        %v2131 = vld [vmem:[%s2120 + $0x50] sm:$0xff]
        %v2132 = vld [vmem:[%s2120 + $0x58] sm:$0xff]
        %v2133 = vld [vmem:[%s2120 + $0x60] sm:$0xff]
        %v2134 = vld [vmem:[%s2120 + $0x68] sm:$0xff]
        %v2135 = vld [vmem:[%s2120 + $0x70] sm:$0xff]
        %v2136 = vld [vmem:[%s2120 + $0x78] sm:$0xff]
        %2137 = vmatprep.subr.mxu0 0.0
        %2138 = vmatpush1.msra.mxu0 %v2136
        %2139 = vmatprep.subr.mxu0 0.0
        %2140 = vmatpush1.msra.mxu0 %v2135
        %2141 = vmatprep.subr.mxu0 0.0
        %2142 = vmatpush1.msra.mxu0 %v2134
        %2143 = vmatprep.subr.mxu0 0.0
        %2144 = vmatpush1.msra.mxu0 %v2133
        %2145 = vmatprep.subr.mxu0 0.0
        %2146 = vmatpush1.msra.mxu0 %v2132
        %2147 = vmatprep.subr.mxu0 0.0
        %2148 = vmatpush1.msra.mxu0 %v2131
        %2149 = vmatprep.subr.mxu0 0.0
        %2150 = vmatpush1.msra.mxu0 %v2130
        %2151 = vmatprep.subr.mxu0 0.0
        %2152 = vmatpush1.msra.mxu0 %v2129
        %2153 = vmatprep.subr.mxu0 0.0
        %2154 = vmatpush1.msra.mxu0 %v2128
        %2155 = vmatprep.subr.mxu0 0.0
        %2156 = vmatpush1.msra.mxu0 %v2127
        %2157 = vmatprep.subr.mxu0 0.0
        %2158 = vmatpush1.msra.mxu0 %v2126
        %2159 = vmatprep.subr.mxu0 0.0
        %2160 = vmatpush1.msra.mxu0 %v2125
        %2161 = vmatprep.subr.mxu0 0.0
        %2162 = vmatpush1.msra.mxu0 %v2124
        %2163 = vmatprep.subr.mxu0 0.0
        %2164 = vmatpush1.msra.mxu0 %v2123
        %2165 = vmatprep.subr.mxu0 0.0
        %2166 = vmatpush1.msra.mxu0 %v2122
        %2167 = vmatprep.subr.mxu0 0.0
        %2168 = vmatpush1.msra.mxu0 %v2121
        %2169 = vmatprep.subr.mxu0 0.0
        %2170 = vmatpush2.msra.mxu0 0.0
        %2171 = vmatprep.subr.mxu0 0.0
        %2172 = vmatpush2.msra.mxu0 0.0
        %2173 = vmatprep.subr.mxu0 0.0
        %2174 = vmatpush2.msra.mxu0 0.0
        %2175 = vmatprep.subr.mxu0 0.0
        %2176 = vmatpush2.msra.mxu0 0.0
        %2177 = vmatprep.subr.mxu0 0.0
        %2178 = vmatpush2.msra.mxu0 0.0
        %2179 = vmatprep.subr.mxu0 0.0
        %2180 = vmatpush2.msra.mxu0 0.0
        %2181 = vmatprep.subr.mxu0 0.0
        %2182 = vmatpush2.msra.mxu0 0.0
        %2183 = vmatprep.subr.mxu0 0.0
        %2184 = vmatpush2.msra.mxu0 0.0
        %2185 = vmatprep.subr.mxu0 0.0
        %2186 = vmatpush2.msra.mxu0 0.0
        %2187 = vmatprep.subr.mxu0 0.0
        %2188 = vmatpush2.msra.mxu0 0.0
        %2189 = vmatprep.subr.mxu0 0.0
        %2190 = vmatpush2.msra.mxu0 0.0
        %2191 = vmatprep.subr.mxu0 0.0
        %2192 = vmatpush2.msra.mxu0 0.0
        %2193 = vmatprep.subr.mxu0 0.0
        %2194 = vmatpush2.msra.mxu0 0.0
        %2195 = vmatprep.subr.mxu0 0.0
        %2196 = vmatpush2.msra.mxu0 0.0
        %2197 = vmatprep.subr.mxu0 0.0
        %2198 = vmatpush2.msra.mxu0 0.0
        %2199 = vmatprep.subr.mxu0 0.0
        %2200 = vmatpush2.msra.mxu0 0.0
        %2201 = vmatprep.mubr.f32.mxu0 0.0
        %2202 = vmatmul.mubr.f32.gmra.mxu0 %v1935
        %v2203 = vpop.f32.mrf.mxu0
        %v2204 = vadd.f32 0.0, %v2203
        %v2205 = vpop.f32.mrf.mxu0
        %2206 = vmatprep.mubr.f32.mxu0 0.0
        %2207 = vmatmul.mubr.f32.gmra.mxu0 %v1936
        %v2208 = vpop.f32.mrf.mxu0
        %v2209 = vadd.f32 0.0, %v2208
        %v2210 = vpop.f32.mrf.mxu0
        %2211 = vdwg.mxu0
        %v2212 = vld [vmem:[%s31] sm:$0x1]
        %v2214 = vlaneseq
        %v2215 = vshrl.u32 %v2214, 7
        %v2216 = vsub.s32 0, %v2215
        %v2217 = vrot.slane %v2212, %v2216
        %v2219 = vadd.f32 %v2217, %v2112
        %v2220 = vadd.f32 %v2217, %v2117
        %2221 = vmatprep.subr.mxu0 0.0
        %2222 = vmatpush1.msra.mxu0 0.0
        %2223 = vmatprep.subr.mxu0 0.0
        %2224 = vmatpush1.msra.mxu0 0.0
        %2225 = vmatprep.subr.mxu0 0.0
        %2226 = vmatpush1.msra.mxu0 0.0
        %2227 = vmatprep.subr.mxu0 0.0
        %2228 = vmatpush1.msra.mxu0 0.0
        %2229 = vmatprep.subr.mxu0 0.0
        %2230 = vmatpush1.msra.mxu0 0.0
        %2231 = vmatprep.subr.mxu0 0.0
        %2232 = vmatpush1.msra.mxu0 0.0
        %2233 = vmatprep.subr.mxu0 0.0
        %2234 = vmatpush1.msra.mxu0 0.0
        %2235 = vmatprep.subr.mxu0 0.0
        %2236 = vmatpush1.msra.mxu0 0.0
        %2237 = vmatprep.subr.mxu0 0.0
        %2238 = vmatpush1.msra.mxu0 0.0
        %2239 = vmatprep.subr.mxu0 0.0
        %2240 = vmatpush1.msra.mxu0 0.0
        %2241 = vmatprep.subr.mxu0 0.0
        %2242 = vmatpush1.msra.mxu0 0.0
        %2243 = vmatprep.subr.mxu0 0.0
        %2244 = vmatpush1.msra.mxu0 0.0
        %2245 = vmatprep.subr.mxu0 0.0
        %2246 = vmatpush1.msra.mxu0 0.0
        %2247 = vmatprep.subr.mxu0 0.0
        %2248 = vmatpush1.msra.mxu0 0.0
        %2249 = vmatprep.subr.mxu0 0.0
        %2250 = vmatpush1.msra.mxu0 %v2025
        %2251 = vmatprep.subr.mxu0 0.0
        %2252 = vmatpush1.msra.mxu0 %v2020
        %2253 = vmatprep.subr.mxu0 0.0
        %2254 = vmatpush2.msra.mxu0 0.0
        %2255 = vmatprep.subr.mxu0 0.0
        %2256 = vmatpush2.msra.mxu0 0.0
        %2257 = vmatprep.subr.mxu0 0.0
        %2258 = vmatpush2.msra.mxu0 0.0
        %2259 = vmatprep.subr.mxu0 0.0
        %2260 = vmatpush2.msra.mxu0 0.0
        %2261 = vmatprep.subr.mxu0 0.0
        %2262 = vmatpush2.msra.mxu0 0.0
        %2263 = vmatprep.subr.mxu0 0.0
        %2264 = vmatpush2.msra.mxu0 0.0
        %2265 = vmatprep.subr.mxu0 0.0
        %2266 = vmatpush2.msra.mxu0 0.0
        %2267 = vmatprep.subr.mxu0 0.0
        %2268 = vmatpush2.msra.mxu0 0.0
        %2269 = vmatprep.subr.mxu0 0.0
        %2270 = vmatpush2.msra.mxu0 0.0
        %2271 = vmatprep.subr.mxu0 0.0
        %2272 = vmatpush2.msra.mxu0 0.0
        %2273 = vmatprep.subr.mxu0 0.0
        %2274 = vmatpush2.msra.mxu0 0.0
        %2275 = vmatprep.subr.mxu0 0.0
        %2276 = vmatpush2.msra.mxu0 0.0
        %2277 = vmatprep.subr.mxu0 0.0
        %2278 = vmatpush2.msra.mxu0 0.0
        %2279 = vmatprep.subr.mxu0 0.0
        %2280 = vmatpush2.msra.mxu0 0.0
        %2281 = vmatprep.subr.mxu0 0.0
        %2282 = vmatpush2.msra.mxu0 0.0
        %2283 = vmatprep.subr.mxu0 0.0
        %2284 = vmatpush2.msra.mxu0 0.0
        %2285 = vmatprep.mubr.f32.mxu0 0.0
        %2286 = vmatmul.mubr.f32.gmra.mxu0 %v1770
        %v2287 = vpop.f32.mrf.mxu0
        %v2288 = vadd.f32 0.0, %v2287
        %v2289 = vpop.f32.mrf.mxu0
        %2290 = vmatprep.mubr.f32.mxu0 0.0
        %2291 = vmatmul.mubr.f32.gmra.mxu0 %v1773
        %v2292 = vpop.f32.mrf.mxu0
        %v2293 = vadd.f32 0.0, %v2292
        %v2294 = vpop.f32.mrf.mxu0
        %2295 = vdwg.mxu0
        %v2296 = vadd.f32 %v2219, %v2288
        %v2297 = vadd.f32 %v2220, %v2293
        %2298 = vmatprep.subr.mxu0 0.0
        %2299 = vmatpush1.msra.mxu0 0.0
        %2300 = vmatprep.subr.mxu0 0.0
        %2301 = vmatpush1.msra.mxu0 0.0
        %2302 = vmatprep.subr.mxu0 0.0
        %2303 = vmatpush1.msra.mxu0 0.0
        %2304 = vmatprep.subr.mxu0 0.0
        %2305 = vmatpush1.msra.mxu0 0.0
        %2306 = vmatprep.subr.mxu0 0.0
        %2307 = vmatpush1.msra.mxu0 0.0
        %2308 = vmatprep.subr.mxu0 0.0
        %2309 = vmatpush1.msra.mxu0 0.0
        %2310 = vmatprep.subr.mxu0 0.0
        %2311 = vmatpush1.msra.mxu0 0.0
        %2312 = vmatprep.subr.mxu0 0.0
        %2313 = vmatpush1.msra.mxu0 0.0
        %2314 = vmatprep.subr.mxu0 0.0
        %2315 = vmatpush1.msra.mxu0 0.0
        %2316 = vmatprep.subr.mxu0 0.0
        %2317 = vmatpush1.msra.mxu0 0.0
        %2318 = vmatprep.subr.mxu0 0.0
        %2319 = vmatpush1.msra.mxu0 0.0
        %2320 = vmatprep.subr.mxu0 0.0
        %2321 = vmatpush1.msra.mxu0 0.0
        %2322 = vmatprep.subr.mxu0 0.0
        %2323 = vmatpush1.msra.mxu0 0.0
        %2324 = vmatprep.subr.mxu0 0.0
        %2325 = vmatpush1.msra.mxu0 0.0
        %2326 = vmatprep.subr.mxu0 0.0
        %2327 = vmatpush1.msra.mxu0 %v2209
        %2328 = vmatprep.subr.mxu0 0.0
        %2329 = vmatpush1.msra.mxu0 %v2204
        %2330 = vmatprep.subr.mxu0 0.0
        %2331 = vmatpush2.msra.mxu0 0.0
        %2332 = vmatprep.subr.mxu0 0.0
        %2333 = vmatpush2.msra.mxu0 0.0
        %2334 = vmatprep.subr.mxu0 0.0
        %2335 = vmatpush2.msra.mxu0 0.0
        %2336 = vmatprep.subr.mxu0 0.0
        %2337 = vmatpush2.msra.mxu0 0.0
        %2338 = vmatprep.subr.mxu0 0.0
        %2339 = vmatpush2.msra.mxu0 0.0
        %2340 = vmatprep.subr.mxu0 0.0
        %2341 = vmatpush2.msra.mxu0 0.0
        %2342 = vmatprep.subr.mxu0 0.0
        %2343 = vmatpush2.msra.mxu0 0.0
        %2344 = vmatprep.subr.mxu0 0.0
        %2345 = vmatpush2.msra.mxu0 0.0
        %2346 = vmatprep.subr.mxu0 0.0
        %2347 = vmatpush2.msra.mxu0 0.0
        %2348 = vmatprep.subr.mxu0 0.0
        %2349 = vmatpush2.msra.mxu0 0.0
        %2350 = vmatprep.subr.mxu0 0.0
        %2351 = vmatpush2.msra.mxu0 0.0
        %2352 = vmatprep.subr.mxu0 0.0
        %2353 = vmatpush2.msra.mxu0 0.0
        %2354 = vmatprep.subr.mxu0 0.0
        %2355 = vmatpush2.msra.mxu0 0.0
        %2356 = vmatprep.subr.mxu0 0.0
        %2357 = vmatpush2.msra.mxu0 0.0
        %2358 = vmatprep.subr.mxu0 0.0
        %2359 = vmatpush2.msra.mxu0 0.0
        %2360 = vmatprep.subr.mxu0 0.0
        %2361 = vmatpush2.msra.mxu0 0.0
        %2362 = vmatprep.mubr.f32.mxu0 0.0
        %2363 = vmatmul.mubr.f32.gmra.mxu0 %v1853
        %v2364 = vpop.f32.mrf.mxu0
        %v2365 = vadd.f32 0.0, %v2364
        %v2366 = vpop.f32.mrf.mxu0
        %2367 = vmatprep.mubr.f32.mxu0 0.0
        %2368 = vmatmul.mubr.f32.gmra.mxu0 %v1856
        %v2369 = vpop.f32.mrf.mxu0
        %v2370 = vadd.f32 0.0, %v2369
        %v2371 = vpop.f32.mrf.mxu0
        %2372 = vdwg.mxu0
        %v2373 = vadd.f32 %v2296, %v2365
        %v2374 = vadd.f32 %v2297, %v2370
        %v2375 = vadd.f32 %v1477, %v2373
        %v2376 = vadd.f32 %v1478, %v2374
        %v2377 = vld [vmem:[#allocation6] sm:$0xff]
        %v2379 = vsel %vm1768, %v2377, 0
        %2381 = vmatprep.subr.mxu0 0.0
        %2382 = vmatpush1.msra.mxu0 0.0
        %2383 = vmatprep.subr.mxu0 0.0
        %2384 = vmatpush1.msra.mxu0 0.0
        %2385 = vmatprep.subr.mxu0 0.0
        %2386 = vmatpush1.msra.mxu0 0.0
        %2387 = vmatprep.subr.mxu0 0.0
        %2388 = vmatpush1.msra.mxu0 0.0
        %2389 = vmatprep.subr.mxu0 0.0
        %2390 = vmatpush1.msra.mxu0 0.0
        %2391 = vmatprep.subr.mxu0 0.0
        %2392 = vmatpush1.msra.mxu0 0.0
        %2393 = vmatprep.subr.mxu0 0.0
        %2394 = vmatpush1.msra.mxu0 0.0
        %2395 = vmatprep.subr.mxu0 0.0
        %2396 = vmatpush1.msra.mxu0 0.0
        %2397 = vmatprep.subr.mxu0 0.0
        %2398 = vmatpush1.msra.mxu0 0.0
        %2399 = vmatprep.subr.mxu0 0.0
        %2400 = vmatpush1.msra.mxu0 0.0
        %2401 = vmatprep.subr.mxu0 0.0
        %2402 = vmatpush1.msra.mxu0 0.0
        %2403 = vmatprep.subr.mxu0 0.0
        %2404 = vmatpush1.msra.mxu0 0.0
        %2405 = vmatprep.subr.mxu0 0.0
        %2406 = vmatpush1.msra.mxu0 0.0
        %2407 = vmatprep.subr.mxu0 0.0
        %2408 = vmatpush1.msra.mxu0 0.0
        %2409 = vmatprep.subr.mxu0 0.0
        %2410 = vmatpush1.msra.mxu0 %v1478
        %2411 = vmatprep.subr.mxu0 0.0
        %2412 = vmatpush1.msra.mxu0 %v1477
        %2413 = vmatprep.subr.mxu0 0.0
        %2414 = vmatpush2.msra.mxu0 0.0
        %2415 = vmatprep.subr.mxu0 0.0
        %2416 = vmatpush2.msra.mxu0 0.0
        %2417 = vmatprep.subr.mxu0 0.0
        %2418 = vmatpush2.msra.mxu0 0.0
        %2419 = vmatprep.subr.mxu0 0.0
        %2420 = vmatpush2.msra.mxu0 0.0
        %2421 = vmatprep.subr.mxu0 0.0
        %2422 = vmatpush2.msra.mxu0 0.0
        %2423 = vmatprep.subr.mxu0 0.0
        %2424 = vmatpush2.msra.mxu0 0.0
        %2425 = vmatprep.subr.mxu0 0.0
        %2426 = vmatpush2.msra.mxu0 0.0
        %2427 = vmatprep.subr.mxu0 0.0
        %2428 = vmatpush2.msra.mxu0 0.0
        %2429 = vmatprep.subr.mxu0 0.0
        %2430 = vmatpush2.msra.mxu0 0.0
        %2431 = vmatprep.subr.mxu0 0.0
        %2432 = vmatpush2.msra.mxu0 0.0
        %2433 = vmatprep.subr.mxu0 0.0
        %2434 = vmatpush2.msra.mxu0 0.0
        %2435 = vmatprep.subr.mxu0 0.0
        %2436 = vmatpush2.msra.mxu0 0.0
        %2437 = vmatprep.subr.mxu0 0.0
        %2438 = vmatpush2.msra.mxu0 0.0
        %2439 = vmatprep.subr.mxu0 0.0
        %2440 = vmatpush2.msra.mxu0 0.0
        %2441 = vmatprep.subr.mxu0 0.0
        %2442 = vmatpush2.msra.mxu0 0.0
        %2443 = vmatprep.subr.mxu0 0.0
        %2444 = vmatpush2.msra.mxu0 0.0
        %2445 = vmatprep.mubr.f32.mxu0 0.0
        %2446 = vmatmul.mubr.f32.gmra.mxu0 %v2379
        %v2447 = vpop.f32.mrf.mxu0
        %v2448 = vadd.f32 0.0, %v2447
        %v2449 = vpop.f32.mrf.mxu0
        %2450 = vdwg.mxu0
        %s2451 = scalar_lea.vmem [#allocation6], 8
        %v2452 = vld [vmem:[%s2451] sm:$0xff]
        %v2454 = vsel %vm1768, %v2452, 0
        %2456 = vmatprep.subr.mxu0 0.0
        %2457 = vmatpush1.msra.mxu0 0.0
        %2458 = vmatprep.subr.mxu0 0.0
        %2459 = vmatpush1.msra.mxu0 0.0
        %2460 = vmatprep.subr.mxu0 0.0
        %2461 = vmatpush1.msra.mxu0 0.0
        %2462 = vmatprep.subr.mxu0 0.0
        %2463 = vmatpush1.msra.mxu0 0.0
        %2464 = vmatprep.subr.mxu0 0.0
        %2465 = vmatpush1.msra.mxu0 0.0
        %2466 = vmatprep.subr.mxu0 0.0
        %2467 = vmatpush1.msra.mxu0 0.0
        %2468 = vmatprep.subr.mxu0 0.0
        %2469 = vmatpush1.msra.mxu0 0.0
        %2470 = vmatprep.subr.mxu0 0.0
        %2471 = vmatpush1.msra.mxu0 0.0
        %2472 = vmatprep.subr.mxu0 0.0
        %2473 = vmatpush1.msra.mxu0 0.0
        %2474 = vmatprep.subr.mxu0 0.0
        %2475 = vmatpush1.msra.mxu0 0.0
        %2476 = vmatprep.subr.mxu0 0.0
        %2477 = vmatpush1.msra.mxu0 0.0
        %2478 = vmatprep.subr.mxu0 0.0
        %2479 = vmatpush1.msra.mxu0 0.0
        %2480 = vmatprep.subr.mxu0 0.0
        %2481 = vmatpush1.msra.mxu0 0.0
        %2482 = vmatprep.subr.mxu0 0.0
        %2483 = vmatpush1.msra.mxu0 0.0
        %2484 = vmatprep.subr.mxu0 0.0
        %2485 = vmatpush1.msra.mxu0 %v1478
        %2486 = vmatprep.subr.mxu0 0.0
        %2487 = vmatpush1.msra.mxu0 %v1477
        %2488 = vmatprep.subr.mxu0 0.0
        %2489 = vmatpush2.msra.mxu0 0.0
        %2490 = vmatprep.subr.mxu0 0.0
        %2491 = vmatpush2.msra.mxu0 0.0
        %2492 = vmatprep.subr.mxu0 0.0
        %2493 = vmatpush2.msra.mxu0 0.0
        %2494 = vmatprep.subr.mxu0 0.0
        %2495 = vmatpush2.msra.mxu0 0.0
        %2496 = vmatprep.subr.mxu0 0.0
        %2497 = vmatpush2.msra.mxu0 0.0
        %2498 = vmatprep.subr.mxu0 0.0
        %2499 = vmatpush2.msra.mxu0 0.0
        %2500 = vmatprep.subr.mxu0 0.0
        %2501 = vmatpush2.msra.mxu0 0.0
        %2502 = vmatprep.subr.mxu0 0.0
        %2503 = vmatpush2.msra.mxu0 0.0
        %2504 = vmatprep.subr.mxu0 0.0
        %2505 = vmatpush2.msra.mxu0 0.0
        %2506 = vmatprep.subr.mxu0 0.0
        %2507 = vmatpush2.msra.mxu0 0.0
        %2508 = vmatprep.subr.mxu0 0.0
        %2509 = vmatpush2.msra.mxu0 0.0
        %2510 = vmatprep.subr.mxu0 0.0
        %2511 = vmatpush2.msra.mxu0 0.0
        %2512 = vmatprep.subr.mxu0 0.0
        %2513 = vmatpush2.msra.mxu0 0.0
        %2514 = vmatprep.subr.mxu0 0.0
        %2515 = vmatpush2.msra.mxu0 0.0
        %2516 = vmatprep.subr.mxu0 0.0
        %2517 = vmatpush2.msra.mxu0 0.0
        %2518 = vmatprep.subr.mxu0 0.0
        %2519 = vmatpush2.msra.mxu0 0.0
        %2520 = vmatprep.mubr.f32.mxu0 0.0
        %2521 = vmatmul.mubr.f32.gmra.mxu0 %v2454
        %v2522 = vpop.f32.mrf.mxu0
        %v2523 = vadd.f32 0.0, %v2522
        %v2524 = vpop.f32.mrf.mxu0
        %2525 = vdwg.mxu0
        %v2526 = vmax.f32 %v2448, %v2523
        %v2527 = vld [vmem:[%s11] sm:$0xff]
        %v2528 = vld [vmem:[%s11 + $0x8] sm:$0xff]
        %v2529 = vld [vmem:[%s11 + $0x10] sm:$0xff]
        %v2530 = vld [vmem:[%s11 + $0x18] sm:$0xff]
        %v2531 = vld [vmem:[%s11 + $0x20] sm:$0xff]
        %v2532 = vld [vmem:[%s11 + $0x28] sm:$0xff]
        %v2533 = vld [vmem:[%s11 + $0x30] sm:$0xff]
        %v2534 = vld [vmem:[%s11 + $0x38] sm:$0xff]
        %v2535 = vld [vmem:[%s11 + $0x40] sm:$0xff]
        %v2536 = vld [vmem:[%s11 + $0x48] sm:$0xff]
        %v2537 = vld [vmem:[%s11 + $0x50] sm:$0xff]
        %v2538 = vld [vmem:[%s11 + $0x58] sm:$0xff]
        %v2539 = vld [vmem:[%s11 + $0x60] sm:$0xff]
        %v2540 = vld [vmem:[%s11 + $0x68] sm:$0xff]
        %v2541 = vld [vmem:[%s11 + $0x70] sm:$0xff]
        %v2542 = vld [vmem:[%s11 + $0x78] sm:$0xff]
        %2543 = vmatprep.subr.mxu0 0.0
        %2544 = vmatpush1.msra.mxu0 %v2542
        %2545 = vmatprep.subr.mxu0 0.0
        %2546 = vmatpush1.msra.mxu0 %v2541
        %2547 = vmatprep.subr.mxu0 0.0
        %2548 = vmatpush1.msra.mxu0 %v2540
        %2549 = vmatprep.subr.mxu0 0.0
        %2550 = vmatpush1.msra.mxu0 %v2539
        %2551 = vmatprep.subr.mxu0 0.0
        %2552 = vmatpush1.msra.mxu0 %v2538
        %2553 = vmatprep.subr.mxu0 0.0
        %2554 = vmatpush1.msra.mxu0 %v2537
        %2555 = vmatprep.subr.mxu0 0.0
        %2556 = vmatpush1.msra.mxu0 %v2536
        %2557 = vmatprep.subr.mxu0 0.0
        %2558 = vmatpush1.msra.mxu0 %v2535
        %2559 = vmatprep.subr.mxu0 0.0
        %2560 = vmatpush1.msra.mxu0 %v2534
        %2561 = vmatprep.subr.mxu0 0.0
        %2562 = vmatpush1.msra.mxu0 %v2533
        %2563 = vmatprep.subr.mxu0 0.0
        %2564 = vmatpush1.msra.mxu0 %v2532
        %2565 = vmatprep.subr.mxu0 0.0
        %2566 = vmatpush1.msra.mxu0 %v2531
        %2567 = vmatprep.subr.mxu0 0.0
        %2568 = vmatpush1.msra.mxu0 %v2530
        %2569 = vmatprep.subr.mxu0 0.0
        %2570 = vmatpush1.msra.mxu0 %v2529
        %2571 = vmatprep.subr.mxu0 0.0
        %2572 = vmatpush1.msra.mxu0 %v2528
        %2573 = vmatprep.subr.mxu0 0.0
        %2574 = vmatpush1.msra.mxu0 %v2527
        %2575 = vmatprep.subr.mxu0 0.0
        %2576 = vmatpush2.msra.mxu0 0.0
        %2577 = vmatprep.subr.mxu0 0.0
        %2578 = vmatpush2.msra.mxu0 0.0
        %2579 = vmatprep.subr.mxu0 0.0
        %2580 = vmatpush2.msra.mxu0 0.0
        %2581 = vmatprep.subr.mxu0 0.0
        %2582 = vmatpush2.msra.mxu0 0.0
        %2583 = vmatprep.subr.mxu0 0.0
        %2584 = vmatpush2.msra.mxu0 0.0
        %2585 = vmatprep.subr.mxu0 0.0
        %2586 = vmatpush2.msra.mxu0 0.0
        %2587 = vmatprep.subr.mxu0 0.0
        %2588 = vmatpush2.msra.mxu0 0.0
        %2589 = vmatprep.subr.mxu0 0.0
        %2590 = vmatpush2.msra.mxu0 0.0
        %2591 = vmatprep.subr.mxu0 0.0
        %2592 = vmatpush2.msra.mxu0 0.0
        %2593 = vmatprep.subr.mxu0 0.0
        %2594 = vmatpush2.msra.mxu0 0.0
        %2595 = vmatprep.subr.mxu0 0.0
        %2596 = vmatpush2.msra.mxu0 0.0
        %2597 = vmatprep.subr.mxu0 0.0
        %2598 = vmatpush2.msra.mxu0 0.0
        %2599 = vmatprep.subr.mxu0 0.0
        %2600 = vmatpush2.msra.mxu0 0.0
        %2601 = vmatprep.subr.mxu0 0.0
        %2602 = vmatpush2.msra.mxu0 0.0
        %2603 = vmatprep.subr.mxu0 0.0
        %2604 = vmatpush2.msra.mxu0 0.0
        %2605 = vmatprep.subr.mxu0 0.0
        %2606 = vmatpush2.msra.mxu0 0.0
        %2607 = vmatprep.mubr.f32.mxu0 0.0
        %2608 = vmatmul.mubr.f32.gmra.mxu0 %v2526
        %v2609 = vpop.f32.mrf.mxu0
        %v2610 = vadd.f32 0.0, %v2609
        %v2611 = vpop.f32.mrf.mxu0
        %2612 = vdwg.mxu0
        %s2613 = scalar_lea.vmem %s11, 128
        %v2614 = vld [vmem:[%s2613] sm:$0xff]
        %v2615 = vld [vmem:[%s2613 + $0x8] sm:$0xff]
        %v2616 = vld [vmem:[%s2613 + $0x10] sm:$0xff]
        %v2617 = vld [vmem:[%s2613 + $0x18] sm:$0xff]
        %v2618 = vld [vmem:[%s2613 + $0x20] sm:$0xff]
        %v2619 = vld [vmem:[%s2613 + $0x28] sm:$0xff]
        %v2620 = vld [vmem:[%s2613 + $0x30] sm:$0xff]
        %v2621 = vld [vmem:[%s2613 + $0x38] sm:$0xff]
        %v2622 = vld [vmem:[%s2613 + $0x40] sm:$0xff]
        %v2623 = vld [vmem:[%s2613 + $0x48] sm:$0xff]
        %v2624 = vld [vmem:[%s2613 + $0x50] sm:$0xff]
        %v2625 = vld [vmem:[%s2613 + $0x58] sm:$0xff]
        %v2626 = vld [vmem:[%s2613 + $0x60] sm:$0xff]
        %v2627 = vld [vmem:[%s2613 + $0x68] sm:$0xff]
        %v2628 = vld [vmem:[%s2613 + $0x70] sm:$0xff]
        %v2629 = vld [vmem:[%s2613 + $0x78] sm:$0xff]
        %2630 = vmatprep.subr.mxu0 0.0
        %2631 = vmatpush1.msra.mxu0 %v2629
        %2632 = vmatprep.subr.mxu0 0.0
        %2633 = vmatpush1.msra.mxu0 %v2628
        %2634 = vmatprep.subr.mxu0 0.0
        %2635 = vmatpush1.msra.mxu0 %v2627
        %2636 = vmatprep.subr.mxu0 0.0
        %2637 = vmatpush1.msra.mxu0 %v2626
        %2638 = vmatprep.subr.mxu0 0.0
        %2639 = vmatpush1.msra.mxu0 %v2625
        %2640 = vmatprep.subr.mxu0 0.0
        %2641 = vmatpush1.msra.mxu0 %v2624
        %2642 = vmatprep.subr.mxu0 0.0
        %2643 = vmatpush1.msra.mxu0 %v2623
        %2644 = vmatprep.subr.mxu0 0.0
        %2645 = vmatpush1.msra.mxu0 %v2622
        %2646 = vmatprep.subr.mxu0 0.0
        %2647 = vmatpush1.msra.mxu0 %v2621
        %2648 = vmatprep.subr.mxu0 0.0
        %2649 = vmatpush1.msra.mxu0 %v2620
        %2650 = vmatprep.subr.mxu0 0.0
        %2651 = vmatpush1.msra.mxu0 %v2619
        %2652 = vmatprep.subr.mxu0 0.0
        %2653 = vmatpush1.msra.mxu0 %v2618
        %2654 = vmatprep.subr.mxu0 0.0
        %2655 = vmatpush1.msra.mxu0 %v2617
        %2656 = vmatprep.subr.mxu0 0.0
        %2657 = vmatpush1.msra.mxu0 %v2616
        %2658 = vmatprep.subr.mxu0 0.0
        %2659 = vmatpush1.msra.mxu0 %v2615
        %2660 = vmatprep.subr.mxu0 0.0
        %2661 = vmatpush1.msra.mxu0 %v2614
        %2662 = vmatprep.subr.mxu0 0.0
        %2663 = vmatpush2.msra.mxu0 0.0
        %2664 = vmatprep.subr.mxu0 0.0
        %2665 = vmatpush2.msra.mxu0 0.0
        %2666 = vmatprep.subr.mxu0 0.0
        %2667 = vmatpush2.msra.mxu0 0.0
        %2668 = vmatprep.subr.mxu0 0.0
        %2669 = vmatpush2.msra.mxu0 0.0
        %2670 = vmatprep.subr.mxu0 0.0
        %2671 = vmatpush2.msra.mxu0 0.0
        %2672 = vmatprep.subr.mxu0 0.0
        %2673 = vmatpush2.msra.mxu0 0.0
        %2674 = vmatprep.subr.mxu0 0.0
        %2675 = vmatpush2.msra.mxu0 0.0
        %2676 = vmatprep.subr.mxu0 0.0
        %2677 = vmatpush2.msra.mxu0 0.0
        %2678 = vmatprep.subr.mxu0 0.0
        %2679 = vmatpush2.msra.mxu0 0.0
        %2680 = vmatprep.subr.mxu0 0.0
        %2681 = vmatpush2.msra.mxu0 0.0
        %2682 = vmatprep.subr.mxu0 0.0
        %2683 = vmatpush2.msra.mxu0 0.0
        %2684 = vmatprep.subr.mxu0 0.0
        %2685 = vmatpush2.msra.mxu0 0.0
        %2686 = vmatprep.subr.mxu0 0.0
        %2687 = vmatpush2.msra.mxu0 0.0
        %2688 = vmatprep.subr.mxu0 0.0
        %2689 = vmatpush2.msra.mxu0 0.0
        %2690 = vmatprep.subr.mxu0 0.0
        %2691 = vmatpush2.msra.mxu0 0.0
        %2692 = vmatprep.subr.mxu0 0.0
        %2693 = vmatpush2.msra.mxu0 0.0
        %2694 = vmatprep.mubr.f32.mxu0 0.0
        %2695 = vmatmul.mubr.f32.gmra.mxu0 %v2526
        %v2696 = vpop.f32.mrf.mxu0
        %v2697 = vadd.f32 0.0, %v2696
        %v2698 = vpop.f32.mrf.mxu0
        %2699 = vdwg.mxu0
        %v2700 = vmax.f32 %v2610, %v2697
        %v2701 = vld [vmem:[#allocation4] sm:$0xff]
        %s2702 = scalar_lea.vmem [#allocation4], 8
        %v2703 = vld [vmem:[%s2702] sm:$0xff]
        %v2704 = vld [vmem:[%s33] sm:$0xff]
        %v2705 = vld [vmem:[%s33 + $0x8] sm:$0xff]
        %v2706 = vld [vmem:[%s33 + $0x10] sm:$0xff]
        %v2707 = vld [vmem:[%s33 + $0x18] sm:$0xff]
        %v2708 = vld [vmem:[%s33 + $0x20] sm:$0xff]
        %v2709 = vld [vmem:[%s33 + $0x28] sm:$0xff]
        %v2710 = vld [vmem:[%s33 + $0x30] sm:$0xff]
        %v2711 = vld [vmem:[%s33 + $0x38] sm:$0xff]
        %vm2712 = vcmask 523264
        %v2714 = vsel %vm2712, %v2700, 0
        %2716 = vmatprep.subr.mxu0 0.0
        %2717 = vmatpush1.msra.mxu0 0.0
        %2718 = vmatprep.subr.mxu0 0.0
        %2719 = vmatpush1.msra.mxu0 0.0
        %2720 = vmatprep.subr.mxu0 0.0
        %2721 = vmatpush1.msra.mxu0 0.0
        %2722 = vmatprep.subr.mxu0 0.0
        %2723 = vmatpush1.msra.mxu0 0.0
        %2724 = vmatprep.subr.mxu0 0.0
        %2725 = vmatpush1.msra.mxu0 0.0
        %2726 = vmatprep.subr.mxu0 0.0
        %2727 = vmatpush1.msra.mxu0 0.0
        %2728 = vmatprep.subr.mxu0 0.0
        %2729 = vmatpush1.msra.mxu0 0.0
        %2730 = vmatprep.subr.mxu0 0.0
        %2731 = vmatpush1.msra.mxu0 0.0
        %2732 = vmatprep.subr.mxu0 0.0
        %2733 = vmatpush1.msra.mxu0 %v2711
        %2734 = vmatprep.subr.mxu0 0.0
        %2735 = vmatpush1.msra.mxu0 %v2710
        %2736 = vmatprep.subr.mxu0 0.0
        %2737 = vmatpush1.msra.mxu0 %v2709
        %2738 = vmatprep.subr.mxu0 0.0
        %2739 = vmatpush1.msra.mxu0 %v2708
        %2740 = vmatprep.subr.mxu0 0.0
        %2741 = vmatpush1.msra.mxu0 %v2707
        %2742 = vmatprep.subr.mxu0 0.0
        %2743 = vmatpush1.msra.mxu0 %v2706
        %2744 = vmatprep.subr.mxu0 0.0
        %2745 = vmatpush1.msra.mxu0 %v2705
        %2746 = vmatprep.subr.mxu0 0.0
        %2747 = vmatpush1.msra.mxu0 %v2704
        %2748 = vmatprep.subr.mxu0 0.0
        %2749 = vmatpush2.msra.mxu0 0.0
        %2750 = vmatprep.subr.mxu0 0.0
        %2751 = vmatpush2.msra.mxu0 0.0
        %2752 = vmatprep.subr.mxu0 0.0
        %2753 = vmatpush2.msra.mxu0 0.0
        %2754 = vmatprep.subr.mxu0 0.0
        %2755 = vmatpush2.msra.mxu0 0.0
        %2756 = vmatprep.subr.mxu0 0.0
        %2757 = vmatpush2.msra.mxu0 0.0
        %2758 = vmatprep.subr.mxu0 0.0
        %2759 = vmatpush2.msra.mxu0 0.0
        %2760 = vmatprep.subr.mxu0 0.0
        %2761 = vmatpush2.msra.mxu0 0.0
        %2762 = vmatprep.subr.mxu0 0.0
        %2763 = vmatpush2.msra.mxu0 0.0
        %2764 = vmatprep.subr.mxu0 0.0
        %2765 = vmatpush2.msra.mxu0 0.0
        %2766 = vmatprep.subr.mxu0 0.0
        %2767 = vmatpush2.msra.mxu0 0.0
        %2768 = vmatprep.subr.mxu0 0.0
        %2769 = vmatpush2.msra.mxu0 0.0
        %2770 = vmatprep.subr.mxu0 0.0
        %2771 = vmatpush2.msra.mxu0 0.0
        %2772 = vmatprep.subr.mxu0 0.0
        %2773 = vmatpush2.msra.mxu0 0.0
        %2774 = vmatprep.subr.mxu0 0.0
        %2775 = vmatpush2.msra.mxu0 0.0
        %2776 = vmatprep.subr.mxu0 0.0
        %2777 = vmatpush2.msra.mxu0 0.0
        %2778 = vmatprep.subr.mxu0 0.0
        %2779 = vmatpush2.msra.mxu0 0.0
        %2780 = vmatprep.mubr.f32.mxu0 0.0
        %2781 = vmatmul.mubr.f32.gmra.mxu0 %v2714
        %v2782 = vpop.f32.mrf.mxu0
        %v2783 = vadd.f32 0.0, %v2782
        %v2784 = vpop.f32.mrf.mxu0
        %2785 = vdwg.mxu0
        %s2786 = scalar_lea.vmem %s33, 64
        %v2787 = vld [vmem:[%s2786] sm:$0xff]
        %v2788 = vld [vmem:[%s2786 + $0x8] sm:$0xff]
        %v2789 = vld [vmem:[%s2786 + $0x10] sm:$0xff]
        %v2790 = vld [vmem:[%s2786 + $0x18] sm:$0xff]
        %v2791 = vld [vmem:[%s2786 + $0x20] sm:$0xff]
        %v2792 = vld [vmem:[%s2786 + $0x28] sm:$0xff]
        %v2793 = vld [vmem:[%s2786 + $0x30] sm:$0xff]
        %v2794 = vld [vmem:[%s2786 + $0x38] sm:$0xff]
        %2795 = vmatprep.subr.mxu0 0.0
        %2796 = vmatpush1.msra.mxu0 0.0
        %2797 = vmatprep.subr.mxu0 0.0
        %2798 = vmatpush1.msra.mxu0 0.0
        %2799 = vmatprep.subr.mxu0 0.0
        %2800 = vmatpush1.msra.mxu0 0.0
        %2801 = vmatprep.subr.mxu0 0.0
        %2802 = vmatpush1.msra.mxu0 0.0
        %2803 = vmatprep.subr.mxu0 0.0
        %2804 = vmatpush1.msra.mxu0 0.0
        %2805 = vmatprep.subr.mxu0 0.0
        %2806 = vmatpush1.msra.mxu0 0.0
        %2807 = vmatprep.subr.mxu0 0.0
        %2808 = vmatpush1.msra.mxu0 0.0
        %2809 = vmatprep.subr.mxu0 0.0
        %2810 = vmatpush1.msra.mxu0 0.0
        %2811 = vmatprep.subr.mxu0 0.0
        %2812 = vmatpush1.msra.mxu0 %v2794
        %2813 = vmatprep.subr.mxu0 0.0
        %2814 = vmatpush1.msra.mxu0 %v2793
        %2815 = vmatprep.subr.mxu0 0.0
        %2816 = vmatpush1.msra.mxu0 %v2792
        %2817 = vmatprep.subr.mxu0 0.0
        %2818 = vmatpush1.msra.mxu0 %v2791
        %2819 = vmatprep.subr.mxu0 0.0
        %2820 = vmatpush1.msra.mxu0 %v2790
        %2821 = vmatprep.subr.mxu0 0.0
        %2822 = vmatpush1.msra.mxu0 %v2789
        %2823 = vmatprep.subr.mxu0 0.0
        %2824 = vmatpush1.msra.mxu0 %v2788
        %2825 = vmatprep.subr.mxu0 0.0
        %2826 = vmatpush1.msra.mxu0 %v2787
        %2827 = vmatprep.subr.mxu0 0.0
        %2828 = vmatpush2.msra.mxu0 0.0
        %2829 = vmatprep.subr.mxu0 0.0
        %2830 = vmatpush2.msra.mxu0 0.0
        %2831 = vmatprep.subr.mxu0 0.0
        %2832 = vmatpush2.msra.mxu0 0.0
        %2833 = vmatprep.subr.mxu0 0.0
        %2834 = vmatpush2.msra.mxu0 0.0
        %2835 = vmatprep.subr.mxu0 0.0
        %2836 = vmatpush2.msra.mxu0 0.0
        %2837 = vmatprep.subr.mxu0 0.0
        %2838 = vmatpush2.msra.mxu0 0.0
        %2839 = vmatprep.subr.mxu0 0.0
        %2840 = vmatpush2.msra.mxu0 0.0
        %2841 = vmatprep.subr.mxu0 0.0
        %2842 = vmatpush2.msra.mxu0 0.0
        %2843 = vmatprep.subr.mxu0 0.0
        %2844 = vmatpush2.msra.mxu0 0.0
        %2845 = vmatprep.subr.mxu0 0.0
        %2846 = vmatpush2.msra.mxu0 0.0
        %2847 = vmatprep.subr.mxu0 0.0
        %2848 = vmatpush2.msra.mxu0 0.0
        %2849 = vmatprep.subr.mxu0 0.0
        %2850 = vmatpush2.msra.mxu0 0.0
        %2851 = vmatprep.subr.mxu0 0.0
        %2852 = vmatpush2.msra.mxu0 0.0
        %2853 = vmatprep.subr.mxu0 0.0
        %2854 = vmatpush2.msra.mxu0 0.0
        %2855 = vmatprep.subr.mxu0 0.0
        %2856 = vmatpush2.msra.mxu0 0.0
        %2857 = vmatprep.subr.mxu0 0.0
        %2858 = vmatpush2.msra.mxu0 0.0
        %2859 = vmatprep.mubr.f32.mxu0 0.0
        %2860 = vmatmul.mubr.f32.gmra.mxu0 %v2714
        %v2861 = vpop.f32.mrf.mxu0
        %v2862 = vadd.f32 0.0, %v2861
        %v2863 = vpop.f32.mrf.mxu0
        %2864 = vdwg.mxu0
        %s2865 = scalar_lea.vmem %s33, 128
        %v2866 = vld [vmem:[%s2865] sm:$0xff]
        %v2867 = vld [vmem:[%s2865 + $0x8] sm:$0xff]
        %v2868 = vld [vmem:[%s2865 + $0x10] sm:$0xff]
        %v2869 = vld [vmem:[%s2865 + $0x18] sm:$0xff]
        %v2870 = vld [vmem:[%s2865 + $0x20] sm:$0xff]
        %v2871 = vld [vmem:[%s2865 + $0x28] sm:$0xff]
        %v2872 = vld [vmem:[%s2865 + $0x30] sm:$0xff]
        %v2873 = vld [vmem:[%s2865 + $0x38] sm:$0xff]
        %2874 = vmatprep.subr.mxu0 0.0
        %2875 = vmatpush1.msra.mxu0 0.0
        %2876 = vmatprep.subr.mxu0 0.0
        %2877 = vmatpush1.msra.mxu0 0.0
        %2878 = vmatprep.subr.mxu0 0.0
        %2879 = vmatpush1.msra.mxu0 0.0
        %2880 = vmatprep.subr.mxu0 0.0
        %2881 = vmatpush1.msra.mxu0 0.0
        %2882 = vmatprep.subr.mxu0 0.0
        %2883 = vmatpush1.msra.mxu0 0.0
        %2884 = vmatprep.subr.mxu0 0.0
        %2885 = vmatpush1.msra.mxu0 0.0
        %2886 = vmatprep.subr.mxu0 0.0
        %2887 = vmatpush1.msra.mxu0 0.0
        %2888 = vmatprep.subr.mxu0 0.0
        %2889 = vmatpush1.msra.mxu0 0.0
        %2890 = vmatprep.subr.mxu0 0.0
        %2891 = vmatpush1.msra.mxu0 %v2873
        %2892 = vmatprep.subr.mxu0 0.0
        %2893 = vmatpush1.msra.mxu0 %v2872
        %2894 = vmatprep.subr.mxu0 0.0
        %2895 = vmatpush1.msra.mxu0 %v2871
        %2896 = vmatprep.subr.mxu0 0.0
        %2897 = vmatpush1.msra.mxu0 %v2870
        %2898 = vmatprep.subr.mxu0 0.0
        %2899 = vmatpush1.msra.mxu0 %v2869
        %2900 = vmatprep.subr.mxu0 0.0
        %2901 = vmatpush1.msra.mxu0 %v2868
        %2902 = vmatprep.subr.mxu0 0.0
        %2903 = vmatpush1.msra.mxu0 %v2867
        %2904 = vmatprep.subr.mxu0 0.0
        %2905 = vmatpush1.msra.mxu0 %v2866
        %2906 = vmatprep.subr.mxu0 0.0
        %2907 = vmatpush2.msra.mxu0 0.0
        %2908 = vmatprep.subr.mxu0 0.0
        %2909 = vmatpush2.msra.mxu0 0.0
        %2910 = vmatprep.subr.mxu0 0.0
        %2911 = vmatpush2.msra.mxu0 0.0
        %2912 = vmatprep.subr.mxu0 0.0
        %2913 = vmatpush2.msra.mxu0 0.0
        %2914 = vmatprep.subr.mxu0 0.0
        %2915 = vmatpush2.msra.mxu0 0.0
        %2916 = vmatprep.subr.mxu0 0.0
        %2917 = vmatpush2.msra.mxu0 0.0
        %2918 = vmatprep.subr.mxu0 0.0
        %2919 = vmatpush2.msra.mxu0 0.0
        %2920 = vmatprep.subr.mxu0 0.0
        %2921 = vmatpush2.msra.mxu0 0.0
        %2922 = vmatprep.subr.mxu0 0.0
        %2923 = vmatpush2.msra.mxu0 0.0
        %2924 = vmatprep.subr.mxu0 0.0
        %2925 = vmatpush2.msra.mxu0 0.0
        %2926 = vmatprep.subr.mxu0 0.0
        %2927 = vmatpush2.msra.mxu0 0.0
        %2928 = vmatprep.subr.mxu0 0.0
        %2929 = vmatpush2.msra.mxu0 0.0
        %2930 = vmatprep.subr.mxu0 0.0
        %2931 = vmatpush2.msra.mxu0 0.0
        %2932 = vmatprep.subr.mxu0 0.0
        %2933 = vmatpush2.msra.mxu0 0.0
        %2934 = vmatprep.subr.mxu0 0.0
        %2935 = vmatpush2.msra.mxu0 0.0
        %2936 = vmatprep.subr.mxu0 0.0
        %2937 = vmatpush2.msra.mxu0 0.0
        %2938 = vmatprep.mubr.f32.mxu0 0.0
        %2939 = vmatmul.mubr.f32.gmra.mxu0 %v2714
        %v2940 = vpop.f32.mrf.mxu0
        %v2941 = vadd.f32 0.0, %v2940
        %v2942 = vpop.f32.mrf.mxu0
        %2943 = vdwg.mxu0
        %v2944 = vld [vmem:[#allocation12] sm:$0x1]
        %v2946 = vlaneseq
        %v2947 = vshrl.u32 %v2946, 7
        %v2948 = vsub.s32 0, %v2947
        %v2949 = vrot.slane %v2944, %v2948
        %v2951 = vadd.f32 %v2949, %v2862
        %vm2952 = vcmask 64512
        %v2954 = vsel %vm2952, %v2701, 0
        %2956 = vmatprep.subr.mxu0 0.0
        %2957 = vmatpush1.msra.mxu0 0.0
        %2958 = vmatprep.subr.mxu0 0.0
        %2959 = vmatpush1.msra.mxu0 0.0
        %2960 = vmatprep.subr.mxu0 0.0
        %2961 = vmatpush1.msra.mxu0 0.0
        %2962 = vmatprep.subr.mxu0 0.0
        %2963 = vmatpush1.msra.mxu0 0.0
        %2964 = vmatprep.subr.mxu0 0.0
        %2965 = vmatpush1.msra.mxu0 0.0
        %2966 = vmatprep.subr.mxu0 0.0
        %2967 = vmatpush1.msra.mxu0 0.0
        %2968 = vmatprep.subr.mxu0 0.0
        %2969 = vmatpush1.msra.mxu0 0.0
        %2970 = vmatprep.subr.mxu0 0.0
        %2971 = vmatpush1.msra.mxu0 0.0
        %2972 = vmatprep.subr.mxu0 0.0
        %2973 = vmatpush1.msra.mxu0 0.0
        %2974 = vmatprep.subr.mxu0 0.0
        %2975 = vmatpush1.msra.mxu0 0.0
        %2976 = vmatprep.subr.mxu0 0.0
        %2977 = vmatpush1.msra.mxu0 0.0
        %2978 = vmatprep.subr.mxu0 0.0
        %2979 = vmatpush1.msra.mxu0 0.0
        %2980 = vmatprep.subr.mxu0 0.0
        %2981 = vmatpush1.msra.mxu0 0.0
        %2982 = vmatprep.subr.mxu0 0.0
        %2983 = vmatpush1.msra.mxu0 0.0
        %2984 = vmatprep.subr.mxu0 0.0
        %2985 = vmatpush1.msra.mxu0 0.0
        %2986 = vmatprep.subr.mxu0 0.0
        %2987 = vmatpush1.msra.mxu0 %v2783
        %2988 = vmatprep.subr.mxu0 0.0
        %2989 = vmatpush2.msra.mxu0 0.0
        %2990 = vmatprep.subr.mxu0 0.0
        %2991 = vmatpush2.msra.mxu0 0.0
        %2992 = vmatprep.subr.mxu0 0.0
        %2993 = vmatpush2.msra.mxu0 0.0
        %2994 = vmatprep.subr.mxu0 0.0
        %2995 = vmatpush2.msra.mxu0 0.0
        %2996 = vmatprep.subr.mxu0 0.0
        %2997 = vmatpush2.msra.mxu0 0.0
        %2998 = vmatprep.subr.mxu0 0.0
        %2999 = vmatpush2.msra.mxu0 0.0
        %3000 = vmatprep.subr.mxu0 0.0
        %3001 = vmatpush2.msra.mxu0 0.0
        %3002 = vmatprep.subr.mxu0 0.0
        %3003 = vmatpush2.msra.mxu0 0.0
        %3004 = vmatprep.subr.mxu0 0.0
        %3005 = vmatpush2.msra.mxu0 0.0
        %3006 = vmatprep.subr.mxu0 0.0
        %3007 = vmatpush2.msra.mxu0 0.0
        %3008 = vmatprep.subr.mxu0 0.0
        %3009 = vmatpush2.msra.mxu0 0.0
        %3010 = vmatprep.subr.mxu0 0.0
        %3011 = vmatpush2.msra.mxu0 0.0
        %3012 = vmatprep.subr.mxu0 0.0
        %3013 = vmatpush2.msra.mxu0 0.0
        %3014 = vmatprep.subr.mxu0 0.0
        %3015 = vmatpush2.msra.mxu0 0.0
        %3016 = vmatprep.subr.mxu0 0.0
        %3017 = vmatpush2.msra.mxu0 0.0
        %3018 = vmatprep.subr.mxu0 0.0
        %3019 = vmatpush2.msra.mxu0 0.0
        %3020 = vmatprep.mubr.f32.mxu0 0.0
        %3021 = vmatmul.mubr.f32.gmra.mxu0 %v2954
        %v3022 = vpop.f32.mrf.mxu0
        %v3023 = vadd.f32 0.0, %v3022
        %v3024 = vpop.f32.mrf.mxu0
        %3025 = vdwg.mxu0
        %v3026 = vadd.f32 %v2951, %v3023
        %v3028 = vsel %vm2952, %v2703, 0
        %3030 = vmatprep.subr.mxu0 0.0
        %3031 = vmatpush1.msra.mxu0 0.0
        %3032 = vmatprep.subr.mxu0 0.0
        %3033 = vmatpush1.msra.mxu0 0.0
        %3034 = vmatprep.subr.mxu0 0.0
        %3035 = vmatpush1.msra.mxu0 0.0
        %3036 = vmatprep.subr.mxu0 0.0
        %3037 = vmatpush1.msra.mxu0 0.0
        %3038 = vmatprep.subr.mxu0 0.0
        %3039 = vmatpush1.msra.mxu0 0.0
        %3040 = vmatprep.subr.mxu0 0.0
        %3041 = vmatpush1.msra.mxu0 0.0
        %3042 = vmatprep.subr.mxu0 0.0
        %3043 = vmatpush1.msra.mxu0 0.0
        %3044 = vmatprep.subr.mxu0 0.0
        %3045 = vmatpush1.msra.mxu0 0.0
        %3046 = vmatprep.subr.mxu0 0.0
        %3047 = vmatpush1.msra.mxu0 0.0
        %3048 = vmatprep.subr.mxu0 0.0
        %3049 = vmatpush1.msra.mxu0 0.0
        %3050 = vmatprep.subr.mxu0 0.0
        %3051 = vmatpush1.msra.mxu0 0.0
        %3052 = vmatprep.subr.mxu0 0.0
        %3053 = vmatpush1.msra.mxu0 0.0
        %3054 = vmatprep.subr.mxu0 0.0
        %3055 = vmatpush1.msra.mxu0 0.0
        %3056 = vmatprep.subr.mxu0 0.0
        %3057 = vmatpush1.msra.mxu0 0.0
        %3058 = vmatprep.subr.mxu0 0.0
        %3059 = vmatpush1.msra.mxu0 0.0
        %3060 = vmatprep.subr.mxu0 0.0
        %3061 = vmatpush1.msra.mxu0 %v2941
        %3062 = vmatprep.subr.mxu0 0.0
        %3063 = vmatpush2.msra.mxu0 0.0
        %3064 = vmatprep.subr.mxu0 0.0
        %3065 = vmatpush2.msra.mxu0 0.0
        %3066 = vmatprep.subr.mxu0 0.0
        %3067 = vmatpush2.msra.mxu0 0.0
        %3068 = vmatprep.subr.mxu0 0.0
        %3069 = vmatpush2.msra.mxu0 0.0
        %3070 = vmatprep.subr.mxu0 0.0
        %3071 = vmatpush2.msra.mxu0 0.0
        %3072 = vmatprep.subr.mxu0 0.0
        %3073 = vmatpush2.msra.mxu0 0.0
        %3074 = vmatprep.subr.mxu0 0.0
        %3075 = vmatpush2.msra.mxu0 0.0
        %3076 = vmatprep.subr.mxu0 0.0
        %3077 = vmatpush2.msra.mxu0 0.0
        %3078 = vmatprep.subr.mxu0 0.0
        %3079 = vmatpush2.msra.mxu0 0.0
        %3080 = vmatprep.subr.mxu0 0.0
        %3081 = vmatpush2.msra.mxu0 0.0
        %3082 = vmatprep.subr.mxu0 0.0
        %3083 = vmatpush2.msra.mxu0 0.0
        %3084 = vmatprep.subr.mxu0 0.0
        %3085 = vmatpush2.msra.mxu0 0.0
        %3086 = vmatprep.subr.mxu0 0.0
        %3087 = vmatpush2.msra.mxu0 0.0
        %3088 = vmatprep.subr.mxu0 0.0
        %3089 = vmatpush2.msra.mxu0 0.0
        %3090 = vmatprep.subr.mxu0 0.0
        %3091 = vmatpush2.msra.mxu0 0.0
        %3092 = vmatprep.subr.mxu0 0.0
        %3093 = vmatpush2.msra.mxu0 0.0
        %3094 = vmatprep.mubr.f32.mxu0 0.0
        %3095 = vmatmul.mubr.f32.gmra.mxu0 %v3028
        %v3096 = vpop.f32.mrf.mxu0
        %v3097 = vadd.f32 0.0, %v3096
        %v3098 = vpop.f32.mrf.mxu0
        %3099 = vdwg.mxu0
        %v3100 = vadd.f32 %v3026, %v3097
        %v3101 = vmax.f32 %v3100, 0.0
        %v3102 = vld [vmem:[%s37] sm:$0xff]
        %v3103 = vld [vmem:[%s37 + $0x8] sm:$0xff]
        %v3104 = vld [vmem:[%s37 + $0x10] sm:$0xff]
        %v3105 = vld [vmem:[%s37 + $0x18] sm:$0xff]
        %v3106 = vld [vmem:[%s37 + $0x20] sm:$0xff]
        %v3107 = vld [vmem:[%s37 + $0x28] sm:$0xff]
        %v3108 = vld [vmem:[%s37 + $0x30] sm:$0xff]
        %v3109 = vld [vmem:[%s37 + $0x38] sm:$0xff]
        %v3111 = vsel %vm2712, %v3101, 0
        %3113 = vmatprep.subr.mxu0 0.0
        %3114 = vmatpush1.msra.mxu0 0.0
        %3115 = vmatprep.subr.mxu0 0.0
        %3116 = vmatpush1.msra.mxu0 0.0
        %3117 = vmatprep.subr.mxu0 0.0
        %3118 = vmatpush1.msra.mxu0 0.0
        %3119 = vmatprep.subr.mxu0 0.0
        %3120 = vmatpush1.msra.mxu0 0.0
        %3121 = vmatprep.subr.mxu0 0.0
        %3122 = vmatpush1.msra.mxu0 0.0
        %3123 = vmatprep.subr.mxu0 0.0
        %3124 = vmatpush1.msra.mxu0 0.0
        %3125 = vmatprep.subr.mxu0 0.0
        %3126 = vmatpush1.msra.mxu0 0.0
        %3127 = vmatprep.subr.mxu0 0.0
        %3128 = vmatpush1.msra.mxu0 0.0
        %3129 = vmatprep.subr.mxu0 0.0
        %3130 = vmatpush1.msra.mxu0 %v3109
        %3131 = vmatprep.subr.mxu0 0.0
        %3132 = vmatpush1.msra.mxu0 %v3108
        %3133 = vmatprep.subr.mxu0 0.0
        %3134 = vmatpush1.msra.mxu0 %v3107
        %3135 = vmatprep.subr.mxu0 0.0
        %3136 = vmatpush1.msra.mxu0 %v3106
        %3137 = vmatprep.subr.mxu0 0.0
        %3138 = vmatpush1.msra.mxu0 %v3105
        %3139 = vmatprep.subr.mxu0 0.0
        %3140 = vmatpush1.msra.mxu0 %v3104
        %3141 = vmatprep.subr.mxu0 0.0
        %3142 = vmatpush1.msra.mxu0 %v3103
        %3143 = vmatprep.subr.mxu0 0.0
        %3144 = vmatpush1.msra.mxu0 %v3102
        %3145 = vmatprep.subr.mxu0 0.0
        %3146 = vmatpush2.msra.mxu0 0.0
        %3147 = vmatprep.subr.mxu0 0.0
        %3148 = vmatpush2.msra.mxu0 0.0
        %3149 = vmatprep.subr.mxu0 0.0
        %3150 = vmatpush2.msra.mxu0 0.0
        %3151 = vmatprep.subr.mxu0 0.0
        %3152 = vmatpush2.msra.mxu0 0.0
        %3153 = vmatprep.subr.mxu0 0.0
        %3154 = vmatpush2.msra.mxu0 0.0
        %3155 = vmatprep.subr.mxu0 0.0
        %3156 = vmatpush2.msra.mxu0 0.0
        %3157 = vmatprep.subr.mxu0 0.0
        %3158 = vmatpush2.msra.mxu0 0.0
        %3159 = vmatprep.subr.mxu0 0.0
        %3160 = vmatpush2.msra.mxu0 0.0
        %3161 = vmatprep.subr.mxu0 0.0
        %3162 = vmatpush2.msra.mxu0 0.0
        %3163 = vmatprep.subr.mxu0 0.0
        %3164 = vmatpush2.msra.mxu0 0.0
        %3165 = vmatprep.subr.mxu0 0.0
        %3166 = vmatpush2.msra.mxu0 0.0
        %3167 = vmatprep.subr.mxu0 0.0
        %3168 = vmatpush2.msra.mxu0 0.0
        %3169 = vmatprep.subr.mxu0 0.0
        %3170 = vmatpush2.msra.mxu0 0.0
        %3171 = vmatprep.subr.mxu0 0.0
        %3172 = vmatpush2.msra.mxu0 0.0
        %3173 = vmatprep.subr.mxu0 0.0
        %3174 = vmatpush2.msra.mxu0 0.0
        %3175 = vmatprep.subr.mxu0 0.0
        %3176 = vmatpush2.msra.mxu0 0.0
        %3177 = vmatprep.mubr.f32.mxu0 0.0
        %3178 = vmatmul.mubr.f32.gmra.mxu0 %v3111
        %v3179 = vpop.f32.mrf.mxu0
        %v3180 = vadd.f32 0.0, %v3179
        %v3181 = vpop.f32.mrf.mxu0
        %3182 = vdwg.mxu0
        %s3183 = scalar_lea.vmem %s37, 64
        %v3184 = vld [vmem:[%s3183] sm:$0xff]
        %v3185 = vld [vmem:[%s3183 + $0x8] sm:$0xff]
        %v3186 = vld [vmem:[%s3183 + $0x10] sm:$0xff]
        %v3187 = vld [vmem:[%s3183 + $0x18] sm:$0xff]
        %v3188 = vld [vmem:[%s3183 + $0x20] sm:$0xff]
        %v3189 = vld [vmem:[%s3183 + $0x28] sm:$0xff]
        %v3190 = vld [vmem:[%s3183 + $0x30] sm:$0xff]
        %v3191 = vld [vmem:[%s3183 + $0x38] sm:$0xff]
        %3192 = vmatprep.subr.mxu0 0.0
        %3193 = vmatpush1.msra.mxu0 0.0
        %3194 = vmatprep.subr.mxu0 0.0
        %3195 = vmatpush1.msra.mxu0 0.0
        %3196 = vmatprep.subr.mxu0 0.0
        %3197 = vmatpush1.msra.mxu0 0.0
        %3198 = vmatprep.subr.mxu0 0.0
        %3199 = vmatpush1.msra.mxu0 0.0
        %3200 = vmatprep.subr.mxu0 0.0
        %3201 = vmatpush1.msra.mxu0 0.0
        %3202 = vmatprep.subr.mxu0 0.0
        %3203 = vmatpush1.msra.mxu0 0.0
        %3204 = vmatprep.subr.mxu0 0.0
        %3205 = vmatpush1.msra.mxu0 0.0
        %3206 = vmatprep.subr.mxu0 0.0
        %3207 = vmatpush1.msra.mxu0 0.0
        %3208 = vmatprep.subr.mxu0 0.0
        %3209 = vmatpush1.msra.mxu0 %v3191
        %3210 = vmatprep.subr.mxu0 0.0
        %3211 = vmatpush1.msra.mxu0 %v3190
        %3212 = vmatprep.subr.mxu0 0.0
        %3213 = vmatpush1.msra.mxu0 %v3189
        %3214 = vmatprep.subr.mxu0 0.0
        %3215 = vmatpush1.msra.mxu0 %v3188
        %3216 = vmatprep.subr.mxu0 0.0
        %3217 = vmatpush1.msra.mxu0 %v3187
        %3218 = vmatprep.subr.mxu0 0.0
        %3219 = vmatpush1.msra.mxu0 %v3186
        %3220 = vmatprep.subr.mxu0 0.0
        %3221 = vmatpush1.msra.mxu0 %v3185
        %3222 = vmatprep.subr.mxu0 0.0
        %3223 = vmatpush1.msra.mxu0 %v3184
        %3224 = vmatprep.subr.mxu0 0.0
        %3225 = vmatpush2.msra.mxu0 0.0
        %3226 = vmatprep.subr.mxu0 0.0
        %3227 = vmatpush2.msra.mxu0 0.0
        %3228 = vmatprep.subr.mxu0 0.0
        %3229 = vmatpush2.msra.mxu0 0.0
        %3230 = vmatprep.subr.mxu0 0.0
        %3231 = vmatpush2.msra.mxu0 0.0
        %3232 = vmatprep.subr.mxu0 0.0
        %3233 = vmatpush2.msra.mxu0 0.0
        %3234 = vmatprep.subr.mxu0 0.0
        %3235 = vmatpush2.msra.mxu0 0.0
        %3236 = vmatprep.subr.mxu0 0.0
        %3237 = vmatpush2.msra.mxu0 0.0
        %3238 = vmatprep.subr.mxu0 0.0
        %3239 = vmatpush2.msra.mxu0 0.0
        %3240 = vmatprep.subr.mxu0 0.0
        %3241 = vmatpush2.msra.mxu0 0.0
        %3242 = vmatprep.subr.mxu0 0.0
        %3243 = vmatpush2.msra.mxu0 0.0
        %3244 = vmatprep.subr.mxu0 0.0
        %3245 = vmatpush2.msra.mxu0 0.0
        %3246 = vmatprep.subr.mxu0 0.0
        %3247 = vmatpush2.msra.mxu0 0.0
        %3248 = vmatprep.subr.mxu0 0.0
        %3249 = vmatpush2.msra.mxu0 0.0
        %3250 = vmatprep.subr.mxu0 0.0
        %3251 = vmatpush2.msra.mxu0 0.0
        %3252 = vmatprep.subr.mxu0 0.0
        %3253 = vmatpush2.msra.mxu0 0.0
        %3254 = vmatprep.subr.mxu0 0.0
        %3255 = vmatpush2.msra.mxu0 0.0
        %3256 = vmatprep.mubr.f32.mxu0 0.0
        %3257 = vmatmul.mubr.f32.gmra.mxu0 %v3111
        %v3258 = vpop.f32.mrf.mxu0
        %v3259 = vadd.f32 0.0, %v3258
        %v3260 = vpop.f32.mrf.mxu0
        %3261 = vdwg.mxu0
        %s3262 = scalar_lea.vmem %s37, 128
        %v3263 = vld [vmem:[%s3262] sm:$0xff]
        %v3264 = vld [vmem:[%s3262 + $0x8] sm:$0xff]
        %v3265 = vld [vmem:[%s3262 + $0x10] sm:$0xff]
        %v3266 = vld [vmem:[%s3262 + $0x18] sm:$0xff]
        %v3267 = vld [vmem:[%s3262 + $0x20] sm:$0xff]
        %v3268 = vld [vmem:[%s3262 + $0x28] sm:$0xff]
        %v3269 = vld [vmem:[%s3262 + $0x30] sm:$0xff]
        %v3270 = vld [vmem:[%s3262 + $0x38] sm:$0xff]
        %3271 = vmatprep.subr.mxu0 0.0
        %3272 = vmatpush1.msra.mxu0 0.0
        %3273 = vmatprep.subr.mxu0 0.0
        %3274 = vmatpush1.msra.mxu0 0.0
        %3275 = vmatprep.subr.mxu0 0.0
        %3276 = vmatpush1.msra.mxu0 0.0
        %3277 = vmatprep.subr.mxu0 0.0
        %3278 = vmatpush1.msra.mxu0 0.0
        %3279 = vmatprep.subr.mxu0 0.0
        %3280 = vmatpush1.msra.mxu0 0.0
        %3281 = vmatprep.subr.mxu0 0.0
        %3282 = vmatpush1.msra.mxu0 0.0
        %3283 = vmatprep.subr.mxu0 0.0
        %3284 = vmatpush1.msra.mxu0 0.0
        %3285 = vmatprep.subr.mxu0 0.0
        %3286 = vmatpush1.msra.mxu0 0.0
        %3287 = vmatprep.subr.mxu0 0.0
        %3288 = vmatpush1.msra.mxu0 %v3270
        %3289 = vmatprep.subr.mxu0 0.0
        %3290 = vmatpush1.msra.mxu0 %v3269
        %3291 = vmatprep.subr.mxu0 0.0
        %3292 = vmatpush1.msra.mxu0 %v3268
        %3293 = vmatprep.subr.mxu0 0.0
        %3294 = vmatpush1.msra.mxu0 %v3267
        %3295 = vmatprep.subr.mxu0 0.0
        %3296 = vmatpush1.msra.mxu0 %v3266
        %3297 = vmatprep.subr.mxu0 0.0
        %3298 = vmatpush1.msra.mxu0 %v3265
        %3299 = vmatprep.subr.mxu0 0.0
        %3300 = vmatpush1.msra.mxu0 %v3264
        %3301 = vmatprep.subr.mxu0 0.0
        %3302 = vmatpush1.msra.mxu0 %v3263
        %3303 = vmatprep.subr.mxu0 0.0
        %3304 = vmatpush2.msra.mxu0 0.0
        %3305 = vmatprep.subr.mxu0 0.0
        %3306 = vmatpush2.msra.mxu0 0.0
        %3307 = vmatprep.subr.mxu0 0.0
        %3308 = vmatpush2.msra.mxu0 0.0
        %3309 = vmatprep.subr.mxu0 0.0
        %3310 = vmatpush2.msra.mxu0 0.0
        %3311 = vmatprep.subr.mxu0 0.0
        %3312 = vmatpush2.msra.mxu0 0.0
        %3313 = vmatprep.subr.mxu0 0.0
        %3314 = vmatpush2.msra.mxu0 0.0
        %3315 = vmatprep.subr.mxu0 0.0
        %3316 = vmatpush2.msra.mxu0 0.0
        %3317 = vmatprep.subr.mxu0 0.0
        %3318 = vmatpush2.msra.mxu0 0.0
        %3319 = vmatprep.subr.mxu0 0.0
        %3320 = vmatpush2.msra.mxu0 0.0
        %3321 = vmatprep.subr.mxu0 0.0
        %3322 = vmatpush2.msra.mxu0 0.0
        %3323 = vmatprep.subr.mxu0 0.0
        %3324 = vmatpush2.msra.mxu0 0.0
        %3325 = vmatprep.subr.mxu0 0.0
        %3326 = vmatpush2.msra.mxu0 0.0
        %3327 = vmatprep.subr.mxu0 0.0
        %3328 = vmatpush2.msra.mxu0 0.0
        %3329 = vmatprep.subr.mxu0 0.0
        %3330 = vmatpush2.msra.mxu0 0.0
        %3331 = vmatprep.subr.mxu0 0.0
        %3332 = vmatpush2.msra.mxu0 0.0
        %3333 = vmatprep.subr.mxu0 0.0
        %3334 = vmatpush2.msra.mxu0 0.0
        %3335 = vmatprep.mubr.f32.mxu0 0.0
        %3336 = vmatmul.mubr.f32.gmra.mxu0 %v3111
        %v3337 = vpop.f32.mrf.mxu0
        %v3338 = vadd.f32 0.0, %v3337
        %v3339 = vpop.f32.mrf.mxu0
        %3340 = vdwg.mxu0
        %v3341 = vld [vmem:[#allocation13] sm:$0x1]
        %v3343 = vlaneseq
        %v3344 = vshrl.u32 %v3343, 7
        %v3345 = vsub.s32 0, %v3344
        %v3346 = vrot.slane %v3341, %v3345
        %v3348 = vadd.f32 %v3346, %v3259
        %3349 = vmatprep.subr.mxu0 0.0
        %3350 = vmatpush1.msra.mxu0 0.0
        %3351 = vmatprep.subr.mxu0 0.0
        %3352 = vmatpush1.msra.mxu0 0.0
        %3353 = vmatprep.subr.mxu0 0.0
        %3354 = vmatpush1.msra.mxu0 0.0
        %3355 = vmatprep.subr.mxu0 0.0
        %3356 = vmatpush1.msra.mxu0 0.0
        %3357 = vmatprep.subr.mxu0 0.0
        %3358 = vmatpush1.msra.mxu0 0.0
        %3359 = vmatprep.subr.mxu0 0.0
        %3360 = vmatpush1.msra.mxu0 0.0
        %3361 = vmatprep.subr.mxu0 0.0
        %3362 = vmatpush1.msra.mxu0 0.0
        %3363 = vmatprep.subr.mxu0 0.0
        %3364 = vmatpush1.msra.mxu0 0.0
        %3365 = vmatprep.subr.mxu0 0.0
        %3366 = vmatpush1.msra.mxu0 0.0
        %3367 = vmatprep.subr.mxu0 0.0
        %3368 = vmatpush1.msra.mxu0 0.0
        %3369 = vmatprep.subr.mxu0 0.0
        %3370 = vmatpush1.msra.mxu0 0.0
        %3371 = vmatprep.subr.mxu0 0.0
        %3372 = vmatpush1.msra.mxu0 0.0
        %3373 = vmatprep.subr.mxu0 0.0
        %3374 = vmatpush1.msra.mxu0 0.0
        %3375 = vmatprep.subr.mxu0 0.0
        %3376 = vmatpush1.msra.mxu0 0.0
        %3377 = vmatprep.subr.mxu0 0.0
        %3378 = vmatpush1.msra.mxu0 0.0
        %3379 = vmatprep.subr.mxu0 0.0
        %3380 = vmatpush1.msra.mxu0 %v3180
        %3381 = vmatprep.subr.mxu0 0.0
        %3382 = vmatpush2.msra.mxu0 0.0
        %3383 = vmatprep.subr.mxu0 0.0
        %3384 = vmatpush2.msra.mxu0 0.0
        %3385 = vmatprep.subr.mxu0 0.0
        %3386 = vmatpush2.msra.mxu0 0.0
        %3387 = vmatprep.subr.mxu0 0.0
        %3388 = vmatpush2.msra.mxu0 0.0
        %3389 = vmatprep.subr.mxu0 0.0
        %3390 = vmatpush2.msra.mxu0 0.0
        %3391 = vmatprep.subr.mxu0 0.0
        %3392 = vmatpush2.msra.mxu0 0.0
        %3393 = vmatprep.subr.mxu0 0.0
        %3394 = vmatpush2.msra.mxu0 0.0
        %3395 = vmatprep.subr.mxu0 0.0
        %3396 = vmatpush2.msra.mxu0 0.0
        %3397 = vmatprep.subr.mxu0 0.0
        %3398 = vmatpush2.msra.mxu0 0.0
        %3399 = vmatprep.subr.mxu0 0.0
        %3400 = vmatpush2.msra.mxu0 0.0
        %3401 = vmatprep.subr.mxu0 0.0
        %3402 = vmatpush2.msra.mxu0 0.0
        %3403 = vmatprep.subr.mxu0 0.0
        %3404 = vmatpush2.msra.mxu0 0.0
        %3405 = vmatprep.subr.mxu0 0.0
        %3406 = vmatpush2.msra.mxu0 0.0
        %3407 = vmatprep.subr.mxu0 0.0
        %3408 = vmatpush2.msra.mxu0 0.0
        %3409 = vmatprep.subr.mxu0 0.0
        %3410 = vmatpush2.msra.mxu0 0.0
        %3411 = vmatprep.subr.mxu0 0.0
        %3412 = vmatpush2.msra.mxu0 0.0
        %3413 = vmatprep.mubr.f32.mxu0 0.0
        %3414 = vmatmul.mubr.f32.gmra.mxu0 %v2954
        %v3415 = vpop.f32.mrf.mxu0
        %v3416 = vadd.f32 0.0, %v3415
        %v3417 = vpop.f32.mrf.mxu0
        %3418 = vdwg.mxu0
        %v3419 = vadd.f32 %v3348, %v3416
        %3420 = vmatprep.subr.mxu0 0.0
        %3421 = vmatpush1.msra.mxu0 0.0
        %3422 = vmatprep.subr.mxu0 0.0
        %3423 = vmatpush1.msra.mxu0 0.0
        %3424 = vmatprep.subr.mxu0 0.0
        %3425 = vmatpush1.msra.mxu0 0.0
        %3426 = vmatprep.subr.mxu0 0.0
        %3427 = vmatpush1.msra.mxu0 0.0
        %3428 = vmatprep.subr.mxu0 0.0
        %3429 = vmatpush1.msra.mxu0 0.0
        %3430 = vmatprep.subr.mxu0 0.0
        %3431 = vmatpush1.msra.mxu0 0.0
        %3432 = vmatprep.subr.mxu0 0.0
        %3433 = vmatpush1.msra.mxu0 0.0
        %3434 = vmatprep.subr.mxu0 0.0
        %3435 = vmatpush1.msra.mxu0 0.0
        %3436 = vmatprep.subr.mxu0 0.0
        %3437 = vmatpush1.msra.mxu0 0.0
        %3438 = vmatprep.subr.mxu0 0.0
        %3439 = vmatpush1.msra.mxu0 0.0
        %3440 = vmatprep.subr.mxu0 0.0
        %3441 = vmatpush1.msra.mxu0 0.0
        %3442 = vmatprep.subr.mxu0 0.0
        %3443 = vmatpush1.msra.mxu0 0.0
        %3444 = vmatprep.subr.mxu0 0.0
        %3445 = vmatpush1.msra.mxu0 0.0
        %3446 = vmatprep.subr.mxu0 0.0
        %3447 = vmatpush1.msra.mxu0 0.0
        %3448 = vmatprep.subr.mxu0 0.0
        %3449 = vmatpush1.msra.mxu0 0.0
        %3450 = vmatprep.subr.mxu0 0.0
        %3451 = vmatpush1.msra.mxu0 %v3338
        %3452 = vmatprep.subr.mxu0 0.0
        %3453 = vmatpush2.msra.mxu0 0.0
        %3454 = vmatprep.subr.mxu0 0.0
        %3455 = vmatpush2.msra.mxu0 0.0
        %3456 = vmatprep.subr.mxu0 0.0
        %3457 = vmatpush2.msra.mxu0 0.0
        %3458 = vmatprep.subr.mxu0 0.0
        %3459 = vmatpush2.msra.mxu0 0.0
        %3460 = vmatprep.subr.mxu0 0.0
        %3461 = vmatpush2.msra.mxu0 0.0
        %3462 = vmatprep.subr.mxu0 0.0
        %3463 = vmatpush2.msra.mxu0 0.0
        %3464 = vmatprep.subr.mxu0 0.0
        %3465 = vmatpush2.msra.mxu0 0.0
        %3466 = vmatprep.subr.mxu0 0.0
        %3467 = vmatpush2.msra.mxu0 0.0
        %3468 = vmatprep.subr.mxu0 0.0
        %3469 = vmatpush2.msra.mxu0 0.0
        %3470 = vmatprep.subr.mxu0 0.0
        %3471 = vmatpush2.msra.mxu0 0.0
        %3472 = vmatprep.subr.mxu0 0.0
        %3473 = vmatpush2.msra.mxu0 0.0
        %3474 = vmatprep.subr.mxu0 0.0
        %3475 = vmatpush2.msra.mxu0 0.0
        %3476 = vmatprep.subr.mxu0 0.0
        %3477 = vmatpush2.msra.mxu0 0.0
        %3478 = vmatprep.subr.mxu0 0.0
        %3479 = vmatpush2.msra.mxu0 0.0
        %3480 = vmatprep.subr.mxu0 0.0
        %3481 = vmatpush2.msra.mxu0 0.0
        %3482 = vmatprep.subr.mxu0 0.0
        %3483 = vmatpush2.msra.mxu0 0.0
        %3484 = vmatprep.mubr.f32.mxu0 0.0
        %3485 = vmatmul.mubr.f32.gmra.mxu0 %v3028
        %v3486 = vpop.f32.mrf.mxu0
        %v3487 = vadd.f32 0.0, %v3486
        %v3488 = vpop.f32.mrf.mxu0
        %3489 = vdwg.mxu0
        %v3490 = vadd.f32 %v3419, %v3487
        %v3491 = vadd.f32 %v2700, %v3490
        %v3492 = vld [vmem:[#allocation19] sm:$0xff]
        %v3493 = vld [vmem:[#allocation19 + $0x8] sm:$0xff]
        %v3494 = vld [vmem:[#allocation19 + $0x10] sm:$0xff]
        %v3495 = vld [vmem:[#allocation19 + $0x18] sm:$0xff]
        %v3496 = vld [vmem:[#allocation19 + $0x20] sm:$0xff]
        %v3497 = vld [vmem:[#allocation19 + $0x28] sm:$0xff]
        %v3498 = vld [vmem:[#allocation19 + $0x30] sm:$0xff]
        %v3499 = vld [vmem:[#allocation19 + $0x38] sm:$0xff]
        %v3501 = vsel %vm2712, %v3491, 0
        %3503 = vmatprep.subr.mxu0 0.0
        %3504 = vmatpush1.msra.mxu0 0.0
        %3505 = vmatprep.subr.mxu0 0.0
        %3506 = vmatpush1.msra.mxu0 0.0
        %3507 = vmatprep.subr.mxu0 0.0
        %3508 = vmatpush1.msra.mxu0 0.0
        %3509 = vmatprep.subr.mxu0 0.0
        %3510 = vmatpush1.msra.mxu0 0.0
        %3511 = vmatprep.subr.mxu0 0.0
        %3512 = vmatpush1.msra.mxu0 0.0
        %3513 = vmatprep.subr.mxu0 0.0
        %3514 = vmatpush1.msra.mxu0 0.0
        %3515 = vmatprep.subr.mxu0 0.0
        %3516 = vmatpush1.msra.mxu0 0.0
        %3517 = vmatprep.subr.mxu0 0.0
        %3518 = vmatpush1.msra.mxu0 0.0
        %3519 = vmatprep.subr.mxu0 0.0
        %3520 = vmatpush1.msra.mxu0 %v3499
        %3521 = vmatprep.subr.mxu0 0.0
        %3522 = vmatpush1.msra.mxu0 %v3498
        %3523 = vmatprep.subr.mxu0 0.0
        %3524 = vmatpush1.msra.mxu0 %v3497
        %3525 = vmatprep.subr.mxu0 0.0
        %3526 = vmatpush1.msra.mxu0 %v3496
        %3527 = vmatprep.subr.mxu0 0.0
        %3528 = vmatpush1.msra.mxu0 %v3495
        %3529 = vmatprep.subr.mxu0 0.0
        %3530 = vmatpush1.msra.mxu0 %v3494
        %3531 = vmatprep.subr.mxu0 0.0
        %3532 = vmatpush1.msra.mxu0 %v3493
        %3533 = vmatprep.subr.mxu0 0.0
        %3534 = vmatpush1.msra.mxu0 %v3492
        %3535 = vmatprep.subr.mxu0 0.0
        %3536 = vmatpush2.msra.mxu0 0.0
        %3537 = vmatprep.subr.mxu0 0.0
        %3538 = vmatpush2.msra.mxu0 0.0
        %3539 = vmatprep.subr.mxu0 0.0
        %3540 = vmatpush2.msra.mxu0 0.0
        %3541 = vmatprep.subr.mxu0 0.0
        %3542 = vmatpush2.msra.mxu0 0.0
        %3543 = vmatprep.subr.mxu0 0.0
        %3544 = vmatpush2.msra.mxu0 0.0
        %3545 = vmatprep.subr.mxu0 0.0
        %3546 = vmatpush2.msra.mxu0 0.0
        %3547 = vmatprep.subr.mxu0 0.0
        %3548 = vmatpush2.msra.mxu0 0.0
        %3549 = vmatprep.subr.mxu0 0.0
        %3550 = vmatpush2.msra.mxu0 0.0
        %3551 = vmatprep.subr.mxu0 0.0
        %3552 = vmatpush2.msra.mxu0 0.0
        %3553 = vmatprep.subr.mxu0 0.0
        %3554 = vmatpush2.msra.mxu0 0.0
        %3555 = vmatprep.subr.mxu0 0.0
        %3556 = vmatpush2.msra.mxu0 0.0
        %3557 = vmatprep.subr.mxu0 0.0
        %3558 = vmatpush2.msra.mxu0 0.0
        %3559 = vmatprep.subr.mxu0 0.0
        %3560 = vmatpush2.msra.mxu0 0.0
        %3561 = vmatprep.subr.mxu0 0.0
        %3562 = vmatpush2.msra.mxu0 0.0
        %3563 = vmatprep.subr.mxu0 0.0
        %3564 = vmatpush2.msra.mxu0 0.0
        %3565 = vmatprep.subr.mxu0 0.0
        %3566 = vmatpush2.msra.mxu0 0.0
        %3567 = vmatprep.mubr.f32.mxu0 0.0
        %3568 = vmatmul.mubr.f32.gmra.mxu0 %v3501
        %v3569 = vpop.f32.mrf.mxu0
        %v3570 = vadd.f32 0.0, %v3569
        %v3571 = vpop.f32.mrf.mxu0
        %3572 = vdwg.mxu0
        %s3573 = scalar_lea.vmem [#allocation19], 64
        %v3574 = vld [vmem:[%s3573] sm:$0xff]
        %v3575 = vld [vmem:[%s3573 + $0x8] sm:$0xff]
        %v3576 = vld [vmem:[%s3573 + $0x10] sm:$0xff]
        %v3577 = vld [vmem:[%s3573 + $0x18] sm:$0xff]
        %v3578 = vld [vmem:[%s3573 + $0x20] sm:$0xff]
        %v3579 = vld [vmem:[%s3573 + $0x28] sm:$0xff]
        %v3580 = vld [vmem:[%s3573 + $0x30] sm:$0xff]
        %v3581 = vld [vmem:[%s3573 + $0x38] sm:$0xff]
        %3582 = vmatprep.subr.mxu0 0.0
        %3583 = vmatpush1.msra.mxu0 0.0
        %3584 = vmatprep.subr.mxu0 0.0
        %3585 = vmatpush1.msra.mxu0 0.0
        %3586 = vmatprep.subr.mxu0 0.0
        %3587 = vmatpush1.msra.mxu0 0.0
        %3588 = vmatprep.subr.mxu0 0.0
        %3589 = vmatpush1.msra.mxu0 0.0
        %3590 = vmatprep.subr.mxu0 0.0
        %3591 = vmatpush1.msra.mxu0 0.0
        %3592 = vmatprep.subr.mxu0 0.0
        %3593 = vmatpush1.msra.mxu0 0.0
        %3594 = vmatprep.subr.mxu0 0.0
        %3595 = vmatpush1.msra.mxu0 0.0
        %3596 = vmatprep.subr.mxu0 0.0
        %3597 = vmatpush1.msra.mxu0 0.0
        %3598 = vmatprep.subr.mxu0 0.0
        %3599 = vmatpush1.msra.mxu0 %v3581
        %3600 = vmatprep.subr.mxu0 0.0
        %3601 = vmatpush1.msra.mxu0 %v3580
        %3602 = vmatprep.subr.mxu0 0.0
        %3603 = vmatpush1.msra.mxu0 %v3579
        %3604 = vmatprep.subr.mxu0 0.0
        %3605 = vmatpush1.msra.mxu0 %v3578
        %3606 = vmatprep.subr.mxu0 0.0
        %3607 = vmatpush1.msra.mxu0 %v3577
        %3608 = vmatprep.subr.mxu0 0.0
        %3609 = vmatpush1.msra.mxu0 %v3576
        %3610 = vmatprep.subr.mxu0 0.0
        %3611 = vmatpush1.msra.mxu0 %v3575
        %3612 = vmatprep.subr.mxu0 0.0
        %3613 = vmatpush1.msra.mxu0 %v3574
        %3614 = vmatprep.subr.mxu0 0.0
        %3615 = vmatpush2.msra.mxu0 0.0
        %3616 = vmatprep.subr.mxu0 0.0
        %3617 = vmatpush2.msra.mxu0 0.0
        %3618 = vmatprep.subr.mxu0 0.0
        %3619 = vmatpush2.msra.mxu0 0.0
        %3620 = vmatprep.subr.mxu0 0.0
        %3621 = vmatpush2.msra.mxu0 0.0
        %3622 = vmatprep.subr.mxu0 0.0
        %3623 = vmatpush2.msra.mxu0 0.0
        %3624 = vmatprep.subr.mxu0 0.0
        %3625 = vmatpush2.msra.mxu0 0.0
        %3626 = vmatprep.subr.mxu0 0.0
        %3627 = vmatpush2.msra.mxu0 0.0
        %3628 = vmatprep.subr.mxu0 0.0
        %3629 = vmatpush2.msra.mxu0 0.0
        %3630 = vmatprep.subr.mxu0 0.0
        %3631 = vmatpush2.msra.mxu0 0.0
        %3632 = vmatprep.subr.mxu0 0.0
        %3633 = vmatpush2.msra.mxu0 0.0
        %3634 = vmatprep.subr.mxu0 0.0
        %3635 = vmatpush2.msra.mxu0 0.0
        %3636 = vmatprep.subr.mxu0 0.0
        %3637 = vmatpush2.msra.mxu0 0.0
        %3638 = vmatprep.subr.mxu0 0.0
        %3639 = vmatpush2.msra.mxu0 0.0
        %3640 = vmatprep.subr.mxu0 0.0
        %3641 = vmatpush2.msra.mxu0 0.0
        %3642 = vmatprep.subr.mxu0 0.0
        %3643 = vmatpush2.msra.mxu0 0.0
        %3644 = vmatprep.subr.mxu0 0.0
        %3645 = vmatpush2.msra.mxu0 0.0
        %3646 = vmatprep.mubr.f32.mxu0 0.0
        %3647 = vmatmul.mubr.f32.gmra.mxu0 %v3501
        %v3648 = vpop.f32.mrf.mxu0
        %v3649 = vadd.f32 0.0, %v3648
        %v3650 = vpop.f32.mrf.mxu0
        %3651 = vdwg.mxu0
        %s3652 = scalar_lea.vmem [#allocation19], 128
        %v3653 = vld [vmem:[%s3652] sm:$0xff]
        %v3654 = vld [vmem:[%s3652 + $0x8] sm:$0xff]
        %v3655 = vld [vmem:[%s3652 + $0x10] sm:$0xff]
        %v3656 = vld [vmem:[%s3652 + $0x18] sm:$0xff]
        %v3657 = vld [vmem:[%s3652 + $0x20] sm:$0xff]
        %v3658 = vld [vmem:[%s3652 + $0x28] sm:$0xff]
        %v3659 = vld [vmem:[%s3652 + $0x30] sm:$0xff]
        %v3660 = vld [vmem:[%s3652 + $0x38] sm:$0xff]
        %3661 = vmatprep.subr.mxu0 0.0
        %3662 = vmatpush1.msra.mxu0 0.0
        %3663 = vmatprep.subr.mxu0 0.0
        %3664 = vmatpush1.msra.mxu0 0.0
        %3665 = vmatprep.subr.mxu0 0.0
        %3666 = vmatpush1.msra.mxu0 0.0
        %3667 = vmatprep.subr.mxu0 0.0
        %3668 = vmatpush1.msra.mxu0 0.0
        %3669 = vmatprep.subr.mxu0 0.0
        %3670 = vmatpush1.msra.mxu0 0.0
        %3671 = vmatprep.subr.mxu0 0.0
        %3672 = vmatpush1.msra.mxu0 0.0
        %3673 = vmatprep.subr.mxu0 0.0
        %3674 = vmatpush1.msra.mxu0 0.0
        %3675 = vmatprep.subr.mxu0 0.0
        %3676 = vmatpush1.msra.mxu0 0.0
        %3677 = vmatprep.subr.mxu0 0.0
        %3678 = vmatpush1.msra.mxu0 %v3660
        %3679 = vmatprep.subr.mxu0 0.0
        %3680 = vmatpush1.msra.mxu0 %v3659
        %3681 = vmatprep.subr.mxu0 0.0
        %3682 = vmatpush1.msra.mxu0 %v3658
        %3683 = vmatprep.subr.mxu0 0.0
        %3684 = vmatpush1.msra.mxu0 %v3657
        %3685 = vmatprep.subr.mxu0 0.0
        %3686 = vmatpush1.msra.mxu0 %v3656
        %3687 = vmatprep.subr.mxu0 0.0
        %3688 = vmatpush1.msra.mxu0 %v3655
        %3689 = vmatprep.subr.mxu0 0.0
        %3690 = vmatpush1.msra.mxu0 %v3654
        %3691 = vmatprep.subr.mxu0 0.0
        %3692 = vmatpush1.msra.mxu0 %v3653
        %3693 = vmatprep.subr.mxu0 0.0
        %3694 = vmatpush2.msra.mxu0 0.0
        %3695 = vmatprep.subr.mxu0 0.0
        %3696 = vmatpush2.msra.mxu0 0.0
        %3697 = vmatprep.subr.mxu0 0.0
        %3698 = vmatpush2.msra.mxu0 0.0
        %3699 = vmatprep.subr.mxu0 0.0
        %3700 = vmatpush2.msra.mxu0 0.0
        %3701 = vmatprep.subr.mxu0 0.0
        %3702 = vmatpush2.msra.mxu0 0.0
        %3703 = vmatprep.subr.mxu0 0.0
        %3704 = vmatpush2.msra.mxu0 0.0
        %3705 = vmatprep.subr.mxu0 0.0
        %3706 = vmatpush2.msra.mxu0 0.0
        %3707 = vmatprep.subr.mxu0 0.0
        %3708 = vmatpush2.msra.mxu0 0.0
        %3709 = vmatprep.subr.mxu0 0.0
        %3710 = vmatpush2.msra.mxu0 0.0
        %3711 = vmatprep.subr.mxu0 0.0
        %3712 = vmatpush2.msra.mxu0 0.0
        %3713 = vmatprep.subr.mxu0 0.0
        %3714 = vmatpush2.msra.mxu0 0.0
        %3715 = vmatprep.subr.mxu0 0.0
        %3716 = vmatpush2.msra.mxu0 0.0
        %3717 = vmatprep.subr.mxu0 0.0
        %3718 = vmatpush2.msra.mxu0 0.0
        %3719 = vmatprep.subr.mxu0 0.0
        %3720 = vmatpush2.msra.mxu0 0.0
        %3721 = vmatprep.subr.mxu0 0.0
        %3722 = vmatpush2.msra.mxu0 0.0
        %3723 = vmatprep.subr.mxu0 0.0
        %3724 = vmatpush2.msra.mxu0 0.0
        %3725 = vmatprep.mubr.f32.mxu0 0.0
        %3726 = vmatmul.mubr.f32.gmra.mxu0 %v3501
        %v3727 = vpop.f32.mrf.mxu0
        %v3728 = vadd.f32 0.0, %v3727
        %v3729 = vpop.f32.mrf.mxu0
        %3730 = vdwg.mxu0
        %v3731 = vld [vmem:[%s51] sm:$0x1]
        %v3733 = vlaneseq
        %v3734 = vshrl.u32 %v3733, 7
        %v3735 = vsub.s32 0, %v3734
        %v3736 = vrot.slane %v3731, %v3735
        %v3738 = vadd.f32 %v3736, %v3649
        %3739 = vmatprep.subr.mxu0 0.0
        %3740 = vmatpush1.msra.mxu0 0.0
        %3741 = vmatprep.subr.mxu0 0.0
        %3742 = vmatpush1.msra.mxu0 0.0
        %3743 = vmatprep.subr.mxu0 0.0
        %3744 = vmatpush1.msra.mxu0 0.0
        %3745 = vmatprep.subr.mxu0 0.0
        %3746 = vmatpush1.msra.mxu0 0.0
        %3747 = vmatprep.subr.mxu0 0.0
        %3748 = vmatpush1.msra.mxu0 0.0
        %3749 = vmatprep.subr.mxu0 0.0
        %3750 = vmatpush1.msra.mxu0 0.0
        %3751 = vmatprep.subr.mxu0 0.0
        %3752 = vmatpush1.msra.mxu0 0.0
        %3753 = vmatprep.subr.mxu0 0.0
        %3754 = vmatpush1.msra.mxu0 0.0
        %3755 = vmatprep.subr.mxu0 0.0
        %3756 = vmatpush1.msra.mxu0 0.0
        %3757 = vmatprep.subr.mxu0 0.0
        %3758 = vmatpush1.msra.mxu0 0.0
        %3759 = vmatprep.subr.mxu0 0.0
        %3760 = vmatpush1.msra.mxu0 0.0
        %3761 = vmatprep.subr.mxu0 0.0
        %3762 = vmatpush1.msra.mxu0 0.0
        %3763 = vmatprep.subr.mxu0 0.0
        %3764 = vmatpush1.msra.mxu0 0.0
        %3765 = vmatprep.subr.mxu0 0.0
        %3766 = vmatpush1.msra.mxu0 0.0
        %3767 = vmatprep.subr.mxu0 0.0
        %3768 = vmatpush1.msra.mxu0 0.0
        %3769 = vmatprep.subr.mxu0 0.0
        %3770 = vmatpush1.msra.mxu0 %v3570
        %3771 = vmatprep.subr.mxu0 0.0
        %3772 = vmatpush2.msra.mxu0 0.0
        %3773 = vmatprep.subr.mxu0 0.0
        %3774 = vmatpush2.msra.mxu0 0.0
        %3775 = vmatprep.subr.mxu0 0.0
        %3776 = vmatpush2.msra.mxu0 0.0
        %3777 = vmatprep.subr.mxu0 0.0
        %3778 = vmatpush2.msra.mxu0 0.0
        %3779 = vmatprep.subr.mxu0 0.0
        %3780 = vmatpush2.msra.mxu0 0.0
        %3781 = vmatprep.subr.mxu0 0.0
        %3782 = vmatpush2.msra.mxu0 0.0
        %3783 = vmatprep.subr.mxu0 0.0
        %3784 = vmatpush2.msra.mxu0 0.0
        %3785 = vmatprep.subr.mxu0 0.0
        %3786 = vmatpush2.msra.mxu0 0.0
        %3787 = vmatprep.subr.mxu0 0.0
        %3788 = vmatpush2.msra.mxu0 0.0
        %3789 = vmatprep.subr.mxu0 0.0
        %3790 = vmatpush2.msra.mxu0 0.0
        %3791 = vmatprep.subr.mxu0 0.0
        %3792 = vmatpush2.msra.mxu0 0.0
        %3793 = vmatprep.subr.mxu0 0.0
        %3794 = vmatpush2.msra.mxu0 0.0
        %3795 = vmatprep.subr.mxu0 0.0
        %3796 = vmatpush2.msra.mxu0 0.0
        %3797 = vmatprep.subr.mxu0 0.0
        %3798 = vmatpush2.msra.mxu0 0.0
        %3799 = vmatprep.subr.mxu0 0.0
        %3800 = vmatpush2.msra.mxu0 0.0
        %3801 = vmatprep.subr.mxu0 0.0
        %3802 = vmatpush2.msra.mxu0 0.0
        %3803 = vmatprep.mubr.f32.mxu0 0.0
        %3804 = vmatmul.mubr.f32.gmra.mxu0 %v2954
        %v3805 = vpop.f32.mrf.mxu0
        %v3806 = vadd.f32 0.0, %v3805
        %v3807 = vpop.f32.mrf.mxu0
        %3808 = vdwg.mxu0
        %v3809 = vadd.f32 %v3738, %v3806
        %3810 = vmatprep.subr.mxu0 0.0
        %3811 = vmatpush1.msra.mxu0 0.0
        %3812 = vmatprep.subr.mxu0 0.0
        %3813 = vmatpush1.msra.mxu0 0.0
        %3814 = vmatprep.subr.mxu0 0.0
        %3815 = vmatpush1.msra.mxu0 0.0
        %3816 = vmatprep.subr.mxu0 0.0
        %3817 = vmatpush1.msra.mxu0 0.0
        %3818 = vmatprep.subr.mxu0 0.0
        %3819 = vmatpush1.msra.mxu0 0.0
        %3820 = vmatprep.subr.mxu0 0.0
        %3821 = vmatpush1.msra.mxu0 0.0
        %3822 = vmatprep.subr.mxu0 0.0
        %3823 = vmatpush1.msra.mxu0 0.0
        %3824 = vmatprep.subr.mxu0 0.0
        %3825 = vmatpush1.msra.mxu0 0.0
        %3826 = vmatprep.subr.mxu0 0.0
        %3827 = vmatpush1.msra.mxu0 0.0
        %3828 = vmatprep.subr.mxu0 0.0
        %3829 = vmatpush1.msra.mxu0 0.0
        %3830 = vmatprep.subr.mxu0 0.0
        %3831 = vmatpush1.msra.mxu0 0.0
        %3832 = vmatprep.subr.mxu0 0.0
        %3833 = vmatpush1.msra.mxu0 0.0
        %3834 = vmatprep.subr.mxu0 0.0
        %3835 = vmatpush1.msra.mxu0 0.0
        %3836 = vmatprep.subr.mxu0 0.0
        %3837 = vmatpush1.msra.mxu0 0.0
        %3838 = vmatprep.subr.mxu0 0.0
        %3839 = vmatpush1.msra.mxu0 0.0
        %3840 = vmatprep.subr.mxu0 0.0
        %3841 = vmatpush1.msra.mxu0 %v3728
        %3842 = vmatprep.subr.mxu0 0.0
        %3843 = vmatpush2.msra.mxu0 0.0
        %3844 = vmatprep.subr.mxu0 0.0
        %3845 = vmatpush2.msra.mxu0 0.0
        %3846 = vmatprep.subr.mxu0 0.0
        %3847 = vmatpush2.msra.mxu0 0.0
        %3848 = vmatprep.subr.mxu0 0.0
        %3849 = vmatpush2.msra.mxu0 0.0
        %3850 = vmatprep.subr.mxu0 0.0
        %3851 = vmatpush2.msra.mxu0 0.0
        %3852 = vmatprep.subr.mxu0 0.0
        %3853 = vmatpush2.msra.mxu0 0.0
        %3854 = vmatprep.subr.mxu0 0.0
        %3855 = vmatpush2.msra.mxu0 0.0
        %3856 = vmatprep.subr.mxu0 0.0
        %3857 = vmatpush2.msra.mxu0 0.0
        %3858 = vmatprep.subr.mxu0 0.0
        %3859 = vmatpush2.msra.mxu0 0.0
        %3860 = vmatprep.subr.mxu0 0.0
        %3861 = vmatpush2.msra.mxu0 0.0
        %3862 = vmatprep.subr.mxu0 0.0
        %3863 = vmatpush2.msra.mxu0 0.0
        %3864 = vmatprep.subr.mxu0 0.0
        %3865 = vmatpush2.msra.mxu0 0.0
        %3866 = vmatprep.subr.mxu0 0.0
        %3867 = vmatpush2.msra.mxu0 0.0
        %3868 = vmatprep.subr.mxu0 0.0
        %3869 = vmatpush2.msra.mxu0 0.0
        %3870 = vmatprep.subr.mxu0 0.0
        %3871 = vmatpush2.msra.mxu0 0.0
        %3872 = vmatprep.subr.mxu0 0.0
        %3873 = vmatpush2.msra.mxu0 0.0
        %3874 = vmatprep.mubr.f32.mxu0 0.0
        %3875 = vmatmul.mubr.f32.gmra.mxu0 %v3028
        %v3876 = vpop.f32.mrf.mxu0
        %v3877 = vadd.f32 0.0, %v3876
        %v3878 = vpop.f32.mrf.mxu0
        %3879 = vdwg.mxu0
        %v3880 = vadd.f32 %v3809, %v3877
        %v3881 = vmax.f32 %v3880, 0.0
        %v3882 = vld [vmem:[#allocation21] sm:$0xff]
        %v3883 = vld [vmem:[#allocation21 + $0x8] sm:$0xff]
        %v3884 = vld [vmem:[#allocation21 + $0x10] sm:$0xff]
        %v3885 = vld [vmem:[#allocation21 + $0x18] sm:$0xff]
        %v3886 = vld [vmem:[#allocation21 + $0x20] sm:$0xff]
        %v3887 = vld [vmem:[#allocation21 + $0x28] sm:$0xff]
        %v3888 = vld [vmem:[#allocation21 + $0x30] sm:$0xff]
        %v3889 = vld [vmem:[#allocation21 + $0x38] sm:$0xff]
        %v3891 = vsel %vm2712, %v3881, 0
        %3893 = vmatprep.subr.mxu0 0.0
        %3894 = vmatpush1.msra.mxu0 0.0
        %3895 = vmatprep.subr.mxu0 0.0
        %3896 = vmatpush1.msra.mxu0 0.0
        %3897 = vmatprep.subr.mxu0 0.0
        %3898 = vmatpush1.msra.mxu0 0.0
        %3899 = vmatprep.subr.mxu0 0.0
        %3900 = vmatpush1.msra.mxu0 0.0
        %3901 = vmatprep.subr.mxu0 0.0
        %3902 = vmatpush1.msra.mxu0 0.0
        %3903 = vmatprep.subr.mxu0 0.0
        %3904 = vmatpush1.msra.mxu0 0.0
        %3905 = vmatprep.subr.mxu0 0.0
        %3906 = vmatpush1.msra.mxu0 0.0
        %3907 = vmatprep.subr.mxu0 0.0
        %3908 = vmatpush1.msra.mxu0 0.0
        %3909 = vmatprep.subr.mxu0 0.0
        %3910 = vmatpush1.msra.mxu0 %v3889
        %3911 = vmatprep.subr.mxu0 0.0
        %3912 = vmatpush1.msra.mxu0 %v3888
        %3913 = vmatprep.subr.mxu0 0.0
        %3914 = vmatpush1.msra.mxu0 %v3887
        %3915 = vmatprep.subr.mxu0 0.0
        %3916 = vmatpush1.msra.mxu0 %v3886
        %3917 = vmatprep.subr.mxu0 0.0
        %3918 = vmatpush1.msra.mxu0 %v3885
        %3919 = vmatprep.subr.mxu0 0.0
        %3920 = vmatpush1.msra.mxu0 %v3884
        %3921 = vmatprep.subr.mxu0 0.0
        %3922 = vmatpush1.msra.mxu0 %v3883
        %3923 = vmatprep.subr.mxu0 0.0
        %3924 = vmatpush1.msra.mxu0 %v3882
        %3925 = vmatprep.subr.mxu0 0.0
        %3926 = vmatpush2.msra.mxu0 0.0
        %3927 = vmatprep.subr.mxu0 0.0
        %3928 = vmatpush2.msra.mxu0 0.0
        %3929 = vmatprep.subr.mxu0 0.0
        %3930 = vmatpush2.msra.mxu0 0.0
        %3931 = vmatprep.subr.mxu0 0.0
        %3932 = vmatpush2.msra.mxu0 0.0
        %3933 = vmatprep.subr.mxu0 0.0
        %3934 = vmatpush2.msra.mxu0 0.0
        %3935 = vmatprep.subr.mxu0 0.0
        %3936 = vmatpush2.msra.mxu0 0.0
        %3937 = vmatprep.subr.mxu0 0.0
        %3938 = vmatpush2.msra.mxu0 0.0
        %3939 = vmatprep.subr.mxu0 0.0
        %3940 = vmatpush2.msra.mxu0 0.0
        %3941 = vmatprep.subr.mxu0 0.0
        %3942 = vmatpush2.msra.mxu0 0.0
        %3943 = vmatprep.subr.mxu0 0.0
        %3944 = vmatpush2.msra.mxu0 0.0
        %3945 = vmatprep.subr.mxu0 0.0
        %3946 = vmatpush2.msra.mxu0 0.0
        %3947 = vmatprep.subr.mxu0 0.0
        %3948 = vmatpush2.msra.mxu0 0.0
        %3949 = vmatprep.subr.mxu0 0.0
        %3950 = vmatpush2.msra.mxu0 0.0
        %3951 = vmatprep.subr.mxu0 0.0
        %3952 = vmatpush2.msra.mxu0 0.0
        %3953 = vmatprep.subr.mxu0 0.0
        %3954 = vmatpush2.msra.mxu0 0.0
        %3955 = vmatprep.subr.mxu0 0.0
        %3956 = vmatpush2.msra.mxu0 0.0
        %3957 = vmatprep.mubr.f32.mxu0 0.0
        %3958 = vmatmul.mubr.f32.gmra.mxu0 %v3891
        %v3959 = vpop.f32.mrf.mxu0
        %v3960 = vadd.f32 0.0, %v3959
        %v3961 = vpop.f32.mrf.mxu0
        %3962 = vdwg.mxu0
        %s3963 = scalar_lea.vmem [#allocation21], 64
        %v3964 = vld [vmem:[%s3963] sm:$0xff]
        %v3965 = vld [vmem:[%s3963 + $0x8] sm:$0xff]
        %v3966 = vld [vmem:[%s3963 + $0x10] sm:$0xff]
        %v3967 = vld [vmem:[%s3963 + $0x18] sm:$0xff]
        %v3968 = vld [vmem:[%s3963 + $0x20] sm:$0xff]
        %v3969 = vld [vmem:[%s3963 + $0x28] sm:$0xff]
        %v3970 = vld [vmem:[%s3963 + $0x30] sm:$0xff]
        %v3971 = vld [vmem:[%s3963 + $0x38] sm:$0xff]
        %3972 = vmatprep.subr.mxu0 0.0
        %3973 = vmatpush1.msra.mxu0 0.0
        %3974 = vmatprep.subr.mxu0 0.0
        %3975 = vmatpush1.msra.mxu0 0.0
        %3976 = vmatprep.subr.mxu0 0.0
        %3977 = vmatpush1.msra.mxu0 0.0
        %3978 = vmatprep.subr.mxu0 0.0
        %3979 = vmatpush1.msra.mxu0 0.0
        %3980 = vmatprep.subr.mxu0 0.0
        %3981 = vmatpush1.msra.mxu0 0.0
        %3982 = vmatprep.subr.mxu0 0.0
        %3983 = vmatpush1.msra.mxu0 0.0
        %3984 = vmatprep.subr.mxu0 0.0
        %3985 = vmatpush1.msra.mxu0 0.0
        %3986 = vmatprep.subr.mxu0 0.0
        %3987 = vmatpush1.msra.mxu0 0.0
        %3988 = vmatprep.subr.mxu0 0.0
        %3989 = vmatpush1.msra.mxu0 %v3971
        %3990 = vmatprep.subr.mxu0 0.0
        %3991 = vmatpush1.msra.mxu0 %v3970
        %3992 = vmatprep.subr.mxu0 0.0
        %3993 = vmatpush1.msra.mxu0 %v3969
        %3994 = vmatprep.subr.mxu0 0.0
        %3995 = vmatpush1.msra.mxu0 %v3968
        %3996 = vmatprep.subr.mxu0 0.0
        %3997 = vmatpush1.msra.mxu0 %v3967
        %3998 = vmatprep.subr.mxu0 0.0
        %3999 = vmatpush1.msra.mxu0 %v3966
        %4000 = vmatprep.subr.mxu0 0.0
        %4001 = vmatpush1.msra.mxu0 %v3965
        %4002 = vmatprep.subr.mxu0 0.0
        %4003 = vmatpush1.msra.mxu0 %v3964
        %4004 = vmatprep.subr.mxu0 0.0
        %4005 = vmatpush2.msra.mxu0 0.0
        %4006 = vmatprep.subr.mxu0 0.0
        %4007 = vmatpush2.msra.mxu0 0.0
        %4008 = vmatprep.subr.mxu0 0.0
        %4009 = vmatpush2.msra.mxu0 0.0
        %4010 = vmatprep.subr.mxu0 0.0
        %4011 = vmatpush2.msra.mxu0 0.0
        %4012 = vmatprep.subr.mxu0 0.0
        %4013 = vmatpush2.msra.mxu0 0.0
        %4014 = vmatprep.subr.mxu0 0.0
        %4015 = vmatpush2.msra.mxu0 0.0
        %4016 = vmatprep.subr.mxu0 0.0
        %4017 = vmatpush2.msra.mxu0 0.0
        %4018 = vmatprep.subr.mxu0 0.0
        %4019 = vmatpush2.msra.mxu0 0.0
        %4020 = vmatprep.subr.mxu0 0.0
        %4021 = vmatpush2.msra.mxu0 0.0
        %4022 = vmatprep.subr.mxu0 0.0
        %4023 = vmatpush2.msra.mxu0 0.0
        %4024 = vmatprep.subr.mxu0 0.0
        %4025 = vmatpush2.msra.mxu0 0.0
        %4026 = vmatprep.subr.mxu0 0.0
        %4027 = vmatpush2.msra.mxu0 0.0
        %4028 = vmatprep.subr.mxu0 0.0
        %4029 = vmatpush2.msra.mxu0 0.0
        %4030 = vmatprep.subr.mxu0 0.0
        %4031 = vmatpush2.msra.mxu0 0.0
        %4032 = vmatprep.subr.mxu0 0.0
        %4033 = vmatpush2.msra.mxu0 0.0
        %4034 = vmatprep.subr.mxu0 0.0
        %4035 = vmatpush2.msra.mxu0 0.0
        %4036 = vmatprep.mubr.f32.mxu0 0.0
        %4037 = vmatmul.mubr.f32.gmra.mxu0 %v3891
        %v4038 = vpop.f32.mrf.mxu0
        %v4039 = vadd.f32 0.0, %v4038
        %v4040 = vpop.f32.mrf.mxu0
        %4041 = vdwg.mxu0
        %s4042 = scalar_lea.vmem [#allocation21], 128
        %v4043 = vld [vmem:[%s4042] sm:$0xff]
        %v4044 = vld [vmem:[%s4042 + $0x8] sm:$0xff]
        %v4045 = vld [vmem:[%s4042 + $0x10] sm:$0xff]
        %v4046 = vld [vmem:[%s4042 + $0x18] sm:$0xff]
        %v4047 = vld [vmem:[%s4042 + $0x20] sm:$0xff]
        %v4048 = vld [vmem:[%s4042 + $0x28] sm:$0xff]
        %v4049 = vld [vmem:[%s4042 + $0x30] sm:$0xff]
        %v4050 = vld [vmem:[%s4042 + $0x38] sm:$0xff]
        %4051 = vmatprep.subr.mxu0 0.0
        %4052 = vmatpush1.msra.mxu0 0.0
        %4053 = vmatprep.subr.mxu0 0.0
        %4054 = vmatpush1.msra.mxu0 0.0
        %4055 = vmatprep.subr.mxu0 0.0
        %4056 = vmatpush1.msra.mxu0 0.0
        %4057 = vmatprep.subr.mxu0 0.0
        %4058 = vmatpush1.msra.mxu0 0.0
        %4059 = vmatprep.subr.mxu0 0.0
        %4060 = vmatpush1.msra.mxu0 0.0
        %4061 = vmatprep.subr.mxu0 0.0
        %4062 = vmatpush1.msra.mxu0 0.0
        %4063 = vmatprep.subr.mxu0 0.0
        %4064 = vmatpush1.msra.mxu0 0.0
        %4065 = vmatprep.subr.mxu0 0.0
        %4066 = vmatpush1.msra.mxu0 0.0
        %4067 = vmatprep.subr.mxu0 0.0
        %4068 = vmatpush1.msra.mxu0 %v4050
        %4069 = vmatprep.subr.mxu0 0.0
        %4070 = vmatpush1.msra.mxu0 %v4049
        %4071 = vmatprep.subr.mxu0 0.0
        %4072 = vmatpush1.msra.mxu0 %v4048
        %4073 = vmatprep.subr.mxu0 0.0
        %4074 = vmatpush1.msra.mxu0 %v4047
        %4075 = vmatprep.subr.mxu0 0.0
        %4076 = vmatpush1.msra.mxu0 %v4046
        %4077 = vmatprep.subr.mxu0 0.0
        %4078 = vmatpush1.msra.mxu0 %v4045
        %4079 = vmatprep.subr.mxu0 0.0
        %4080 = vmatpush1.msra.mxu0 %v4044
        %4081 = vmatprep.subr.mxu0 0.0
        %4082 = vmatpush1.msra.mxu0 %v4043
        %4083 = vmatprep.subr.mxu0 0.0
        %4084 = vmatpush2.msra.mxu0 0.0
        %4085 = vmatprep.subr.mxu0 0.0
        %4086 = vmatpush2.msra.mxu0 0.0
        %4087 = vmatprep.subr.mxu0 0.0
        %4088 = vmatpush2.msra.mxu0 0.0
        %4089 = vmatprep.subr.mxu0 0.0
        %4090 = vmatpush2.msra.mxu0 0.0
        %4091 = vmatprep.subr.mxu0 0.0
        %4092 = vmatpush2.msra.mxu0 0.0
        %4093 = vmatprep.subr.mxu0 0.0
        %4094 = vmatpush2.msra.mxu0 0.0
        %4095 = vmatprep.subr.mxu0 0.0
        %4096 = vmatpush2.msra.mxu0 0.0
        %4097 = vmatprep.subr.mxu0 0.0
        %4098 = vmatpush2.msra.mxu0 0.0
        %4099 = vmatprep.subr.mxu0 0.0
        %4100 = vmatpush2.msra.mxu0 0.0
        %4101 = vmatprep.subr.mxu0 0.0
        %4102 = vmatpush2.msra.mxu0 0.0
        %4103 = vmatprep.subr.mxu0 0.0
        %4104 = vmatpush2.msra.mxu0 0.0
        %4105 = vmatprep.subr.mxu0 0.0
        %4106 = vmatpush2.msra.mxu0 0.0
        %4107 = vmatprep.subr.mxu0 0.0
        %4108 = vmatpush2.msra.mxu0 0.0
        %4109 = vmatprep.subr.mxu0 0.0
        %4110 = vmatpush2.msra.mxu0 0.0
        %4111 = vmatprep.subr.mxu0 0.0
        %4112 = vmatpush2.msra.mxu0 0.0
        %4113 = vmatprep.subr.mxu0 0.0
        %4114 = vmatpush2.msra.mxu0 0.0
        %4115 = vmatprep.mubr.f32.mxu0 0.0
        %4116 = vmatmul.mubr.f32.gmra.mxu0 %v3891
        %v4117 = vpop.f32.mrf.mxu0
        %v4118 = vadd.f32 0.0, %v4117
        %v4119 = vpop.f32.mrf.mxu0
        %4120 = vdwg.mxu0
        %v4121 = vld [vmem:[#allocation22] sm:$0x1]
        %v4123 = vlaneseq
        %v4124 = vshrl.u32 %v4123, 7
        %v4125 = vsub.s32 0, %v4124
        %v4126 = vrot.slane %v4121, %v4125
        %v4128 = vadd.f32 %v4126, %v4039
        %4129 = vmatprep.subr.mxu0 0.0
        %4130 = vmatpush1.msra.mxu0 0.0
        %4131 = vmatprep.subr.mxu0 0.0
        %4132 = vmatpush1.msra.mxu0 0.0
        %4133 = vmatprep.subr.mxu0 0.0
        %4134 = vmatpush1.msra.mxu0 0.0
        %4135 = vmatprep.subr.mxu0 0.0
        %4136 = vmatpush1.msra.mxu0 0.0
        %4137 = vmatprep.subr.mxu0 0.0
        %4138 = vmatpush1.msra.mxu0 0.0
        %4139 = vmatprep.subr.mxu0 0.0
        %4140 = vmatpush1.msra.mxu0 0.0
        %4141 = vmatprep.subr.mxu0 0.0
        %4142 = vmatpush1.msra.mxu0 0.0
        %4143 = vmatprep.subr.mxu0 0.0
        %4144 = vmatpush1.msra.mxu0 0.0
        %4145 = vmatprep.subr.mxu0 0.0
        %4146 = vmatpush1.msra.mxu0 0.0
        %4147 = vmatprep.subr.mxu0 0.0
        %4148 = vmatpush1.msra.mxu0 0.0
        %4149 = vmatprep.subr.mxu0 0.0
        %4150 = vmatpush1.msra.mxu0 0.0
        %4151 = vmatprep.subr.mxu0 0.0
        %4152 = vmatpush1.msra.mxu0 0.0
        %4153 = vmatprep.subr.mxu0 0.0
        %4154 = vmatpush1.msra.mxu0 0.0
        %4155 = vmatprep.subr.mxu0 0.0
        %4156 = vmatpush1.msra.mxu0 0.0
        %4157 = vmatprep.subr.mxu0 0.0
        %4158 = vmatpush1.msra.mxu0 0.0
        %4159 = vmatprep.subr.mxu0 0.0
        %4160 = vmatpush1.msra.mxu0 %v3960
        %4161 = vmatprep.subr.mxu0 0.0
        %4162 = vmatpush2.msra.mxu0 0.0
        %4163 = vmatprep.subr.mxu0 0.0
        %4164 = vmatpush2.msra.mxu0 0.0
        %4165 = vmatprep.subr.mxu0 0.0
        %4166 = vmatpush2.msra.mxu0 0.0
        %4167 = vmatprep.subr.mxu0 0.0
        %4168 = vmatpush2.msra.mxu0 0.0
        %4169 = vmatprep.subr.mxu0 0.0
        %4170 = vmatpush2.msra.mxu0 0.0
        %4171 = vmatprep.subr.mxu0 0.0
        %4172 = vmatpush2.msra.mxu0 0.0
        %4173 = vmatprep.subr.mxu0 0.0
        %4174 = vmatpush2.msra.mxu0 0.0
        %4175 = vmatprep.subr.mxu0 0.0
        %4176 = vmatpush2.msra.mxu0 0.0
        %4177 = vmatprep.subr.mxu0 0.0
        %4178 = vmatpush2.msra.mxu0 0.0
        %4179 = vmatprep.subr.mxu0 0.0
        %4180 = vmatpush2.msra.mxu0 0.0
        %4181 = vmatprep.subr.mxu0 0.0
        %4182 = vmatpush2.msra.mxu0 0.0
        %4183 = vmatprep.subr.mxu0 0.0
        %4184 = vmatpush2.msra.mxu0 0.0
        %4185 = vmatprep.subr.mxu0 0.0
        %4186 = vmatpush2.msra.mxu0 0.0
        %4187 = vmatprep.subr.mxu0 0.0
        %4188 = vmatpush2.msra.mxu0 0.0
        %4189 = vmatprep.subr.mxu0 0.0
        %4190 = vmatpush2.msra.mxu0 0.0
        %4191 = vmatprep.subr.mxu0 0.0
        %4192 = vmatpush2.msra.mxu0 0.0
        %4193 = vmatprep.mubr.f32.mxu0 0.0
        %4194 = vmatmul.mubr.f32.gmra.mxu0 %v2954
        %v4195 = vpop.f32.mrf.mxu0
        %v4196 = vadd.f32 0.0, %v4195
        %v4197 = vpop.f32.mrf.mxu0
        %4198 = vdwg.mxu0
        %v4199 = vadd.f32 %v4128, %v4196
        %4200 = vmatprep.subr.mxu0 0.0
        %4201 = vmatpush1.msra.mxu0 0.0
        %4202 = vmatprep.subr.mxu0 0.0
        %4203 = vmatpush1.msra.mxu0 0.0
        %4204 = vmatprep.subr.mxu0 0.0
        %4205 = vmatpush1.msra.mxu0 0.0
        %4206 = vmatprep.subr.mxu0 0.0
        %4207 = vmatpush1.msra.mxu0 0.0
        %4208 = vmatprep.subr.mxu0 0.0
        %4209 = vmatpush1.msra.mxu0 0.0
        %4210 = vmatprep.subr.mxu0 0.0
        %4211 = vmatpush1.msra.mxu0 0.0
        %4212 = vmatprep.subr.mxu0 0.0
        %4213 = vmatpush1.msra.mxu0 0.0
        %4214 = vmatprep.subr.mxu0 0.0
        %4215 = vmatpush1.msra.mxu0 0.0
        %4216 = vmatprep.subr.mxu0 0.0
        %4217 = vmatpush1.msra.mxu0 0.0
        %4218 = vmatprep.subr.mxu0 0.0
        %4219 = vmatpush1.msra.mxu0 0.0
        %4220 = vmatprep.subr.mxu0 0.0
        %4221 = vmatpush1.msra.mxu0 0.0
        %4222 = vmatprep.subr.mxu0 0.0
        %4223 = vmatpush1.msra.mxu0 0.0
        %4224 = vmatprep.subr.mxu0 0.0
        %4225 = vmatpush1.msra.mxu0 0.0
        %4226 = vmatprep.subr.mxu0 0.0
        %4227 = vmatpush1.msra.mxu0 0.0
        %4228 = vmatprep.subr.mxu0 0.0
        %4229 = vmatpush1.msra.mxu0 0.0
        %4230 = vmatprep.subr.mxu0 0.0
        %4231 = vmatpush1.msra.mxu0 %v4118
        %4232 = vmatprep.subr.mxu0 0.0
        %4233 = vmatpush2.msra.mxu0 0.0
        %4234 = vmatprep.subr.mxu0 0.0
        %4235 = vmatpush2.msra.mxu0 0.0
        %4236 = vmatprep.subr.mxu0 0.0
        %4237 = vmatpush2.msra.mxu0 0.0
        %4238 = vmatprep.subr.mxu0 0.0
        %4239 = vmatpush2.msra.mxu0 0.0
        %4240 = vmatprep.subr.mxu0 0.0
        %4241 = vmatpush2.msra.mxu0 0.0
        %4242 = vmatprep.subr.mxu0 0.0
        %4243 = vmatpush2.msra.mxu0 0.0
        %4244 = vmatprep.subr.mxu0 0.0
        %4245 = vmatpush2.msra.mxu0 0.0
        %4246 = vmatprep.subr.mxu0 0.0
        %4247 = vmatpush2.msra.mxu0 0.0
        %4248 = vmatprep.subr.mxu0 0.0
        %4249 = vmatpush2.msra.mxu0 0.0
        %4250 = vmatprep.subr.mxu0 0.0
        %4251 = vmatpush2.msra.mxu0 0.0
        %4252 = vmatprep.subr.mxu0 0.0
        %4253 = vmatpush2.msra.mxu0 0.0
        %4254 = vmatprep.subr.mxu0 0.0
        %4255 = vmatpush2.msra.mxu0 0.0
        %4256 = vmatprep.subr.mxu0 0.0
        %4257 = vmatpush2.msra.mxu0 0.0
        %4258 = vmatprep.subr.mxu0 0.0
        %4259 = vmatpush2.msra.mxu0 0.0
        %4260 = vmatprep.subr.mxu0 0.0
        %4261 = vmatpush2.msra.mxu0 0.0
        %4262 = vmatprep.subr.mxu0 0.0
        %4263 = vmatpush2.msra.mxu0 0.0
        %4264 = vmatprep.mubr.f32.mxu0 0.0
        %4265 = vmatmul.mubr.f32.gmra.mxu0 %v3028
        %v4266 = vpop.f32.mrf.mxu0
        %v4267 = vadd.f32 0.0, %v4266
        %v4268 = vpop.f32.mrf.mxu0
        %4269 = vdwg.mxu0
        %v4270 = vadd.f32 %v4199, %v4267
        %v4271 = vadd.f32 %v3491, %v4270
        %v4272 = vld [vmem:[#allocation9] sm:$0xf]
        %v4274 = vsel %vm2952, %v4272, 0
        %4276 = vmatprep.subr.mxu0 0.0
        %4277 = vmatpush1.msra.mxu0 0.0
        %4278 = vmatprep.subr.mxu0 0.0
        %4279 = vmatpush1.msra.mxu0 0.0
        %4280 = vmatprep.subr.mxu0 0.0
        %4281 = vmatpush1.msra.mxu0 0.0
        %4282 = vmatprep.subr.mxu0 0.0
        %4283 = vmatpush1.msra.mxu0 0.0
        %4284 = vmatprep.subr.mxu0 0.0
        %4285 = vmatpush1.msra.mxu0 0.0
        %4286 = vmatprep.subr.mxu0 0.0
        %4287 = vmatpush1.msra.mxu0 0.0
        %4288 = vmatprep.subr.mxu0 0.0
        %4289 = vmatpush1.msra.mxu0 0.0
        %4290 = vmatprep.subr.mxu0 0.0
        %4291 = vmatpush1.msra.mxu0 0.0
        %4292 = vmatprep.subr.mxu0 0.0
        %4293 = vmatpush1.msra.mxu0 0.0
        %4294 = vmatprep.subr.mxu0 0.0
        %4295 = vmatpush1.msra.mxu0 0.0
        %4296 = vmatprep.subr.mxu0 0.0
        %4297 = vmatpush1.msra.mxu0 0.0
        %4298 = vmatprep.subr.mxu0 0.0
        %4299 = vmatpush1.msra.mxu0 0.0
        %4300 = vmatprep.subr.mxu0 0.0
        %4301 = vmatpush1.msra.mxu0 0.0
        %4302 = vmatprep.subr.mxu0 0.0
        %4303 = vmatpush1.msra.mxu0 0.0
        %4304 = vmatprep.subr.mxu0 0.0
        %4305 = vmatpush1.msra.mxu0 0.0
        %4306 = vmatprep.subr.mxu0 0.0
        %4307 = vmatpush1.msra.mxu0 %v3491
        %4308 = vmatprep.subr.mxu0 0.0
        %4309 = vmatpush2.msra.mxu0 0.0
        %4310 = vmatprep.subr.mxu0 0.0
        %4311 = vmatpush2.msra.mxu0 0.0
        %4312 = vmatprep.subr.mxu0 0.0
        %4313 = vmatpush2.msra.mxu0 0.0
        %4314 = vmatprep.subr.mxu0 0.0
        %4315 = vmatpush2.msra.mxu0 0.0
        %4316 = vmatprep.subr.mxu0 0.0
        %4317 = vmatpush2.msra.mxu0 0.0
        %4318 = vmatprep.subr.mxu0 0.0
        %4319 = vmatpush2.msra.mxu0 0.0
        %4320 = vmatprep.subr.mxu0 0.0
        %4321 = vmatpush2.msra.mxu0 0.0
        %4322 = vmatprep.subr.mxu0 0.0
        %4323 = vmatpush2.msra.mxu0 0.0
        %4324 = vmatprep.subr.mxu0 0.0
        %4325 = vmatpush2.msra.mxu0 0.0
        %4326 = vmatprep.subr.mxu0 0.0
        %4327 = vmatpush2.msra.mxu0 0.0
        %4328 = vmatprep.subr.mxu0 0.0
        %4329 = vmatpush2.msra.mxu0 0.0
        %4330 = vmatprep.subr.mxu0 0.0
        %4331 = vmatpush2.msra.mxu0 0.0
        %4332 = vmatprep.subr.mxu0 0.0
        %4333 = vmatpush2.msra.mxu0 0.0
        %4334 = vmatprep.subr.mxu0 0.0
        %4335 = vmatpush2.msra.mxu0 0.0
        %4336 = vmatprep.subr.mxu0 0.0
        %4337 = vmatpush2.msra.mxu0 0.0
        %4338 = vmatprep.subr.mxu0 0.0
        %4339 = vmatpush2.msra.mxu0 0.0
        %4340 = vmatprep.mubr.f32.mxu0 0.0
        %4341 = vmatmul.mubr.f32.gmra.mxu0 %v4274
        %v4342 = vpop.f32.mrf.mxu0
        %v4343 = vadd.f32 0.0, %v4342
        %v4344 = vpop.f32.mrf.mxu0
        %4345 = vdwg.mxu0
        %s4346 = scalar_lea.vmem [#allocation9], 4
        %v4347 = vld [vmem:[%s4346] sm:$0xf]
        %v4349 = vsel %vm2952, %v4347, 0
        %4351 = vmatprep.subr.mxu0 0.0
        %4352 = vmatpush1.msra.mxu0 0.0
        %4353 = vmatprep.subr.mxu0 0.0
        %4354 = vmatpush1.msra.mxu0 0.0
        %4355 = vmatprep.subr.mxu0 0.0
        %4356 = vmatpush1.msra.mxu0 0.0
        %4357 = vmatprep.subr.mxu0 0.0
        %4358 = vmatpush1.msra.mxu0 0.0
        %4359 = vmatprep.subr.mxu0 0.0
        %4360 = vmatpush1.msra.mxu0 0.0
        %4361 = vmatprep.subr.mxu0 0.0
        %4362 = vmatpush1.msra.mxu0 0.0
        %4363 = vmatprep.subr.mxu0 0.0
        %4364 = vmatpush1.msra.mxu0 0.0
        %4365 = vmatprep.subr.mxu0 0.0
        %4366 = vmatpush1.msra.mxu0 0.0
        %4367 = vmatprep.subr.mxu0 0.0
        %4368 = vmatpush1.msra.mxu0 0.0
        %4369 = vmatprep.subr.mxu0 0.0
        %4370 = vmatpush1.msra.mxu0 0.0
        %4371 = vmatprep.subr.mxu0 0.0
        %4372 = vmatpush1.msra.mxu0 0.0
        %4373 = vmatprep.subr.mxu0 0.0
        %4374 = vmatpush1.msra.mxu0 0.0
        %4375 = vmatprep.subr.mxu0 0.0
        %4376 = vmatpush1.msra.mxu0 0.0
        %4377 = vmatprep.subr.mxu0 0.0
        %4378 = vmatpush1.msra.mxu0 0.0
        %4379 = vmatprep.subr.mxu0 0.0
        %4380 = vmatpush1.msra.mxu0 0.0
        %4381 = vmatprep.subr.mxu0 0.0
        %4382 = vmatpush1.msra.mxu0 %v3491
        %4383 = vmatprep.subr.mxu0 0.0
        %4384 = vmatpush2.msra.mxu0 0.0
        %4385 = vmatprep.subr.mxu0 0.0
        %4386 = vmatpush2.msra.mxu0 0.0
        %4387 = vmatprep.subr.mxu0 0.0
        %4388 = vmatpush2.msra.mxu0 0.0
        %4389 = vmatprep.subr.mxu0 0.0
        %4390 = vmatpush2.msra.mxu0 0.0
        %4391 = vmatprep.subr.mxu0 0.0
        %4392 = vmatpush2.msra.mxu0 0.0
        %4393 = vmatprep.subr.mxu0 0.0
        %4394 = vmatpush2.msra.mxu0 0.0
        %4395 = vmatprep.subr.mxu0 0.0
        %4396 = vmatpush2.msra.mxu0 0.0
        %4397 = vmatprep.subr.mxu0 0.0
        %4398 = vmatpush2.msra.mxu0 0.0
        %4399 = vmatprep.subr.mxu0 0.0
        %4400 = vmatpush2.msra.mxu0 0.0
        %4401 = vmatprep.subr.mxu0 0.0
        %4402 = vmatpush2.msra.mxu0 0.0
        %4403 = vmatprep.subr.mxu0 0.0
        %4404 = vmatpush2.msra.mxu0 0.0
        %4405 = vmatprep.subr.mxu0 0.0
        %4406 = vmatpush2.msra.mxu0 0.0
        %4407 = vmatprep.subr.mxu0 0.0
        %4408 = vmatpush2.msra.mxu0 0.0
        %4409 = vmatprep.subr.mxu0 0.0
        %4410 = vmatpush2.msra.mxu0 0.0
        %4411 = vmatprep.subr.mxu0 0.0
        %4412 = vmatpush2.msra.mxu0 0.0
        %4413 = vmatprep.subr.mxu0 0.0
        %4414 = vmatpush2.msra.mxu0 0.0
        %4415 = vmatprep.mubr.f32.mxu0 0.0
        %4416 = vmatmul.mubr.f32.gmra.mxu0 %v4349
        %v4417 = vpop.f32.mrf.mxu0
        %v4418 = vadd.f32 0.0, %v4417
        %v4419 = vpop.f32.mrf.mxu0
        %4420 = vdwg.mxu0
        %v4421 = vmax.f32 %v4343, %v4418
        %v4422 = vld [vmem:[%s19] sm:$0xff]
        %v4423 = vld [vmem:[%s19 + $0x8] sm:$0xff]
        %v4424 = vld [vmem:[%s19 + $0x10] sm:$0xff]
        %v4425 = vld [vmem:[%s19 + $0x18] sm:$0xff]
        %v4426 = vld [vmem:[%s19 + $0x20] sm:$0xff]
        %v4427 = vld [vmem:[%s19 + $0x28] sm:$0xff]
        %v4428 = vld [vmem:[%s19 + $0x30] sm:$0xff]
        %v4429 = vld [vmem:[%s19 + $0x38] sm:$0xff]
        %v4431 = vsel %vm2712, %v4421, 0
        %4433 = vmatprep.subr.mxu0 0.0
        %4434 = vmatpush1.msra.mxu0 0.0
        %4435 = vmatprep.subr.mxu0 0.0
        %4436 = vmatpush1.msra.mxu0 0.0
        %4437 = vmatprep.subr.mxu0 0.0
        %4438 = vmatpush1.msra.mxu0 0.0
        %4439 = vmatprep.subr.mxu0 0.0
        %4440 = vmatpush1.msra.mxu0 0.0
        %4441 = vmatprep.subr.mxu0 0.0
        %4442 = vmatpush1.msra.mxu0 0.0
        %4443 = vmatprep.subr.mxu0 0.0
        %4444 = vmatpush1.msra.mxu0 0.0
        %4445 = vmatprep.subr.mxu0 0.0
        %4446 = vmatpush1.msra.mxu0 0.0
        %4447 = vmatprep.subr.mxu0 0.0
        %4448 = vmatpush1.msra.mxu0 0.0
        %4449 = vmatprep.subr.mxu0 0.0
        %4450 = vmatpush1.msra.mxu0 %v4429
        %4451 = vmatprep.subr.mxu0 0.0
        %4452 = vmatpush1.msra.mxu0 %v4428
        %4453 = vmatprep.subr.mxu0 0.0
        %4454 = vmatpush1.msra.mxu0 %v4427
        %4455 = vmatprep.subr.mxu0 0.0
        %4456 = vmatpush1.msra.mxu0 %v4426
        %4457 = vmatprep.subr.mxu0 0.0
        %4458 = vmatpush1.msra.mxu0 %v4425
        %4459 = vmatprep.subr.mxu0 0.0
        %4460 = vmatpush1.msra.mxu0 %v4424
        %4461 = vmatprep.subr.mxu0 0.0
        %4462 = vmatpush1.msra.mxu0 %v4423
        %4463 = vmatprep.subr.mxu0 0.0
        %4464 = vmatpush1.msra.mxu0 %v4422
        %4465 = vmatprep.subr.mxu0 0.0
        %4466 = vmatpush2.msra.mxu0 0.0
        %4467 = vmatprep.subr.mxu0 0.0
        %4468 = vmatpush2.msra.mxu0 0.0
        %4469 = vmatprep.subr.mxu0 0.0
        %4470 = vmatpush2.msra.mxu0 0.0
        %4471 = vmatprep.subr.mxu0 0.0
        %4472 = vmatpush2.msra.mxu0 0.0
        %4473 = vmatprep.subr.mxu0 0.0
        %4474 = vmatpush2.msra.mxu0 0.0
        %4475 = vmatprep.subr.mxu0 0.0
        %4476 = vmatpush2.msra.mxu0 0.0
        %4477 = vmatprep.subr.mxu0 0.0
        %4478 = vmatpush2.msra.mxu0 0.0
        %4479 = vmatprep.subr.mxu0 0.0
        %4480 = vmatpush2.msra.mxu0 0.0
        %4481 = vmatprep.subr.mxu0 0.0
        %4482 = vmatpush2.msra.mxu0 0.0
        %4483 = vmatprep.subr.mxu0 0.0
        %4484 = vmatpush2.msra.mxu0 0.0
        %4485 = vmatprep.subr.mxu0 0.0
        %4486 = vmatpush2.msra.mxu0 0.0
        %4487 = vmatprep.subr.mxu0 0.0
        %4488 = vmatpush2.msra.mxu0 0.0
        %4489 = vmatprep.subr.mxu0 0.0
        %4490 = vmatpush2.msra.mxu0 0.0
        %4491 = vmatprep.subr.mxu0 0.0
        %4492 = vmatpush2.msra.mxu0 0.0
        %4493 = vmatprep.subr.mxu0 0.0
        %4494 = vmatpush2.msra.mxu0 0.0
        %4495 = vmatprep.subr.mxu0 0.0
        %4496 = vmatpush2.msra.mxu0 0.0
        %4497 = vmatprep.mubr.f32.mxu0 0.0
        %4498 = vmatmul.mubr.f32.gmra.mxu0 %v4431
        %v4499 = vpop.f32.mrf.mxu0
        %v4500 = vadd.f32 0.0, %v4499
        %v4501 = vpop.f32.mrf.mxu0
        %4502 = vdwg.mxu0
        %s4503 = scalar_lea.vmem %s19, 64
        %v4504 = vld [vmem:[%s4503] sm:$0xff]
        %v4505 = vld [vmem:[%s4503 + $0x8] sm:$0xff]
        %v4506 = vld [vmem:[%s4503 + $0x10] sm:$0xff]
        %v4507 = vld [vmem:[%s4503 + $0x18] sm:$0xff]
        %v4508 = vld [vmem:[%s4503 + $0x20] sm:$0xff]
        %v4509 = vld [vmem:[%s4503 + $0x28] sm:$0xff]
        %v4510 = vld [vmem:[%s4503 + $0x30] sm:$0xff]
        %v4511 = vld [vmem:[%s4503 + $0x38] sm:$0xff]
        %4512 = vmatprep.subr.mxu0 0.0
        %4513 = vmatpush1.msra.mxu0 0.0
        %4514 = vmatprep.subr.mxu0 0.0
        %4515 = vmatpush1.msra.mxu0 0.0
        %4516 = vmatprep.subr.mxu0 0.0
        %4517 = vmatpush1.msra.mxu0 0.0
        %4518 = vmatprep.subr.mxu0 0.0
        %4519 = vmatpush1.msra.mxu0 0.0
        %4520 = vmatprep.subr.mxu0 0.0
        %4521 = vmatpush1.msra.mxu0 0.0
        %4522 = vmatprep.subr.mxu0 0.0
        %4523 = vmatpush1.msra.mxu0 0.0
        %4524 = vmatprep.subr.mxu0 0.0
        %4525 = vmatpush1.msra.mxu0 0.0
        %4526 = vmatprep.subr.mxu0 0.0
        %4527 = vmatpush1.msra.mxu0 0.0
        %4528 = vmatprep.subr.mxu0 0.0
        %4529 = vmatpush1.msra.mxu0 %v4511
        %4530 = vmatprep.subr.mxu0 0.0
        %4531 = vmatpush1.msra.mxu0 %v4510
        %4532 = vmatprep.subr.mxu0 0.0
        %4533 = vmatpush1.msra.mxu0 %v4509
        %4534 = vmatprep.subr.mxu0 0.0
        %4535 = vmatpush1.msra.mxu0 %v4508
        %4536 = vmatprep.subr.mxu0 0.0
        %4537 = vmatpush1.msra.mxu0 %v4507
        %4538 = vmatprep.subr.mxu0 0.0
        %4539 = vmatpush1.msra.mxu0 %v4506
        %4540 = vmatprep.subr.mxu0 0.0
        %4541 = vmatpush1.msra.mxu0 %v4505
        %4542 = vmatprep.subr.mxu0 0.0
        %4543 = vmatpush1.msra.mxu0 %v4504
        %4544 = vmatprep.subr.mxu0 0.0
        %4545 = vmatpush2.msra.mxu0 0.0
        %4546 = vmatprep.subr.mxu0 0.0
        %4547 = vmatpush2.msra.mxu0 0.0
        %4548 = vmatprep.subr.mxu0 0.0
        %4549 = vmatpush2.msra.mxu0 0.0
        %4550 = vmatprep.subr.mxu0 0.0
        %4551 = vmatpush2.msra.mxu0 0.0
        %4552 = vmatprep.subr.mxu0 0.0
        %4553 = vmatpush2.msra.mxu0 0.0
        %4554 = vmatprep.subr.mxu0 0.0
        %4555 = vmatpush2.msra.mxu0 0.0
        %4556 = vmatprep.subr.mxu0 0.0
        %4557 = vmatpush2.msra.mxu0 0.0
        %4558 = vmatprep.subr.mxu0 0.0
        %4559 = vmatpush2.msra.mxu0 0.0
        %4560 = vmatprep.subr.mxu0 0.0
        %4561 = vmatpush2.msra.mxu0 0.0
        %4562 = vmatprep.subr.mxu0 0.0
        %4563 = vmatpush2.msra.mxu0 0.0
        %4564 = vmatprep.subr.mxu0 0.0
        %4565 = vmatpush2.msra.mxu0 0.0
        %4566 = vmatprep.subr.mxu0 0.0
        %4567 = vmatpush2.msra.mxu0 0.0
        %4568 = vmatprep.subr.mxu0 0.0
        %4569 = vmatpush2.msra.mxu0 0.0
        %4570 = vmatprep.subr.mxu0 0.0
        %4571 = vmatpush2.msra.mxu0 0.0
        %4572 = vmatprep.subr.mxu0 0.0
        %4573 = vmatpush2.msra.mxu0 0.0
        %4574 = vmatprep.subr.mxu0 0.0
        %4575 = vmatpush2.msra.mxu0 0.0
        %4576 = vmatprep.mubr.f32.mxu0 0.0
        %4577 = vmatmul.mubr.f32.gmra.mxu0 %v4431
        %v4578 = vpop.f32.mrf.mxu0
        %v4579 = vadd.f32 0.0, %v4578
        %v4580 = vpop.f32.mrf.mxu0
        %4581 = vdwg.mxu0
        %v4582 = vmax.f32 %v4500, %v4579
        %v4583 = vld [vmem:[%s7] sm:$0xf]
        %s4584 = scalar_lea.vmem %s7, 4
        %v4585 = vld [vmem:[%s4584] sm:$0xf]
        %v4586 = vld [vmem:[%s57] sm:$0xff]
        %v4587 = vld [vmem:[%s57 + $0x8] sm:$0xff]
        %v4588 = vld [vmem:[%s57 + $0x10] sm:$0xff]
        %v4589 = vld [vmem:[%s57 + $0x18] sm:$0xff]
        %vm4590 = vcmask 261120
        %v4592 = vsel %vm4590, %v4582, 0
        %4594 = vmatprep.subr.mxu0 0.0
        %4595 = vmatpush1.msra.mxu0 0.0
        %4596 = vmatprep.subr.mxu0 0.0
        %4597 = vmatpush1.msra.mxu0 0.0
        %4598 = vmatprep.subr.mxu0 0.0
        %4599 = vmatpush1.msra.mxu0 0.0
        %4600 = vmatprep.subr.mxu0 0.0
        %4601 = vmatpush1.msra.mxu0 0.0
        %4602 = vmatprep.subr.mxu0 0.0
        %4603 = vmatpush1.msra.mxu0 0.0
        %4604 = vmatprep.subr.mxu0 0.0
        %4605 = vmatpush1.msra.mxu0 0.0
        %4606 = vmatprep.subr.mxu0 0.0
        %4607 = vmatpush1.msra.mxu0 0.0
        %4608 = vmatprep.subr.mxu0 0.0
        %4609 = vmatpush1.msra.mxu0 0.0
        %4610 = vmatprep.subr.mxu0 0.0
        %4611 = vmatpush1.msra.mxu0 0.0
        %4612 = vmatprep.subr.mxu0 0.0
        %4613 = vmatpush1.msra.mxu0 0.0
        %4614 = vmatprep.subr.mxu0 0.0
        %4615 = vmatpush1.msra.mxu0 0.0
        %4616 = vmatprep.subr.mxu0 0.0
        %4617 = vmatpush1.msra.mxu0 0.0
        %4618 = vmatprep.subr.mxu0 0.0
        %4619 = vmatpush1.msra.mxu0 %v4589
        %4620 = vmatprep.subr.mxu0 0.0
        %4621 = vmatpush1.msra.mxu0 %v4588
        %4622 = vmatprep.subr.mxu0 0.0
        %4623 = vmatpush1.msra.mxu0 %v4587
        %4624 = vmatprep.subr.mxu0 0.0
        %4625 = vmatpush1.msra.mxu0 %v4586
        %4626 = vmatprep.subr.mxu0 0.0
        %4627 = vmatpush2.msra.mxu0 0.0
        %4628 = vmatprep.subr.mxu0 0.0
        %4629 = vmatpush2.msra.mxu0 0.0
        %4630 = vmatprep.subr.mxu0 0.0
        %4631 = vmatpush2.msra.mxu0 0.0
        %4632 = vmatprep.subr.mxu0 0.0
        %4633 = vmatpush2.msra.mxu0 0.0
        %4634 = vmatprep.subr.mxu0 0.0
        %4635 = vmatpush2.msra.mxu0 0.0
        %4636 = vmatprep.subr.mxu0 0.0
        %4637 = vmatpush2.msra.mxu0 0.0
        %4638 = vmatprep.subr.mxu0 0.0
        %4639 = vmatpush2.msra.mxu0 0.0
        %4640 = vmatprep.subr.mxu0 0.0
        %4641 = vmatpush2.msra.mxu0 0.0
        %4642 = vmatprep.subr.mxu0 0.0
        %4643 = vmatpush2.msra.mxu0 0.0
        %4644 = vmatprep.subr.mxu0 0.0
        %4645 = vmatpush2.msra.mxu0 0.0
        %4646 = vmatprep.subr.mxu0 0.0
        %4647 = vmatpush2.msra.mxu0 0.0
        %4648 = vmatprep.subr.mxu0 0.0
        %4649 = vmatpush2.msra.mxu0 0.0
        %4650 = vmatprep.subr.mxu0 0.0
        %4651 = vmatpush2.msra.mxu0 0.0
        %4652 = vmatprep.subr.mxu0 0.0
        %4653 = vmatpush2.msra.mxu0 0.0
        %4654 = vmatprep.subr.mxu0 0.0
        %4655 = vmatpush2.msra.mxu0 0.0
        %4656 = vmatprep.subr.mxu0 0.0
        %4657 = vmatpush2.msra.mxu0 0.0
        %4658 = vmatprep.mubr.f32.mxu0 0.0
        %4659 = vmatmul.mubr.f32.gmra.mxu0 %v4592
        %v4660 = vpop.f32.mrf.mxu0
        %v4661 = vadd.f32 0.0, %v4660
        %v4662 = vpop.f32.mrf.mxu0
        %4663 = vdwg.mxu0
        %s4664 = scalar_lea.vmem %s57, 32
        %v4665 = vld [vmem:[%s4664] sm:$0xff]
        %v4666 = vld [vmem:[%s4664 + $0x8] sm:$0xff]
        %v4667 = vld [vmem:[%s4664 + $0x10] sm:$0xff]
        %v4668 = vld [vmem:[%s4664 + $0x18] sm:$0xff]
        %4669 = vmatprep.subr.mxu0 0.0
        %4670 = vmatpush1.msra.mxu0 0.0
        %4671 = vmatprep.subr.mxu0 0.0
        %4672 = vmatpush1.msra.mxu0 0.0
        %4673 = vmatprep.subr.mxu0 0.0
        %4674 = vmatpush1.msra.mxu0 0.0
        %4675 = vmatprep.subr.mxu0 0.0
        %4676 = vmatpush1.msra.mxu0 0.0
        %4677 = vmatprep.subr.mxu0 0.0
        %4678 = vmatpush1.msra.mxu0 0.0
        %4679 = vmatprep.subr.mxu0 0.0
        %4680 = vmatpush1.msra.mxu0 0.0
        %4681 = vmatprep.subr.mxu0 0.0
        %4682 = vmatpush1.msra.mxu0 0.0
        %4683 = vmatprep.subr.mxu0 0.0
        %4684 = vmatpush1.msra.mxu0 0.0
        %4685 = vmatprep.subr.mxu0 0.0
        %4686 = vmatpush1.msra.mxu0 0.0
        %4687 = vmatprep.subr.mxu0 0.0
        %4688 = vmatpush1.msra.mxu0 0.0
        %4689 = vmatprep.subr.mxu0 0.0
        %4690 = vmatpush1.msra.mxu0 0.0
        %4691 = vmatprep.subr.mxu0 0.0
        %4692 = vmatpush1.msra.mxu0 0.0
        %4693 = vmatprep.subr.mxu0 0.0
        %4694 = vmatpush1.msra.mxu0 %v4668
        %4695 = vmatprep.subr.mxu0 0.0
        %4696 = vmatpush1.msra.mxu0 %v4667
        %4697 = vmatprep.subr.mxu0 0.0
        %4698 = vmatpush1.msra.mxu0 %v4666
        %4699 = vmatprep.subr.mxu0 0.0
        %4700 = vmatpush1.msra.mxu0 %v4665
        %4701 = vmatprep.subr.mxu0 0.0
        %4702 = vmatpush2.msra.mxu0 0.0
        %4703 = vmatprep.subr.mxu0 0.0
        %4704 = vmatpush2.msra.mxu0 0.0
        %4705 = vmatprep.subr.mxu0 0.0
        %4706 = vmatpush2.msra.mxu0 0.0
        %4707 = vmatprep.subr.mxu0 0.0
        %4708 = vmatpush2.msra.mxu0 0.0
        %4709 = vmatprep.subr.mxu0 0.0
        %4710 = vmatpush2.msra.mxu0 0.0
        %4711 = vmatprep.subr.mxu0 0.0
        %4712 = vmatpush2.msra.mxu0 0.0
        %4713 = vmatprep.subr.mxu0 0.0
        %4714 = vmatpush2.msra.mxu0 0.0
        %4715 = vmatprep.subr.mxu0 0.0
        %4716 = vmatpush2.msra.mxu0 0.0
        %4717 = vmatprep.subr.mxu0 0.0
        %4718 = vmatpush2.msra.mxu0 0.0
        %4719 = vmatprep.subr.mxu0 0.0
        %4720 = vmatpush2.msra.mxu0 0.0
        %4721 = vmatprep.subr.mxu0 0.0
        %4722 = vmatpush2.msra.mxu0 0.0
        %4723 = vmatprep.subr.mxu0 0.0
        %4724 = vmatpush2.msra.mxu0 0.0
        %4725 = vmatprep.subr.mxu0 0.0
        %4726 = vmatpush2.msra.mxu0 0.0
        %4727 = vmatprep.subr.mxu0 0.0
        %4728 = vmatpush2.msra.mxu0 0.0
        %4729 = vmatprep.subr.mxu0 0.0
        %4730 = vmatpush2.msra.mxu0 0.0
        %4731 = vmatprep.subr.mxu0 0.0
        %4732 = vmatpush2.msra.mxu0 0.0
        %4733 = vmatprep.mubr.f32.mxu0 0.0
        %4734 = vmatmul.mubr.f32.gmra.mxu0 %v4592
        %v4735 = vpop.f32.mrf.mxu0
        %v4736 = vadd.f32 0.0, %v4735
        %v4737 = vpop.f32.mrf.mxu0
        %4738 = vdwg.mxu0
        %s4739 = scalar_lea.vmem %s57, 64
        %v4740 = vld [vmem:[%s4739] sm:$0xff]
        %v4741 = vld [vmem:[%s4739 + $0x8] sm:$0xff]
        %v4742 = vld [vmem:[%s4739 + $0x10] sm:$0xff]
        %v4743 = vld [vmem:[%s4739 + $0x18] sm:$0xff]
        %4744 = vmatprep.subr.mxu0 0.0
        %4745 = vmatpush1.msra.mxu0 0.0
        %4746 = vmatprep.subr.mxu0 0.0
        %4747 = vmatpush1.msra.mxu0 0.0
        %4748 = vmatprep.subr.mxu0 0.0
        %4749 = vmatpush1.msra.mxu0 0.0
        %4750 = vmatprep.subr.mxu0 0.0
        %4751 = vmatpush1.msra.mxu0 0.0
        %4752 = vmatprep.subr.mxu0 0.0
        %4753 = vmatpush1.msra.mxu0 0.0
        %4754 = vmatprep.subr.mxu0 0.0
        %4755 = vmatpush1.msra.mxu0 0.0
        %4756 = vmatprep.subr.mxu0 0.0
        %4757 = vmatpush1.msra.mxu0 0.0
        %4758 = vmatprep.subr.mxu0 0.0
        %4759 = vmatpush1.msra.mxu0 0.0
        %4760 = vmatprep.subr.mxu0 0.0
        %4761 = vmatpush1.msra.mxu0 0.0
        %4762 = vmatprep.subr.mxu0 0.0
        %4763 = vmatpush1.msra.mxu0 0.0
        %4764 = vmatprep.subr.mxu0 0.0
        %4765 = vmatpush1.msra.mxu0 0.0
        %4766 = vmatprep.subr.mxu0 0.0
        %4767 = vmatpush1.msra.mxu0 0.0
        %4768 = vmatprep.subr.mxu0 0.0
        %4769 = vmatpush1.msra.mxu0 %v4743
        %4770 = vmatprep.subr.mxu0 0.0
        %4771 = vmatpush1.msra.mxu0 %v4742
        %4772 = vmatprep.subr.mxu0 0.0
        %4773 = vmatpush1.msra.mxu0 %v4741
        %4774 = vmatprep.subr.mxu0 0.0
        %4775 = vmatpush1.msra.mxu0 %v4740
        %4776 = vmatprep.subr.mxu0 0.0
        %4777 = vmatpush2.msra.mxu0 0.0
        %4778 = vmatprep.subr.mxu0 0.0
        %4779 = vmatpush2.msra.mxu0 0.0
        %4780 = vmatprep.subr.mxu0 0.0
        %4781 = vmatpush2.msra.mxu0 0.0
        %4782 = vmatprep.subr.mxu0 0.0
        %4783 = vmatpush2.msra.mxu0 0.0
        %4784 = vmatprep.subr.mxu0 0.0
        %4785 = vmatpush2.msra.mxu0 0.0
        %4786 = vmatprep.subr.mxu0 0.0
        %4787 = vmatpush2.msra.mxu0 0.0
        %4788 = vmatprep.subr.mxu0 0.0
        %4789 = vmatpush2.msra.mxu0 0.0
        %4790 = vmatprep.subr.mxu0 0.0
        %4791 = vmatpush2.msra.mxu0 0.0
        %4792 = vmatprep.subr.mxu0 0.0
        %4793 = vmatpush2.msra.mxu0 0.0
        %4794 = vmatprep.subr.mxu0 0.0
        %4795 = vmatpush2.msra.mxu0 0.0
        %4796 = vmatprep.subr.mxu0 0.0
        %4797 = vmatpush2.msra.mxu0 0.0
        %4798 = vmatprep.subr.mxu0 0.0
        %4799 = vmatpush2.msra.mxu0 0.0
        %4800 = vmatprep.subr.mxu0 0.0
        %4801 = vmatpush2.msra.mxu0 0.0
        %4802 = vmatprep.subr.mxu0 0.0
        %4803 = vmatpush2.msra.mxu0 0.0
        %4804 = vmatprep.subr.mxu0 0.0
        %4805 = vmatpush2.msra.mxu0 0.0
        %4806 = vmatprep.subr.mxu0 0.0
        %4807 = vmatpush2.msra.mxu0 0.0
        %4808 = vmatprep.mubr.f32.mxu0 0.0
        %4809 = vmatmul.mubr.f32.gmra.mxu0 %v4592
        %v4810 = vpop.f32.mrf.mxu0
        %v4811 = vadd.f32 0.0, %v4810
        %v4812 = vpop.f32.mrf.mxu0
        %4813 = vdwg.mxu0
        %v4814 = vld [vmem:[%s59] sm:$0x1]
        %v4816 = vlaneseq
        %v4817 = vshrl.u32 %v4816, 7
        %v4818 = vsub.s32 0, %v4817
        %v4819 = vrot.slane %v4814, %v4818
        %v4821 = vadd.f32 %v4819, %v4736
        %vm4822 = vcmask 31744
        %v4824 = vsel %vm4822, %v4583, 0
        %vm4826 = vcmask 1043456
        %v4828 = vsel %vm4826, %v4661, 0
        %4830 = vmatprep.subr.mxu0 0.0
        %4831 = vmatpush1.msra.mxu0 0.0
        %4832 = vmatprep.subr.mxu0 0.0
        %4833 = vmatpush1.msra.mxu0 0.0
        %4834 = vmatprep.subr.mxu0 0.0
        %4835 = vmatpush1.msra.mxu0 0.0
        %4836 = vmatprep.subr.mxu0 0.0
        %4837 = vmatpush1.msra.mxu0 0.0
        %4838 = vmatprep.subr.mxu0 0.0
        %4839 = vmatpush1.msra.mxu0 0.0
        %4840 = vmatprep.subr.mxu0 0.0
        %4841 = vmatpush1.msra.mxu0 0.0
        %4842 = vmatprep.subr.mxu0 0.0
        %4843 = vmatpush1.msra.mxu0 0.0
        %4844 = vmatprep.subr.mxu0 0.0
        %4845 = vmatpush1.msra.mxu0 0.0
        %4846 = vmatprep.subr.mxu0 0.0
        %4847 = vmatpush1.msra.mxu0 0.0
        %4848 = vmatprep.subr.mxu0 0.0
        %4849 = vmatpush1.msra.mxu0 0.0
        %4850 = vmatprep.subr.mxu0 0.0
        %4851 = vmatpush1.msra.mxu0 0.0
        %4852 = vmatprep.subr.mxu0 0.0
        %4853 = vmatpush1.msra.mxu0 0.0
        %4854 = vmatprep.subr.mxu0 0.0
        %4855 = vmatpush1.msra.mxu0 0.0
        %4856 = vmatprep.subr.mxu0 0.0
        %4857 = vmatpush1.msra.mxu0 0.0
        %4858 = vmatprep.subr.mxu0 0.0
        %4859 = vmatpush1.msra.mxu0 0.0
        %4860 = vmatprep.subr.mxu0 0.0
        %4861 = vmatpush1.msra.mxu0 %v4828
        %4862 = vmatprep.subr.mxu0 0.0
        %4863 = vmatpush2.msra.mxu0 0.0
        %4864 = vmatprep.subr.mxu0 0.0
        %4865 = vmatpush2.msra.mxu0 0.0
        %4866 = vmatprep.subr.mxu0 0.0
        %4867 = vmatpush2.msra.mxu0 0.0
        %4868 = vmatprep.subr.mxu0 0.0
        %4869 = vmatpush2.msra.mxu0 0.0
        %4870 = vmatprep.subr.mxu0 0.0
        %4871 = vmatpush2.msra.mxu0 0.0
        %4872 = vmatprep.subr.mxu0 0.0
        %4873 = vmatpush2.msra.mxu0 0.0
        %4874 = vmatprep.subr.mxu0 0.0
        %4875 = vmatpush2.msra.mxu0 0.0
        %4876 = vmatprep.subr.mxu0 0.0
        %4877 = vmatpush2.msra.mxu0 0.0
        %4878 = vmatprep.subr.mxu0 0.0
        %4879 = vmatpush2.msra.mxu0 0.0
        %4880 = vmatprep.subr.mxu0 0.0
        %4881 = vmatpush2.msra.mxu0 0.0
        %4882 = vmatprep.subr.mxu0 0.0
        %4883 = vmatpush2.msra.mxu0 0.0
        %4884 = vmatprep.subr.mxu0 0.0
        %4885 = vmatpush2.msra.mxu0 0.0
        %4886 = vmatprep.subr.mxu0 0.0
        %4887 = vmatpush2.msra.mxu0 0.0
        %4888 = vmatprep.subr.mxu0 0.0
        %4889 = vmatpush2.msra.mxu0 0.0
        %4890 = vmatprep.subr.mxu0 0.0
        %4891 = vmatpush2.msra.mxu0 0.0
        %4892 = vmatprep.subr.mxu0 0.0
        %4893 = vmatpush2.msra.mxu0 0.0
        %4894 = vmatprep.mubr.f32.mxu0 0.0
        %4895 = vmatmul.mubr.f32.gmra.mxu0 %v4824
        %v4896 = vpop.f32.mrf.mxu0
        %v4897 = vadd.f32 0.0, %v4896
        %v4898 = vpop.f32.mrf.mxu0
        %4899 = vdwg.mxu0
        %v4900 = vadd.f32 %v4821, %v4897
        %v4902 = vsel %vm4822, %v4585, 0
        %v4905 = vsel %vm4826, %v4811, 0
        %4907 = vmatprep.subr.mxu0 0.0
        %4908 = vmatpush1.msra.mxu0 0.0
        %4909 = vmatprep.subr.mxu0 0.0
        %4910 = vmatpush1.msra.mxu0 0.0
        %4911 = vmatprep.subr.mxu0 0.0
        %4912 = vmatpush1.msra.mxu0 0.0
        %4913 = vmatprep.subr.mxu0 0.0
        %4914 = vmatpush1.msra.mxu0 0.0
        %4915 = vmatprep.subr.mxu0 0.0
        %4916 = vmatpush1.msra.mxu0 0.0
        %4917 = vmatprep.subr.mxu0 0.0
        %4918 = vmatpush1.msra.mxu0 0.0
        %4919 = vmatprep.subr.mxu0 0.0
        %4920 = vmatpush1.msra.mxu0 0.0
        %4921 = vmatprep.subr.mxu0 0.0
        %4922 = vmatpush1.msra.mxu0 0.0
        %4923 = vmatprep.subr.mxu0 0.0
        %4924 = vmatpush1.msra.mxu0 0.0
        %4925 = vmatprep.subr.mxu0 0.0
        %4926 = vmatpush1.msra.mxu0 0.0
        %4927 = vmatprep.subr.mxu0 0.0
        %4928 = vmatpush1.msra.mxu0 0.0
        %4929 = vmatprep.subr.mxu0 0.0
        %4930 = vmatpush1.msra.mxu0 0.0
        %4931 = vmatprep.subr.mxu0 0.0
        %4932 = vmatpush1.msra.mxu0 0.0
        %4933 = vmatprep.subr.mxu0 0.0
        %4934 = vmatpush1.msra.mxu0 0.0
        %4935 = vmatprep.subr.mxu0 0.0
        %4936 = vmatpush1.msra.mxu0 0.0
        %4937 = vmatprep.subr.mxu0 0.0
        %4938 = vmatpush1.msra.mxu0 %v4905
        %4939 = vmatprep.subr.mxu0 0.0
        %4940 = vmatpush2.msra.mxu0 0.0
        %4941 = vmatprep.subr.mxu0 0.0
        %4942 = vmatpush2.msra.mxu0 0.0
        %4943 = vmatprep.subr.mxu0 0.0
        %4944 = vmatpush2.msra.mxu0 0.0
        %4945 = vmatprep.subr.mxu0 0.0
        %4946 = vmatpush2.msra.mxu0 0.0
        %4947 = vmatprep.subr.mxu0 0.0
        %4948 = vmatpush2.msra.mxu0 0.0
        %4949 = vmatprep.subr.mxu0 0.0
        %4950 = vmatpush2.msra.mxu0 0.0
        %4951 = vmatprep.subr.mxu0 0.0
        %4952 = vmatpush2.msra.mxu0 0.0
        %4953 = vmatprep.subr.mxu0 0.0
        %4954 = vmatpush2.msra.mxu0 0.0
        %4955 = vmatprep.subr.mxu0 0.0
        %4956 = vmatpush2.msra.mxu0 0.0
        %4957 = vmatprep.subr.mxu0 0.0
        %4958 = vmatpush2.msra.mxu0 0.0
        %4959 = vmatprep.subr.mxu0 0.0
        %4960 = vmatpush2.msra.mxu0 0.0
        %4961 = vmatprep.subr.mxu0 0.0
        %4962 = vmatpush2.msra.mxu0 0.0
        %4963 = vmatprep.subr.mxu0 0.0
        %4964 = vmatpush2.msra.mxu0 0.0
        %4965 = vmatprep.subr.mxu0 0.0
        %4966 = vmatpush2.msra.mxu0 0.0
        %4967 = vmatprep.subr.mxu0 0.0
        %4968 = vmatpush2.msra.mxu0 0.0
        %4969 = vmatprep.subr.mxu0 0.0
        %4970 = vmatpush2.msra.mxu0 0.0
        %4971 = vmatprep.mubr.f32.mxu0 0.0
        %4972 = vmatmul.mubr.f32.gmra.mxu0 %v4902
        %v4973 = vpop.f32.mrf.mxu0
        %v4974 = vadd.f32 0.0, %v4973
        %v4975 = vpop.f32.mrf.mxu0
        %4976 = vdwg.mxu0
        %v4977 = vadd.f32 %v4900, %v4974
        %v4978 = vmax.f32 %v4977, 0.0
        %v4979 = vld [vmem:[#allocation24] sm:$0xff]
        %v4980 = vld [vmem:[#allocation24 + $0x8] sm:$0xff]
        %v4981 = vld [vmem:[#allocation24 + $0x10] sm:$0xff]
        %v4982 = vld [vmem:[#allocation24 + $0x18] sm:$0xff]
        %v4984 = vsel %vm4590, %v4978, 0
        %4986 = vmatprep.subr.mxu0 0.0
        %4987 = vmatpush1.msra.mxu0 0.0
        %4988 = vmatprep.subr.mxu0 0.0
        %4989 = vmatpush1.msra.mxu0 0.0
        %4990 = vmatprep.subr.mxu0 0.0
        %4991 = vmatpush1.msra.mxu0 0.0
        %4992 = vmatprep.subr.mxu0 0.0
        %4993 = vmatpush1.msra.mxu0 0.0
        %4994 = vmatprep.subr.mxu0 0.0
        %4995 = vmatpush1.msra.mxu0 0.0
        %4996 = vmatprep.subr.mxu0 0.0
        %4997 = vmatpush1.msra.mxu0 0.0
        %4998 = vmatprep.subr.mxu0 0.0
        %4999 = vmatpush1.msra.mxu0 0.0
        %5000 = vmatprep.subr.mxu0 0.0
        %5001 = vmatpush1.msra.mxu0 0.0
        %5002 = vmatprep.subr.mxu0 0.0
        %5003 = vmatpush1.msra.mxu0 0.0
        %5004 = vmatprep.subr.mxu0 0.0
        %5005 = vmatpush1.msra.mxu0 0.0
        %5006 = vmatprep.subr.mxu0 0.0
        %5007 = vmatpush1.msra.mxu0 0.0
        %5008 = vmatprep.subr.mxu0 0.0
        %5009 = vmatpush1.msra.mxu0 0.0
        %5010 = vmatprep.subr.mxu0 0.0
        %5011 = vmatpush1.msra.mxu0 %v4982
        %5012 = vmatprep.subr.mxu0 0.0
        %5013 = vmatpush1.msra.mxu0 %v4981
        %5014 = vmatprep.subr.mxu0 0.0
        %5015 = vmatpush1.msra.mxu0 %v4980
        %5016 = vmatprep.subr.mxu0 0.0
        %5017 = vmatpush1.msra.mxu0 %v4979
        %5018 = vmatprep.subr.mxu0 0.0
        %5019 = vmatpush2.msra.mxu0 0.0
        %5020 = vmatprep.subr.mxu0 0.0
        %5021 = vmatpush2.msra.mxu0 0.0
        %5022 = vmatprep.subr.mxu0 0.0
        %5023 = vmatpush2.msra.mxu0 0.0
        %5024 = vmatprep.subr.mxu0 0.0
        %5025 = vmatpush2.msra.mxu0 0.0
        %5026 = vmatprep.subr.mxu0 0.0
        %5027 = vmatpush2.msra.mxu0 0.0
        %5028 = vmatprep.subr.mxu0 0.0
        %5029 = vmatpush2.msra.mxu0 0.0
        %5030 = vmatprep.subr.mxu0 0.0
        %5031 = vmatpush2.msra.mxu0 0.0
        %5032 = vmatprep.subr.mxu0 0.0
        %5033 = vmatpush2.msra.mxu0 0.0
        %5034 = vmatprep.subr.mxu0 0.0
        %5035 = vmatpush2.msra.mxu0 0.0
        %5036 = vmatprep.subr.mxu0 0.0
        %5037 = vmatpush2.msra.mxu0 0.0
        %5038 = vmatprep.subr.mxu0 0.0
        %5039 = vmatpush2.msra.mxu0 0.0
        %5040 = vmatprep.subr.mxu0 0.0
        %5041 = vmatpush2.msra.mxu0 0.0
        %5042 = vmatprep.subr.mxu0 0.0
        %5043 = vmatpush2.msra.mxu0 0.0
        %5044 = vmatprep.subr.mxu0 0.0
        %5045 = vmatpush2.msra.mxu0 0.0
        %5046 = vmatprep.subr.mxu0 0.0
        %5047 = vmatpush2.msra.mxu0 0.0
        %5048 = vmatprep.subr.mxu0 0.0
        %5049 = vmatpush2.msra.mxu0 0.0
        %5050 = vmatprep.mubr.f32.mxu0 0.0
        %5051 = vmatmul.mubr.f32.gmra.mxu0 %v4984
        %v5052 = vpop.f32.mrf.mxu0
        %v5053 = vadd.f32 0.0, %v5052
        %v5054 = vpop.f32.mrf.mxu0
        %5055 = vdwg.mxu0
        %s5056 = scalar_lea.vmem [#allocation24], 32
        %v5057 = vld [vmem:[%s5056] sm:$0xff]
        %v5058 = vld [vmem:[%s5056 + $0x8] sm:$0xff]
        %v5059 = vld [vmem:[%s5056 + $0x10] sm:$0xff]
        %v5060 = vld [vmem:[%s5056 + $0x18] sm:$0xff]
        %5061 = vmatprep.subr.mxu0 0.0
        %5062 = vmatpush1.msra.mxu0 0.0
        %5063 = vmatprep.subr.mxu0 0.0
        %5064 = vmatpush1.msra.mxu0 0.0
        %5065 = vmatprep.subr.mxu0 0.0
        %5066 = vmatpush1.msra.mxu0 0.0
        %5067 = vmatprep.subr.mxu0 0.0
        %5068 = vmatpush1.msra.mxu0 0.0
        %5069 = vmatprep.subr.mxu0 0.0
        %5070 = vmatpush1.msra.mxu0 0.0
        %5071 = vmatprep.subr.mxu0 0.0
        %5072 = vmatpush1.msra.mxu0 0.0
        %5073 = vmatprep.subr.mxu0 0.0
        %5074 = vmatpush1.msra.mxu0 0.0
        %5075 = vmatprep.subr.mxu0 0.0
        %5076 = vmatpush1.msra.mxu0 0.0
        %5077 = vmatprep.subr.mxu0 0.0
        %5078 = vmatpush1.msra.mxu0 0.0
        %5079 = vmatprep.subr.mxu0 0.0
        %5080 = vmatpush1.msra.mxu0 0.0
        %5081 = vmatprep.subr.mxu0 0.0
        %5082 = vmatpush1.msra.mxu0 0.0
        %5083 = vmatprep.subr.mxu0 0.0
        %5084 = vmatpush1.msra.mxu0 0.0
        %5085 = vmatprep.subr.mxu0 0.0
        %5086 = vmatpush1.msra.mxu0 %v5060
        %5087 = vmatprep.subr.mxu0 0.0
        %5088 = vmatpush1.msra.mxu0 %v5059
        %5089 = vmatprep.subr.mxu0 0.0
        %5090 = vmatpush1.msra.mxu0 %v5058
        %5091 = vmatprep.subr.mxu0 0.0
        %5092 = vmatpush1.msra.mxu0 %v5057
        %5093 = vmatprep.subr.mxu0 0.0
        %5094 = vmatpush2.msra.mxu0 0.0
        %5095 = vmatprep.subr.mxu0 0.0
        %5096 = vmatpush2.msra.mxu0 0.0
        %5097 = vmatprep.subr.mxu0 0.0
        %5098 = vmatpush2.msra.mxu0 0.0
        %5099 = vmatprep.subr.mxu0 0.0
        %5100 = vmatpush2.msra.mxu0 0.0
        %5101 = vmatprep.subr.mxu0 0.0
        %5102 = vmatpush2.msra.mxu0 0.0
        %5103 = vmatprep.subr.mxu0 0.0
        %5104 = vmatpush2.msra.mxu0 0.0
        %5105 = vmatprep.subr.mxu0 0.0
        %5106 = vmatpush2.msra.mxu0 0.0
        %5107 = vmatprep.subr.mxu0 0.0
        %5108 = vmatpush2.msra.mxu0 0.0
        %5109 = vmatprep.subr.mxu0 0.0
        %5110 = vmatpush2.msra.mxu0 0.0
        %5111 = vmatprep.subr.mxu0 0.0
        %5112 = vmatpush2.msra.mxu0 0.0
        %5113 = vmatprep.subr.mxu0 0.0
        %5114 = vmatpush2.msra.mxu0 0.0
        %5115 = vmatprep.subr.mxu0 0.0
        %5116 = vmatpush2.msra.mxu0 0.0
        %5117 = vmatprep.subr.mxu0 0.0
        %5118 = vmatpush2.msra.mxu0 0.0
        %5119 = vmatprep.subr.mxu0 0.0
        %5120 = vmatpush2.msra.mxu0 0.0
        %5121 = vmatprep.subr.mxu0 0.0
        %5122 = vmatpush2.msra.mxu0 0.0
        %5123 = vmatprep.subr.mxu0 0.0
        %5124 = vmatpush2.msra.mxu0 0.0
        %5125 = vmatprep.mubr.f32.mxu0 0.0
        %5126 = vmatmul.mubr.f32.gmra.mxu0 %v4984
        %v5127 = vpop.f32.mrf.mxu0
        %v5128 = vadd.f32 0.0, %v5127
        %v5129 = vpop.f32.mrf.mxu0
        %5130 = vdwg.mxu0
        %s5131 = scalar_lea.vmem [#allocation24], 64
        %v5132 = vld [vmem:[%s5131] sm:$0xff]
        %v5133 = vld [vmem:[%s5131 + $0x8] sm:$0xff]
        %v5134 = vld [vmem:[%s5131 + $0x10] sm:$0xff]
        %v5135 = vld [vmem:[%s5131 + $0x18] sm:$0xff]
        %5136 = vmatprep.subr.mxu0 0.0
        %5137 = vmatpush1.msra.mxu0 0.0
        %5138 = vmatprep.subr.mxu0 0.0
        %5139 = vmatpush1.msra.mxu0 0.0
        %5140 = vmatprep.subr.mxu0 0.0
        %5141 = vmatpush1.msra.mxu0 0.0
        %5142 = vmatprep.subr.mxu0 0.0
        %5143 = vmatpush1.msra.mxu0 0.0
        %5144 = vmatprep.subr.mxu0 0.0
        %5145 = vmatpush1.msra.mxu0 0.0
        %5146 = vmatprep.subr.mxu0 0.0
        %5147 = vmatpush1.msra.mxu0 0.0
        %5148 = vmatprep.subr.mxu0 0.0
        %5149 = vmatpush1.msra.mxu0 0.0
        %5150 = vmatprep.subr.mxu0 0.0
        %5151 = vmatpush1.msra.mxu0 0.0
        %5152 = vmatprep.subr.mxu0 0.0
        %5153 = vmatpush1.msra.mxu0 0.0
        %5154 = vmatprep.subr.mxu0 0.0
        %5155 = vmatpush1.msra.mxu0 0.0
        %5156 = vmatprep.subr.mxu0 0.0
        %5157 = vmatpush1.msra.mxu0 0.0
        %5158 = vmatprep.subr.mxu0 0.0
        %5159 = vmatpush1.msra.mxu0 0.0
        %5160 = vmatprep.subr.mxu0 0.0
        %5161 = vmatpush1.msra.mxu0 %v5135
        %5162 = vmatprep.subr.mxu0 0.0
        %5163 = vmatpush1.msra.mxu0 %v5134
        %5164 = vmatprep.subr.mxu0 0.0
        %5165 = vmatpush1.msra.mxu0 %v5133
        %5166 = vmatprep.subr.mxu0 0.0
        %5167 = vmatpush1.msra.mxu0 %v5132
        %5168 = vmatprep.subr.mxu0 0.0
        %5169 = vmatpush2.msra.mxu0 0.0
        %5170 = vmatprep.subr.mxu0 0.0
        %5171 = vmatpush2.msra.mxu0 0.0
        %5172 = vmatprep.subr.mxu0 0.0
        %5173 = vmatpush2.msra.mxu0 0.0
        %5174 = vmatprep.subr.mxu0 0.0
        %5175 = vmatpush2.msra.mxu0 0.0
        %5176 = vmatprep.subr.mxu0 0.0
        %5177 = vmatpush2.msra.mxu0 0.0
        %5178 = vmatprep.subr.mxu0 0.0
        %5179 = vmatpush2.msra.mxu0 0.0
        %5180 = vmatprep.subr.mxu0 0.0
        %5181 = vmatpush2.msra.mxu0 0.0
        %5182 = vmatprep.subr.mxu0 0.0
        %5183 = vmatpush2.msra.mxu0 0.0
        %5184 = vmatprep.subr.mxu0 0.0
        %5185 = vmatpush2.msra.mxu0 0.0
        %5186 = vmatprep.subr.mxu0 0.0
        %5187 = vmatpush2.msra.mxu0 0.0
        %5188 = vmatprep.subr.mxu0 0.0
        %5189 = vmatpush2.msra.mxu0 0.0
        %5190 = vmatprep.subr.mxu0 0.0
        %5191 = vmatpush2.msra.mxu0 0.0
        %5192 = vmatprep.subr.mxu0 0.0
        %5193 = vmatpush2.msra.mxu0 0.0
        %5194 = vmatprep.subr.mxu0 0.0
        %5195 = vmatpush2.msra.mxu0 0.0
        %5196 = vmatprep.subr.mxu0 0.0
        %5197 = vmatpush2.msra.mxu0 0.0
        %5198 = vmatprep.subr.mxu0 0.0
        %5199 = vmatpush2.msra.mxu0 0.0
        %5200 = vmatprep.mubr.f32.mxu0 0.0
        %5201 = vmatmul.mubr.f32.gmra.mxu0 %v4984
        %v5202 = vpop.f32.mrf.mxu0
        %v5203 = vadd.f32 0.0, %v5202
        %v5204 = vpop.f32.mrf.mxu0
        %5205 = vdwg.mxu0
        %v5206 = vld [vmem:[%s63] sm:$0x1]
        %v5208 = vlaneseq
        %v5209 = vshrl.u32 %v5208, 7
        %v5210 = vsub.s32 0, %v5209
        %v5211 = vrot.slane %v5206, %v5210
        %v5213 = vadd.f32 %v5211, %v5128
        %v5215 = vsel %vm4826, %v5053, 0
        %5217 = vmatprep.subr.mxu0 0.0
        %5218 = vmatpush1.msra.mxu0 0.0
        %5219 = vmatprep.subr.mxu0 0.0
        %5220 = vmatpush1.msra.mxu0 0.0
        %5221 = vmatprep.subr.mxu0 0.0
        %5222 = vmatpush1.msra.mxu0 0.0
        %5223 = vmatprep.subr.mxu0 0.0
        %5224 = vmatpush1.msra.mxu0 0.0
        %5225 = vmatprep.subr.mxu0 0.0
        %5226 = vmatpush1.msra.mxu0 0.0
        %5227 = vmatprep.subr.mxu0 0.0
        %5228 = vmatpush1.msra.mxu0 0.0
        %5229 = vmatprep.subr.mxu0 0.0
        %5230 = vmatpush1.msra.mxu0 0.0
        %5231 = vmatprep.subr.mxu0 0.0
        %5232 = vmatpush1.msra.mxu0 0.0
        %5233 = vmatprep.subr.mxu0 0.0
        %5234 = vmatpush1.msra.mxu0 0.0
        %5235 = vmatprep.subr.mxu0 0.0
        %5236 = vmatpush1.msra.mxu0 0.0
        %5237 = vmatprep.subr.mxu0 0.0
        %5238 = vmatpush1.msra.mxu0 0.0
        %5239 = vmatprep.subr.mxu0 0.0
        %5240 = vmatpush1.msra.mxu0 0.0
        %5241 = vmatprep.subr.mxu0 0.0
        %5242 = vmatpush1.msra.mxu0 0.0
        %5243 = vmatprep.subr.mxu0 0.0
        %5244 = vmatpush1.msra.mxu0 0.0
        %5245 = vmatprep.subr.mxu0 0.0
        %5246 = vmatpush1.msra.mxu0 0.0
        %5247 = vmatprep.subr.mxu0 0.0
        %5248 = vmatpush1.msra.mxu0 %v5215
        %5249 = vmatprep.subr.mxu0 0.0
        %5250 = vmatpush2.msra.mxu0 0.0
        %5251 = vmatprep.subr.mxu0 0.0
        %5252 = vmatpush2.msra.mxu0 0.0
        %5253 = vmatprep.subr.mxu0 0.0
        %5254 = vmatpush2.msra.mxu0 0.0
        %5255 = vmatprep.subr.mxu0 0.0
        %5256 = vmatpush2.msra.mxu0 0.0
        %5257 = vmatprep.subr.mxu0 0.0
        %5258 = vmatpush2.msra.mxu0 0.0
        %5259 = vmatprep.subr.mxu0 0.0
        %5260 = vmatpush2.msra.mxu0 0.0
        %5261 = vmatprep.subr.mxu0 0.0
        %5262 = vmatpush2.msra.mxu0 0.0
        %5263 = vmatprep.subr.mxu0 0.0
        %5264 = vmatpush2.msra.mxu0 0.0
        %5265 = vmatprep.subr.mxu0 0.0
        %5266 = vmatpush2.msra.mxu0 0.0
        %5267 = vmatprep.subr.mxu0 0.0
        %5268 = vmatpush2.msra.mxu0 0.0
        %5269 = vmatprep.subr.mxu0 0.0
        %5270 = vmatpush2.msra.mxu0 0.0
        %5271 = vmatprep.subr.mxu0 0.0
        %5272 = vmatpush2.msra.mxu0 0.0
        %5273 = vmatprep.subr.mxu0 0.0
        %5274 = vmatpush2.msra.mxu0 0.0
        %5275 = vmatprep.subr.mxu0 0.0
        %5276 = vmatpush2.msra.mxu0 0.0
        %5277 = vmatprep.subr.mxu0 0.0
        %5278 = vmatpush2.msra.mxu0 0.0
        %5279 = vmatprep.subr.mxu0 0.0
        %5280 = vmatpush2.msra.mxu0 0.0
        %5281 = vmatprep.mubr.f32.mxu0 0.0
        %5282 = vmatmul.mubr.f32.gmra.mxu0 %v4824
        %v5283 = vpop.f32.mrf.mxu0
        %v5284 = vadd.f32 0.0, %v5283
        %v5285 = vpop.f32.mrf.mxu0
        %5286 = vdwg.mxu0
        %v5287 = vadd.f32 %v5213, %v5284
        %v5289 = vsel %vm4826, %v5203, 0
        %5291 = vmatprep.subr.mxu0 0.0
        %5292 = vmatpush1.msra.mxu0 0.0
        %5293 = vmatprep.subr.mxu0 0.0
        %5294 = vmatpush1.msra.mxu0 0.0
        %5295 = vmatprep.subr.mxu0 0.0
        %5296 = vmatpush1.msra.mxu0 0.0
        %5297 = vmatprep.subr.mxu0 0.0
        %5298 = vmatpush1.msra.mxu0 0.0
        %5299 = vmatprep.subr.mxu0 0.0
        %5300 = vmatpush1.msra.mxu0 0.0
        %5301 = vmatprep.subr.mxu0 0.0
        %5302 = vmatpush1.msra.mxu0 0.0
        %5303 = vmatprep.subr.mxu0 0.0
        %5304 = vmatpush1.msra.mxu0 0.0
        %5305 = vmatprep.subr.mxu0 0.0
        %5306 = vmatpush1.msra.mxu0 0.0
        %5307 = vmatprep.subr.mxu0 0.0
        %5308 = vmatpush1.msra.mxu0 0.0
        %5309 = vmatprep.subr.mxu0 0.0
        %5310 = vmatpush1.msra.mxu0 0.0
        %5311 = vmatprep.subr.mxu0 0.0
        %5312 = vmatpush1.msra.mxu0 0.0
        %5313 = vmatprep.subr.mxu0 0.0
        %5314 = vmatpush1.msra.mxu0 0.0
        %5315 = vmatprep.subr.mxu0 0.0
        %5316 = vmatpush1.msra.mxu0 0.0
        %5317 = vmatprep.subr.mxu0 0.0
        %5318 = vmatpush1.msra.mxu0 0.0
        %5319 = vmatprep.subr.mxu0 0.0
        %5320 = vmatpush1.msra.mxu0 0.0
        %5321 = vmatprep.subr.mxu0 0.0
        %5322 = vmatpush1.msra.mxu0 %v5289
        %5323 = vmatprep.subr.mxu0 0.0
        %5324 = vmatpush2.msra.mxu0 0.0
        %5325 = vmatprep.subr.mxu0 0.0
        %5326 = vmatpush2.msra.mxu0 0.0
        %5327 = vmatprep.subr.mxu0 0.0
        %5328 = vmatpush2.msra.mxu0 0.0
        %5329 = vmatprep.subr.mxu0 0.0
        %5330 = vmatpush2.msra.mxu0 0.0
        %5331 = vmatprep.subr.mxu0 0.0
        %5332 = vmatpush2.msra.mxu0 0.0
        %5333 = vmatprep.subr.mxu0 0.0
        %5334 = vmatpush2.msra.mxu0 0.0
        %5335 = vmatprep.subr.mxu0 0.0
        %5336 = vmatpush2.msra.mxu0 0.0
        %5337 = vmatprep.subr.mxu0 0.0
        %5338 = vmatpush2.msra.mxu0 0.0
        %5339 = vmatprep.subr.mxu0 0.0
        %5340 = vmatpush2.msra.mxu0 0.0
        %5341 = vmatprep.subr.mxu0 0.0
        %5342 = vmatpush2.msra.mxu0 0.0
        %5343 = vmatprep.subr.mxu0 0.0
        %5344 = vmatpush2.msra.mxu0 0.0
        %5345 = vmatprep.subr.mxu0 0.0
        %5346 = vmatpush2.msra.mxu0 0.0
        %5347 = vmatprep.subr.mxu0 0.0
        %5348 = vmatpush2.msra.mxu0 0.0
        %5349 = vmatprep.subr.mxu0 0.0
        %5350 = vmatpush2.msra.mxu0 0.0
        %5351 = vmatprep.subr.mxu0 0.0
        %5352 = vmatpush2.msra.mxu0 0.0
        %5353 = vmatprep.subr.mxu0 0.0
        %5354 = vmatpush2.msra.mxu0 0.0
        %5355 = vmatprep.mubr.f32.mxu0 0.0
        %5356 = vmatmul.mubr.f32.gmra.mxu0 %v4902
        %v5357 = vpop.f32.mrf.mxu0
        %v5358 = vadd.f32 0.0, %v5357
        %v5359 = vpop.f32.mrf.mxu0
        %5360 = vdwg.mxu0
        %v5361 = vadd.f32 %v5287, %v5358
        %v5362 = vadd.f32 %v4582, %v5361
        %v5363 = vld [vmem:[#allocation28] sm:$0xff]
        %v5364 = vld [vmem:[#allocation28 + $0x8] sm:$0xff]
        %v5365 = vld [vmem:[#allocation28 + $0x10] sm:$0xff]
        %v5366 = vld [vmem:[#allocation28 + $0x18] sm:$0xff]
        %v5368 = vsel %vm4590, %v5362, 0
        %5370 = vmatprep.subr.mxu0 0.0
        %5371 = vmatpush1.msra.mxu0 0.0
        %5372 = vmatprep.subr.mxu0 0.0
        %5373 = vmatpush1.msra.mxu0 0.0
        %5374 = vmatprep.subr.mxu0 0.0
        %5375 = vmatpush1.msra.mxu0 0.0
        %5376 = vmatprep.subr.mxu0 0.0
        %5377 = vmatpush1.msra.mxu0 0.0
        %5378 = vmatprep.subr.mxu0 0.0
        %5379 = vmatpush1.msra.mxu0 0.0
        %5380 = vmatprep.subr.mxu0 0.0
        %5381 = vmatpush1.msra.mxu0 0.0
        %5382 = vmatprep.subr.mxu0 0.0
        %5383 = vmatpush1.msra.mxu0 0.0
        %5384 = vmatprep.subr.mxu0 0.0
        %5385 = vmatpush1.msra.mxu0 0.0
        %5386 = vmatprep.subr.mxu0 0.0
        %5387 = vmatpush1.msra.mxu0 0.0
        %5388 = vmatprep.subr.mxu0 0.0
        %5389 = vmatpush1.msra.mxu0 0.0
        %5390 = vmatprep.subr.mxu0 0.0
        %5391 = vmatpush1.msra.mxu0 0.0
        %5392 = vmatprep.subr.mxu0 0.0
        %5393 = vmatpush1.msra.mxu0 0.0
        %5394 = vmatprep.subr.mxu0 0.0
        %5395 = vmatpush1.msra.mxu0 %v5366
        %5396 = vmatprep.subr.mxu0 0.0
        %5397 = vmatpush1.msra.mxu0 %v5365
        %5398 = vmatprep.subr.mxu0 0.0
        %5399 = vmatpush1.msra.mxu0 %v5364
        %5400 = vmatprep.subr.mxu0 0.0
        %5401 = vmatpush1.msra.mxu0 %v5363
        %5402 = vmatprep.subr.mxu0 0.0
        %5403 = vmatpush2.msra.mxu0 0.0
        %5404 = vmatprep.subr.mxu0 0.0
        %5405 = vmatpush2.msra.mxu0 0.0
        %5406 = vmatprep.subr.mxu0 0.0
        %5407 = vmatpush2.msra.mxu0 0.0
        %5408 = vmatprep.subr.mxu0 0.0
        %5409 = vmatpush2.msra.mxu0 0.0
        %5410 = vmatprep.subr.mxu0 0.0
        %5411 = vmatpush2.msra.mxu0 0.0
        %5412 = vmatprep.subr.mxu0 0.0
        %5413 = vmatpush2.msra.mxu0 0.0
        %5414 = vmatprep.subr.mxu0 0.0
        %5415 = vmatpush2.msra.mxu0 0.0
        %5416 = vmatprep.subr.mxu0 0.0
        %5417 = vmatpush2.msra.mxu0 0.0
        %5418 = vmatprep.subr.mxu0 0.0
        %5419 = vmatpush2.msra.mxu0 0.0
        %5420 = vmatprep.subr.mxu0 0.0
        %5421 = vmatpush2.msra.mxu0 0.0
        %5422 = vmatprep.subr.mxu0 0.0
        %5423 = vmatpush2.msra.mxu0 0.0
        %5424 = vmatprep.subr.mxu0 0.0
        %5425 = vmatpush2.msra.mxu0 0.0
        %5426 = vmatprep.subr.mxu0 0.0
        %5427 = vmatpush2.msra.mxu0 0.0
        %5428 = vmatprep.subr.mxu0 0.0
        %5429 = vmatpush2.msra.mxu0 0.0
        %5430 = vmatprep.subr.mxu0 0.0
        %5431 = vmatpush2.msra.mxu0 0.0
        %5432 = vmatprep.subr.mxu0 0.0
        %5433 = vmatpush2.msra.mxu0 0.0
        %5434 = vmatprep.mubr.f32.mxu0 0.0
        %5435 = vmatmul.mubr.f32.gmra.mxu0 %v5368
        %v5436 = vpop.f32.mrf.mxu0
        %v5437 = vadd.f32 0.0, %v5436
        %v5438 = vpop.f32.mrf.mxu0
        %5439 = vdwg.mxu0
        %s5440 = scalar_lea.vmem [#allocation28], 32
        %v5441 = vld [vmem:[%s5440] sm:$0xff]
        %v5442 = vld [vmem:[%s5440 + $0x8] sm:$0xff]
        %v5443 = vld [vmem:[%s5440 + $0x10] sm:$0xff]
        %v5444 = vld [vmem:[%s5440 + $0x18] sm:$0xff]
        %5445 = vmatprep.subr.mxu0 0.0
        %5446 = vmatpush1.msra.mxu0 0.0
        %5447 = vmatprep.subr.mxu0 0.0
        %5448 = vmatpush1.msra.mxu0 0.0
        %5449 = vmatprep.subr.mxu0 0.0
        %5450 = vmatpush1.msra.mxu0 0.0
        %5451 = vmatprep.subr.mxu0 0.0
        %5452 = vmatpush1.msra.mxu0 0.0
        %5453 = vmatprep.subr.mxu0 0.0
        %5454 = vmatpush1.msra.mxu0 0.0
        %5455 = vmatprep.subr.mxu0 0.0
        %5456 = vmatpush1.msra.mxu0 0.0
        %5457 = vmatprep.subr.mxu0 0.0
        %5458 = vmatpush1.msra.mxu0 0.0
        %5459 = vmatprep.subr.mxu0 0.0
        %5460 = vmatpush1.msra.mxu0 0.0
        %5461 = vmatprep.subr.mxu0 0.0
        %5462 = vmatpush1.msra.mxu0 0.0
        %5463 = vmatprep.subr.mxu0 0.0
        %5464 = vmatpush1.msra.mxu0 0.0
        %5465 = vmatprep.subr.mxu0 0.0
        %5466 = vmatpush1.msra.mxu0 0.0
        %5467 = vmatprep.subr.mxu0 0.0
        %5468 = vmatpush1.msra.mxu0 0.0
        %5469 = vmatprep.subr.mxu0 0.0
        %5470 = vmatpush1.msra.mxu0 %v5444
        %5471 = vmatprep.subr.mxu0 0.0
        %5472 = vmatpush1.msra.mxu0 %v5443
        %5473 = vmatprep.subr.mxu0 0.0
        %5474 = vmatpush1.msra.mxu0 %v5442
        %5475 = vmatprep.subr.mxu0 0.0
        %5476 = vmatpush1.msra.mxu0 %v5441
        %5477 = vmatprep.subr.mxu0 0.0
        %5478 = vmatpush2.msra.mxu0 0.0
        %5479 = vmatprep.subr.mxu0 0.0
        %5480 = vmatpush2.msra.mxu0 0.0
        %5481 = vmatprep.subr.mxu0 0.0
        %5482 = vmatpush2.msra.mxu0 0.0
        %5483 = vmatprep.subr.mxu0 0.0
        %5484 = vmatpush2.msra.mxu0 0.0
        %5485 = vmatprep.subr.mxu0 0.0
        %5486 = vmatpush2.msra.mxu0 0.0
        %5487 = vmatprep.subr.mxu0 0.0
        %5488 = vmatpush2.msra.mxu0 0.0
        %5489 = vmatprep.subr.mxu0 0.0
        %5490 = vmatpush2.msra.mxu0 0.0
        %5491 = vmatprep.subr.mxu0 0.0
        %5492 = vmatpush2.msra.mxu0 0.0
        %5493 = vmatprep.subr.mxu0 0.0
        %5494 = vmatpush2.msra.mxu0 0.0
        %5495 = vmatprep.subr.mxu0 0.0
        %5496 = vmatpush2.msra.mxu0 0.0
        %5497 = vmatprep.subr.mxu0 0.0
        %5498 = vmatpush2.msra.mxu0 0.0
        %5499 = vmatprep.subr.mxu0 0.0
        %5500 = vmatpush2.msra.mxu0 0.0
        %5501 = vmatprep.subr.mxu0 0.0
        %5502 = vmatpush2.msra.mxu0 0.0
        %5503 = vmatprep.subr.mxu0 0.0
        %5504 = vmatpush2.msra.mxu0 0.0
        %5505 = vmatprep.subr.mxu0 0.0
        %5506 = vmatpush2.msra.mxu0 0.0
        %5507 = vmatprep.subr.mxu0 0.0
        %5508 = vmatpush2.msra.mxu0 0.0
        %5509 = vmatprep.mubr.f32.mxu0 0.0
        %5510 = vmatmul.mubr.f32.gmra.mxu0 %v5368
        %v5511 = vpop.f32.mrf.mxu0
        %v5512 = vadd.f32 0.0, %v5511
        %v5513 = vpop.f32.mrf.mxu0
        %5514 = vdwg.mxu0
        %s5515 = scalar_lea.vmem [#allocation28], 64
        %v5516 = vld [vmem:[%s5515] sm:$0xff]
        %v5517 = vld [vmem:[%s5515 + $0x8] sm:$0xff]
        %v5518 = vld [vmem:[%s5515 + $0x10] sm:$0xff]
        %v5519 = vld [vmem:[%s5515 + $0x18] sm:$0xff]
        %5520 = vmatprep.subr.mxu0 0.0
        %5521 = vmatpush1.msra.mxu0 0.0
        %5522 = vmatprep.subr.mxu0 0.0
        %5523 = vmatpush1.msra.mxu0 0.0
        %5524 = vmatprep.subr.mxu0 0.0
        %5525 = vmatpush1.msra.mxu0 0.0
        %5526 = vmatprep.subr.mxu0 0.0
        %5527 = vmatpush1.msra.mxu0 0.0
        %5528 = vmatprep.subr.mxu0 0.0
        %5529 = vmatpush1.msra.mxu0 0.0
        %5530 = vmatprep.subr.mxu0 0.0
        %5531 = vmatpush1.msra.mxu0 0.0
        %5532 = vmatprep.subr.mxu0 0.0
        %5533 = vmatpush1.msra.mxu0 0.0
        %5534 = vmatprep.subr.mxu0 0.0
        %5535 = vmatpush1.msra.mxu0 0.0
        %5536 = vmatprep.subr.mxu0 0.0
        %5537 = vmatpush1.msra.mxu0 0.0
        %5538 = vmatprep.subr.mxu0 0.0
        %5539 = vmatpush1.msra.mxu0 0.0
        %5540 = vmatprep.subr.mxu0 0.0
        %5541 = vmatpush1.msra.mxu0 0.0
        %5542 = vmatprep.subr.mxu0 0.0
        %5543 = vmatpush1.msra.mxu0 0.0
        %5544 = vmatprep.subr.mxu0 0.0
        %5545 = vmatpush1.msra.mxu0 %v5519
        %5546 = vmatprep.subr.mxu0 0.0
        %5547 = vmatpush1.msra.mxu0 %v5518
        %5548 = vmatprep.subr.mxu0 0.0
        %5549 = vmatpush1.msra.mxu0 %v5517
        %5550 = vmatprep.subr.mxu0 0.0
        %5551 = vmatpush1.msra.mxu0 %v5516
        %5552 = vmatprep.subr.mxu0 0.0
        %5553 = vmatpush2.msra.mxu0 0.0
        %5554 = vmatprep.subr.mxu0 0.0
        %5555 = vmatpush2.msra.mxu0 0.0
        %5556 = vmatprep.subr.mxu0 0.0
        %5557 = vmatpush2.msra.mxu0 0.0
        %5558 = vmatprep.subr.mxu0 0.0
        %5559 = vmatpush2.msra.mxu0 0.0
        %5560 = vmatprep.subr.mxu0 0.0
        %5561 = vmatpush2.msra.mxu0 0.0
        %5562 = vmatprep.subr.mxu0 0.0
        %5563 = vmatpush2.msra.mxu0 0.0
        %5564 = vmatprep.subr.mxu0 0.0
        %5565 = vmatpush2.msra.mxu0 0.0
        %5566 = vmatprep.subr.mxu0 0.0
        %5567 = vmatpush2.msra.mxu0 0.0
        %5568 = vmatprep.subr.mxu0 0.0
        %5569 = vmatpush2.msra.mxu0 0.0
        %5570 = vmatprep.subr.mxu0 0.0
        %5571 = vmatpush2.msra.mxu0 0.0
        %5572 = vmatprep.subr.mxu0 0.0
        %5573 = vmatpush2.msra.mxu0 0.0
        %5574 = vmatprep.subr.mxu0 0.0
        %5575 = vmatpush2.msra.mxu0 0.0
        %5576 = vmatprep.subr.mxu0 0.0
        %5577 = vmatpush2.msra.mxu0 0.0
        %5578 = vmatprep.subr.mxu0 0.0
        %5579 = vmatpush2.msra.mxu0 0.0
        %5580 = vmatprep.subr.mxu0 0.0
        %5581 = vmatpush2.msra.mxu0 0.0
        %5582 = vmatprep.subr.mxu0 0.0
        %5583 = vmatpush2.msra.mxu0 0.0
        %5584 = vmatprep.mubr.f32.mxu0 0.0
        %5585 = vmatmul.mubr.f32.gmra.mxu0 %v5368
        %v5586 = vpop.f32.mrf.mxu0
        %v5587 = vadd.f32 0.0, %v5586
        %v5588 = vpop.f32.mrf.mxu0
        %5589 = vdwg.mxu0
        %v5590 = vld [vmem:[%s75] sm:$0x1]
        %v5592 = vlaneseq
        %v5593 = vshrl.u32 %v5592, 7
        %v5594 = vsub.s32 0, %v5593
        %v5595 = vrot.slane %v5590, %v5594
        %v5597 = vadd.f32 %v5595, %v5512
        %v5599 = vsel %vm4826, %v5437, 0
        %5601 = vmatprep.subr.mxu0 0.0
        %5602 = vmatpush1.msra.mxu0 0.0
        %5603 = vmatprep.subr.mxu0 0.0
        %5604 = vmatpush1.msra.mxu0 0.0
        %5605 = vmatprep.subr.mxu0 0.0
        %5606 = vmatpush1.msra.mxu0 0.0
        %5607 = vmatprep.subr.mxu0 0.0
        %5608 = vmatpush1.msra.mxu0 0.0
        %5609 = vmatprep.subr.mxu0 0.0
        %5610 = vmatpush1.msra.mxu0 0.0
        %5611 = vmatprep.subr.mxu0 0.0
        %5612 = vmatpush1.msra.mxu0 0.0
        %5613 = vmatprep.subr.mxu0 0.0
        %5614 = vmatpush1.msra.mxu0 0.0
        %5615 = vmatprep.subr.mxu0 0.0
        %5616 = vmatpush1.msra.mxu0 0.0
        %5617 = vmatprep.subr.mxu0 0.0
        %5618 = vmatpush1.msra.mxu0 0.0
        %5619 = vmatprep.subr.mxu0 0.0
        %5620 = vmatpush1.msra.mxu0 0.0
        %5621 = vmatprep.subr.mxu0 0.0
        %5622 = vmatpush1.msra.mxu0 0.0
        %5623 = vmatprep.subr.mxu0 0.0
        %5624 = vmatpush1.msra.mxu0 0.0
        %5625 = vmatprep.subr.mxu0 0.0
        %5626 = vmatpush1.msra.mxu0 0.0
        %5627 = vmatprep.subr.mxu0 0.0
        %5628 = vmatpush1.msra.mxu0 0.0
        %5629 = vmatprep.subr.mxu0 0.0
        %5630 = vmatpush1.msra.mxu0 0.0
        %5631 = vmatprep.subr.mxu0 0.0
        %5632 = vmatpush1.msra.mxu0 %v5599
        %5633 = vmatprep.subr.mxu0 0.0
        %5634 = vmatpush2.msra.mxu0 0.0
        %5635 = vmatprep.subr.mxu0 0.0
        %5636 = vmatpush2.msra.mxu0 0.0
        %5637 = vmatprep.subr.mxu0 0.0
        %5638 = vmatpush2.msra.mxu0 0.0
        %5639 = vmatprep.subr.mxu0 0.0
        %5640 = vmatpush2.msra.mxu0 0.0
        %5641 = vmatprep.subr.mxu0 0.0
        %5642 = vmatpush2.msra.mxu0 0.0
        %5643 = vmatprep.subr.mxu0 0.0
        %5644 = vmatpush2.msra.mxu0 0.0
        %5645 = vmatprep.subr.mxu0 0.0
        %5646 = vmatpush2.msra.mxu0 0.0
        %5647 = vmatprep.subr.mxu0 0.0
        %5648 = vmatpush2.msra.mxu0 0.0
        %5649 = vmatprep.subr.mxu0 0.0
        %5650 = vmatpush2.msra.mxu0 0.0
        %5651 = vmatprep.subr.mxu0 0.0
        %5652 = vmatpush2.msra.mxu0 0.0
        %5653 = vmatprep.subr.mxu0 0.0
        %5654 = vmatpush2.msra.mxu0 0.0
        %5655 = vmatprep.subr.mxu0 0.0
        %5656 = vmatpush2.msra.mxu0 0.0
        %5657 = vmatprep.subr.mxu0 0.0
        %5658 = vmatpush2.msra.mxu0 0.0
        %5659 = vmatprep.subr.mxu0 0.0
        %5660 = vmatpush2.msra.mxu0 0.0
        %5661 = vmatprep.subr.mxu0 0.0
        %5662 = vmatpush2.msra.mxu0 0.0
        %5663 = vmatprep.subr.mxu0 0.0
        %5664 = vmatpush2.msra.mxu0 0.0
        %5665 = vmatprep.mubr.f32.mxu0 0.0
        %5666 = vmatmul.mubr.f32.gmra.mxu0 %v4824
        %v5667 = vpop.f32.mrf.mxu0
        %v5668 = vadd.f32 0.0, %v5667
        %v5669 = vpop.f32.mrf.mxu0
        %5670 = vdwg.mxu0
        %v5671 = vadd.f32 %v5597, %v5668
        %v5673 = vsel %vm4826, %v5587, 0
        %5675 = vmatprep.subr.mxu0 0.0
        %5676 = vmatpush1.msra.mxu0 0.0
        %5677 = vmatprep.subr.mxu0 0.0
        %5678 = vmatpush1.msra.mxu0 0.0
        %5679 = vmatprep.subr.mxu0 0.0
        %5680 = vmatpush1.msra.mxu0 0.0
        %5681 = vmatprep.subr.mxu0 0.0
        %5682 = vmatpush1.msra.mxu0 0.0
        %5683 = vmatprep.subr.mxu0 0.0
        %5684 = vmatpush1.msra.mxu0 0.0
        %5685 = vmatprep.subr.mxu0 0.0
        %5686 = vmatpush1.msra.mxu0 0.0
        %5687 = vmatprep.subr.mxu0 0.0
        %5688 = vmatpush1.msra.mxu0 0.0
        %5689 = vmatprep.subr.mxu0 0.0
        %5690 = vmatpush1.msra.mxu0 0.0
        %5691 = vmatprep.subr.mxu0 0.0
        %5692 = vmatpush1.msra.mxu0 0.0
        %5693 = vmatprep.subr.mxu0 0.0
        %5694 = vmatpush1.msra.mxu0 0.0
        %5695 = vmatprep.subr.mxu0 0.0
        %5696 = vmatpush1.msra.mxu0 0.0
        %5697 = vmatprep.subr.mxu0 0.0
        %5698 = vmatpush1.msra.mxu0 0.0
        %5699 = vmatprep.subr.mxu0 0.0
        %5700 = vmatpush1.msra.mxu0 0.0
        %5701 = vmatprep.subr.mxu0 0.0
        %5702 = vmatpush1.msra.mxu0 0.0
        %5703 = vmatprep.subr.mxu0 0.0
        %5704 = vmatpush1.msra.mxu0 0.0
        %5705 = vmatprep.subr.mxu0 0.0
        %5706 = vmatpush1.msra.mxu0 %v5673
        %5707 = vmatprep.subr.mxu0 0.0
        %5708 = vmatpush2.msra.mxu0 0.0
        %5709 = vmatprep.subr.mxu0 0.0
        %5710 = vmatpush2.msra.mxu0 0.0
        %5711 = vmatprep.subr.mxu0 0.0
        %5712 = vmatpush2.msra.mxu0 0.0
        %5713 = vmatprep.subr.mxu0 0.0
        %5714 = vmatpush2.msra.mxu0 0.0
        %5715 = vmatprep.subr.mxu0 0.0
        %5716 = vmatpush2.msra.mxu0 0.0
        %5717 = vmatprep.subr.mxu0 0.0
        %5718 = vmatpush2.msra.mxu0 0.0
        %5719 = vmatprep.subr.mxu0 0.0
        %5720 = vmatpush2.msra.mxu0 0.0
        %5721 = vmatprep.subr.mxu0 0.0
        %5722 = vmatpush2.msra.mxu0 0.0
        %5723 = vmatprep.subr.mxu0 0.0
        %5724 = vmatpush2.msra.mxu0 0.0
        %5725 = vmatprep.subr.mxu0 0.0
        %5726 = vmatpush2.msra.mxu0 0.0
        %5727 = vmatprep.subr.mxu0 0.0
        %5728 = vmatpush2.msra.mxu0 0.0
        %5729 = vmatprep.subr.mxu0 0.0
        %5730 = vmatpush2.msra.mxu0 0.0
        %5731 = vmatprep.subr.mxu0 0.0
        %5732 = vmatpush2.msra.mxu0 0.0
        %5733 = vmatprep.subr.mxu0 0.0
        %5734 = vmatpush2.msra.mxu0 0.0
        %5735 = vmatprep.subr.mxu0 0.0
        %5736 = vmatpush2.msra.mxu0 0.0
        %5737 = vmatprep.subr.mxu0 0.0
        %5738 = vmatpush2.msra.mxu0 0.0
        %5739 = vmatprep.mubr.f32.mxu0 0.0
        %5740 = vmatmul.mubr.f32.gmra.mxu0 %v4902
        %v5741 = vpop.f32.mrf.mxu0
        %v5742 = vadd.f32 0.0, %v5741
        %v5743 = vpop.f32.mrf.mxu0
        %5744 = vdwg.mxu0
        %v5745 = vadd.f32 %v5671, %v5742
        %v5746 = vmax.f32 %v5745, 0.0
        %v5747 = vld [vmem:[#allocation30] sm:$0xff]
        %v5748 = vld [vmem:[#allocation30 + $0x8] sm:$0xff]
        %v5749 = vld [vmem:[#allocation30 + $0x10] sm:$0xff]
        %v5750 = vld [vmem:[#allocation30 + $0x18] sm:$0xff]
        %v5752 = vsel %vm4590, %v5746, 0
        %5754 = vmatprep.subr.mxu0 0.0
        %5755 = vmatpush1.msra.mxu0 0.0
        %5756 = vmatprep.subr.mxu0 0.0
        %5757 = vmatpush1.msra.mxu0 0.0
        %5758 = vmatprep.subr.mxu0 0.0
        %5759 = vmatpush1.msra.mxu0 0.0
        %5760 = vmatprep.subr.mxu0 0.0
        %5761 = vmatpush1.msra.mxu0 0.0
        %5762 = vmatprep.subr.mxu0 0.0
        %5763 = vmatpush1.msra.mxu0 0.0
        %5764 = vmatprep.subr.mxu0 0.0
        %5765 = vmatpush1.msra.mxu0 0.0
        %5766 = vmatprep.subr.mxu0 0.0
        %5767 = vmatpush1.msra.mxu0 0.0
        %5768 = vmatprep.subr.mxu0 0.0
        %5769 = vmatpush1.msra.mxu0 0.0
        %5770 = vmatprep.subr.mxu0 0.0
        %5771 = vmatpush1.msra.mxu0 0.0
        %5772 = vmatprep.subr.mxu0 0.0
        %5773 = vmatpush1.msra.mxu0 0.0
        %5774 = vmatprep.subr.mxu0 0.0
        %5775 = vmatpush1.msra.mxu0 0.0
        %5776 = vmatprep.subr.mxu0 0.0
        %5777 = vmatpush1.msra.mxu0 0.0
        %5778 = vmatprep.subr.mxu0 0.0
        %5779 = vmatpush1.msra.mxu0 %v5750
        %5780 = vmatprep.subr.mxu0 0.0
        %5781 = vmatpush1.msra.mxu0 %v5749
        %5782 = vmatprep.subr.mxu0 0.0
        %5783 = vmatpush1.msra.mxu0 %v5748
        %5784 = vmatprep.subr.mxu0 0.0
        %5785 = vmatpush1.msra.mxu0 %v5747
        %5786 = vmatprep.subr.mxu0 0.0
        %5787 = vmatpush2.msra.mxu0 0.0
        %5788 = vmatprep.subr.mxu0 0.0
        %5789 = vmatpush2.msra.mxu0 0.0
        %5790 = vmatprep.subr.mxu0 0.0
        %5791 = vmatpush2.msra.mxu0 0.0
        %5792 = vmatprep.subr.mxu0 0.0
        %5793 = vmatpush2.msra.mxu0 0.0
        %5794 = vmatprep.subr.mxu0 0.0
        %5795 = vmatpush2.msra.mxu0 0.0
        %5796 = vmatprep.subr.mxu0 0.0
        %5797 = vmatpush2.msra.mxu0 0.0
        %5798 = vmatprep.subr.mxu0 0.0
        %5799 = vmatpush2.msra.mxu0 0.0
        %5800 = vmatprep.subr.mxu0 0.0
        %5801 = vmatpush2.msra.mxu0 0.0
        %5802 = vmatprep.subr.mxu0 0.0
        %5803 = vmatpush2.msra.mxu0 0.0
        %5804 = vmatprep.subr.mxu0 0.0
        %5805 = vmatpush2.msra.mxu0 0.0
        %5806 = vmatprep.subr.mxu0 0.0
        %5807 = vmatpush2.msra.mxu0 0.0
        %5808 = vmatprep.subr.mxu0 0.0
        %5809 = vmatpush2.msra.mxu0 0.0
        %5810 = vmatprep.subr.mxu0 0.0
        %5811 = vmatpush2.msra.mxu0 0.0
        %5812 = vmatprep.subr.mxu0 0.0
        %5813 = vmatpush2.msra.mxu0 0.0
        %5814 = vmatprep.subr.mxu0 0.0
        %5815 = vmatpush2.msra.mxu0 0.0
        %5816 = vmatprep.subr.mxu0 0.0
        %5817 = vmatpush2.msra.mxu0 0.0
        %5818 = vmatprep.mubr.f32.mxu0 0.0
        %5819 = vmatmul.mubr.f32.gmra.mxu0 %v5752
        %v5820 = vpop.f32.mrf.mxu0
        %v5821 = vadd.f32 0.0, %v5820
        %v5822 = vpop.f32.mrf.mxu0
        %5823 = vdwg.mxu0
        %s5824 = scalar_lea.vmem [#allocation30], 32
        %v5825 = vld [vmem:[%s5824] sm:$0xff]
        %v5826 = vld [vmem:[%s5824 + $0x8] sm:$0xff]
        %v5827 = vld [vmem:[%s5824 + $0x10] sm:$0xff]
        %v5828 = vld [vmem:[%s5824 + $0x18] sm:$0xff]
        %5829 = vmatprep.subr.mxu0 0.0
        %5830 = vmatpush1.msra.mxu0 0.0
        %5831 = vmatprep.subr.mxu0 0.0
        %5832 = vmatpush1.msra.mxu0 0.0
        %5833 = vmatprep.subr.mxu0 0.0
        %5834 = vmatpush1.msra.mxu0 0.0
        %5835 = vmatprep.subr.mxu0 0.0
        %5836 = vmatpush1.msra.mxu0 0.0
        %5837 = vmatprep.subr.mxu0 0.0
        %5838 = vmatpush1.msra.mxu0 0.0
        %5839 = vmatprep.subr.mxu0 0.0
        %5840 = vmatpush1.msra.mxu0 0.0
        %5841 = vmatprep.subr.mxu0 0.0
        %5842 = vmatpush1.msra.mxu0 0.0
        %5843 = vmatprep.subr.mxu0 0.0
        %5844 = vmatpush1.msra.mxu0 0.0
        %5845 = vmatprep.subr.mxu0 0.0
        %5846 = vmatpush1.msra.mxu0 0.0
        %5847 = vmatprep.subr.mxu0 0.0
        %5848 = vmatpush1.msra.mxu0 0.0
        %5849 = vmatprep.subr.mxu0 0.0
        %5850 = vmatpush1.msra.mxu0 0.0
        %5851 = vmatprep.subr.mxu0 0.0
        %5852 = vmatpush1.msra.mxu0 0.0
        %5853 = vmatprep.subr.mxu0 0.0
        %5854 = vmatpush1.msra.mxu0 %v5828
        %5855 = vmatprep.subr.mxu0 0.0
        %5856 = vmatpush1.msra.mxu0 %v5827
        %5857 = vmatprep.subr.mxu0 0.0
        %5858 = vmatpush1.msra.mxu0 %v5826
        %5859 = vmatprep.subr.mxu0 0.0
        %5860 = vmatpush1.msra.mxu0 %v5825
        %5861 = vmatprep.subr.mxu0 0.0
        %5862 = vmatpush2.msra.mxu0 0.0
        %5863 = vmatprep.subr.mxu0 0.0
        %5864 = vmatpush2.msra.mxu0 0.0
        %5865 = vmatprep.subr.mxu0 0.0
        %5866 = vmatpush2.msra.mxu0 0.0
        %5867 = vmatprep.subr.mxu0 0.0
        %5868 = vmatpush2.msra.mxu0 0.0
        %5869 = vmatprep.subr.mxu0 0.0
        %5870 = vmatpush2.msra.mxu0 0.0
        %5871 = vmatprep.subr.mxu0 0.0
        %5872 = vmatpush2.msra.mxu0 0.0
        %5873 = vmatprep.subr.mxu0 0.0
        %5874 = vmatpush2.msra.mxu0 0.0
        %5875 = vmatprep.subr.mxu0 0.0
        %5876 = vmatpush2.msra.mxu0 0.0
        %5877 = vmatprep.subr.mxu0 0.0
        %5878 = vmatpush2.msra.mxu0 0.0
        %5879 = vmatprep.subr.mxu0 0.0
        %5880 = vmatpush2.msra.mxu0 0.0
        %5881 = vmatprep.subr.mxu0 0.0
        %5882 = vmatpush2.msra.mxu0 0.0
        %5883 = vmatprep.subr.mxu0 0.0
        %5884 = vmatpush2.msra.mxu0 0.0
        %5885 = vmatprep.subr.mxu0 0.0
        %5886 = vmatpush2.msra.mxu0 0.0
        %5887 = vmatprep.subr.mxu0 0.0
        %5888 = vmatpush2.msra.mxu0 0.0
        %5889 = vmatprep.subr.mxu0 0.0
        %5890 = vmatpush2.msra.mxu0 0.0
        %5891 = vmatprep.subr.mxu0 0.0
        %5892 = vmatpush2.msra.mxu0 0.0
        %5893 = vmatprep.mubr.f32.mxu0 0.0
        %5894 = vmatmul.mubr.f32.gmra.mxu0 %v5752
        %v5895 = vpop.f32.mrf.mxu0
        %v5896 = vadd.f32 0.0, %v5895
        %v5897 = vpop.f32.mrf.mxu0
        %5898 = vdwg.mxu0
        %s5899 = scalar_lea.vmem [#allocation30], 64
        %v5900 = vld [vmem:[%s5899] sm:$0xff]
        %v5901 = vld [vmem:[%s5899 + $0x8] sm:$0xff]
        %v5902 = vld [vmem:[%s5899 + $0x10] sm:$0xff]
        %v5903 = vld [vmem:[%s5899 + $0x18] sm:$0xff]
        %5904 = vmatprep.subr.mxu0 0.0
        %5905 = vmatpush1.msra.mxu0 0.0
        %5906 = vmatprep.subr.mxu0 0.0
        %5907 = vmatpush1.msra.mxu0 0.0
        %5908 = vmatprep.subr.mxu0 0.0
        %5909 = vmatpush1.msra.mxu0 0.0
        %5910 = vmatprep.subr.mxu0 0.0
        %5911 = vmatpush1.msra.mxu0 0.0
        %5912 = vmatprep.subr.mxu0 0.0
        %5913 = vmatpush1.msra.mxu0 0.0
        %5914 = vmatprep.subr.mxu0 0.0
        %5915 = vmatpush1.msra.mxu0 0.0
        %5916 = vmatprep.subr.mxu0 0.0
        %5917 = vmatpush1.msra.mxu0 0.0
        %5918 = vmatprep.subr.mxu0 0.0
        %5919 = vmatpush1.msra.mxu0 0.0
        %5920 = vmatprep.subr.mxu0 0.0
        %5921 = vmatpush1.msra.mxu0 0.0
        %5922 = vmatprep.subr.mxu0 0.0
        %5923 = vmatpush1.msra.mxu0 0.0
        %5924 = vmatprep.subr.mxu0 0.0
        %5925 = vmatpush1.msra.mxu0 0.0
        %5926 = vmatprep.subr.mxu0 0.0
        %5927 = vmatpush1.msra.mxu0 0.0
        %5928 = vmatprep.subr.mxu0 0.0
        %5929 = vmatpush1.msra.mxu0 %v5903
        %5930 = vmatprep.subr.mxu0 0.0
        %5931 = vmatpush1.msra.mxu0 %v5902
        %5932 = vmatprep.subr.mxu0 0.0
        %5933 = vmatpush1.msra.mxu0 %v5901
        %5934 = vmatprep.subr.mxu0 0.0
        %5935 = vmatpush1.msra.mxu0 %v5900
        %5936 = vmatprep.subr.mxu0 0.0
        %5937 = vmatpush2.msra.mxu0 0.0
        %5938 = vmatprep.subr.mxu0 0.0
        %5939 = vmatpush2.msra.mxu0 0.0
        %5940 = vmatprep.subr.mxu0 0.0
        %5941 = vmatpush2.msra.mxu0 0.0
        %5942 = vmatprep.subr.mxu0 0.0
        %5943 = vmatpush2.msra.mxu0 0.0
        %5944 = vmatprep.subr.mxu0 0.0
        %5945 = vmatpush2.msra.mxu0 0.0
        %5946 = vmatprep.subr.mxu0 0.0
        %5947 = vmatpush2.msra.mxu0 0.0
        %5948 = vmatprep.subr.mxu0 0.0
        %5949 = vmatpush2.msra.mxu0 0.0
        %5950 = vmatprep.subr.mxu0 0.0
        %5951 = vmatpush2.msra.mxu0 0.0
        %5952 = vmatprep.subr.mxu0 0.0
        %5953 = vmatpush2.msra.mxu0 0.0
        %5954 = vmatprep.subr.mxu0 0.0
        %5955 = vmatpush2.msra.mxu0 0.0
        %5956 = vmatprep.subr.mxu0 0.0
        %5957 = vmatpush2.msra.mxu0 0.0
        %5958 = vmatprep.subr.mxu0 0.0
        %5959 = vmatpush2.msra.mxu0 0.0
        %5960 = vmatprep.subr.mxu0 0.0
        %5961 = vmatpush2.msra.mxu0 0.0
        %5962 = vmatprep.subr.mxu0 0.0
        %5963 = vmatpush2.msra.mxu0 0.0
        %5964 = vmatprep.subr.mxu0 0.0
        %5965 = vmatpush2.msra.mxu0 0.0
        %5966 = vmatprep.subr.mxu0 0.0
        %5967 = vmatpush2.msra.mxu0 0.0
        %5968 = vmatprep.mubr.f32.mxu0 0.0
        %5969 = vmatmul.mubr.f32.gmra.mxu0 %v5752
        %v5970 = vpop.f32.mrf.mxu0
        %v5971 = vadd.f32 0.0, %v5970
        %v5972 = vpop.f32.mrf.mxu0
        %5973 = vdwg.mxu0
        %v5974 = vld [vmem:[%s79] sm:$0x1]
        %v5976 = vlaneseq
        %v5977 = vshrl.u32 %v5976, 7
        %v5978 = vsub.s32 0, %v5977
        %v5979 = vrot.slane %v5974, %v5978
        %v5981 = vadd.f32 %v5979, %v5896
        %v5983 = vsel %vm4826, %v5821, 0
        %5985 = vmatprep.subr.mxu0 0.0
        %5986 = vmatpush1.msra.mxu0 0.0
        %5987 = vmatprep.subr.mxu0 0.0
        %5988 = vmatpush1.msra.mxu0 0.0
        %5989 = vmatprep.subr.mxu0 0.0
        %5990 = vmatpush1.msra.mxu0 0.0
        %5991 = vmatprep.subr.mxu0 0.0
        %5992 = vmatpush1.msra.mxu0 0.0
        %5993 = vmatprep.subr.mxu0 0.0
        %5994 = vmatpush1.msra.mxu0 0.0
        %5995 = vmatprep.subr.mxu0 0.0
        %5996 = vmatpush1.msra.mxu0 0.0
        %5997 = vmatprep.subr.mxu0 0.0
        %5998 = vmatpush1.msra.mxu0 0.0
        %5999 = vmatprep.subr.mxu0 0.0
        %6000 = vmatpush1.msra.mxu0 0.0
        %6001 = vmatprep.subr.mxu0 0.0
        %6002 = vmatpush1.msra.mxu0 0.0
        %6003 = vmatprep.subr.mxu0 0.0
        %6004 = vmatpush1.msra.mxu0 0.0
        %6005 = vmatprep.subr.mxu0 0.0
        %6006 = vmatpush1.msra.mxu0 0.0
        %6007 = vmatprep.subr.mxu0 0.0
        %6008 = vmatpush1.msra.mxu0 0.0
        %6009 = vmatprep.subr.mxu0 0.0
        %6010 = vmatpush1.msra.mxu0 0.0
        %6011 = vmatprep.subr.mxu0 0.0
        %6012 = vmatpush1.msra.mxu0 0.0
        %6013 = vmatprep.subr.mxu0 0.0
        %6014 = vmatpush1.msra.mxu0 0.0
        %6015 = vmatprep.subr.mxu0 0.0
        %6016 = vmatpush1.msra.mxu0 %v5983
        %6017 = vmatprep.subr.mxu0 0.0
        %6018 = vmatpush2.msra.mxu0 0.0
        %6019 = vmatprep.subr.mxu0 0.0
        %6020 = vmatpush2.msra.mxu0 0.0
        %6021 = vmatprep.subr.mxu0 0.0
        %6022 = vmatpush2.msra.mxu0 0.0
        %6023 = vmatprep.subr.mxu0 0.0
        %6024 = vmatpush2.msra.mxu0 0.0
        %6025 = vmatprep.subr.mxu0 0.0
        %6026 = vmatpush2.msra.mxu0 0.0
        %6027 = vmatprep.subr.mxu0 0.0
        %6028 = vmatpush2.msra.mxu0 0.0
        %6029 = vmatprep.subr.mxu0 0.0
        %6030 = vmatpush2.msra.mxu0 0.0
        %6031 = vmatprep.subr.mxu0 0.0
        %6032 = vmatpush2.msra.mxu0 0.0
        %6033 = vmatprep.subr.mxu0 0.0
        %6034 = vmatpush2.msra.mxu0 0.0
        %6035 = vmatprep.subr.mxu0 0.0
        %6036 = vmatpush2.msra.mxu0 0.0
        %6037 = vmatprep.subr.mxu0 0.0
        %6038 = vmatpush2.msra.mxu0 0.0
        %6039 = vmatprep.subr.mxu0 0.0
        %6040 = vmatpush2.msra.mxu0 0.0
        %6041 = vmatprep.subr.mxu0 0.0
        %6042 = vmatpush2.msra.mxu0 0.0
        %6043 = vmatprep.subr.mxu0 0.0
        %6044 = vmatpush2.msra.mxu0 0.0
        %6045 = vmatprep.subr.mxu0 0.0
        %6046 = vmatpush2.msra.mxu0 0.0
        %6047 = vmatprep.subr.mxu0 0.0
        %6048 = vmatpush2.msra.mxu0 0.0
        %6049 = vmatprep.mubr.f32.mxu0 0.0
        %6050 = vmatmul.mubr.f32.gmra.mxu0 %v4824
        %v6051 = vpop.f32.mrf.mxu0
        %v6052 = vadd.f32 0.0, %v6051
        %v6053 = vpop.f32.mrf.mxu0
        %6054 = vdwg.mxu0
        %v6055 = vadd.f32 %v5981, %v6052
        %v6057 = vsel %vm4826, %v5971, 0
        %6059 = vmatprep.subr.mxu0 0.0
        %6060 = vmatpush1.msra.mxu0 0.0
        %6061 = vmatprep.subr.mxu0 0.0
        %6062 = vmatpush1.msra.mxu0 0.0
        %6063 = vmatprep.subr.mxu0 0.0
        %6064 = vmatpush1.msra.mxu0 0.0
        %6065 = vmatprep.subr.mxu0 0.0
        %6066 = vmatpush1.msra.mxu0 0.0
        %6067 = vmatprep.subr.mxu0 0.0
        %6068 = vmatpush1.msra.mxu0 0.0
        %6069 = vmatprep.subr.mxu0 0.0
        %6070 = vmatpush1.msra.mxu0 0.0
        %6071 = vmatprep.subr.mxu0 0.0
        %6072 = vmatpush1.msra.mxu0 0.0
        %6073 = vmatprep.subr.mxu0 0.0
        %6074 = vmatpush1.msra.mxu0 0.0
        %6075 = vmatprep.subr.mxu0 0.0
        %6076 = vmatpush1.msra.mxu0 0.0
        %6077 = vmatprep.subr.mxu0 0.0
        %6078 = vmatpush1.msra.mxu0 0.0
        %6079 = vmatprep.subr.mxu0 0.0
        %6080 = vmatpush1.msra.mxu0 0.0
        %6081 = vmatprep.subr.mxu0 0.0
        %6082 = vmatpush1.msra.mxu0 0.0
        %6083 = vmatprep.subr.mxu0 0.0
        %6084 = vmatpush1.msra.mxu0 0.0
        %6085 = vmatprep.subr.mxu0 0.0
        %6086 = vmatpush1.msra.mxu0 0.0
        %6087 = vmatprep.subr.mxu0 0.0
        %6088 = vmatpush1.msra.mxu0 0.0
        %6089 = vmatprep.subr.mxu0 0.0
        %6090 = vmatpush1.msra.mxu0 %v6057
        %6091 = vmatprep.subr.mxu0 0.0
        %6092 = vmatpush2.msra.mxu0 0.0
        %6093 = vmatprep.subr.mxu0 0.0
        %6094 = vmatpush2.msra.mxu0 0.0
        %6095 = vmatprep.subr.mxu0 0.0
        %6096 = vmatpush2.msra.mxu0 0.0
        %6097 = vmatprep.subr.mxu0 0.0
        %6098 = vmatpush2.msra.mxu0 0.0
        %6099 = vmatprep.subr.mxu0 0.0
        %6100 = vmatpush2.msra.mxu0 0.0
        %6101 = vmatprep.subr.mxu0 0.0
        %6102 = vmatpush2.msra.mxu0 0.0
        %6103 = vmatprep.subr.mxu0 0.0
        %6104 = vmatpush2.msra.mxu0 0.0
        %6105 = vmatprep.subr.mxu0 0.0
        %6106 = vmatpush2.msra.mxu0 0.0
        %6107 = vmatprep.subr.mxu0 0.0
        %6108 = vmatpush2.msra.mxu0 0.0
        %6109 = vmatprep.subr.mxu0 0.0
        %6110 = vmatpush2.msra.mxu0 0.0
        %6111 = vmatprep.subr.mxu0 0.0
        %6112 = vmatpush2.msra.mxu0 0.0
        %6113 = vmatprep.subr.mxu0 0.0
        %6114 = vmatpush2.msra.mxu0 0.0
        %6115 = vmatprep.subr.mxu0 0.0
        %6116 = vmatpush2.msra.mxu0 0.0
        %6117 = vmatprep.subr.mxu0 0.0
        %6118 = vmatpush2.msra.mxu0 0.0
        %6119 = vmatprep.subr.mxu0 0.0
        %6120 = vmatpush2.msra.mxu0 0.0
        %6121 = vmatprep.subr.mxu0 0.0
        %6122 = vmatpush2.msra.mxu0 0.0
        %6123 = vmatprep.mubr.f32.mxu0 0.0
        %6124 = vmatmul.mubr.f32.gmra.mxu0 %v4902
        %v6125 = vpop.f32.mrf.mxu0
        %v6126 = vadd.f32 0.0, %v6125
        %v6127 = vpop.f32.mrf.mxu0
        %6128 = vdwg.mxu0
        %v6129 = vadd.f32 %v6055, %v6126
        %v6130 = vadd.f32 %v5362, %v6129
        %v6131 = vld [vmem:[#allocation25] sm:$0xff]
        %v6132 = vld [vmem:[#allocation25 + $0x8] sm:$0xff]
        %v6133 = vld [vmem:[#allocation25 + $0x10] sm:$0xff]
        %v6134 = vld [vmem:[#allocation25 + $0x18] sm:$0xff]
        %v6136 = vsel %vm4590, %v6130, 0
        %6138 = vmatprep.subr.mxu0 0.0
        %6139 = vmatpush1.msra.mxu0 0.0
        %6140 = vmatprep.subr.mxu0 0.0
        %6141 = vmatpush1.msra.mxu0 0.0
        %6142 = vmatprep.subr.mxu0 0.0
        %6143 = vmatpush1.msra.mxu0 0.0
        %6144 = vmatprep.subr.mxu0 0.0
        %6145 = vmatpush1.msra.mxu0 0.0
        %6146 = vmatprep.subr.mxu0 0.0
        %6147 = vmatpush1.msra.mxu0 0.0
        %6148 = vmatprep.subr.mxu0 0.0
        %6149 = vmatpush1.msra.mxu0 0.0
        %6150 = vmatprep.subr.mxu0 0.0
        %6151 = vmatpush1.msra.mxu0 0.0
        %6152 = vmatprep.subr.mxu0 0.0
        %6153 = vmatpush1.msra.mxu0 0.0
        %6154 = vmatprep.subr.mxu0 0.0
        %6155 = vmatpush1.msra.mxu0 0.0
        %6156 = vmatprep.subr.mxu0 0.0
        %6157 = vmatpush1.msra.mxu0 0.0
        %6158 = vmatprep.subr.mxu0 0.0
        %6159 = vmatpush1.msra.mxu0 0.0
        %6160 = vmatprep.subr.mxu0 0.0
        %6161 = vmatpush1.msra.mxu0 0.0
        %6162 = vmatprep.subr.mxu0 0.0
        %6163 = vmatpush1.msra.mxu0 %v6134
        %6164 = vmatprep.subr.mxu0 0.0
        %6165 = vmatpush1.msra.mxu0 %v6133
        %6166 = vmatprep.subr.mxu0 0.0
        %6167 = vmatpush1.msra.mxu0 %v6132
        %6168 = vmatprep.subr.mxu0 0.0
        %6169 = vmatpush1.msra.mxu0 %v6131
        %6170 = vmatprep.subr.mxu0 0.0
        %6171 = vmatpush2.msra.mxu0 0.0
        %6172 = vmatprep.subr.mxu0 0.0
        %6173 = vmatpush2.msra.mxu0 0.0
        %6174 = vmatprep.subr.mxu0 0.0
        %6175 = vmatpush2.msra.mxu0 0.0
        %6176 = vmatprep.subr.mxu0 0.0
        %6177 = vmatpush2.msra.mxu0 0.0
        %6178 = vmatprep.subr.mxu0 0.0
        %6179 = vmatpush2.msra.mxu0 0.0
        %6180 = vmatprep.subr.mxu0 0.0
        %6181 = vmatpush2.msra.mxu0 0.0
        %6182 = vmatprep.subr.mxu0 0.0
        %6183 = vmatpush2.msra.mxu0 0.0
        %6184 = vmatprep.subr.mxu0 0.0
        %6185 = vmatpush2.msra.mxu0 0.0
        %6186 = vmatprep.subr.mxu0 0.0
        %6187 = vmatpush2.msra.mxu0 0.0
        %6188 = vmatprep.subr.mxu0 0.0
        %6189 = vmatpush2.msra.mxu0 0.0
        %6190 = vmatprep.subr.mxu0 0.0
        %6191 = vmatpush2.msra.mxu0 0.0
        %6192 = vmatprep.subr.mxu0 0.0
        %6193 = vmatpush2.msra.mxu0 0.0
        %6194 = vmatprep.subr.mxu0 0.0
        %6195 = vmatpush2.msra.mxu0 0.0
        %6196 = vmatprep.subr.mxu0 0.0
        %6197 = vmatpush2.msra.mxu0 0.0
        %6198 = vmatprep.subr.mxu0 0.0
        %6199 = vmatpush2.msra.mxu0 0.0
        %6200 = vmatprep.subr.mxu0 0.0
        %6201 = vmatpush2.msra.mxu0 0.0
        %6202 = vmatprep.mubr.f32.mxu0 0.0
        %6203 = vmatmul.mubr.f32.gmra.mxu0 %v6136
        %v6204 = vpop.f32.mrf.mxu0
        %v6205 = vadd.f32 0.0, %v6204
        %v6206 = vpop.f32.mrf.mxu0
        %6207 = vdwg.mxu0
        %s6208 = scalar_lea.vmem [#allocation25], 32
        %v6209 = vld [vmem:[%s6208] sm:$0xff]
        %v6210 = vld [vmem:[%s6208 + $0x8] sm:$0xff]
        %v6211 = vld [vmem:[%s6208 + $0x10] sm:$0xff]
        %v6212 = vld [vmem:[%s6208 + $0x18] sm:$0xff]
        %6213 = vmatprep.subr.mxu0 0.0
        %6214 = vmatpush1.msra.mxu0 0.0
        %6215 = vmatprep.subr.mxu0 0.0
        %6216 = vmatpush1.msra.mxu0 0.0
        %6217 = vmatprep.subr.mxu0 0.0
        %6218 = vmatpush1.msra.mxu0 0.0
        %6219 = vmatprep.subr.mxu0 0.0
        %6220 = vmatpush1.msra.mxu0 0.0
        %6221 = vmatprep.subr.mxu0 0.0
        %6222 = vmatpush1.msra.mxu0 0.0
        %6223 = vmatprep.subr.mxu0 0.0
        %6224 = vmatpush1.msra.mxu0 0.0
        %6225 = vmatprep.subr.mxu0 0.0
        %6226 = vmatpush1.msra.mxu0 0.0
        %6227 = vmatprep.subr.mxu0 0.0
        %6228 = vmatpush1.msra.mxu0 0.0
        %6229 = vmatprep.subr.mxu0 0.0
        %6230 = vmatpush1.msra.mxu0 0.0
        %6231 = vmatprep.subr.mxu0 0.0
        %6232 = vmatpush1.msra.mxu0 0.0
        %6233 = vmatprep.subr.mxu0 0.0
        %6234 = vmatpush1.msra.mxu0 0.0
        %6235 = vmatprep.subr.mxu0 0.0
        %6236 = vmatpush1.msra.mxu0 0.0
        %6237 = vmatprep.subr.mxu0 0.0
        %6238 = vmatpush1.msra.mxu0 %v6212
        %6239 = vmatprep.subr.mxu0 0.0
        %6240 = vmatpush1.msra.mxu0 %v6211
        %6241 = vmatprep.subr.mxu0 0.0
        %6242 = vmatpush1.msra.mxu0 %v6210
        %6243 = vmatprep.subr.mxu0 0.0
        %6244 = vmatpush1.msra.mxu0 %v6209
        %6245 = vmatprep.subr.mxu0 0.0
        %6246 = vmatpush2.msra.mxu0 0.0
        %6247 = vmatprep.subr.mxu0 0.0
        %6248 = vmatpush2.msra.mxu0 0.0
        %6249 = vmatprep.subr.mxu0 0.0
        %6250 = vmatpush2.msra.mxu0 0.0
        %6251 = vmatprep.subr.mxu0 0.0
        %6252 = vmatpush2.msra.mxu0 0.0
        %6253 = vmatprep.subr.mxu0 0.0
        %6254 = vmatpush2.msra.mxu0 0.0
        %6255 = vmatprep.subr.mxu0 0.0
        %6256 = vmatpush2.msra.mxu0 0.0
        %6257 = vmatprep.subr.mxu0 0.0
        %6258 = vmatpush2.msra.mxu0 0.0
        %6259 = vmatprep.subr.mxu0 0.0
        %6260 = vmatpush2.msra.mxu0 0.0
        %6261 = vmatprep.subr.mxu0 0.0
        %6262 = vmatpush2.msra.mxu0 0.0
        %6263 = vmatprep.subr.mxu0 0.0
        %6264 = vmatpush2.msra.mxu0 0.0
        %6265 = vmatprep.subr.mxu0 0.0
        %6266 = vmatpush2.msra.mxu0 0.0
        %6267 = vmatprep.subr.mxu0 0.0
        %6268 = vmatpush2.msra.mxu0 0.0
        %6269 = vmatprep.subr.mxu0 0.0
        %6270 = vmatpush2.msra.mxu0 0.0
        %6271 = vmatprep.subr.mxu0 0.0
        %6272 = vmatpush2.msra.mxu0 0.0
        %6273 = vmatprep.subr.mxu0 0.0
        %6274 = vmatpush2.msra.mxu0 0.0
        %6275 = vmatprep.subr.mxu0 0.0
        %6276 = vmatpush2.msra.mxu0 0.0
        %6277 = vmatprep.mubr.f32.mxu0 0.0
        %6278 = vmatmul.mubr.f32.gmra.mxu0 %v6136
        %v6279 = vpop.f32.mrf.mxu0
        %v6280 = vadd.f32 0.0, %v6279
        %v6281 = vpop.f32.mrf.mxu0
        %6282 = vdwg.mxu0
        %s6283 = scalar_lea.vmem [#allocation25], 64
        %v6284 = vld [vmem:[%s6283] sm:$0xff]
        %v6285 = vld [vmem:[%s6283 + $0x8] sm:$0xff]
        %v6286 = vld [vmem:[%s6283 + $0x10] sm:$0xff]
        %v6287 = vld [vmem:[%s6283 + $0x18] sm:$0xff]
        %6288 = vmatprep.subr.mxu0 0.0
        %6289 = vmatpush1.msra.mxu0 0.0
        %6290 = vmatprep.subr.mxu0 0.0
        %6291 = vmatpush1.msra.mxu0 0.0
        %6292 = vmatprep.subr.mxu0 0.0
        %6293 = vmatpush1.msra.mxu0 0.0
        %6294 = vmatprep.subr.mxu0 0.0
        %6295 = vmatpush1.msra.mxu0 0.0
        %6296 = vmatprep.subr.mxu0 0.0
        %6297 = vmatpush1.msra.mxu0 0.0
        %6298 = vmatprep.subr.mxu0 0.0
        %6299 = vmatpush1.msra.mxu0 0.0
        %6300 = vmatprep.subr.mxu0 0.0
        %6301 = vmatpush1.msra.mxu0 0.0
        %6302 = vmatprep.subr.mxu0 0.0
        %6303 = vmatpush1.msra.mxu0 0.0
        %6304 = vmatprep.subr.mxu0 0.0
        %6305 = vmatpush1.msra.mxu0 0.0
        %6306 = vmatprep.subr.mxu0 0.0
        %6307 = vmatpush1.msra.mxu0 0.0
        %6308 = vmatprep.subr.mxu0 0.0
        %6309 = vmatpush1.msra.mxu0 0.0
        %6310 = vmatprep.subr.mxu0 0.0
        %6311 = vmatpush1.msra.mxu0 0.0
        %6312 = vmatprep.subr.mxu0 0.0
        %6313 = vmatpush1.msra.mxu0 %v6287
        %6314 = vmatprep.subr.mxu0 0.0
        %6315 = vmatpush1.msra.mxu0 %v6286
        %6316 = vmatprep.subr.mxu0 0.0
        %6317 = vmatpush1.msra.mxu0 %v6285
        %6318 = vmatprep.subr.mxu0 0.0
        %6319 = vmatpush1.msra.mxu0 %v6284
        %6320 = vmatprep.subr.mxu0 0.0
        %6321 = vmatpush2.msra.mxu0 0.0
        %6322 = vmatprep.subr.mxu0 0.0
        %6323 = vmatpush2.msra.mxu0 0.0
        %6324 = vmatprep.subr.mxu0 0.0
        %6325 = vmatpush2.msra.mxu0 0.0
        %6326 = vmatprep.subr.mxu0 0.0
        %6327 = vmatpush2.msra.mxu0 0.0
        %6328 = vmatprep.subr.mxu0 0.0
        %6329 = vmatpush2.msra.mxu0 0.0
        %6330 = vmatprep.subr.mxu0 0.0
        %6331 = vmatpush2.msra.mxu0 0.0
        %6332 = vmatprep.subr.mxu0 0.0
        %6333 = vmatpush2.msra.mxu0 0.0
        %6334 = vmatprep.subr.mxu0 0.0
        %6335 = vmatpush2.msra.mxu0 0.0
        %6336 = vmatprep.subr.mxu0 0.0
        %6337 = vmatpush2.msra.mxu0 0.0
        %6338 = vmatprep.subr.mxu0 0.0
        %6339 = vmatpush2.msra.mxu0 0.0
        %6340 = vmatprep.subr.mxu0 0.0
        %6341 = vmatpush2.msra.mxu0 0.0
        %6342 = vmatprep.subr.mxu0 0.0
        %6343 = vmatpush2.msra.mxu0 0.0
        %6344 = vmatprep.subr.mxu0 0.0
        %6345 = vmatpush2.msra.mxu0 0.0
        %6346 = vmatprep.subr.mxu0 0.0
        %6347 = vmatpush2.msra.mxu0 0.0
        %6348 = vmatprep.subr.mxu0 0.0
        %6349 = vmatpush2.msra.mxu0 0.0
        %6350 = vmatprep.subr.mxu0 0.0
        %6351 = vmatpush2.msra.mxu0 0.0
        %6352 = vmatprep.mubr.f32.mxu0 0.0
        %6353 = vmatmul.mubr.f32.gmra.mxu0 %v6136
        %v6354 = vpop.f32.mrf.mxu0
        %v6355 = vadd.f32 0.0, %v6354
        %v6356 = vpop.f32.mrf.mxu0
        %6357 = vdwg.mxu0
        %v6358 = vld [vmem:[%s67] sm:$0x1]
        %v6360 = vlaneseq
        %v6361 = vshrl.u32 %v6360, 7
        %v6362 = vsub.s32 0, %v6361
        %v6363 = vrot.slane %v6358, %v6362
        %v6365 = vadd.f32 %v6363, %v6280
        %v6367 = vsel %vm4826, %v6205, 0
        %6369 = vmatprep.subr.mxu0 0.0
        %6370 = vmatpush1.msra.mxu0 0.0
        %6371 = vmatprep.subr.mxu0 0.0
        %6372 = vmatpush1.msra.mxu0 0.0
        %6373 = vmatprep.subr.mxu0 0.0
        %6374 = vmatpush1.msra.mxu0 0.0
        %6375 = vmatprep.subr.mxu0 0.0
        %6376 = vmatpush1.msra.mxu0 0.0
        %6377 = vmatprep.subr.mxu0 0.0
        %6378 = vmatpush1.msra.mxu0 0.0
        %6379 = vmatprep.subr.mxu0 0.0
        %6380 = vmatpush1.msra.mxu0 0.0
        %6381 = vmatprep.subr.mxu0 0.0
        %6382 = vmatpush1.msra.mxu0 0.0
        %6383 = vmatprep.subr.mxu0 0.0
        %6384 = vmatpush1.msra.mxu0 0.0
        %6385 = vmatprep.subr.mxu0 0.0
        %6386 = vmatpush1.msra.mxu0 0.0
        %6387 = vmatprep.subr.mxu0 0.0
        %6388 = vmatpush1.msra.mxu0 0.0
        %6389 = vmatprep.subr.mxu0 0.0
        %6390 = vmatpush1.msra.mxu0 0.0
        %6391 = vmatprep.subr.mxu0 0.0
        %6392 = vmatpush1.msra.mxu0 0.0
        %6393 = vmatprep.subr.mxu0 0.0
        %6394 = vmatpush1.msra.mxu0 0.0
        %6395 = vmatprep.subr.mxu0 0.0
        %6396 = vmatpush1.msra.mxu0 0.0
        %6397 = vmatprep.subr.mxu0 0.0
        %6398 = vmatpush1.msra.mxu0 0.0
        %6399 = vmatprep.subr.mxu0 0.0
        %6400 = vmatpush1.msra.mxu0 %v6367
        %6401 = vmatprep.subr.mxu0 0.0
        %6402 = vmatpush2.msra.mxu0 0.0
        %6403 = vmatprep.subr.mxu0 0.0
        %6404 = vmatpush2.msra.mxu0 0.0
        %6405 = vmatprep.subr.mxu0 0.0
        %6406 = vmatpush2.msra.mxu0 0.0
        %6407 = vmatprep.subr.mxu0 0.0
        %6408 = vmatpush2.msra.mxu0 0.0
        %6409 = vmatprep.subr.mxu0 0.0
        %6410 = vmatpush2.msra.mxu0 0.0
        %6411 = vmatprep.subr.mxu0 0.0
        %6412 = vmatpush2.msra.mxu0 0.0
        %6413 = vmatprep.subr.mxu0 0.0
        %6414 = vmatpush2.msra.mxu0 0.0
        %6415 = vmatprep.subr.mxu0 0.0
        %6416 = vmatpush2.msra.mxu0 0.0
        %6417 = vmatprep.subr.mxu0 0.0
        %6418 = vmatpush2.msra.mxu0 0.0
        %6419 = vmatprep.subr.mxu0 0.0
        %6420 = vmatpush2.msra.mxu0 0.0
        %6421 = vmatprep.subr.mxu0 0.0
        %6422 = vmatpush2.msra.mxu0 0.0
        %6423 = vmatprep.subr.mxu0 0.0
        %6424 = vmatpush2.msra.mxu0 0.0
        %6425 = vmatprep.subr.mxu0 0.0
        %6426 = vmatpush2.msra.mxu0 0.0
        %6427 = vmatprep.subr.mxu0 0.0
        %6428 = vmatpush2.msra.mxu0 0.0
        %6429 = vmatprep.subr.mxu0 0.0
        %6430 = vmatpush2.msra.mxu0 0.0
        %6431 = vmatprep.subr.mxu0 0.0
        %6432 = vmatpush2.msra.mxu0 0.0
        %6433 = vmatprep.mubr.f32.mxu0 0.0
        %6434 = vmatmul.mubr.f32.gmra.mxu0 %v4824
        %v6435 = vpop.f32.mrf.mxu0
        %v6436 = vadd.f32 0.0, %v6435
        %v6437 = vpop.f32.mrf.mxu0
        %6438 = vdwg.mxu0
        %v6439 = vadd.f32 %v6365, %v6436
        %v6441 = vsel %vm4826, %v6355, 0
        %6443 = vmatprep.subr.mxu0 0.0
        %6444 = vmatpush1.msra.mxu0 0.0
        %6445 = vmatprep.subr.mxu0 0.0
        %6446 = vmatpush1.msra.mxu0 0.0
        %6447 = vmatprep.subr.mxu0 0.0
        %6448 = vmatpush1.msra.mxu0 0.0
        %6449 = vmatprep.subr.mxu0 0.0
        %6450 = vmatpush1.msra.mxu0 0.0
        %6451 = vmatprep.subr.mxu0 0.0
        %6452 = vmatpush1.msra.mxu0 0.0
        %6453 = vmatprep.subr.mxu0 0.0
        %6454 = vmatpush1.msra.mxu0 0.0
        %6455 = vmatprep.subr.mxu0 0.0
        %6456 = vmatpush1.msra.mxu0 0.0
        %6457 = vmatprep.subr.mxu0 0.0
        %6458 = vmatpush1.msra.mxu0 0.0
        %6459 = vmatprep.subr.mxu0 0.0
        %6460 = vmatpush1.msra.mxu0 0.0
        %6461 = vmatprep.subr.mxu0 0.0
        %6462 = vmatpush1.msra.mxu0 0.0
        %6463 = vmatprep.subr.mxu0 0.0
        %6464 = vmatpush1.msra.mxu0 0.0
        %6465 = vmatprep.subr.mxu0 0.0
        %6466 = vmatpush1.msra.mxu0 0.0
        %6467 = vmatprep.subr.mxu0 0.0
        %6468 = vmatpush1.msra.mxu0 0.0
        %6469 = vmatprep.subr.mxu0 0.0
        %6470 = vmatpush1.msra.mxu0 0.0
        %6471 = vmatprep.subr.mxu0 0.0
        %6472 = vmatpush1.msra.mxu0 0.0
        %6473 = vmatprep.subr.mxu0 0.0
        %6474 = vmatpush1.msra.mxu0 %v6441
        %6475 = vmatprep.subr.mxu0 0.0
        %6476 = vmatpush2.msra.mxu0 0.0
        %6477 = vmatprep.subr.mxu0 0.0
        %6478 = vmatpush2.msra.mxu0 0.0
        %6479 = vmatprep.subr.mxu0 0.0
        %6480 = vmatpush2.msra.mxu0 0.0
        %6481 = vmatprep.subr.mxu0 0.0
        %6482 = vmatpush2.msra.mxu0 0.0
        %6483 = vmatprep.subr.mxu0 0.0
        %6484 = vmatpush2.msra.mxu0 0.0
        %6485 = vmatprep.subr.mxu0 0.0
        %6486 = vmatpush2.msra.mxu0 0.0
        %6487 = vmatprep.subr.mxu0 0.0
        %6488 = vmatpush2.msra.mxu0 0.0
        %6489 = vmatprep.subr.mxu0 0.0
        %6490 = vmatpush2.msra.mxu0 0.0
        %6491 = vmatprep.subr.mxu0 0.0
        %6492 = vmatpush2.msra.mxu0 0.0
        %6493 = vmatprep.subr.mxu0 0.0
        %6494 = vmatpush2.msra.mxu0 0.0
        %6495 = vmatprep.subr.mxu0 0.0
        %6496 = vmatpush2.msra.mxu0 0.0
        %6497 = vmatprep.subr.mxu0 0.0
        %6498 = vmatpush2.msra.mxu0 0.0
        %6499 = vmatprep.subr.mxu0 0.0
        %6500 = vmatpush2.msra.mxu0 0.0
        %6501 = vmatprep.subr.mxu0 0.0
        %6502 = vmatpush2.msra.mxu0 0.0
        %6503 = vmatprep.subr.mxu0 0.0
        %6504 = vmatpush2.msra.mxu0 0.0
        %6505 = vmatprep.subr.mxu0 0.0
        %6506 = vmatpush2.msra.mxu0 0.0
        %6507 = vmatprep.mubr.f32.mxu0 0.0
        %6508 = vmatmul.mubr.f32.gmra.mxu0 %v4902
        %v6509 = vpop.f32.mrf.mxu0
        %v6510 = vadd.f32 0.0, %v6509
        %v6511 = vpop.f32.mrf.mxu0
        %6512 = vdwg.mxu0
        %v6513 = vadd.f32 %v6439, %v6510
        %v6514 = vmax.f32 %v6513, 0.0
        %v6515 = vld [vmem:[#allocation27] sm:$0xff]
        %v6516 = vld [vmem:[#allocation27 + $0x8] sm:$0xff]
        %v6517 = vld [vmem:[#allocation27 + $0x10] sm:$0xff]
        %v6518 = vld [vmem:[#allocation27 + $0x18] sm:$0xff]
        %v6520 = vsel %vm4590, %v6514, 0
        %6522 = vmatprep.subr.mxu0 0.0
        %6523 = vmatpush1.msra.mxu0 0.0
        %6524 = vmatprep.subr.mxu0 0.0
        %6525 = vmatpush1.msra.mxu0 0.0
        %6526 = vmatprep.subr.mxu0 0.0
        %6527 = vmatpush1.msra.mxu0 0.0
        %6528 = vmatprep.subr.mxu0 0.0
        %6529 = vmatpush1.msra.mxu0 0.0
        %6530 = vmatprep.subr.mxu0 0.0
        %6531 = vmatpush1.msra.mxu0 0.0
        %6532 = vmatprep.subr.mxu0 0.0
        %6533 = vmatpush1.msra.mxu0 0.0
        %6534 = vmatprep.subr.mxu0 0.0
        %6535 = vmatpush1.msra.mxu0 0.0
        %6536 = vmatprep.subr.mxu0 0.0
        %6537 = vmatpush1.msra.mxu0 0.0
        %6538 = vmatprep.subr.mxu0 0.0
        %6539 = vmatpush1.msra.mxu0 0.0
        %6540 = vmatprep.subr.mxu0 0.0
        %6541 = vmatpush1.msra.mxu0 0.0
        %6542 = vmatprep.subr.mxu0 0.0
        %6543 = vmatpush1.msra.mxu0 0.0
        %6544 = vmatprep.subr.mxu0 0.0
        %6545 = vmatpush1.msra.mxu0 0.0
        %6546 = vmatprep.subr.mxu0 0.0
        %6547 = vmatpush1.msra.mxu0 %v6518
        %6548 = vmatprep.subr.mxu0 0.0
        %6549 = vmatpush1.msra.mxu0 %v6517
        %6550 = vmatprep.subr.mxu0 0.0
        %6551 = vmatpush1.msra.mxu0 %v6516
        %6552 = vmatprep.subr.mxu0 0.0
        %6553 = vmatpush1.msra.mxu0 %v6515
        %6554 = vmatprep.subr.mxu0 0.0
        %6555 = vmatpush2.msra.mxu0 0.0
        %6556 = vmatprep.subr.mxu0 0.0
        %6557 = vmatpush2.msra.mxu0 0.0
        %6558 = vmatprep.subr.mxu0 0.0
        %6559 = vmatpush2.msra.mxu0 0.0
        %6560 = vmatprep.subr.mxu0 0.0
        %6561 = vmatpush2.msra.mxu0 0.0
        %6562 = vmatprep.subr.mxu0 0.0
        %6563 = vmatpush2.msra.mxu0 0.0
        %6564 = vmatprep.subr.mxu0 0.0
        %6565 = vmatpush2.msra.mxu0 0.0
        %6566 = vmatprep.subr.mxu0 0.0
        %6567 = vmatpush2.msra.mxu0 0.0
        %6568 = vmatprep.subr.mxu0 0.0
        %6569 = vmatpush2.msra.mxu0 0.0
        %6570 = vmatprep.subr.mxu0 0.0
        %6571 = vmatpush2.msra.mxu0 0.0
        %6572 = vmatprep.subr.mxu0 0.0
        %6573 = vmatpush2.msra.mxu0 0.0
        %6574 = vmatprep.subr.mxu0 0.0
        %6575 = vmatpush2.msra.mxu0 0.0
        %6576 = vmatprep.subr.mxu0 0.0
        %6577 = vmatpush2.msra.mxu0 0.0
        %6578 = vmatprep.subr.mxu0 0.0
        %6579 = vmatpush2.msra.mxu0 0.0
        %6580 = vmatprep.subr.mxu0 0.0
        %6581 = vmatpush2.msra.mxu0 0.0
        %6582 = vmatprep.subr.mxu0 0.0
        %6583 = vmatpush2.msra.mxu0 0.0
        %6584 = vmatprep.subr.mxu0 0.0
        %6585 = vmatpush2.msra.mxu0 0.0
        %6586 = vmatprep.mubr.f32.mxu0 0.0
        %6587 = vmatmul.mubr.f32.gmra.mxu0 %v6520
        %v6588 = vpop.f32.mrf.mxu0
        %v6589 = vadd.f32 0.0, %v6588
        %v6590 = vpop.f32.mrf.mxu0
        %6591 = vdwg.mxu0
        %s6592 = scalar_lea.vmem [#allocation27], 32
        %v6593 = vld [vmem:[%s6592] sm:$0xff]
        %v6594 = vld [vmem:[%s6592 + $0x8] sm:$0xff]
        %v6595 = vld [vmem:[%s6592 + $0x10] sm:$0xff]
        %v6596 = vld [vmem:[%s6592 + $0x18] sm:$0xff]
        %6597 = vmatprep.subr.mxu0 0.0
        %6598 = vmatpush1.msra.mxu0 0.0
        %6599 = vmatprep.subr.mxu0 0.0
        %6600 = vmatpush1.msra.mxu0 0.0
        %6601 = vmatprep.subr.mxu0 0.0
        %6602 = vmatpush1.msra.mxu0 0.0
        %6603 = vmatprep.subr.mxu0 0.0
        %6604 = vmatpush1.msra.mxu0 0.0
        %6605 = vmatprep.subr.mxu0 0.0
        %6606 = vmatpush1.msra.mxu0 0.0
        %6607 = vmatprep.subr.mxu0 0.0
        %6608 = vmatpush1.msra.mxu0 0.0
        %6609 = vmatprep.subr.mxu0 0.0
        %6610 = vmatpush1.msra.mxu0 0.0
        %6611 = vmatprep.subr.mxu0 0.0
        %6612 = vmatpush1.msra.mxu0 0.0
        %6613 = vmatprep.subr.mxu0 0.0
        %6614 = vmatpush1.msra.mxu0 0.0
        %6615 = vmatprep.subr.mxu0 0.0
        %6616 = vmatpush1.msra.mxu0 0.0
        %6617 = vmatprep.subr.mxu0 0.0
        %6618 = vmatpush1.msra.mxu0 0.0
        %6619 = vmatprep.subr.mxu0 0.0
        %6620 = vmatpush1.msra.mxu0 0.0
        %6621 = vmatprep.subr.mxu0 0.0
        %6622 = vmatpush1.msra.mxu0 %v6596
        %6623 = vmatprep.subr.mxu0 0.0
        %6624 = vmatpush1.msra.mxu0 %v6595
        %6625 = vmatprep.subr.mxu0 0.0
        %6626 = vmatpush1.msra.mxu0 %v6594
        %6627 = vmatprep.subr.mxu0 0.0
        %6628 = vmatpush1.msra.mxu0 %v6593
        %6629 = vmatprep.subr.mxu0 0.0
        %6630 = vmatpush2.msra.mxu0 0.0
        %6631 = vmatprep.subr.mxu0 0.0
        %6632 = vmatpush2.msra.mxu0 0.0
        %6633 = vmatprep.subr.mxu0 0.0
        %6634 = vmatpush2.msra.mxu0 0.0
        %6635 = vmatprep.subr.mxu0 0.0
        %6636 = vmatpush2.msra.mxu0 0.0
        %6637 = vmatprep.subr.mxu0 0.0
        %6638 = vmatpush2.msra.mxu0 0.0
        %6639 = vmatprep.subr.mxu0 0.0
        %6640 = vmatpush2.msra.mxu0 0.0
        %6641 = vmatprep.subr.mxu0 0.0
        %6642 = vmatpush2.msra.mxu0 0.0
        %6643 = vmatprep.subr.mxu0 0.0
        %6644 = vmatpush2.msra.mxu0 0.0
        %6645 = vmatprep.subr.mxu0 0.0
        %6646 = vmatpush2.msra.mxu0 0.0
        %6647 = vmatprep.subr.mxu0 0.0
        %6648 = vmatpush2.msra.mxu0 0.0
        %6649 = vmatprep.subr.mxu0 0.0
        %6650 = vmatpush2.msra.mxu0 0.0
        %6651 = vmatprep.subr.mxu0 0.0
        %6652 = vmatpush2.msra.mxu0 0.0
        %6653 = vmatprep.subr.mxu0 0.0
        %6654 = vmatpush2.msra.mxu0 0.0
        %6655 = vmatprep.subr.mxu0 0.0
        %6656 = vmatpush2.msra.mxu0 0.0
        %6657 = vmatprep.subr.mxu0 0.0
        %6658 = vmatpush2.msra.mxu0 0.0
        %6659 = vmatprep.subr.mxu0 0.0
        %6660 = vmatpush2.msra.mxu0 0.0
        %6661 = vmatprep.mubr.f32.mxu0 0.0
        %6662 = vmatmul.mubr.f32.gmra.mxu0 %v6520
        %v6663 = vpop.f32.mrf.mxu0
        %v6664 = vadd.f32 0.0, %v6663
        %v6665 = vpop.f32.mrf.mxu0
        %6666 = vdwg.mxu0
        %s6667 = scalar_lea.vmem [#allocation27], 64
        %v6668 = vld [vmem:[%s6667] sm:$0xff]
        %v6669 = vld [vmem:[%s6667 + $0x8] sm:$0xff]
        %v6670 = vld [vmem:[%s6667 + $0x10] sm:$0xff]
        %v6671 = vld [vmem:[%s6667 + $0x18] sm:$0xff]
        %6672 = vmatprep.subr.mxu0 0.0
        %6673 = vmatpush1.msra.mxu0 0.0
        %6674 = vmatprep.subr.mxu0 0.0
        %6675 = vmatpush1.msra.mxu0 0.0
        %6676 = vmatprep.subr.mxu0 0.0
        %6677 = vmatpush1.msra.mxu0 0.0
        %6678 = vmatprep.subr.mxu0 0.0
        %6679 = vmatpush1.msra.mxu0 0.0
        %6680 = vmatprep.subr.mxu0 0.0
        %6681 = vmatpush1.msra.mxu0 0.0
        %6682 = vmatprep.subr.mxu0 0.0
        %6683 = vmatpush1.msra.mxu0 0.0
        %6684 = vmatprep.subr.mxu0 0.0
        %6685 = vmatpush1.msra.mxu0 0.0
        %6686 = vmatprep.subr.mxu0 0.0
        %6687 = vmatpush1.msra.mxu0 0.0
        %6688 = vmatprep.subr.mxu0 0.0
        %6689 = vmatpush1.msra.mxu0 0.0
        %6690 = vmatprep.subr.mxu0 0.0
        %6691 = vmatpush1.msra.mxu0 0.0
        %6692 = vmatprep.subr.mxu0 0.0
        %6693 = vmatpush1.msra.mxu0 0.0
        %6694 = vmatprep.subr.mxu0 0.0
        %6695 = vmatpush1.msra.mxu0 0.0
        %6696 = vmatprep.subr.mxu0 0.0
        %6697 = vmatpush1.msra.mxu0 %v6671
        %6698 = vmatprep.subr.mxu0 0.0
        %6699 = vmatpush1.msra.mxu0 %v6670
        %6700 = vmatprep.subr.mxu0 0.0
        %6701 = vmatpush1.msra.mxu0 %v6669
        %6702 = vmatprep.subr.mxu0 0.0
        %6703 = vmatpush1.msra.mxu0 %v6668
        %6704 = vmatprep.subr.mxu0 0.0
        %6705 = vmatpush2.msra.mxu0 0.0
        %6706 = vmatprep.subr.mxu0 0.0
        %6707 = vmatpush2.msra.mxu0 0.0
        %6708 = vmatprep.subr.mxu0 0.0
        %6709 = vmatpush2.msra.mxu0 0.0
        %6710 = vmatprep.subr.mxu0 0.0
        %6711 = vmatpush2.msra.mxu0 0.0
        %6712 = vmatprep.subr.mxu0 0.0
        %6713 = vmatpush2.msra.mxu0 0.0
        %6714 = vmatprep.subr.mxu0 0.0
        %6715 = vmatpush2.msra.mxu0 0.0
        %6716 = vmatprep.subr.mxu0 0.0
        %6717 = vmatpush2.msra.mxu0 0.0
        %6718 = vmatprep.subr.mxu0 0.0
        %6719 = vmatpush2.msra.mxu0 0.0
        %6720 = vmatprep.subr.mxu0 0.0
        %6721 = vmatpush2.msra.mxu0 0.0
        %6722 = vmatprep.subr.mxu0 0.0
        %6723 = vmatpush2.msra.mxu0 0.0
        %6724 = vmatprep.subr.mxu0 0.0
        %6725 = vmatpush2.msra.mxu0 0.0
        %6726 = vmatprep.subr.mxu0 0.0
        %6727 = vmatpush2.msra.mxu0 0.0
        %6728 = vmatprep.subr.mxu0 0.0
        %6729 = vmatpush2.msra.mxu0 0.0
        %6730 = vmatprep.subr.mxu0 0.0
        %6731 = vmatpush2.msra.mxu0 0.0
        %6732 = vmatprep.subr.mxu0 0.0
        %6733 = vmatpush2.msra.mxu0 0.0
        %6734 = vmatprep.subr.mxu0 0.0
        %6735 = vmatpush2.msra.mxu0 0.0
        %6736 = vmatprep.mubr.f32.mxu0 0.0
        %6737 = vmatmul.mubr.f32.gmra.mxu0 %v6520
        %v6738 = vpop.f32.mrf.mxu0
        %v6739 = vadd.f32 0.0, %v6738
        %v6740 = vpop.f32.mrf.mxu0
        %6741 = vdwg.mxu0
        %v6742 = vld [vmem:[%s71] sm:$0x1]
        %v6744 = vlaneseq
        %v6745 = vshrl.u32 %v6744, 7
        %v6746 = vsub.s32 0, %v6745
        %v6747 = vrot.slane %v6742, %v6746
        %v6749 = vadd.f32 %v6747, %v6664
        %v6751 = vsel %vm4826, %v6589, 0
        %6753 = vmatprep.subr.mxu0 0.0
        %6754 = vmatpush1.msra.mxu0 0.0
        %6755 = vmatprep.subr.mxu0 0.0
        %6756 = vmatpush1.msra.mxu0 0.0
        %6757 = vmatprep.subr.mxu0 0.0
        %6758 = vmatpush1.msra.mxu0 0.0
        %6759 = vmatprep.subr.mxu0 0.0
        %6760 = vmatpush1.msra.mxu0 0.0
        %6761 = vmatprep.subr.mxu0 0.0
        %6762 = vmatpush1.msra.mxu0 0.0
        %6763 = vmatprep.subr.mxu0 0.0
        %6764 = vmatpush1.msra.mxu0 0.0
        %6765 = vmatprep.subr.mxu0 0.0
        %6766 = vmatpush1.msra.mxu0 0.0
        %6767 = vmatprep.subr.mxu0 0.0
        %6768 = vmatpush1.msra.mxu0 0.0
        %6769 = vmatprep.subr.mxu0 0.0
        %6770 = vmatpush1.msra.mxu0 0.0
        %6771 = vmatprep.subr.mxu0 0.0
        %6772 = vmatpush1.msra.mxu0 0.0
        %6773 = vmatprep.subr.mxu0 0.0
        %6774 = vmatpush1.msra.mxu0 0.0
        %6775 = vmatprep.subr.mxu0 0.0
        %6776 = vmatpush1.msra.mxu0 0.0
        %6777 = vmatprep.subr.mxu0 0.0
        %6778 = vmatpush1.msra.mxu0 0.0
        %6779 = vmatprep.subr.mxu0 0.0
        %6780 = vmatpush1.msra.mxu0 0.0
        %6781 = vmatprep.subr.mxu0 0.0
        %6782 = vmatpush1.msra.mxu0 0.0
        %6783 = vmatprep.subr.mxu0 0.0
        %6784 = vmatpush1.msra.mxu0 %v6751
        %6785 = vmatprep.subr.mxu0 0.0
        %6786 = vmatpush2.msra.mxu0 0.0
        %6787 = vmatprep.subr.mxu0 0.0
        %6788 = vmatpush2.msra.mxu0 0.0
        %6789 = vmatprep.subr.mxu0 0.0
        %6790 = vmatpush2.msra.mxu0 0.0
        %6791 = vmatprep.subr.mxu0 0.0
        %6792 = vmatpush2.msra.mxu0 0.0
        %6793 = vmatprep.subr.mxu0 0.0
        %6794 = vmatpush2.msra.mxu0 0.0
        %6795 = vmatprep.subr.mxu0 0.0
        %6796 = vmatpush2.msra.mxu0 0.0
        %6797 = vmatprep.subr.mxu0 0.0
        %6798 = vmatpush2.msra.mxu0 0.0
        %6799 = vmatprep.subr.mxu0 0.0
        %6800 = vmatpush2.msra.mxu0 0.0
        %6801 = vmatprep.subr.mxu0 0.0
        %6802 = vmatpush2.msra.mxu0 0.0
        %6803 = vmatprep.subr.mxu0 0.0
        %6804 = vmatpush2.msra.mxu0 0.0
        %6805 = vmatprep.subr.mxu0 0.0
        %6806 = vmatpush2.msra.mxu0 0.0
        %6807 = vmatprep.subr.mxu0 0.0
        %6808 = vmatpush2.msra.mxu0 0.0
        %6809 = vmatprep.subr.mxu0 0.0
        %6810 = vmatpush2.msra.mxu0 0.0
        %6811 = vmatprep.subr.mxu0 0.0
        %6812 = vmatpush2.msra.mxu0 0.0
        %6813 = vmatprep.subr.mxu0 0.0
        %6814 = vmatpush2.msra.mxu0 0.0
        %6815 = vmatprep.subr.mxu0 0.0
        %6816 = vmatpush2.msra.mxu0 0.0
        %6817 = vmatprep.mubr.f32.mxu0 0.0
        %6818 = vmatmul.mubr.f32.gmra.mxu0 %v4824
        %v6819 = vpop.f32.mrf.mxu0
        %v6820 = vadd.f32 0.0, %v6819
        %v6821 = vpop.f32.mrf.mxu0
        %6822 = vdwg.mxu0
        %v6823 = vadd.f32 %v6749, %v6820
        %v6825 = vsel %vm4826, %v6739, 0
        %6827 = vmatprep.subr.mxu0 0.0
        %6828 = vmatpush1.msra.mxu0 0.0
        %6829 = vmatprep.subr.mxu0 0.0
        %6830 = vmatpush1.msra.mxu0 0.0
        %6831 = vmatprep.subr.mxu0 0.0
        %6832 = vmatpush1.msra.mxu0 0.0
        %6833 = vmatprep.subr.mxu0 0.0
        %6834 = vmatpush1.msra.mxu0 0.0
        %6835 = vmatprep.subr.mxu0 0.0
        %6836 = vmatpush1.msra.mxu0 0.0
        %6837 = vmatprep.subr.mxu0 0.0
        %6838 = vmatpush1.msra.mxu0 0.0
        %6839 = vmatprep.subr.mxu0 0.0
        %6840 = vmatpush1.msra.mxu0 0.0
        %6841 = vmatprep.subr.mxu0 0.0
        %6842 = vmatpush1.msra.mxu0 0.0
        %6843 = vmatprep.subr.mxu0 0.0
        %6844 = vmatpush1.msra.mxu0 0.0
        %6845 = vmatprep.subr.mxu0 0.0
        %6846 = vmatpush1.msra.mxu0 0.0
        %6847 = vmatprep.subr.mxu0 0.0
        %6848 = vmatpush1.msra.mxu0 0.0
        %6849 = vmatprep.subr.mxu0 0.0
        %6850 = vmatpush1.msra.mxu0 0.0
        %6851 = vmatprep.subr.mxu0 0.0
        %6852 = vmatpush1.msra.mxu0 0.0
        %6853 = vmatprep.subr.mxu0 0.0
        %6854 = vmatpush1.msra.mxu0 0.0
        %6855 = vmatprep.subr.mxu0 0.0
        %6856 = vmatpush1.msra.mxu0 0.0
        %6857 = vmatprep.subr.mxu0 0.0
        %6858 = vmatpush1.msra.mxu0 %v6825
        %6859 = vmatprep.subr.mxu0 0.0
        %6860 = vmatpush2.msra.mxu0 0.0
        %6861 = vmatprep.subr.mxu0 0.0
        %6862 = vmatpush2.msra.mxu0 0.0
        %6863 = vmatprep.subr.mxu0 0.0
        %6864 = vmatpush2.msra.mxu0 0.0
        %6865 = vmatprep.subr.mxu0 0.0
        %6866 = vmatpush2.msra.mxu0 0.0
        %6867 = vmatprep.subr.mxu0 0.0
        %6868 = vmatpush2.msra.mxu0 0.0
        %6869 = vmatprep.subr.mxu0 0.0
        %6870 = vmatpush2.msra.mxu0 0.0
        %6871 = vmatprep.subr.mxu0 0.0
        %6872 = vmatpush2.msra.mxu0 0.0
        %6873 = vmatprep.subr.mxu0 0.0
        %6874 = vmatpush2.msra.mxu0 0.0
        %6875 = vmatprep.subr.mxu0 0.0
        %6876 = vmatpush2.msra.mxu0 0.0
        %6877 = vmatprep.subr.mxu0 0.0
        %6878 = vmatpush2.msra.mxu0 0.0
        %6879 = vmatprep.subr.mxu0 0.0
        %6880 = vmatpush2.msra.mxu0 0.0
        %6881 = vmatprep.subr.mxu0 0.0
        %6882 = vmatpush2.msra.mxu0 0.0
        %6883 = vmatprep.subr.mxu0 0.0
        %6884 = vmatpush2.msra.mxu0 0.0
        %6885 = vmatprep.subr.mxu0 0.0
        %6886 = vmatpush2.msra.mxu0 0.0
        %6887 = vmatprep.subr.mxu0 0.0
        %6888 = vmatpush2.msra.mxu0 0.0
        %6889 = vmatprep.subr.mxu0 0.0
        %6890 = vmatpush2.msra.mxu0 0.0
        %6891 = vmatprep.mubr.f32.mxu0 0.0
        %6892 = vmatmul.mubr.f32.gmra.mxu0 %v4902
        %v6893 = vpop.f32.mrf.mxu0
        %v6894 = vadd.f32 0.0, %v6893
        %v6895 = vpop.f32.mrf.mxu0
        %6896 = vdwg.mxu0
        %v6897 = vadd.f32 %v6823, %v6894
        %v6898 = vadd.f32 %v6130, %v6897
        %v6899 = vld [vmem:[%s21] sm:$0xff]
        %v6901 = vsel %vm4822, %v6899, 0
        %v6904 = vsel %vm4826, %v6898, 0
        %6906 = vmatprep.subr.mxu0 0.0
        %6907 = vmatpush1.msra.mxu0 0.0
        %6908 = vmatprep.subr.mxu0 0.0
        %6909 = vmatpush1.msra.mxu0 0.0
        %6910 = vmatprep.subr.mxu0 0.0
        %6911 = vmatpush1.msra.mxu0 0.0
        %6912 = vmatprep.subr.mxu0 0.0
        %6913 = vmatpush1.msra.mxu0 0.0
        %6914 = vmatprep.subr.mxu0 0.0
        %6915 = vmatpush1.msra.mxu0 0.0
        %6916 = vmatprep.subr.mxu0 0.0
        %6917 = vmatpush1.msra.mxu0 0.0
        %6918 = vmatprep.subr.mxu0 0.0
        %6919 = vmatpush1.msra.mxu0 0.0
        %6920 = vmatprep.subr.mxu0 0.0
        %6921 = vmatpush1.msra.mxu0 0.0
        %6922 = vmatprep.subr.mxu0 0.0
        %6923 = vmatpush1.msra.mxu0 0.0
        %6924 = vmatprep.subr.mxu0 0.0
        %6925 = vmatpush1.msra.mxu0 0.0
        %6926 = vmatprep.subr.mxu0 0.0
        %6927 = vmatpush1.msra.mxu0 0.0
        %6928 = vmatprep.subr.mxu0 0.0
        %6929 = vmatpush1.msra.mxu0 0.0
        %6930 = vmatprep.subr.mxu0 0.0
        %6931 = vmatpush1.msra.mxu0 0.0
        %6932 = vmatprep.subr.mxu0 0.0
        %6933 = vmatpush1.msra.mxu0 0.0
        %6934 = vmatprep.subr.mxu0 0.0
        %6935 = vmatpush1.msra.mxu0 0.0
        %6936 = vmatprep.subr.mxu0 0.0
        %6937 = vmatpush1.msra.mxu0 %v6904
        %6938 = vmatprep.subr.mxu0 0.0
        %6939 = vmatpush2.msra.mxu0 0.0
        %6940 = vmatprep.subr.mxu0 0.0
        %6941 = vmatpush2.msra.mxu0 0.0
        %6942 = vmatprep.subr.mxu0 0.0
        %6943 = vmatpush2.msra.mxu0 0.0
        %6944 = vmatprep.subr.mxu0 0.0
        %6945 = vmatpush2.msra.mxu0 0.0
        %6946 = vmatprep.subr.mxu0 0.0
        %6947 = vmatpush2.msra.mxu0 0.0
        %6948 = vmatprep.subr.mxu0 0.0
        %6949 = vmatpush2.msra.mxu0 0.0
        %6950 = vmatprep.subr.mxu0 0.0
        %6951 = vmatpush2.msra.mxu0 0.0
        %6952 = vmatprep.subr.mxu0 0.0
        %6953 = vmatpush2.msra.mxu0 0.0
        %6954 = vmatprep.subr.mxu0 0.0
        %6955 = vmatpush2.msra.mxu0 0.0
        %6956 = vmatprep.subr.mxu0 0.0
        %6957 = vmatpush2.msra.mxu0 0.0
        %6958 = vmatprep.subr.mxu0 0.0
        %6959 = vmatpush2.msra.mxu0 0.0
        %6960 = vmatprep.subr.mxu0 0.0
        %6961 = vmatpush2.msra.mxu0 0.0
        %6962 = vmatprep.subr.mxu0 0.0
        %6963 = vmatpush2.msra.mxu0 0.0
        %6964 = vmatprep.subr.mxu0 0.0
        %6965 = vmatpush2.msra.mxu0 0.0
        %6966 = vmatprep.subr.mxu0 0.0
        %6967 = vmatpush2.msra.mxu0 0.0
        %6968 = vmatprep.subr.mxu0 0.0
        %6969 = vmatpush2.msra.mxu0 0.0
        %6970 = vmatprep.mubr.f32.mxu0 0.0
        %6971 = vmatmul.mubr.f32.gmra.mxu0 %v6901
        %v6972 = vpop.f32.mrf.mxu0
        %v6973 = vadd.f32 0.0, %v6972
        %v6974 = vpop.f32.mrf.mxu0
        %6975 = vdwg.mxu0
        %v6976 = vld [vmem:[#allocation10] sm:$0xff]
        %v6977 = vld [vmem:[#allocation10 + $0x8] sm:$0xff]
        %v6978 = vld [vmem:[#allocation10 + $0x10] sm:$0xff]
        %v6979 = vld [vmem:[#allocation10 + $0x18] sm:$0xff]
        %v6981 = vsel %vm4590, %v6973, 0
        %6983 = vmatprep.subr.mxu0 0.0
        %6984 = vmatpush1.msra.mxu0 0.0
        %6985 = vmatprep.subr.mxu0 0.0
        %6986 = vmatpush1.msra.mxu0 0.0
        %6987 = vmatprep.subr.mxu0 0.0
        %6988 = vmatpush1.msra.mxu0 0.0
        %6989 = vmatprep.subr.mxu0 0.0
        %6990 = vmatpush1.msra.mxu0 0.0
        %6991 = vmatprep.subr.mxu0 0.0
        %6992 = vmatpush1.msra.mxu0 0.0
        %6993 = vmatprep.subr.mxu0 0.0
        %6994 = vmatpush1.msra.mxu0 0.0
        %6995 = vmatprep.subr.mxu0 0.0
        %6996 = vmatpush1.msra.mxu0 0.0
        %6997 = vmatprep.subr.mxu0 0.0
        %6998 = vmatpush1.msra.mxu0 0.0
        %6999 = vmatprep.subr.mxu0 0.0
        %7000 = vmatpush1.msra.mxu0 0.0
        %7001 = vmatprep.subr.mxu0 0.0
        %7002 = vmatpush1.msra.mxu0 0.0
        %7003 = vmatprep.subr.mxu0 0.0
        %7004 = vmatpush1.msra.mxu0 0.0
        %7005 = vmatprep.subr.mxu0 0.0
        %7006 = vmatpush1.msra.mxu0 0.0
        %7007 = vmatprep.subr.mxu0 0.0
        %7008 = vmatpush1.msra.mxu0 %v6979
        %7009 = vmatprep.subr.mxu0 0.0
        %7010 = vmatpush1.msra.mxu0 %v6978
        %7011 = vmatprep.subr.mxu0 0.0
        %7012 = vmatpush1.msra.mxu0 %v6977
        %7013 = vmatprep.subr.mxu0 0.0
        %7014 = vmatpush1.msra.mxu0 %v6976
        %7015 = vmatprep.subr.mxu0 0.0
        %7016 = vmatpush2.msra.mxu0 0.0
        %7017 = vmatprep.subr.mxu0 0.0
        %7018 = vmatpush2.msra.mxu0 0.0
        %7019 = vmatprep.subr.mxu0 0.0
        %7020 = vmatpush2.msra.mxu0 0.0
        %7021 = vmatprep.subr.mxu0 0.0
        %7022 = vmatpush2.msra.mxu0 0.0
        %7023 = vmatprep.subr.mxu0 0.0
        %7024 = vmatpush2.msra.mxu0 0.0
        %7025 = vmatprep.subr.mxu0 0.0
        %7026 = vmatpush2.msra.mxu0 0.0
        %7027 = vmatprep.subr.mxu0 0.0
        %7028 = vmatpush2.msra.mxu0 0.0
        %7029 = vmatprep.subr.mxu0 0.0
        %7030 = vmatpush2.msra.mxu0 0.0
        %7031 = vmatprep.subr.mxu0 0.0
        %7032 = vmatpush2.msra.mxu0 0.0
        %7033 = vmatprep.subr.mxu0 0.0
        %7034 = vmatpush2.msra.mxu0 0.0
        %7035 = vmatprep.subr.mxu0 0.0
        %7036 = vmatpush2.msra.mxu0 0.0
        %7037 = vmatprep.subr.mxu0 0.0
        %7038 = vmatpush2.msra.mxu0 0.0
        %7039 = vmatprep.subr.mxu0 0.0
        %7040 = vmatpush2.msra.mxu0 0.0
        %7041 = vmatprep.subr.mxu0 0.0
        %7042 = vmatpush2.msra.mxu0 0.0
        %7043 = vmatprep.subr.mxu0 0.0
        %7044 = vmatpush2.msra.mxu0 0.0
        %7045 = vmatprep.subr.mxu0 0.0
        %7046 = vmatpush2.msra.mxu0 0.0
        %7047 = vmatprep.mubr.f32.mxu0 0.0
        %7048 = vmatmul.mubr.f32.gmra.mxu0 %v6981
        %v7049 = vpop.f32.mrf.mxu0
        %v7050 = vadd.f32 0.0, %v7049
        %v7051 = vpop.f32.mrf.mxu0
        %7052 = vdwg.mxu0
        %v7053 = vadd.f32 %v4271, %v7050
        %v7054 = vld [vmem:[%s41] sm:$0xff]
        %v7055 = vld [vmem:[%s41 + $0x8] sm:$0xff]
        %v7056 = vld [vmem:[%s41 + $0x10] sm:$0xff]
        %v7057 = vld [vmem:[%s41 + $0x18] sm:$0xff]
        %v7058 = vld [vmem:[%s41 + $0x20] sm:$0xff]
        %v7059 = vld [vmem:[%s41 + $0x28] sm:$0xff]
        %v7060 = vld [vmem:[%s41 + $0x30] sm:$0xff]
        %v7061 = vld [vmem:[%s41 + $0x38] sm:$0xff]
        %v7063 = vsel %vm2712, %v7053, 0
        %7065 = vmatprep.subr.mxu0 0.0
        %7066 = vmatpush1.msra.mxu0 0.0
        %7067 = vmatprep.subr.mxu0 0.0
        %7068 = vmatpush1.msra.mxu0 0.0
        %7069 = vmatprep.subr.mxu0 0.0
        %7070 = vmatpush1.msra.mxu0 0.0
        %7071 = vmatprep.subr.mxu0 0.0
        %7072 = vmatpush1.msra.mxu0 0.0
        %7073 = vmatprep.subr.mxu0 0.0
        %7074 = vmatpush1.msra.mxu0 0.0
        %7075 = vmatprep.subr.mxu0 0.0
        %7076 = vmatpush1.msra.mxu0 0.0
        %7077 = vmatprep.subr.mxu0 0.0
        %7078 = vmatpush1.msra.mxu0 0.0
        %7079 = vmatprep.subr.mxu0 0.0
        %7080 = vmatpush1.msra.mxu0 0.0
        %7081 = vmatprep.subr.mxu0 0.0
        %7082 = vmatpush1.msra.mxu0 %v7061
        %7083 = vmatprep.subr.mxu0 0.0
        %7084 = vmatpush1.msra.mxu0 %v7060
        %7085 = vmatprep.subr.mxu0 0.0
        %7086 = vmatpush1.msra.mxu0 %v7059
        %7087 = vmatprep.subr.mxu0 0.0
        %7088 = vmatpush1.msra.mxu0 %v7058
        %7089 = vmatprep.subr.mxu0 0.0
        %7090 = vmatpush1.msra.mxu0 %v7057
        %7091 = vmatprep.subr.mxu0 0.0
        %7092 = vmatpush1.msra.mxu0 %v7056
        %7093 = vmatprep.subr.mxu0 0.0
        %7094 = vmatpush1.msra.mxu0 %v7055
        %7095 = vmatprep.subr.mxu0 0.0
        %7096 = vmatpush1.msra.mxu0 %v7054
        %7097 = vmatprep.subr.mxu0 0.0
        %7098 = vmatpush2.msra.mxu0 0.0
        %7099 = vmatprep.subr.mxu0 0.0
        %7100 = vmatpush2.msra.mxu0 0.0
        %7101 = vmatprep.subr.mxu0 0.0
        %7102 = vmatpush2.msra.mxu0 0.0
        %7103 = vmatprep.subr.mxu0 0.0
        %7104 = vmatpush2.msra.mxu0 0.0
        %7105 = vmatprep.subr.mxu0 0.0
        %7106 = vmatpush2.msra.mxu0 0.0
        %7107 = vmatprep.subr.mxu0 0.0
        %7108 = vmatpush2.msra.mxu0 0.0
        %7109 = vmatprep.subr.mxu0 0.0
        %7110 = vmatpush2.msra.mxu0 0.0
        %7111 = vmatprep.subr.mxu0 0.0
        %7112 = vmatpush2.msra.mxu0 0.0
        %7113 = vmatprep.subr.mxu0 0.0
        %7114 = vmatpush2.msra.mxu0 0.0
        %7115 = vmatprep.subr.mxu0 0.0
        %7116 = vmatpush2.msra.mxu0 0.0
        %7117 = vmatprep.subr.mxu0 0.0
        %7118 = vmatpush2.msra.mxu0 0.0
        %7119 = vmatprep.subr.mxu0 0.0
        %7120 = vmatpush2.msra.mxu0 0.0
        %7121 = vmatprep.subr.mxu0 0.0
        %7122 = vmatpush2.msra.mxu0 0.0
        %7123 = vmatprep.subr.mxu0 0.0
        %7124 = vmatpush2.msra.mxu0 0.0
        %7125 = vmatprep.subr.mxu0 0.0
        %7126 = vmatpush2.msra.mxu0 0.0
        %7127 = vmatprep.subr.mxu0 0.0
        %7128 = vmatpush2.msra.mxu0 0.0
        %7129 = vmatprep.mubr.f32.mxu0 0.0
        %7130 = vmatmul.mubr.f32.gmra.mxu0 %v7063
        %v7131 = vpop.f32.mrf.mxu0
        %v7132 = vadd.f32 0.0, %v7131
        %v7133 = vpop.f32.mrf.mxu0
        %7134 = vdwg.mxu0
        %s7135 = scalar_lea.vmem %s41, 64
        %v7136 = vld [vmem:[%s7135] sm:$0xff]
        %v7137 = vld [vmem:[%s7135 + $0x8] sm:$0xff]
        %v7138 = vld [vmem:[%s7135 + $0x10] sm:$0xff]
        %v7139 = vld [vmem:[%s7135 + $0x18] sm:$0xff]
        %v7140 = vld [vmem:[%s7135 + $0x20] sm:$0xff]
        %v7141 = vld [vmem:[%s7135 + $0x28] sm:$0xff]
        %v7142 = vld [vmem:[%s7135 + $0x30] sm:$0xff]
        %v7143 = vld [vmem:[%s7135 + $0x38] sm:$0xff]
        %7144 = vmatprep.subr.mxu0 0.0
        %7145 = vmatpush1.msra.mxu0 0.0
        %7146 = vmatprep.subr.mxu0 0.0
        %7147 = vmatpush1.msra.mxu0 0.0
        %7148 = vmatprep.subr.mxu0 0.0
        %7149 = vmatpush1.msra.mxu0 0.0
        %7150 = vmatprep.subr.mxu0 0.0
        %7151 = vmatpush1.msra.mxu0 0.0
        %7152 = vmatprep.subr.mxu0 0.0
        %7153 = vmatpush1.msra.mxu0 0.0
        %7154 = vmatprep.subr.mxu0 0.0
        %7155 = vmatpush1.msra.mxu0 0.0
        %7156 = vmatprep.subr.mxu0 0.0
        %7157 = vmatpush1.msra.mxu0 0.0
        %7158 = vmatprep.subr.mxu0 0.0
        %7159 = vmatpush1.msra.mxu0 0.0
        %7160 = vmatprep.subr.mxu0 0.0
        %7161 = vmatpush1.msra.mxu0 %v7143
        %7162 = vmatprep.subr.mxu0 0.0
        %7163 = vmatpush1.msra.mxu0 %v7142
        %7164 = vmatprep.subr.mxu0 0.0
        %7165 = vmatpush1.msra.mxu0 %v7141
        %7166 = vmatprep.subr.mxu0 0.0
        %7167 = vmatpush1.msra.mxu0 %v7140
        %7168 = vmatprep.subr.mxu0 0.0
        %7169 = vmatpush1.msra.mxu0 %v7139
        %7170 = vmatprep.subr.mxu0 0.0
        %7171 = vmatpush1.msra.mxu0 %v7138
        %7172 = vmatprep.subr.mxu0 0.0
        %7173 = vmatpush1.msra.mxu0 %v7137
        %7174 = vmatprep.subr.mxu0 0.0
        %7175 = vmatpush1.msra.mxu0 %v7136
        %7176 = vmatprep.subr.mxu0 0.0
        %7177 = vmatpush2.msra.mxu0 0.0
        %7178 = vmatprep.subr.mxu0 0.0
        %7179 = vmatpush2.msra.mxu0 0.0
        %7180 = vmatprep.subr.mxu0 0.0
        %7181 = vmatpush2.msra.mxu0 0.0
        %7182 = vmatprep.subr.mxu0 0.0
        %7183 = vmatpush2.msra.mxu0 0.0
        %7184 = vmatprep.subr.mxu0 0.0
        %7185 = vmatpush2.msra.mxu0 0.0
        %7186 = vmatprep.subr.mxu0 0.0
        %7187 = vmatpush2.msra.mxu0 0.0
        %7188 = vmatprep.subr.mxu0 0.0
        %7189 = vmatpush2.msra.mxu0 0.0
        %7190 = vmatprep.subr.mxu0 0.0
        %7191 = vmatpush2.msra.mxu0 0.0
        %7192 = vmatprep.subr.mxu0 0.0
        %7193 = vmatpush2.msra.mxu0 0.0
        %7194 = vmatprep.subr.mxu0 0.0
        %7195 = vmatpush2.msra.mxu0 0.0
        %7196 = vmatprep.subr.mxu0 0.0
        %7197 = vmatpush2.msra.mxu0 0.0
        %7198 = vmatprep.subr.mxu0 0.0
        %7199 = vmatpush2.msra.mxu0 0.0
        %7200 = vmatprep.subr.mxu0 0.0
        %7201 = vmatpush2.msra.mxu0 0.0
        %7202 = vmatprep.subr.mxu0 0.0
        %7203 = vmatpush2.msra.mxu0 0.0
        %7204 = vmatprep.subr.mxu0 0.0
        %7205 = vmatpush2.msra.mxu0 0.0
        %7206 = vmatprep.subr.mxu0 0.0
        %7207 = vmatpush2.msra.mxu0 0.0
        %7208 = vmatprep.mubr.f32.mxu0 0.0
        %7209 = vmatmul.mubr.f32.gmra.mxu0 %v7063
        %v7210 = vpop.f32.mrf.mxu0
        %v7211 = vadd.f32 0.0, %v7210
        %v7212 = vpop.f32.mrf.mxu0
        %7213 = vdwg.mxu0
        %s7214 = scalar_lea.vmem %s41, 128
        %v7215 = vld [vmem:[%s7214] sm:$0xff]
        %v7216 = vld [vmem:[%s7214 + $0x8] sm:$0xff]
        %v7217 = vld [vmem:[%s7214 + $0x10] sm:$0xff]
        %v7218 = vld [vmem:[%s7214 + $0x18] sm:$0xff]
        %v7219 = vld [vmem:[%s7214 + $0x20] sm:$0xff]
        %v7220 = vld [vmem:[%s7214 + $0x28] sm:$0xff]
        %v7221 = vld [vmem:[%s7214 + $0x30] sm:$0xff]
        %v7222 = vld [vmem:[%s7214 + $0x38] sm:$0xff]
        %7223 = vmatprep.subr.mxu0 0.0
        %7224 = vmatpush1.msra.mxu0 0.0
        %7225 = vmatprep.subr.mxu0 0.0
        %7226 = vmatpush1.msra.mxu0 0.0
        %7227 = vmatprep.subr.mxu0 0.0
        %7228 = vmatpush1.msra.mxu0 0.0
        %7229 = vmatprep.subr.mxu0 0.0
        %7230 = vmatpush1.msra.mxu0 0.0
        %7231 = vmatprep.subr.mxu0 0.0
        %7232 = vmatpush1.msra.mxu0 0.0
        %7233 = vmatprep.subr.mxu0 0.0
        %7234 = vmatpush1.msra.mxu0 0.0
        %7235 = vmatprep.subr.mxu0 0.0
        %7236 = vmatpush1.msra.mxu0 0.0
        %7237 = vmatprep.subr.mxu0 0.0
        %7238 = vmatpush1.msra.mxu0 0.0
        %7239 = vmatprep.subr.mxu0 0.0
        %7240 = vmatpush1.msra.mxu0 %v7222
        %7241 = vmatprep.subr.mxu0 0.0
        %7242 = vmatpush1.msra.mxu0 %v7221
        %7243 = vmatprep.subr.mxu0 0.0
        %7244 = vmatpush1.msra.mxu0 %v7220
        %7245 = vmatprep.subr.mxu0 0.0
        %7246 = vmatpush1.msra.mxu0 %v7219
        %7247 = vmatprep.subr.mxu0 0.0
        %7248 = vmatpush1.msra.mxu0 %v7218
        %7249 = vmatprep.subr.mxu0 0.0
        %7250 = vmatpush1.msra.mxu0 %v7217
        %7251 = vmatprep.subr.mxu0 0.0
        %7252 = vmatpush1.msra.mxu0 %v7216
        %7253 = vmatprep.subr.mxu0 0.0
        %7254 = vmatpush1.msra.mxu0 %v7215
        %7255 = vmatprep.subr.mxu0 0.0
        %7256 = vmatpush2.msra.mxu0 0.0
        %7257 = vmatprep.subr.mxu0 0.0
        %7258 = vmatpush2.msra.mxu0 0.0
        %7259 = vmatprep.subr.mxu0 0.0
        %7260 = vmatpush2.msra.mxu0 0.0
        %7261 = vmatprep.subr.mxu0 0.0
        %7262 = vmatpush2.msra.mxu0 0.0
        %7263 = vmatprep.subr.mxu0 0.0
        %7264 = vmatpush2.msra.mxu0 0.0
        %7265 = vmatprep.subr.mxu0 0.0
        %7266 = vmatpush2.msra.mxu0 0.0
        %7267 = vmatprep.subr.mxu0 0.0
        %7268 = vmatpush2.msra.mxu0 0.0
        %7269 = vmatprep.subr.mxu0 0.0
        %7270 = vmatpush2.msra.mxu0 0.0
        %7271 = vmatprep.subr.mxu0 0.0
        %7272 = vmatpush2.msra.mxu0 0.0
        %7273 = vmatprep.subr.mxu0 0.0
        %7274 = vmatpush2.msra.mxu0 0.0
        %7275 = vmatprep.subr.mxu0 0.0
        %7276 = vmatpush2.msra.mxu0 0.0
        %7277 = vmatprep.subr.mxu0 0.0
        %7278 = vmatpush2.msra.mxu0 0.0
        %7279 = vmatprep.subr.mxu0 0.0
        %7280 = vmatpush2.msra.mxu0 0.0
        %7281 = vmatprep.subr.mxu0 0.0
        %7282 = vmatpush2.msra.mxu0 0.0
        %7283 = vmatprep.subr.mxu0 0.0
        %7284 = vmatpush2.msra.mxu0 0.0
        %7285 = vmatprep.subr.mxu0 0.0
        %7286 = vmatpush2.msra.mxu0 0.0
        %7287 = vmatprep.mubr.f32.mxu0 0.0
        %7288 = vmatmul.mubr.f32.gmra.mxu0 %v7063
        %v7289 = vpop.f32.mrf.mxu0
        %v7290 = vadd.f32 0.0, %v7289
        %v7291 = vpop.f32.mrf.mxu0
        %7292 = vdwg.mxu0
        %v7293 = vld [vmem:[#allocation15] sm:$0x1]
        %v7295 = vlaneseq
        %v7296 = vshrl.u32 %v7295, 7
        %v7297 = vsub.s32 0, %v7296
        %v7298 = vrot.slane %v7293, %v7297
        %v7300 = vadd.f32 %v7298, %v7211
        %7301 = vmatprep.subr.mxu0 0.0
        %7302 = vmatpush1.msra.mxu0 0.0
        %7303 = vmatprep.subr.mxu0 0.0
        %7304 = vmatpush1.msra.mxu0 0.0
        %7305 = vmatprep.subr.mxu0 0.0
        %7306 = vmatpush1.msra.mxu0 0.0
        %7307 = vmatprep.subr.mxu0 0.0
        %7308 = vmatpush1.msra.mxu0 0.0
        %7309 = vmatprep.subr.mxu0 0.0
        %7310 = vmatpush1.msra.mxu0 0.0
        %7311 = vmatprep.subr.mxu0 0.0
        %7312 = vmatpush1.msra.mxu0 0.0
        %7313 = vmatprep.subr.mxu0 0.0
        %7314 = vmatpush1.msra.mxu0 0.0
        %7315 = vmatprep.subr.mxu0 0.0
        %7316 = vmatpush1.msra.mxu0 0.0
        %7317 = vmatprep.subr.mxu0 0.0
        %7318 = vmatpush1.msra.mxu0 0.0
        %7319 = vmatprep.subr.mxu0 0.0
        %7320 = vmatpush1.msra.mxu0 0.0
        %7321 = vmatprep.subr.mxu0 0.0
        %7322 = vmatpush1.msra.mxu0 0.0
        %7323 = vmatprep.subr.mxu0 0.0
        %7324 = vmatpush1.msra.mxu0 0.0
        %7325 = vmatprep.subr.mxu0 0.0
        %7326 = vmatpush1.msra.mxu0 0.0
        %7327 = vmatprep.subr.mxu0 0.0
        %7328 = vmatpush1.msra.mxu0 0.0
        %7329 = vmatprep.subr.mxu0 0.0
        %7330 = vmatpush1.msra.mxu0 0.0
        %7331 = vmatprep.subr.mxu0 0.0
        %7332 = vmatpush1.msra.mxu0 %v7132
        %7333 = vmatprep.subr.mxu0 0.0
        %7334 = vmatpush2.msra.mxu0 0.0
        %7335 = vmatprep.subr.mxu0 0.0
        %7336 = vmatpush2.msra.mxu0 0.0
        %7337 = vmatprep.subr.mxu0 0.0
        %7338 = vmatpush2.msra.mxu0 0.0
        %7339 = vmatprep.subr.mxu0 0.0
        %7340 = vmatpush2.msra.mxu0 0.0
        %7341 = vmatprep.subr.mxu0 0.0
        %7342 = vmatpush2.msra.mxu0 0.0
        %7343 = vmatprep.subr.mxu0 0.0
        %7344 = vmatpush2.msra.mxu0 0.0
        %7345 = vmatprep.subr.mxu0 0.0
        %7346 = vmatpush2.msra.mxu0 0.0
        %7347 = vmatprep.subr.mxu0 0.0
        %7348 = vmatpush2.msra.mxu0 0.0
        %7349 = vmatprep.subr.mxu0 0.0
        %7350 = vmatpush2.msra.mxu0 0.0
        %7351 = vmatprep.subr.mxu0 0.0
        %7352 = vmatpush2.msra.mxu0 0.0
        %7353 = vmatprep.subr.mxu0 0.0
        %7354 = vmatpush2.msra.mxu0 0.0
        %7355 = vmatprep.subr.mxu0 0.0
        %7356 = vmatpush2.msra.mxu0 0.0
        %7357 = vmatprep.subr.mxu0 0.0
        %7358 = vmatpush2.msra.mxu0 0.0
        %7359 = vmatprep.subr.mxu0 0.0
        %7360 = vmatpush2.msra.mxu0 0.0
        %7361 = vmatprep.subr.mxu0 0.0
        %7362 = vmatpush2.msra.mxu0 0.0
        %7363 = vmatprep.subr.mxu0 0.0
        %7364 = vmatpush2.msra.mxu0 0.0
        %7365 = vmatprep.mubr.f32.mxu0 0.0
        %7366 = vmatmul.mubr.f32.gmra.mxu0 %v2954
        %v7367 = vpop.f32.mrf.mxu0
        %v7368 = vadd.f32 0.0, %v7367
        %v7369 = vpop.f32.mrf.mxu0
        %7370 = vdwg.mxu0
        %v7371 = vadd.f32 %v7300, %v7368
        %7372 = vmatprep.subr.mxu0 0.0
        %7373 = vmatpush1.msra.mxu0 0.0
        %7374 = vmatprep.subr.mxu0 0.0
        %7375 = vmatpush1.msra.mxu0 0.0
        %7376 = vmatprep.subr.mxu0 0.0
        %7377 = vmatpush1.msra.mxu0 0.0
        %7378 = vmatprep.subr.mxu0 0.0
        %7379 = vmatpush1.msra.mxu0 0.0
        %7380 = vmatprep.subr.mxu0 0.0
        %7381 = vmatpush1.msra.mxu0 0.0
        %7382 = vmatprep.subr.mxu0 0.0
        %7383 = vmatpush1.msra.mxu0 0.0
        %7384 = vmatprep.subr.mxu0 0.0
        %7385 = vmatpush1.msra.mxu0 0.0
        %7386 = vmatprep.subr.mxu0 0.0
        %7387 = vmatpush1.msra.mxu0 0.0
        %7388 = vmatprep.subr.mxu0 0.0
        %7389 = vmatpush1.msra.mxu0 0.0
        %7390 = vmatprep.subr.mxu0 0.0
        %7391 = vmatpush1.msra.mxu0 0.0
        %7392 = vmatprep.subr.mxu0 0.0
        %7393 = vmatpush1.msra.mxu0 0.0
        %7394 = vmatprep.subr.mxu0 0.0
        %7395 = vmatpush1.msra.mxu0 0.0
        %7396 = vmatprep.subr.mxu0 0.0
        %7397 = vmatpush1.msra.mxu0 0.0
        %7398 = vmatprep.subr.mxu0 0.0
        %7399 = vmatpush1.msra.mxu0 0.0
        %7400 = vmatprep.subr.mxu0 0.0
        %7401 = vmatpush1.msra.mxu0 0.0
        %7402 = vmatprep.subr.mxu0 0.0
        %7403 = vmatpush1.msra.mxu0 %v7290
        %7404 = vmatprep.subr.mxu0 0.0
        %7405 = vmatpush2.msra.mxu0 0.0
        %7406 = vmatprep.subr.mxu0 0.0
        %7407 = vmatpush2.msra.mxu0 0.0
        %7408 = vmatprep.subr.mxu0 0.0
        %7409 = vmatpush2.msra.mxu0 0.0
        %7410 = vmatprep.subr.mxu0 0.0
        %7411 = vmatpush2.msra.mxu0 0.0
        %7412 = vmatprep.subr.mxu0 0.0
        %7413 = vmatpush2.msra.mxu0 0.0
        %7414 = vmatprep.subr.mxu0 0.0
        %7415 = vmatpush2.msra.mxu0 0.0
        %7416 = vmatprep.subr.mxu0 0.0
        %7417 = vmatpush2.msra.mxu0 0.0
        %7418 = vmatprep.subr.mxu0 0.0
        %7419 = vmatpush2.msra.mxu0 0.0
        %7420 = vmatprep.subr.mxu0 0.0
        %7421 = vmatpush2.msra.mxu0 0.0
        %7422 = vmatprep.subr.mxu0 0.0
        %7423 = vmatpush2.msra.mxu0 0.0
        %7424 = vmatprep.subr.mxu0 0.0
        %7425 = vmatpush2.msra.mxu0 0.0
        %7426 = vmatprep.subr.mxu0 0.0
        %7427 = vmatpush2.msra.mxu0 0.0
        %7428 = vmatprep.subr.mxu0 0.0
        %7429 = vmatpush2.msra.mxu0 0.0
        %7430 = vmatprep.subr.mxu0 0.0
        %7431 = vmatpush2.msra.mxu0 0.0
        %7432 = vmatprep.subr.mxu0 0.0
        %7433 = vmatpush2.msra.mxu0 0.0
        %7434 = vmatprep.subr.mxu0 0.0
        %7435 = vmatpush2.msra.mxu0 0.0
        %7436 = vmatprep.mubr.f32.mxu0 0.0
        %7437 = vmatmul.mubr.f32.gmra.mxu0 %v3028
        %v7438 = vpop.f32.mrf.mxu0
        %v7439 = vadd.f32 0.0, %v7438
        %v7440 = vpop.f32.mrf.mxu0
        %7441 = vdwg.mxu0
        %v7442 = vadd.f32 %v7371, %v7439
        %v7443 = vmax.f32 %v7442, 0.0
        %v7444 = vld [vmem:[#allocation16] sm:$0xff]
        %v7445 = vld [vmem:[#allocation16 + $0x8] sm:$0xff]
        %v7446 = vld [vmem:[#allocation16 + $0x10] sm:$0xff]
        %v7447 = vld [vmem:[#allocation16 + $0x18] sm:$0xff]
        %v7448 = vld [vmem:[#allocation16 + $0x20] sm:$0xff]
        %v7449 = vld [vmem:[#allocation16 + $0x28] sm:$0xff]
        %v7450 = vld [vmem:[#allocation16 + $0x30] sm:$0xff]
        %v7451 = vld [vmem:[#allocation16 + $0x38] sm:$0xff]
        %v7453 = vsel %vm2712, %v7443, 0
        %7455 = vmatprep.subr.mxu0 0.0
        %7456 = vmatpush1.msra.mxu0 0.0
        %7457 = vmatprep.subr.mxu0 0.0
        %7458 = vmatpush1.msra.mxu0 0.0
        %7459 = vmatprep.subr.mxu0 0.0
        %7460 = vmatpush1.msra.mxu0 0.0
        %7461 = vmatprep.subr.mxu0 0.0
        %7462 = vmatpush1.msra.mxu0 0.0
        %7463 = vmatprep.subr.mxu0 0.0
        %7464 = vmatpush1.msra.mxu0 0.0
        %7465 = vmatprep.subr.mxu0 0.0
        %7466 = vmatpush1.msra.mxu0 0.0
        %7467 = vmatprep.subr.mxu0 0.0
        %7468 = vmatpush1.msra.mxu0 0.0
        %7469 = vmatprep.subr.mxu0 0.0
        %7470 = vmatpush1.msra.mxu0 0.0
        %7471 = vmatprep.subr.mxu0 0.0
        %7472 = vmatpush1.msra.mxu0 %v7451
        %7473 = vmatprep.subr.mxu0 0.0
        %7474 = vmatpush1.msra.mxu0 %v7450
        %7475 = vmatprep.subr.mxu0 0.0
        %7476 = vmatpush1.msra.mxu0 %v7449
        %7477 = vmatprep.subr.mxu0 0.0
        %7478 = vmatpush1.msra.mxu0 %v7448
        %7479 = vmatprep.subr.mxu0 0.0
        %7480 = vmatpush1.msra.mxu0 %v7447
        %7481 = vmatprep.subr.mxu0 0.0
        %7482 = vmatpush1.msra.mxu0 %v7446
        %7483 = vmatprep.subr.mxu0 0.0
        %7484 = vmatpush1.msra.mxu0 %v7445
        %7485 = vmatprep.subr.mxu0 0.0
        %7486 = vmatpush1.msra.mxu0 %v7444
        %7487 = vmatprep.subr.mxu0 0.0
        %7488 = vmatpush2.msra.mxu0 0.0
        %7489 = vmatprep.subr.mxu0 0.0
        %7490 = vmatpush2.msra.mxu0 0.0
        %7491 = vmatprep.subr.mxu0 0.0
        %7492 = vmatpush2.msra.mxu0 0.0
        %7493 = vmatprep.subr.mxu0 0.0
        %7494 = vmatpush2.msra.mxu0 0.0
        %7495 = vmatprep.subr.mxu0 0.0
        %7496 = vmatpush2.msra.mxu0 0.0
        %7497 = vmatprep.subr.mxu0 0.0
        %7498 = vmatpush2.msra.mxu0 0.0
        %7499 = vmatprep.subr.mxu0 0.0
        %7500 = vmatpush2.msra.mxu0 0.0
        %7501 = vmatprep.subr.mxu0 0.0
        %7502 = vmatpush2.msra.mxu0 0.0
        %7503 = vmatprep.subr.mxu0 0.0
        %7504 = vmatpush2.msra.mxu0 0.0
        %7505 = vmatprep.subr.mxu0 0.0
        %7506 = vmatpush2.msra.mxu0 0.0
        %7507 = vmatprep.subr.mxu0 0.0
        %7508 = vmatpush2.msra.mxu0 0.0
        %7509 = vmatprep.subr.mxu0 0.0
        %7510 = vmatpush2.msra.mxu0 0.0
        %7511 = vmatprep.subr.mxu0 0.0
        %7512 = vmatpush2.msra.mxu0 0.0
        %7513 = vmatprep.subr.mxu0 0.0
        %7514 = vmatpush2.msra.mxu0 0.0
        %7515 = vmatprep.subr.mxu0 0.0
        %7516 = vmatpush2.msra.mxu0 0.0
        %7517 = vmatprep.subr.mxu0 0.0
        %7518 = vmatpush2.msra.mxu0 0.0
        %7519 = vmatprep.mubr.f32.mxu0 0.0
        %7520 = vmatmul.mubr.f32.gmra.mxu0 %v7453
        %v7521 = vpop.f32.mrf.mxu0
        %v7522 = vadd.f32 0.0, %v7521
        %v7523 = vpop.f32.mrf.mxu0
        %7524 = vdwg.mxu0
        %s7525 = scalar_lea.vmem [#allocation16], 64
        %v7526 = vld [vmem:[%s7525] sm:$0xff]
        %v7527 = vld [vmem:[%s7525 + $0x8] sm:$0xff]
        %v7528 = vld [vmem:[%s7525 + $0x10] sm:$0xff]
        %v7529 = vld [vmem:[%s7525 + $0x18] sm:$0xff]
        %v7530 = vld [vmem:[%s7525 + $0x20] sm:$0xff]
        %v7531 = vld [vmem:[%s7525 + $0x28] sm:$0xff]
        %v7532 = vld [vmem:[%s7525 + $0x30] sm:$0xff]
        %v7533 = vld [vmem:[%s7525 + $0x38] sm:$0xff]
        %7534 = vmatprep.subr.mxu0 0.0
        %7535 = vmatpush1.msra.mxu0 0.0
        %7536 = vmatprep.subr.mxu0 0.0
        %7537 = vmatpush1.msra.mxu0 0.0
        %7538 = vmatprep.subr.mxu0 0.0
        %7539 = vmatpush1.msra.mxu0 0.0
        %7540 = vmatprep.subr.mxu0 0.0
        %7541 = vmatpush1.msra.mxu0 0.0
        %7542 = vmatprep.subr.mxu0 0.0
        %7543 = vmatpush1.msra.mxu0 0.0
        %7544 = vmatprep.subr.mxu0 0.0
        %7545 = vmatpush1.msra.mxu0 0.0
        %7546 = vmatprep.subr.mxu0 0.0
        %7547 = vmatpush1.msra.mxu0 0.0
        %7548 = vmatprep.subr.mxu0 0.0
        %7549 = vmatpush1.msra.mxu0 0.0
        %7550 = vmatprep.subr.mxu0 0.0
        %7551 = vmatpush1.msra.mxu0 %v7533
        %7552 = vmatprep.subr.mxu0 0.0
        %7553 = vmatpush1.msra.mxu0 %v7532
        %7554 = vmatprep.subr.mxu0 0.0
        %7555 = vmatpush1.msra.mxu0 %v7531
        %7556 = vmatprep.subr.mxu0 0.0
        %7557 = vmatpush1.msra.mxu0 %v7530
        %7558 = vmatprep.subr.mxu0 0.0
        %7559 = vmatpush1.msra.mxu0 %v7529
        %7560 = vmatprep.subr.mxu0 0.0
        %7561 = vmatpush1.msra.mxu0 %v7528
        %7562 = vmatprep.subr.mxu0 0.0
        %7563 = vmatpush1.msra.mxu0 %v7527
        %7564 = vmatprep.subr.mxu0 0.0
        %7565 = vmatpush1.msra.mxu0 %v7526
        %7566 = vmatprep.subr.mxu0 0.0
        %7567 = vmatpush2.msra.mxu0 0.0
        %7568 = vmatprep.subr.mxu0 0.0
        %7569 = vmatpush2.msra.mxu0 0.0
        %7570 = vmatprep.subr.mxu0 0.0
        %7571 = vmatpush2.msra.mxu0 0.0
        %7572 = vmatprep.subr.mxu0 0.0
        %7573 = vmatpush2.msra.mxu0 0.0
        %7574 = vmatprep.subr.mxu0 0.0
        %7575 = vmatpush2.msra.mxu0 0.0
        %7576 = vmatprep.subr.mxu0 0.0
        %7577 = vmatpush2.msra.mxu0 0.0
        %7578 = vmatprep.subr.mxu0 0.0
        %7579 = vmatpush2.msra.mxu0 0.0
        %7580 = vmatprep.subr.mxu0 0.0
        %7581 = vmatpush2.msra.mxu0 0.0
        %7582 = vmatprep.subr.mxu0 0.0
        %7583 = vmatpush2.msra.mxu0 0.0
        %7584 = vmatprep.subr.mxu0 0.0
        %7585 = vmatpush2.msra.mxu0 0.0
        %7586 = vmatprep.subr.mxu0 0.0
        %7587 = vmatpush2.msra.mxu0 0.0
        %7588 = vmatprep.subr.mxu0 0.0
        %7589 = vmatpush2.msra.mxu0 0.0
        %7590 = vmatprep.subr.mxu0 0.0
        %7591 = vmatpush2.msra.mxu0 0.0
        %7592 = vmatprep.subr.mxu0 0.0
        %7593 = vmatpush2.msra.mxu0 0.0
        %7594 = vmatprep.subr.mxu0 0.0
        %7595 = vmatpush2.msra.mxu0 0.0
        %7596 = vmatprep.subr.mxu0 0.0
        %7597 = vmatpush2.msra.mxu0 0.0
        %7598 = vmatprep.mubr.f32.mxu0 0.0
        %7599 = vmatmul.mubr.f32.gmra.mxu0 %v7453
        %v7600 = vpop.f32.mrf.mxu0
        %v7601 = vadd.f32 0.0, %v7600
        %v7602 = vpop.f32.mrf.mxu0
        %7603 = vdwg.mxu0
        %s7604 = scalar_lea.vmem [#allocation16], 128
        %v7605 = vld [vmem:[%s7604] sm:$0xff]
        %v7606 = vld [vmem:[%s7604 + $0x8] sm:$0xff]
        %v7607 = vld [vmem:[%s7604 + $0x10] sm:$0xff]
        %v7608 = vld [vmem:[%s7604 + $0x18] sm:$0xff]
        %v7609 = vld [vmem:[%s7604 + $0x20] sm:$0xff]
        %v7610 = vld [vmem:[%s7604 + $0x28] sm:$0xff]
        %v7611 = vld [vmem:[%s7604 + $0x30] sm:$0xff]
        %v7612 = vld [vmem:[%s7604 + $0x38] sm:$0xff]
        %7613 = vmatprep.subr.mxu0 0.0
        %7614 = vmatpush1.msra.mxu0 0.0
        %7615 = vmatprep.subr.mxu0 0.0
        %7616 = vmatpush1.msra.mxu0 0.0
        %7617 = vmatprep.subr.mxu0 0.0
        %7618 = vmatpush1.msra.mxu0 0.0
        %7619 = vmatprep.subr.mxu0 0.0
        %7620 = vmatpush1.msra.mxu0 0.0
        %7621 = vmatprep.subr.mxu0 0.0
        %7622 = vmatpush1.msra.mxu0 0.0
        %7623 = vmatprep.subr.mxu0 0.0
        %7624 = vmatpush1.msra.mxu0 0.0
        %7625 = vmatprep.subr.mxu0 0.0
        %7626 = vmatpush1.msra.mxu0 0.0
        %7627 = vmatprep.subr.mxu0 0.0
        %7628 = vmatpush1.msra.mxu0 0.0
        %7629 = vmatprep.subr.mxu0 0.0
        %7630 = vmatpush1.msra.mxu0 %v7612
        %7631 = vmatprep.subr.mxu0 0.0
        %7632 = vmatpush1.msra.mxu0 %v7611
        %7633 = vmatprep.subr.mxu0 0.0
        %7634 = vmatpush1.msra.mxu0 %v7610
        %7635 = vmatprep.subr.mxu0 0.0
        %7636 = vmatpush1.msra.mxu0 %v7609
        %7637 = vmatprep.subr.mxu0 0.0
        %7638 = vmatpush1.msra.mxu0 %v7608
        %7639 = vmatprep.subr.mxu0 0.0
        %7640 = vmatpush1.msra.mxu0 %v7607
        %7641 = vmatprep.subr.mxu0 0.0
        %7642 = vmatpush1.msra.mxu0 %v7606
        %7643 = vmatprep.subr.mxu0 0.0
        %7644 = vmatpush1.msra.mxu0 %v7605
        %7645 = vmatprep.subr.mxu0 0.0
        %7646 = vmatpush2.msra.mxu0 0.0
        %7647 = vmatprep.subr.mxu0 0.0
        %7648 = vmatpush2.msra.mxu0 0.0
        %7649 = vmatprep.subr.mxu0 0.0
        %7650 = vmatpush2.msra.mxu0 0.0
        %7651 = vmatprep.subr.mxu0 0.0
        %7652 = vmatpush2.msra.mxu0 0.0
        %7653 = vmatprep.subr.mxu0 0.0
        %7654 = vmatpush2.msra.mxu0 0.0
        %7655 = vmatprep.subr.mxu0 0.0
        %7656 = vmatpush2.msra.mxu0 0.0
        %7657 = vmatprep.subr.mxu0 0.0
        %7658 = vmatpush2.msra.mxu0 0.0
        %7659 = vmatprep.subr.mxu0 0.0
        %7660 = vmatpush2.msra.mxu0 0.0
        %7661 = vmatprep.subr.mxu0 0.0
        %7662 = vmatpush2.msra.mxu0 0.0
        %7663 = vmatprep.subr.mxu0 0.0
        %7664 = vmatpush2.msra.mxu0 0.0
        %7665 = vmatprep.subr.mxu0 0.0
        %7666 = vmatpush2.msra.mxu0 0.0
        %7667 = vmatprep.subr.mxu0 0.0
        %7668 = vmatpush2.msra.mxu0 0.0
        %7669 = vmatprep.subr.mxu0 0.0
        %7670 = vmatpush2.msra.mxu0 0.0
        %7671 = vmatprep.subr.mxu0 0.0
        %7672 = vmatpush2.msra.mxu0 0.0
        %7673 = vmatprep.subr.mxu0 0.0
        %7674 = vmatpush2.msra.mxu0 0.0
        %7675 = vmatprep.subr.mxu0 0.0
        %7676 = vmatpush2.msra.mxu0 0.0
        %7677 = vmatprep.mubr.f32.mxu0 0.0
        %7678 = vmatmul.mubr.f32.gmra.mxu0 %v7453
        %v7679 = vpop.f32.mrf.mxu0
        %v7680 = vadd.f32 0.0, %v7679
        %v7681 = vpop.f32.mrf.mxu0
        %7682 = vdwg.mxu0
        %v7683 = vld [vmem:[#allocation18] sm:$0x1]
        %v7685 = vlaneseq
        %v7686 = vshrl.u32 %v7685, 7
        %v7687 = vsub.s32 0, %v7686
        %v7688 = vrot.slane %v7683, %v7687
        %v7690 = vadd.f32 %v7688, %v7601
        %7691 = vmatprep.subr.mxu0 0.0
        %7692 = vmatpush1.msra.mxu0 0.0
        %7693 = vmatprep.subr.mxu0 0.0
        %7694 = vmatpush1.msra.mxu0 0.0
        %7695 = vmatprep.subr.mxu0 0.0
        %7696 = vmatpush1.msra.mxu0 0.0
        %7697 = vmatprep.subr.mxu0 0.0
        %7698 = vmatpush1.msra.mxu0 0.0
        %7699 = vmatprep.subr.mxu0 0.0
        %7700 = vmatpush1.msra.mxu0 0.0
        %7701 = vmatprep.subr.mxu0 0.0
        %7702 = vmatpush1.msra.mxu0 0.0
        %7703 = vmatprep.subr.mxu0 0.0
        %7704 = vmatpush1.msra.mxu0 0.0
        %7705 = vmatprep.subr.mxu0 0.0
        %7706 = vmatpush1.msra.mxu0 0.0
        %7707 = vmatprep.subr.mxu0 0.0
        %7708 = vmatpush1.msra.mxu0 0.0
        %7709 = vmatprep.subr.mxu0 0.0
        %7710 = vmatpush1.msra.mxu0 0.0
        %7711 = vmatprep.subr.mxu0 0.0
        %7712 = vmatpush1.msra.mxu0 0.0
        %7713 = vmatprep.subr.mxu0 0.0
        %7714 = vmatpush1.msra.mxu0 0.0
        %7715 = vmatprep.subr.mxu0 0.0
        %7716 = vmatpush1.msra.mxu0 0.0
        %7717 = vmatprep.subr.mxu0 0.0
        %7718 = vmatpush1.msra.mxu0 0.0
        %7719 = vmatprep.subr.mxu0 0.0
        %7720 = vmatpush1.msra.mxu0 0.0
        %7721 = vmatprep.subr.mxu0 0.0
        %7722 = vmatpush1.msra.mxu0 %v7522
        %7723 = vmatprep.subr.mxu0 0.0
        %7724 = vmatpush2.msra.mxu0 0.0
        %7725 = vmatprep.subr.mxu0 0.0
        %7726 = vmatpush2.msra.mxu0 0.0
        %7727 = vmatprep.subr.mxu0 0.0
        %7728 = vmatpush2.msra.mxu0 0.0
        %7729 = vmatprep.subr.mxu0 0.0
        %7730 = vmatpush2.msra.mxu0 0.0
        %7731 = vmatprep.subr.mxu0 0.0
        %7732 = vmatpush2.msra.mxu0 0.0
        %7733 = vmatprep.subr.mxu0 0.0
        %7734 = vmatpush2.msra.mxu0 0.0
        %7735 = vmatprep.subr.mxu0 0.0
        %7736 = vmatpush2.msra.mxu0 0.0
        %7737 = vmatprep.subr.mxu0 0.0
        %7738 = vmatpush2.msra.mxu0 0.0
        %7739 = vmatprep.subr.mxu0 0.0
        %7740 = vmatpush2.msra.mxu0 0.0
        %7741 = vmatprep.subr.mxu0 0.0
        %7742 = vmatpush2.msra.mxu0 0.0
        %7743 = vmatprep.subr.mxu0 0.0
        %7744 = vmatpush2.msra.mxu0 0.0
        %7745 = vmatprep.subr.mxu0 0.0
        %7746 = vmatpush2.msra.mxu0 0.0
        %7747 = vmatprep.subr.mxu0 0.0
        %7748 = vmatpush2.msra.mxu0 0.0
        %7749 = vmatprep.subr.mxu0 0.0
        %7750 = vmatpush2.msra.mxu0 0.0
        %7751 = vmatprep.subr.mxu0 0.0
        %7752 = vmatpush2.msra.mxu0 0.0
        %7753 = vmatprep.subr.mxu0 0.0
        %7754 = vmatpush2.msra.mxu0 0.0
        %7755 = vmatprep.mubr.f32.mxu0 0.0
        %7756 = vmatmul.mubr.f32.gmra.mxu0 %v2954
        %v7757 = vpop.f32.mrf.mxu0
        %v7758 = vadd.f32 0.0, %v7757
        %v7759 = vpop.f32.mrf.mxu0
        %7760 = vdwg.mxu0
        %v7761 = vadd.f32 %v7690, %v7758
        %7762 = vmatprep.subr.mxu0 0.0
        %7763 = vmatpush1.msra.mxu0 0.0
        %7764 = vmatprep.subr.mxu0 0.0
        %7765 = vmatpush1.msra.mxu0 0.0
        %7766 = vmatprep.subr.mxu0 0.0
        %7767 = vmatpush1.msra.mxu0 0.0
        %7768 = vmatprep.subr.mxu0 0.0
        %7769 = vmatpush1.msra.mxu0 0.0
        %7770 = vmatprep.subr.mxu0 0.0
        %7771 = vmatpush1.msra.mxu0 0.0
        %7772 = vmatprep.subr.mxu0 0.0
        %7773 = vmatpush1.msra.mxu0 0.0
        %7774 = vmatprep.subr.mxu0 0.0
        %7775 = vmatpush1.msra.mxu0 0.0
        %7776 = vmatprep.subr.mxu0 0.0
        %7777 = vmatpush1.msra.mxu0 0.0
        %7778 = vmatprep.subr.mxu0 0.0
        %7779 = vmatpush1.msra.mxu0 0.0
        %7780 = vmatprep.subr.mxu0 0.0
        %7781 = vmatpush1.msra.mxu0 0.0
        %7782 = vmatprep.subr.mxu0 0.0
        %7783 = vmatpush1.msra.mxu0 0.0
        %7784 = vmatprep.subr.mxu0 0.0
        %7785 = vmatpush1.msra.mxu0 0.0
        %7786 = vmatprep.subr.mxu0 0.0
        %7787 = vmatpush1.msra.mxu0 0.0
        %7788 = vmatprep.subr.mxu0 0.0
        %7789 = vmatpush1.msra.mxu0 0.0
        %7790 = vmatprep.subr.mxu0 0.0
        %7791 = vmatpush1.msra.mxu0 0.0
        %7792 = vmatprep.subr.mxu0 0.0
        %7793 = vmatpush1.msra.mxu0 %v7680
        %7794 = vmatprep.subr.mxu0 0.0
        %7795 = vmatpush2.msra.mxu0 0.0
        %7796 = vmatprep.subr.mxu0 0.0
        %7797 = vmatpush2.msra.mxu0 0.0
        %7798 = vmatprep.subr.mxu0 0.0
        %7799 = vmatpush2.msra.mxu0 0.0
        %7800 = vmatprep.subr.mxu0 0.0
        %7801 = vmatpush2.msra.mxu0 0.0
        %7802 = vmatprep.subr.mxu0 0.0
        %7803 = vmatpush2.msra.mxu0 0.0
        %7804 = vmatprep.subr.mxu0 0.0
        %7805 = vmatpush2.msra.mxu0 0.0
        %7806 = vmatprep.subr.mxu0 0.0
        %7807 = vmatpush2.msra.mxu0 0.0
        %7808 = vmatprep.subr.mxu0 0.0
        %7809 = vmatpush2.msra.mxu0 0.0
        %7810 = vmatprep.subr.mxu0 0.0
        %7811 = vmatpush2.msra.mxu0 0.0
        %7812 = vmatprep.subr.mxu0 0.0
        %7813 = vmatpush2.msra.mxu0 0.0
        %7814 = vmatprep.subr.mxu0 0.0
        %7815 = vmatpush2.msra.mxu0 0.0
        %7816 = vmatprep.subr.mxu0 0.0
        %7817 = vmatpush2.msra.mxu0 0.0
        %7818 = vmatprep.subr.mxu0 0.0
        %7819 = vmatpush2.msra.mxu0 0.0
        %7820 = vmatprep.subr.mxu0 0.0
        %7821 = vmatpush2.msra.mxu0 0.0
        %7822 = vmatprep.subr.mxu0 0.0
        %7823 = vmatpush2.msra.mxu0 0.0
        %7824 = vmatprep.subr.mxu0 0.0
        %7825 = vmatpush2.msra.mxu0 0.0
        %7826 = vmatprep.mubr.f32.mxu0 0.0
        %7827 = vmatmul.mubr.f32.gmra.mxu0 %v3028
        %v7828 = vpop.f32.mrf.mxu0
        %v7829 = vadd.f32 0.0, %v7828
        %v7830 = vpop.f32.mrf.mxu0
        %7831 = vdwg.mxu0
        %v7832 = vadd.f32 %v7761, %v7829
        %v7833 = vadd.f32 %v7053, %v7832
        %v7834 = vld [vmem:[%s13] sm:$0xff]
        %v7835 = vld [vmem:[%s13 + $0x8] sm:$0xff]
        %v7837 = vsel %vm2952, %v7834, 0
        %v7840 = vsel %vm2952, %v7835, 0
        %7842 = vmatprep.subr.mxu0 0.0
        %7843 = vmatpush1.msra.mxu0 0.0
        %7844 = vmatprep.subr.mxu0 0.0
        %7845 = vmatpush1.msra.mxu0 0.0
        %7846 = vmatprep.subr.mxu0 0.0
        %7847 = vmatpush1.msra.mxu0 0.0
        %7848 = vmatprep.subr.mxu0 0.0
        %7849 = vmatpush1.msra.mxu0 0.0
        %7850 = vmatprep.subr.mxu0 0.0
        %7851 = vmatpush1.msra.mxu0 0.0
        %7852 = vmatprep.subr.mxu0 0.0
        %7853 = vmatpush1.msra.mxu0 0.0
        %7854 = vmatprep.subr.mxu0 0.0
        %7855 = vmatpush1.msra.mxu0 0.0
        %7856 = vmatprep.subr.mxu0 0.0
        %7857 = vmatpush1.msra.mxu0 0.0
        %7858 = vmatprep.subr.mxu0 0.0
        %7859 = vmatpush1.msra.mxu0 0.0
        %7860 = vmatprep.subr.mxu0 0.0
        %7861 = vmatpush1.msra.mxu0 0.0
        %7862 = vmatprep.subr.mxu0 0.0
        %7863 = vmatpush1.msra.mxu0 0.0
        %7864 = vmatprep.subr.mxu0 0.0
        %7865 = vmatpush1.msra.mxu0 0.0
        %7866 = vmatprep.subr.mxu0 0.0
        %7867 = vmatpush1.msra.mxu0 0.0
        %7868 = vmatprep.subr.mxu0 0.0
        %7869 = vmatpush1.msra.mxu0 0.0
        %7870 = vmatprep.subr.mxu0 0.0
        %7871 = vmatpush1.msra.mxu0 0.0
        %7872 = vmatprep.subr.mxu0 0.0
        %7873 = vmatpush1.msra.mxu0 %v7833
        %7874 = vmatprep.subr.mxu0 0.0
        %7875 = vmatpush2.msra.mxu0 0.0
        %7876 = vmatprep.subr.mxu0 0.0
        %7877 = vmatpush2.msra.mxu0 0.0
        %7878 = vmatprep.subr.mxu0 0.0
        %7879 = vmatpush2.msra.mxu0 0.0
        %7880 = vmatprep.subr.mxu0 0.0
        %7881 = vmatpush2.msra.mxu0 0.0
        %7882 = vmatprep.subr.mxu0 0.0
        %7883 = vmatpush2.msra.mxu0 0.0
        %7884 = vmatprep.subr.mxu0 0.0
        %7885 = vmatpush2.msra.mxu0 0.0
        %7886 = vmatprep.subr.mxu0 0.0
        %7887 = vmatpush2.msra.mxu0 0.0
        %7888 = vmatprep.subr.mxu0 0.0
        %7889 = vmatpush2.msra.mxu0 0.0
        %7890 = vmatprep.subr.mxu0 0.0
        %7891 = vmatpush2.msra.mxu0 0.0
        %7892 = vmatprep.subr.mxu0 0.0
        %7893 = vmatpush2.msra.mxu0 0.0
        %7894 = vmatprep.subr.mxu0 0.0
        %7895 = vmatpush2.msra.mxu0 0.0
        %7896 = vmatprep.subr.mxu0 0.0
        %7897 = vmatpush2.msra.mxu0 0.0
        %7898 = vmatprep.subr.mxu0 0.0
        %7899 = vmatpush2.msra.mxu0 0.0
        %7900 = vmatprep.subr.mxu0 0.0
        %7901 = vmatpush2.msra.mxu0 0.0
        %7902 = vmatprep.subr.mxu0 0.0
        %7903 = vmatpush2.msra.mxu0 0.0
        %7904 = vmatprep.subr.mxu0 0.0
        %7905 = vmatpush2.msra.mxu0 0.0
        %7906 = vmatprep.mubr.f32.mxu0 0.0
        %7907 = vmatmul.mubr.f32.gmra.mxu0 %v7837
        %v7908 = vpop.f32.mrf.mxu0
        %v7909 = vadd.f32 0.0, %v7908
        %v7910 = vpop.f32.mrf.mxu0
        %7911 = vmatprep.mubr.f32.mxu0 0.0
        %7912 = vmatmul.mubr.f32.gmra.mxu0 %v7840
        %v7913 = vpop.f32.mrf.mxu0
        %v7914 = vadd.f32 0.0, %v7913
        %v7915 = vpop.f32.mrf.mxu0
        %7916 = vdwg.mxu0
        %v7917 = vld [vmem:[#allocation7] sm:$0xff]
        %v7918 = vld [vmem:[#allocation7 + $0x8] sm:$0xff]
        %v7919 = vld [vmem:[#allocation7 + $0x10] sm:$0xff]
        %v7920 = vld [vmem:[#allocation7 + $0x18] sm:$0xff]
        %v7921 = vld [vmem:[#allocation7 + $0x20] sm:$0xff]
        %v7922 = vld [vmem:[#allocation7 + $0x28] sm:$0xff]
        %v7923 = vld [vmem:[#allocation7 + $0x30] sm:$0xff]
        %v7924 = vld [vmem:[#allocation7 + $0x38] sm:$0xff]
        %v7926 = vsel %vm2712, %v7909, 0
        %v7929 = vsel %vm2712, %v7914, 0
        %7931 = vmatprep.subr.mxu0 0.0
        %7932 = vmatpush1.msra.mxu0 0.0
        %7933 = vmatprep.subr.mxu0 0.0
        %7934 = vmatpush1.msra.mxu0 0.0
        %7935 = vmatprep.subr.mxu0 0.0
        %7936 = vmatpush1.msra.mxu0 0.0
        %7937 = vmatprep.subr.mxu0 0.0
        %7938 = vmatpush1.msra.mxu0 0.0
        %7939 = vmatprep.subr.mxu0 0.0
        %7940 = vmatpush1.msra.mxu0 0.0
        %7941 = vmatprep.subr.mxu0 0.0
        %7942 = vmatpush1.msra.mxu0 0.0
        %7943 = vmatprep.subr.mxu0 0.0
        %7944 = vmatpush1.msra.mxu0 0.0
        %7945 = vmatprep.subr.mxu0 0.0
        %7946 = vmatpush1.msra.mxu0 0.0
        %7947 = vmatprep.subr.mxu0 0.0
        %7948 = vmatpush1.msra.mxu0 %v7924
        %7949 = vmatprep.subr.mxu0 0.0
        %7950 = vmatpush1.msra.mxu0 %v7923
        %7951 = vmatprep.subr.mxu0 0.0
        %7952 = vmatpush1.msra.mxu0 %v7922
        %7953 = vmatprep.subr.mxu0 0.0
        %7954 = vmatpush1.msra.mxu0 %v7921
        %7955 = vmatprep.subr.mxu0 0.0
        %7956 = vmatpush1.msra.mxu0 %v7920
        %7957 = vmatprep.subr.mxu0 0.0
        %7958 = vmatpush1.msra.mxu0 %v7919
        %7959 = vmatprep.subr.mxu0 0.0
        %7960 = vmatpush1.msra.mxu0 %v7918
        %7961 = vmatprep.subr.mxu0 0.0
        %7962 = vmatpush1.msra.mxu0 %v7917
        %7963 = vmatprep.subr.mxu0 0.0
        %7964 = vmatpush2.msra.mxu0 0.0
        %7965 = vmatprep.subr.mxu0 0.0
        %7966 = vmatpush2.msra.mxu0 0.0
        %7967 = vmatprep.subr.mxu0 0.0
        %7968 = vmatpush2.msra.mxu0 0.0
        %7969 = vmatprep.subr.mxu0 0.0
        %7970 = vmatpush2.msra.mxu0 0.0
        %7971 = vmatprep.subr.mxu0 0.0
        %7972 = vmatpush2.msra.mxu0 0.0
        %7973 = vmatprep.subr.mxu0 0.0
        %7974 = vmatpush2.msra.mxu0 0.0
        %7975 = vmatprep.subr.mxu0 0.0
        %7976 = vmatpush2.msra.mxu0 0.0
        %7977 = vmatprep.subr.mxu0 0.0
        %7978 = vmatpush2.msra.mxu0 0.0
        %7979 = vmatprep.subr.mxu0 0.0
        %7980 = vmatpush2.msra.mxu0 0.0
        %7981 = vmatprep.subr.mxu0 0.0
        %7982 = vmatpush2.msra.mxu0 0.0
        %7983 = vmatprep.subr.mxu0 0.0
        %7984 = vmatpush2.msra.mxu0 0.0
        %7985 = vmatprep.subr.mxu0 0.0
        %7986 = vmatpush2.msra.mxu0 0.0
        %7987 = vmatprep.subr.mxu0 0.0
        %7988 = vmatpush2.msra.mxu0 0.0
        %7989 = vmatprep.subr.mxu0 0.0
        %7990 = vmatpush2.msra.mxu0 0.0
        %7991 = vmatprep.subr.mxu0 0.0
        %7992 = vmatpush2.msra.mxu0 0.0
        %7993 = vmatprep.subr.mxu0 0.0
        %7994 = vmatpush2.msra.mxu0 0.0
        %7995 = vmatprep.mubr.f32.mxu0 0.0
        %7996 = vmatmul.mubr.f32.gmra.mxu0 %v7926
        %v7997 = vpop.f32.mrf.mxu0
        %v7998 = vadd.f32 0.0, %v7997
        %v7999 = vpop.f32.mrf.mxu0
        %8000 = vmatprep.mubr.f32.mxu0 0.0
        %8001 = vmatmul.mubr.f32.gmra.mxu0 %v7929
        %v8002 = vpop.f32.mrf.mxu0
        %v8003 = vadd.f32 0.0, %v8002
        %v8004 = vpop.f32.mrf.mxu0
        %8005 = vdwg.mxu0
        %v8006 = vadd.f32 %v2375, %v7998
        %v8007 = vadd.f32 %v2376, %v8003
        %8008 = vst [vmem:[%s1476] sm:$0xff] %v8006
        %8009 = vst [vmem:[%s1476 + $0x8] sm:$0xff] %v8007
        %p8010 = scmp.lt.s32.totalorder %s102, 1
        %s8011 = scalar_select %p8010, %s102, 1
        %s8012 = smul.addr %s8011, 2
        %s8013 = smul.addr %s8012, 8
        %s8014 = scalar_lea.vmem %s81, %s8013
        // Predicated region
        $region257: #{fwd.1} parent=179 // pred_check
          %p8015 = pneg %p965
        $region258: #{fwd.1} parent=179 // pred_check_branch
          %8017 = sbr.rel (%p8015) target = $region260
        $region259: #{fwd.1} parent=179 // pred_region
          _
        $region260: #{fwd.1} parent=179 // pred_fallthru
          _
      $region180: #{fwd.1} parent=5 // pred_fallthru
        _
      %p8018 = scmp.le.s32.totalorder 2, %s97
      // Predicated region
      $region261: #{fwd.1} parent=5 // pred_check
        %p8019 = pneg %p8018
      $region262: #{fwd.1} parent=5 // pred_check_branch
        %8021 = sbr.rel (%p8019) target = $region264
      $region263: #{fwd.1} parent=5 // pred_region
        %s8022 = ssub.s32 %s97, 2
        // Predicated region
        $region265: #{fwd.1} parent=263 // pred_check
          %p8023 = pneg %p971
        $region266: #{fwd.1} parent=263 // pred_check_branch
          %8025 = sbr.rel (%p8023) target = $region268
        $region267: #{fwd.1} parent=263 // pred_region
          %p8026 = scmp.lt.s32.totalorder %s103, 1
          %s8027 = scalar_select %p8026, %s103, 1
          %s8028 = smul.addr %s8027, 2
          %s8029 = smul.addr %s8028, 8
          %s8030 = scalar_lea.vmem %s81, %s8029
        $region268: #{fwd.1} parent=263 // pred_fallthru
          _
      $region264: #{fwd.1} parent=5 // pred_fallthru
        _
    $region6: #{fwd.1} parent=1 // loop_footer
      %s101 = sadd.s32 1, %s97
    $region7: #{fwd.1} parent=1 // loop_footer_branch
      %96 = sbr.rel target = $region3
    $region8: #{fwd.1} parent=1 // loop_exit
      _
    %8031 = vsyncpa [#allocation3], 1
    %s8032 = scalar_lea.sflag [#allocation3], 1
    %8033 = vsyncpa %s8032, 1
    %8034 = vsyncpa [#allocation5], 1
    %8035 = vsyncpa [#allocation8], 1
    %8036 = vsyncpa [#allocation11], 1
    %8037 = vsyncpa [#allocation14], 1
    %8038 = vsyncpa [#allocation17], 1
    %8039 = vsyncpa [#allocation20], 1
    %8040 = vsyncpa [#allocation23], 1
    %8041 = vsyncpa [#allocation26], 1
    %8042 = vsyncpa [#allocation29], 1

</llo_original>
